<compile_context>
chip_gen: v7x
topology: tpu7x:2x2x1
jax: 0.10.0
libtpu: 0.0.40
codegen_flags: <defaults>
</compile_context>

<pallas_src>
import math
import functools

import jax
import jax.numpy as jnp
from jax.experimental import pallas as pl
from jax.experimental.pallas import tpu as pltpu  # noqa: F401  (imported for TPU backend parity)


# ----------------------------------------------------------------------------
# In-kernel helpers (pure jnp on values already loaded from VMEM refs)
# ----------------------------------------------------------------------------

def _dot(a, b):
    # MXU matmul: bf16 operands, f32 accumulation.
    return jnp.dot(a.astype(jnp.bfloat16), b.astype(jnp.bfloat16),
                   preferred_element_type=jnp.float32)


def _dotT(a, b):
    # a @ b.T (contract last dims) without an explicit transpose op.
    return jax.lax.dot_general(
        a.astype(jnp.bfloat16), b.astype(jnp.bfloat16),
        dimension_numbers=(((1,), (1,)), ((), ())),
        preferred_element_type=jnp.float32)


def _layer_norm(x, g, b, eps=1e-5):
    mu = jnp.mean(x, axis=-1, keepdims=True)
    var = jnp.mean(jnp.square(x - mu), axis=-1, keepdims=True)
    return (x - mu) * jax.lax.rsqrt(var + eps) * g + b


def _softmax_rows(x):
    x = x - jnp.max(x, axis=-1, keepdims=True)
    e = jnp.exp(x)
    return e * pl.reciprocal(jnp.sum(e, axis=-1, keepdims=True), approx=True)


def _mha(q_src, kv_src, mask_bias, w_in, b_in, w_out, b_out, *, num_heads, q_scale):
    """Literal seq-first nn.MultiheadAttention on flattened (L*N, E) operands.

    Rows with equal (row mod N) form one MHA batch element; mask_bias (0 / -1e30,
    precomputed outside) enforces that block structure, so scores/values are dense
    2-D MXU matmuls.  q_scale folds the module's `query / sqrt(E)`; the internal
    1/sqrt(head_dim) is applied on the scores.
    """
    E = q_src.shape[-1]
    dh = E // num_heads
    sm = 1.0 / math.sqrt(dh)
    q = _dot(q_src, w_in[:, :E]) * q_scale + b_in[:, :E]
    k = _dot(kv_src, w_in[:, E:2 * E]) + b_in[:, E:2 * E]
    v = _dot(kv_src, w_in[:, 2 * E:]) + b_in[:, 2 * E:]
    out = b_out                                   # (1, E) broadcasts over rows
    for h in range(num_heads):                    # static unroll, H is small
        sl = slice(h * dh, (h + 1) * dh)
        s = _dotT(q[:, sl], k[:, sl]) * sm + mask_bias
        p = _softmax_rows(s)
        out = out + _dot(_dot(p, v[:, sl]), w_out[sl, :])
    return out


def _ffn(x, w1, b1, w2, b2):
    h = jnp.maximum(_dot(x, w1) + b1, 0.0)
    return _dot(h, w2) + b2


# ----------------------------------------------------------------------------
# Fused per-layer kernels
# ----------------------------------------------------------------------------

def _encoder_layer_kernel(x_ref, mask_ref, ln1g_ref, ln1b_ref,
                          win_ref, bin_ref, wo_ref, bo_ref,
                          ln2g_ref, ln2b_ref, w1_ref, b1_ref, w2_ref, b2_ref,
                          o_ref, *, num_heads, q_scale):
    x = x_ref[...]
    xn = _layer_norm(x, ln1g_ref[...], ln1b_ref[...])
    x = x + _mha(xn, xn, mask_ref[...], win_ref[...], bin_ref[...],
                 wo_ref[...], bo_ref[...], num_heads=num_heads, q_scale=q_scale)
    xn = _layer_norm(x, ln2g_ref[...], ln2b_ref[...])
    x = x + _ffn(xn, w1_ref[...], b1_ref[...], w2_ref[...], b2_ref[...])
    o_ref[...] = x


def _decoder_layer_kernel(x_ref, mem_ref, mask_ref,
                          ln1g_ref, ln1b_ref, sa_win_ref, sa_bin_ref, sa_wo_ref, sa_bo_ref,
                          ln2g_ref, ln2b_ref, ca_win_ref, ca_bin_ref, ca_wo_ref, ca_bo_ref,
                          ln3g_ref, ln3b_ref, w1_ref, b1_ref, w2_ref, b2_ref,
                          pool_ref, fcw_ref, fcb_ref,
                          o_ref, probs_ref, *, num_heads, q_scale):
    x = x_ref[...]
    mem = mem_ref[...]
    mask = mask_ref[...]
    xn = _layer_norm(x, ln1g_ref[...], ln1b_ref[...])
    x = x + _mha(xn, xn, mask, sa_win_ref[...], sa_bin_ref[...],
                 sa_wo_ref[...], sa_bo_ref[...], num_heads=num_heads, q_scale=q_scale)
    xn = _layer_norm(x, ln2g_ref[...], ln2b_ref[...])
    x = x + _mha(xn, mem, mask, ca_win_ref[...], ca_bin_ref[...],
                 ca_wo_ref[...], ca_bo_ref[...], num_heads=num_heads, q_scale=q_scale)
    xn = _layer_norm(x, ln3g_ref[...], ln3b_ref[...])
    x = x + _ffn(xn, w1_ref[...], b1_ref[...], w2_ref[...], b2_ref[...])
    o_ref[...] = x
    # Fused classifier head: mean over seq (via pooling matmul) -> fc -> softmax.
    # Only the value produced by the LAST decoder layer call is consumed.
    pooled = jnp.dot(pool_ref[...], x, preferred_element_type=jnp.float32)      # (B, E)
    logits = jnp.dot(pooled, fcw_ref[...], preferred_element_type=jnp.float32) + fcb_ref[...]
    probs_ref[...] = _softmax_rows(logits)


# ----------------------------------------------------------------------------
# Wrappers (grid-free, whole arrays as single VMEM blocks — everything is tiny)
# ----------------------------------------------------------------------------

def encoder_layer(x2d, mask, p, *, num_heads, q_scale):
    M, E = x2d.shape
    kernel = functools.partial(_encoder_layer_kernel, num_heads=num_heads, q_scale=q_scale)
    return pl.pallas_call(
        kernel,
        out_shape=jax.ShapeDtypeStruct((M, E), jnp.float32),
    )(x2d, mask, p["ln1_g"], p["ln1_b"],
      p["attn_w_in"], p["attn_b_in"], p["attn_w_out"], p["attn_b_out"],
      p["ln2_g"], p["ln2_b"], p["ff_w1"], p["ff_b1"], p["ff_w2"], p["ff_b2"])


def decoder_layer(x2d, mem2d, mask, p, pool_mat, fc_w, fc_b, *, num_heads, q_scale):
    M, E = x2d.shape
    B = pool_mat.shape[0]
    O = fc_w.shape[1]
    kernel = functools.partial(_decoder_layer_kernel, num_heads=num_heads, q_scale=q_scale)
    return pl.pallas_call(
        kernel,
        out_shape=(jax.ShapeDtypeStruct((M, E), jnp.float32),
                   jax.ShapeDtypeStruct((B, O), jnp.float32)),
    )(x2d, mem2d, mask,
      p["ln1_g"], p["ln1_b"],
      p["sa_w_in"], p["sa_b_in"], p["sa_w_out"], p["sa_b_out"],
      p["ln2_g"], p["ln2_b"],
      p["ca_w_in"], p["ca_b_in"], p["ca_w_out"], p["ca_b_out"],
      p["ln3_g"], p["ln3_b"],
      p["ff_w1"], p["ff_b1"], p["ff_w2"], p["ff_b2"],
      pool_mat, fc_w, fc_b)


def _attn_mask_bias(m_rows, m_cols, n):
    # row = l*n + pos, col = s*n + pos'; attention is valid iff pos == pos'.
    r = jnp.arange(m_rows) % n
    c = jnp.arange(m_cols) % n
    return jnp.where(r[:, None] == c[None, :], 0.0, -1e30).astype(jnp.float32)


def transformer_forward(params, src_ids, tgt_ids, *, num_heads, embedding_dim):
    E = embedding_dim
    q_scale = 1.0 / math.sqrt(E)     # the `x_norm / self.scale`, folded into the Q projection
    B, S = src_ids.shape
    _, T = tgt_ids.shape

    # TODO(synk): embedding row-gather + positional-encoding add stay as tiny XLA glue
    # (a PrefetchScalarGridSpec / pl.Element gather kernel is possible but not worth a launch).
    src = jnp.take(params["embed"], src_ids, axis=0) + params["pos_enc"][:S][None]
    tgt = jnp.take(params["embed"], tgt_ids, axis=0) + params["pos_enc"][:T][None]

    src2 = src.reshape(B * S, E)
    tgt2 = tgt.reshape(B * T, E)
    enc_mask = _attn_mask_bias(B * S, B * S, S)
    dec_mask = _attn_mask_bias(B * T, B * T, T)   # self & cross identical (literal MHA => T == S)
    pool_mat = ((jnp.arange(B * T) // T)[None, :] ==
                jnp.arange(B)[:, None]).astype(jnp.float32) / T   # mean over dim=1 (seq)

    mem = src2
    for p in params["enc_layers"]:
        mem = encoder_layer(mem, enc_mask, p, num_heads=num_heads, q_scale=q_scale)

    out = tgt2
    probs = None
    for p in params["dec_layers"]:
        out, probs = decoder_layer(out, mem, dec_mask, p, pool_mat,
                                   params["fc_w"], params["fc_b"],
                                   num_heads=num_heads, q_scale=q_scale)
    return probs                                    # (B, output_dim)


# ----------------------------------------------------------------------------
# Deterministic parameter init (shapes mirror the PyTorch __init__)
# ----------------------------------------------------------------------------

def init_params(key, vocab_size, embedding_dim, num_enc, num_dec, output_dim, max_len=50):
    E = embedding_dim
    keys = iter(jax.random.split(key, 256))

    def nrm(shape, s=0.02):
        return jax.random.normal(next(keys), shape, dtype=jnp.float32) * s

    def mha(prefix):
        in_w = nrm((3 * E, E))          # PyTorch in_proj_weight layout (3E, E)
        out_w = nrm((E, E))
        return {f"{prefix}_w_in": in_w.T,                             # (E, 3E) = [Wq^T|Wk^T|Wv^T]
                f"{prefix}_b_in": jnp.zeros((1, 3 * E), jnp.float32),
                f"{prefix}_w_out": out_w.T,                           # (E, E)
                f"{prefix}_b_out": jnp.zeros((1, E), jnp.float32)}

    def ln(i):
        return {f"ln{i}_g": jnp.ones((1, E), jnp.float32),
                f"ln{i}_b": jnp.zeros((1, E), jnp.float32)}

    def ff():
        return {"ff_w1": nrm((4 * E, E)).T, "ff_b1": jnp.zeros((1, 4 * E), jnp.float32),
                "ff_w2": nrm((E, 4 * E)).T, "ff_b2": jnp.zeros((1, E), jnp.float32)}

    # sinusoidal positional encoding (max_len, E)
    pos = jnp.arange(max_len, dtype=jnp.float32)[:, None]
    div = jnp.exp(jnp.arange(0, E, 2, dtype=jnp.float32) * (-math.log(10000.0) / E))
    pe = jnp.zeros((max_len, E), jnp.float32)
    pe = pe.at[:, 0::2].set(jnp.sin(pos * div))
    pe = pe.at[:, 1::2].set(jnp.cos(pos * div))

    return dict(
        embed=jax.random.normal(next(keys), (vocab_size, E), dtype=jnp.float32),
        pos_enc=pe,
        enc_layers=[{**mha("attn"), **ln(1), **ln(2), **ff()} for _ in range(num_enc)],
        dec_layers=[{**mha("sa"), **mha("ca"), **ln(1), **ln(2), **ln(3), **ff()}
                    for _ in range(num_dec)],
        fc_w=nrm((output_dim, E)).T,                 # (E, output_dim)
        fc_b=jnp.zeros((1, output_dim), jnp.float32),
    )


if __name__ == "__main__":
    vocab_size = 100
    embedding_dim = 32
    num_heads = 4
    hidden_dim = 64          # present in the signature; FF width is 4*embedding_dim as in the module
    num_encoder_layers = 2
    num_decoder_layers = 2
    output_dim = 2
    B, S, T = 2, 8, 8        # literal seq-first MHA convention => cross-attn needs T == S

    key = jax.random.PRNGKey(0)
    pkey, skey, tkey = jax.random.split(key, 3)
    params = init_params(pkey, vocab_size, embedding_dim,
                         num_encoder_layers, num_decoder_layers, output_dim, max_len=50)
    src_ids = jax.random.randint(skey, (B, S), 0, vocab_size)
    tgt_ids = jax.random.randint(tkey, (B, T), 0, vocab_size)

    fwd = jax.jit(functools.partial(transformer_forward,
                                    num_heads=num_heads, embedding_dim=embedding_dim))
    out = fwd(params, src_ids, tgt_ids)
    jax.block_until_ready(out)
    assert out.shape == (B, output_dim)
    assert bool(jnp.all(jnp.isfinite(out)))
    print("KERNEL_OK")
</pallas_src>

<mosaic_0001>
module attributes {stable_mosaic.version = 11 : i64} {
  func.func @_encoder_layer_kernel(%arg0: memref<16x32xf32, #tpu.memory_space<vmem>>, %arg1: memref<16x16xf32, #tpu.memory_space<vmem>>, %arg2: memref<1x32xf32, #tpu.memory_space<vmem>>, %arg3: memref<1x32xf32, #tpu.memory_space<vmem>>, %arg4: memref<32x96xf32, #tpu.memory_space<vmem>>, %arg5: memref<1x96xf32, #tpu.memory_space<vmem>>, %arg6: memref<32x32xf32, #tpu.memory_space<vmem>>, %arg7: memref<1x32xf32, #tpu.memory_space<vmem>>, %arg8: memref<1x32xf32, #tpu.memory_space<vmem>>, %arg9: memref<1x32xf32, #tpu.memory_space<vmem>>, %arg10: memref<32x128xf32, #tpu.memory_space<vmem>>, %arg11: memref<1x128xf32, #tpu.memory_space<vmem>>, %arg12: memref<128x32xf32, #tpu.memory_space<vmem>>, %arg13: memref<1x32xf32, #tpu.memory_space<vmem>>, %arg14: memref<16x32xf32, #tpu.memory_space<vmem>>) attributes {dimension_semantics = [], scalar_prefetch = 0 : i64, scratch_operands = 0 : i64, tpu.core_type = #tpu.core_type<tc>} {
    %c0 = arith.constant 0 : index
    %c0_0 = arith.constant 0 : index
    %0 = vector.load %arg0[%c0, %c0_0] : memref<16x32xf32, #tpu.memory_space<vmem>>, vector<16x32xf32>
    %c0_1 = arith.constant 0 : index
    %c0_2 = arith.constant 0 : index
    %1 = vector.load %arg2[%c0_1, %c0_2] : memref<1x32xf32, #tpu.memory_space<vmem>>, vector<1x32xf32>
    %c0_3 = arith.constant 0 : index
    %c0_4 = arith.constant 0 : index
    %2 = vector.load %arg3[%c0_3, %c0_4] : memref<1x32xf32, #tpu.memory_space<vmem>>, vector<1x32xf32>
    %cst = arith.constant dense<0.000000e+00> : vector<16xf32>
    %3 = vector.multi_reduction <add>, %0, %cst [1] : vector<16x32xf32> to vector<16xf32>
    %4 = vector.shape_cast %3 : vector<16xf32> to vector<16x1xf32>
    %cst_5 = arith.constant 3.200000e+01 : f32
    %5 = vector.broadcast %cst_5 : f32 to vector<16x1xf32>
    %6 = arith.divf %4, %5 : vector<16x1xf32>
    %7 = vector.broadcast %6 : vector<16x1xf32> to vector<16x32xf32>
    %8 = arith.subf %0, %7 : vector<16x32xf32>
    %9 = arith.mulf %8, %8 : vector<16x32xf32>
    %cst_6 = arith.constant dense<0.000000e+00> : vector<16xf32>
    %10 = vector.multi_reduction <add>, %9, %cst_6 [1] : vector<16x32xf32> to vector<16xf32>
    %11 = vector.shape_cast %10 : vector<16xf32> to vector<16x1xf32>
    %cst_7 = arith.constant 3.200000e+01 : f32
    %12 = vector.broadcast %cst_7 : f32 to vector<16x1xf32>
    %13 = arith.divf %11, %12 : vector<16x1xf32>
    %14 = vector.broadcast %6 : vector<16x1xf32> to vector<16x32xf32>
    %15 = arith.subf %0, %14 : vector<16x32xf32>
    %cst_8 = arith.constant 9.99999974E-6 : f32
    %16 = vector.broadcast %cst_8 : f32 to vector<16x1xf32>
    %17 = arith.addf %13, %16 : vector<16x1xf32>
    %18 = math.rsqrt %17 : vector<16x1xf32>
    %19 = vector.broadcast %18 : vector<16x1xf32> to vector<16x32xf32>
    %20 = arith.mulf %15, %19 : vector<16x32xf32>
    %21 = vector.broadcast %1 : vector<1x32xf32> to vector<16x32xf32>
    %22 = arith.mulf %20, %21 : vector<16x32xf32>
    %23 = vector.broadcast %2 : vector<1x32xf32> to vector<16x32xf32>
    %24 = arith.addf %22, %23 : vector<16x32xf32>
    %c0_9 = arith.constant 0 : index
    %c0_10 = arith.constant 0 : index
    %25 = vector.load %arg1[%c0_9, %c0_10] : memref<16x16xf32, #tpu.memory_space<vmem>>, vector<16x16xf32>
    %c0_11 = arith.constant 0 : index
    %c0_12 = arith.constant 0 : index
    %26 = vector.load %arg4[%c0_11, %c0_12] : memref<32x96xf32, #tpu.memory_space<vmem>>, vector<32x96xf32>
    %c0_13 = arith.constant 0 : index
    %c0_14 = arith.constant 0 : index
    %27 = vector.load %arg5[%c0_13, %c0_14] : memref<1x96xf32, #tpu.memory_space<vmem>>, vector<1x96xf32>
    %c0_15 = arith.constant 0 : index
    %c0_16 = arith.constant 0 : index
    %28 = vector.load %arg6[%c0_15, %c0_16] : memref<32x32xf32, #tpu.memory_space<vmem>>, vector<32x32xf32>
    %c0_17 = arith.constant 0 : index
    %c0_18 = arith.constant 0 : index
    %29 = vector.load %arg7[%c0_17, %c0_18] : memref<1x32xf32, #tpu.memory_space<vmem>>, vector<1x32xf32>
    %30 = vector.extract_strided_slice %26 {offsets = [0, 0], sizes = [32, 32], strides = [1, 1]} : vector<32x96xf32> to vector<32x32xf32>
    %31 = arith.truncf %24 : vector<16x32xf32> to vector<16x32xbf16>
    %32 = arith.truncf %30 : vector<32x32xf32> to vector<32x32xbf16>
    %cst_19 = arith.constant dense<0.000000e+00> : vector<16x32xf32>
    %33 = tpu.matmul %31, %32, %cst_19 {dimension_numbers = #tpu.dot_dimension_numbers<[1], [0], [0], [1], [0, 0, 1, 1], [], []>} : vector<16x32xbf16>, vector<32x32xbf16>, vector<16x32xf32> -> vector<16x32xf32>
    %cst_20 = arith.constant 0.176776692 : f32
    %34 = vector.broadcast %cst_20 : f32 to vector<16x32xf32>
    %35 = arith.mulf %33, %34 : vector<16x32xf32>
    %36 = vector.extract_strided_slice %27 {offsets = [0, 0], sizes = [1, 32], strides = [1, 1]} : vector<1x96xf32> to vector<1x32xf32>
    %37 = vector.broadcast %36 : vector<1x32xf32> to vector<16x32xf32>
    %38 = arith.addf %35, %37 : vector<16x32xf32>
    %39 = vector.extract_strided_slice %26 {offsets = [0, 32], sizes = [32, 32], strides = [1, 1]} : vector<32x96xf32> to vector<32x32xf32>
    %40 = arith.truncf %24 : vector<16x32xf32> to vector<16x32xbf16>
    %41 = arith.truncf %39 : vector<32x32xf32> to vector<32x32xbf16>
    %cst_21 = arith.constant dense<0.000000e+00> : vector<16x32xf32>
    %42 = tpu.matmul %40, %41, %cst_21 {dimension_numbers = #tpu.dot_dimension_numbers<[1], [0], [0], [1], [0, 0, 1, 1], [], []>} : vector<16x32xbf16>, vector<32x32xbf16>, vector<16x32xf32> -> vector<16x32xf32>
    %43 = vector.extract_strided_slice %27 {offsets = [0, 32], sizes = [1, 32], strides = [1, 1]} : vector<1x96xf32> to vector<1x32xf32>
    %44 = vector.broadcast %43 : vector<1x32xf32> to vector<16x32xf32>
    %45 = arith.addf %42, %44 : vector<16x32xf32>
    %46 = vector.extract_strided_slice %26 {offsets = [0, 64], sizes = [32, 32], strides = [1, 1]} : vector<32x96xf32> to vector<32x32xf32>
    %47 = arith.truncf %24 : vector<16x32xf32> to vector<16x32xbf16>
    %48 = arith.truncf %46 : vector<32x32xf32> to vector<32x32xbf16>
    %cst_22 = arith.constant dense<0.000000e+00> : vector<16x32xf32>
    %49 = tpu.matmul %47, %48, %cst_22 {dimension_numbers = #tpu.dot_dimension_numbers<[1], [0], [0], [1], [0, 0, 1, 1], [], []>} : vector<16x32xbf16>, vector<32x32xbf16>, vector<16x32xf32> -> vector<16x32xf32>
    %50 = vector.extract_strided_slice %27 {offsets = [0, 64], sizes = [1, 32], strides = [1, 1]} : vector<1x96xf32> to vector<1x32xf32>
    %51 = vector.broadcast %50 : vector<1x32xf32> to vector<16x32xf32>
    %52 = arith.addf %49, %51 : vector<16x32xf32>
    %53 = vector.extract_strided_slice %38 {offsets = [0, 0], sizes = [16, 8], strides = [1, 1]} : vector<16x32xf32> to vector<16x8xf32>
    %54 = vector.extract_strided_slice %45 {offsets = [0, 0], sizes = [16, 8], strides = [1, 1]} : vector<16x32xf32> to vector<16x8xf32>
    %55 = arith.truncf %53 : vector<16x8xf32> to vector<16x8xbf16>
    %56 = arith.truncf %54 : vector<16x8xf32> to vector<16x8xbf16>
    %cst_23 = arith.constant dense<0.000000e+00> : vector<16x16xf32>
    %57 = tpu.matmul %55, %56, %cst_23 {dimension_numbers = #tpu.dot_dimension_numbers<[1], [1], [0], [0], [0, 0, 1, 0], [], []>} : vector<16x8xbf16>, vector<16x8xbf16>, vector<16x16xf32> -> vector<16x16xf32>
    %cst_24 = arith.constant 0.353553385 : f32
    %58 = vector.broadcast %cst_24 : f32 to vector<16x16xf32>
    %59 = arith.mulf %57, %58 : vector<16x16xf32>
    %60 = arith.addf %59, %25 : vector<16x16xf32>
    %cst_25 = arith.constant dense<0xFF800000> : vector<16xf32>
    %61 = vector.multi_reduction <maximumf>, %60, %cst_25 [1] : vector<16x16xf32> to vector<16xf32>
    %62 = vector.shape_cast %61 : vector<16xf32> to vector<16x1xf32>
    %63 = vector.broadcast %62 : vector<16x1xf32> to vector<16x16xf32>
    %64 = arith.subf %60, %63 : vector<16x16xf32>
    %65 = math.exp %64 : vector<16x16xf32>
    %cst_26 = arith.constant dense<0.000000e+00> : vector<16xf32>
    %66 = vector.multi_reduction <add>, %65, %cst_26 [1] : vector<16x16xf32> to vector<16xf32>
    %67 = vector.shape_cast %66 : vector<16xf32> to vector<16x1xf32>
    %68 = tpu.reciprocal %67 {approx = true} : vector<16x1xf32> -> vector<16x1xf32>
    %69 = vector.broadcast %68 : vector<16x1xf32> to vector<16x16xf32>
    %70 = arith.mulf %65, %69 : vector<16x16xf32>
    %71 = vector.extract_strided_slice %52 {offsets = [0, 0], sizes = [16, 8], strides = [1, 1]} : vector<16x32xf32> to vector<16x8xf32>
    %72 = arith.truncf %70 : vector<16x16xf32> to vector<16x16xbf16>
    %73 = arith.truncf %71 : vector<16x8xf32> to vector<16x8xbf16>
    %cst_27 = arith.constant dense<0.000000e+00> : vector<16x8xf32>
    %74 = tpu.matmul %72, %73, %cst_27 {dimension_numbers = #tpu.dot_dimension_numbers<[1], [0], [0], [1], [0, 0, 1, 1], [], []>} : vector<16x16xbf16>, vector<16x8xbf16>, vector<16x8xf32> -> vector<16x8xf32>
    %75 = vector.extract_strided_slice %28 {offsets = [0, 0], sizes = [8, 32], strides = [1, 1]} : vector<32x32xf32> to vector<8x32xf32>
    %76 = arith.truncf %74 : vector<16x8xf32> to vector<16x8xbf16>
    %77 = arith.truncf %75 : vector<8x32xf32> to vector<8x32xbf16>
    %cst_28 = arith.constant dense<0.000000e+00> : vector<16x32xf32>
    %78 = tpu.matmul %76, %77, %cst_28 {dimension_numbers = #tpu.dot_dimension_numbers<[1], [0], [0], [1], [0, 0, 1, 1], [], []>} : vector<16x8xbf16>, vector<8x32xbf16>, vector<16x32xf32> -> vector<16x32xf32>
    %79 = vector.broadcast %29 : vector<1x32xf32> to vector<16x32xf32>
    %80 = arith.addf %79, %78 : vector<16x32xf32>
    %81 = vector.extract_strided_slice %38 {offsets = [0, 8], sizes = [16, 8], strides = [1, 1]} : vector<16x32xf32> to vector<16x8xf32>
    %82 = vector.extract_strided_slice %45 {offsets = [0, 8], sizes = [16, 8], strides = [1, 1]} : vector<16x32xf32> to vector<16x8xf32>
    %83 = arith.truncf %81 : vector<16x8xf32> to vector<16x8xbf16>
    %84 = arith.truncf %82 : vector<16x8xf32> to vector<16x8xbf16>
    %cst_29 = arith.constant dense<0.000000e+00> : vector<16x16xf32>
    %85 = tpu.matmul %83, %84, %cst_29 {dimension_numbers = #tpu.dot_dimension_numbers<[1], [1], [0], [0], [0, 0, 1, 0], [], []>} : vector<16x8xbf16>, vector<16x8xbf16>, vector<16x16xf32> -> vector<16x16xf32>
    %cst_30 = arith.constant 0.353553385 : f32
    %86 = vector.broadcast %cst_30 : f32 to vector<16x16xf32>
    %87 = arith.mulf %85, %86 : vector<16x16xf32>
    %88 = arith.addf %87, %25 : vector<16x16xf32>
    %cst_31 = arith.constant dense<0xFF800000> : vector<16xf32>
    %89 = vector.multi_reduction <maximumf>, %88, %cst_31 [1] : vector<16x16xf32> to vector<16xf32>
    %90 = vector.shape_cast %89 : vector<16xf32> to vector<16x1xf32>
    %91 = vector.broadcast %90 : vector<16x1xf32> to vector<16x16xf32>
    %92 = arith.subf %88, %91 : vector<16x16xf32>
    %93 = math.exp %92 : vector<16x16xf32>
    %cst_32 = arith.constant dense<0.000000e+00> : vector<16xf32>
    %94 = vector.multi_reduction <add>, %93, %cst_32 [1] : vector<16x16xf32> to vector<16xf32>
    %95 = vector.shape_cast %94 : vector<16xf32> to vector<16x1xf32>
    %96 = tpu.reciprocal %95 {approx = true} : vector<16x1xf32> -> vector<16x1xf32>
    %97 = vector.broadcast %96 : vector<16x1xf32> to vector<16x16xf32>
    %98 = arith.mulf %93, %97 : vector<16x16xf32>
    %99 = vector.extract_strided_slice %52 {offsets = [0, 8], sizes = [16, 8], strides = [1, 1]} : vector<16x32xf32> to vector<16x8xf32>
    %100 = arith.truncf %98 : vector<16x16xf32> to vector<16x16xbf16>
    %101 = arith.truncf %99 : vector<16x8xf32> to vector<16x8xbf16>
    %cst_33 = arith.constant dense<0.000000e+00> : vector<16x8xf32>
    %102 = tpu.matmul %100, %101, %cst_33 {dimension_numbers = #tpu.dot_dimension_numbers<[1], [0], [0], [1], [0, 0, 1, 1], [], []>} : vector<16x16xbf16>, vector<16x8xbf16>, vector<16x8xf32> -> vector<16x8xf32>
    %103 = vector.extract_strided_slice %28 {offsets = [8, 0], sizes = [8, 32], strides = [1, 1]} : vector<32x32xf32> to vector<8x32xf32>
    %104 = arith.truncf %102 : vector<16x8xf32> to vector<16x8xbf16>
    %105 = arith.truncf %103 : vector<8x32xf32> to vector<8x32xbf16>
    %cst_34 = arith.constant dense<0.000000e+00> : vector<16x32xf32>
    %106 = tpu.matmul %104, %105, %cst_34 {dimension_numbers = #tpu.dot_dimension_numbers<[1], [0], [0], [1], [0, 0, 1, 1], [], []>} : vector<16x8xbf16>, vector<8x32xbf16>, vector<16x32xf32> -> vector<16x32xf32>
    %107 = arith.addf %80, %106 : vector<16x32xf32>
    %108 = vector.extract_strided_slice %38 {offsets = [0, 16], sizes = [16, 8], strides = [1, 1]} : vector<16x32xf32> to vector<16x8xf32>
    %109 = vector.extract_strided_slice %45 {offsets = [0, 16], sizes = [16, 8], strides = [1, 1]} : vector<16x32xf32> to vector<16x8xf32>
    %110 = arith.truncf %108 : vector<16x8xf32> to vector<16x8xbf16>
    %111 = arith.truncf %109 : vector<16x8xf32> to vector<16x8xbf16>
    %cst_35 = arith.constant dense<0.000000e+00> : vector<16x16xf32>
    %112 = tpu.matmul %110, %111, %cst_35 {dimension_numbers = #tpu.dot_dimension_numbers<[1], [1], [0], [0], [0, 0, 1, 0], [], []>} : vector<16x8xbf16>, vector<16x8xbf16>, vector<16x16xf32> -> vector<16x16xf32>
    %cst_36 = arith.constant 0.353553385 : f32
    %113 = vector.broadcast %cst_36 : f32 to vector<16x16xf32>
    %114 = arith.mulf %112, %113 : vector<16x16xf32>
    %115 = arith.addf %114, %25 : vector<16x16xf32>
    %cst_37 = arith.constant dense<0xFF800000> : vector<16xf32>
    %116 = vector.multi_reduction <maximumf>, %115, %cst_37 [1] : vector<16x16xf32> to vector<16xf32>
    %117 = vector.shape_cast %116 : vector<16xf32> to vector<16x1xf32>
    %118 = vector.broadcast %117 : vector<16x1xf32> to vector<16x16xf32>
    %119 = arith.subf %115, %118 : vector<16x16xf32>
    %120 = math.exp %119 : vector<16x16xf32>
    %cst_38 = arith.constant dense<0.000000e+00> : vector<16xf32>
    %121 = vector.multi_reduction <add>, %120, %cst_38 [1] : vector<16x16xf32> to vector<16xf32>
    %122 = vector.shape_cast %121 : vector<16xf32> to vector<16x1xf32>
    %123 = tpu.reciprocal %122 {approx = true} : vector<16x1xf32> -> vector<16x1xf32>
    %124 = vector.broadcast %123 : vector<16x1xf32> to vector<16x16xf32>
    %125 = arith.mulf %120, %124 : vector<16x16xf32>
    %126 = vector.extract_strided_slice %52 {offsets = [0, 16], sizes = [16, 8], strides = [1, 1]} : vector<16x32xf32> to vector<16x8xf32>
    %127 = arith.truncf %125 : vector<16x16xf32> to vector<16x16xbf16>
    %128 = arith.truncf %126 : vector<16x8xf32> to vector<16x8xbf16>
    %cst_39 = arith.constant dense<0.000000e+00> : vector<16x8xf32>
    %129 = tpu.matmul %127, %128, %cst_39 {dimension_numbers = #tpu.dot_dimension_numbers<[1], [0], [0], [1], [0, 0, 1, 1], [], []>} : vector<16x16xbf16>, vector<16x8xbf16>, vector<16x8xf32> -> vector<16x8xf32>
    %130 = vector.extract_strided_slice %28 {offsets = [16, 0], sizes = [8, 32], strides = [1, 1]} : vector<32x32xf32> to vector<8x32xf32>
    %131 = arith.truncf %129 : vector<16x8xf32> to vector<16x8xbf16>
    %132 = arith.truncf %130 : vector<8x32xf32> to vector<8x32xbf16>
    %cst_40 = arith.constant dense<0.000000e+00> : vector<16x32xf32>
    %133 = tpu.matmul %131, %132, %cst_40 {dimension_numbers = #tpu.dot_dimension_numbers<[1], [0], [0], [1], [0, 0, 1, 1], [], []>} : vector<16x8xbf16>, vector<8x32xbf16>, vector<16x32xf32> -> vector<16x32xf32>
    %134 = arith.addf %107, %133 : vector<16x32xf32>
    %135 = vector.extract_strided_slice %38 {offsets = [0, 24], sizes = [16, 8], strides = [1, 1]} : vector<16x32xf32> to vector<16x8xf32>
    %136 = vector.extract_strided_slice %45 {offsets = [0, 24], sizes = [16, 8], strides = [1, 1]} : vector<16x32xf32> to vector<16x8xf32>
    %137 = arith.truncf %135 : vector<16x8xf32> to vector<16x8xbf16>
    %138 = arith.truncf %136 : vector<16x8xf32> to vector<16x8xbf16>
    %cst_41 = arith.constant dense<0.000000e+00> : vector<16x16xf32>
    %139 = tpu.matmul %137, %138, %cst_41 {dimension_numbers = #tpu.dot_dimension_numbers<[1], [1], [0], [0], [0, 0, 1, 0], [], []>} : vector<16x8xbf16>, vector<16x8xbf16>, vector<16x16xf32> -> vector<16x16xf32>
    %cst_42 = arith.constant 0.353553385 : f32
    %140 = vector.broadcast %cst_42 : f32 to vector<16x16xf32>
    %141 = arith.mulf %139, %140 : vector<16x16xf32>
    %142 = arith.addf %141, %25 : vector<16x16xf32>
    %cst_43 = arith.constant dense<0xFF800000> : vector<16xf32>
    %143 = vector.multi_reduction <maximumf>, %142, %cst_43 [1] : vector<16x16xf32> to vector<16xf32>
    %144 = vector.shape_cast %143 : vector<16xf32> to vector<16x1xf32>
    %145 = vector.broadcast %144 : vector<16x1xf32> to vector<16x16xf32>
    %146 = arith.subf %142, %145 : vector<16x16xf32>
    %147 = math.exp %146 : vector<16x16xf32>
    %cst_44 = arith.constant dense<0.000000e+00> : vector<16xf32>
    %148 = vector.multi_reduction <add>, %147, %cst_44 [1] : vector<16x16xf32> to vector<16xf32>
    %149 = vector.shape_cast %148 : vector<16xf32> to vector<16x1xf32>
    %150 = tpu.reciprocal %149 {approx = true} : vector<16x1xf32> -> vector<16x1xf32>
    %151 = vector.broadcast %150 : vector<16x1xf32> to vector<16x16xf32>
    %152 = arith.mulf %147, %151 : vector<16x16xf32>
    %153 = vector.extract_strided_slice %52 {offsets = [0, 24], sizes = [16, 8], strides = [1, 1]} : vector<16x32xf32> to vector<16x8xf32>
    %154 = arith.truncf %152 : vector<16x16xf32> to vector<16x16xbf16>
    %155 = arith.truncf %153 : vector<16x8xf32> to vector<16x8xbf16>
    %cst_45 = arith.constant dense<0.000000e+00> : vector<16x8xf32>
    %156 = tpu.matmul %154, %155, %cst_45 {dimension_numbers = #tpu.dot_dimension_numbers<[1], [0], [0], [1], [0, 0, 1, 1], [], []>} : vector<16x16xbf16>, vector<16x8xbf16>, vector<16x8xf32> -> vector<16x8xf32>
    %157 = vector.extract_strided_slice %28 {offsets = [24, 0], sizes = [8, 32], strides = [1, 1]} : vector<32x32xf32> to vector<8x32xf32>
    %158 = arith.truncf %156 : vector<16x8xf32> to vector<16x8xbf16>
    %159 = arith.truncf %157 : vector<8x32xf32> to vector<8x32xbf16>
    %cst_46 = arith.constant dense<0.000000e+00> : vector<16x32xf32>
    %160 = tpu.matmul %158, %159, %cst_46 {dimension_numbers = #tpu.dot_dimension_numbers<[1], [0], [0], [1], [0, 0, 1, 1], [], []>} : vector<16x8xbf16>, vector<8x32xbf16>, vector<16x32xf32> -> vector<16x32xf32>
    %161 = arith.addf %134, %160 : vector<16x32xf32>
    %162 = arith.addf %0, %161 : vector<16x32xf32>
    %c0_47 = arith.constant 0 : index
    %c0_48 = arith.constant 0 : index
    %163 = vector.load %arg8[%c0_47, %c0_48] : memref<1x32xf32, #tpu.memory_space<vmem>>, vector<1x32xf32>
    %c0_49 = arith.constant 0 : index
    %c0_50 = arith.constant 0 : index
    %164 = vector.load %arg9[%c0_49, %c0_50] : memref<1x32xf32, #tpu.memory_space<vmem>>, vector<1x32xf32>
    %cst_51 = arith.constant dense<0.000000e+00> : vector<16xf32>
    %165 = vector.multi_reduction <add>, %162, %cst_51 [1] : vector<16x32xf32> to vector<16xf32>
    %166 = vector.shape_cast %165 : vector<16xf32> to vector<16x1xf32>
    %cst_52 = arith.constant 3.200000e+01 : f32
    %167 = vector.broadcast %cst_52 : f32 to vector<16x1xf32>
    %168 = arith.divf %166, %167 : vector<16x1xf32>
    %169 = vector.broadcast %168 : vector<16x1xf32> to vector<16x32xf32>
    %170 = arith.subf %162, %169 : vector<16x32xf32>
    %171 = arith.mulf %170, %170 : vector<16x32xf32>
    %cst_53 = arith.constant dense<0.000000e+00> : vector<16xf32>
    %172 = vector.multi_reduction <add>, %171, %cst_53 [1] : vector<16x32xf32> to vector<16xf32>
    %173 = vector.shape_cast %172 : vector<16xf32> to vector<16x1xf32>
    %cst_54 = arith.constant 3.200000e+01 : f32
    %174 = vector.broadcast %cst_54 : f32 to vector<16x1xf32>
    %175 = arith.divf %173, %174 : vector<16x1xf32>
    %176 = vector.broadcast %168 : vector<16x1xf32> to vector<16x32xf32>
    %177 = arith.subf %162, %176 : vector<16x32xf32>
    %cst_55 = arith.constant 9.99999974E-6 : f32
    %178 = vector.broadcast %cst_55 : f32 to vector<16x1xf32>
    %179 = arith.addf %175, %178 : vector<16x1xf32>
    %180 = math.rsqrt %179 : vector<16x1xf32>
    %181 = vector.broadcast %180 : vector<16x1xf32> to vector<16x32xf32>
    %182 = arith.mulf %177, %181 : vector<16x32xf32>
    %183 = vector.broadcast %163 : vector<1x32xf32> to vector<16x32xf32>
    %184 = arith.mulf %182, %183 : vector<16x32xf32>
    %185 = vector.broadcast %164 : vector<1x32xf32> to vector<16x32xf32>
    %186 = arith.addf %184, %185 : vector<16x32xf32>
    %c0_56 = arith.constant 0 : index
    %c0_57 = arith.constant 0 : index
    %187 = vector.load %arg10[%c0_56, %c0_57] : memref<32x128xf32, #tpu.memory_space<vmem>>, vector<32x128xf32>
    %c0_58 = arith.constant 0 : index
    %c0_59 = arith.constant 0 : index
    %188 = vector.load %arg11[%c0_58, %c0_59] : memref<1x128xf32, #tpu.memory_space<vmem>>, vector<1x128xf32>
    %c0_60 = arith.constant 0 : index
    %c0_61 = arith.constant 0 : index
    %189 = vector.load %arg12[%c0_60, %c0_61] : memref<128x32xf32, #tpu.memory_space<vmem>>, vector<128x32xf32>
    %c0_62 = arith.constant 0 : index
    %c0_63 = arith.constant 0 : index
    %190 = vector.load %arg13[%c0_62, %c0_63] : memref<1x32xf32, #tpu.memory_space<vmem>>, vector<1x32xf32>
    %191 = arith.truncf %186 : vector<16x32xf32> to vector<16x32xbf16>
    %192 = arith.truncf %187 : vector<32x128xf32> to vector<32x128xbf16>
    %cst_64 = arith.constant dense<0.000000e+00> : vector<16x128xf32>
    %193 = tpu.matmul %191, %192, %cst_64 {dimension_numbers = #tpu.dot_dimension_numbers<[1], [0], [0], [1], [0, 0, 1, 1], [], []>} : vector<16x32xbf16>, vector<32x128xbf16>, vector<16x128xf32> -> vector<16x128xf32>
    %194 = vector.broadcast %188 : vector<1x128xf32> to vector<16x128xf32>
    %195 = arith.addf %193, %194 : vector<16x128xf32>
    %cst_65 = arith.constant 0.000000e+00 : f32
    %196 = vector.broadcast %cst_65 : f32 to vector<16x128xf32>
    %197 = arith.maximumf %195, %196 : vector<16x128xf32>
    %198 = arith.truncf %197 : vector<16x128xf32> to vector<16x128xbf16>
    %199 = arith.truncf %189 : vector<128x32xf32> to vector<128x32xbf16>
    %cst_66 = arith.constant dense<0.000000e+00> : vector<16x32xf32>
    %200 = tpu.matmul %198, %199, %cst_66 {dimension_numbers = #tpu.dot_dimension_numbers<[1], [0], [0], [1], [0, 0, 1, 1], [], []>} : vector<16x128xbf16>, vector<128x32xbf16>, vector<16x32xf32> -> vector<16x32xf32>
    %201 = vector.broadcast %190 : vector<1x32xf32> to vector<16x32xf32>
    %202 = arith.addf %200, %201 : vector<16x32xf32>
    %203 = arith.addf %162, %202 : vector<16x32xf32>
    %c0_67 = arith.constant 0 : index
    %c0_68 = arith.constant 0 : index
    %204 = vector.load %arg14[%c0_67, %c0_68] : memref<16x32xf32, #tpu.memory_space<vmem>>, vector<16x32xf32>
    tpu.vector_store %arg14[%c0_67, %c0_68], %203 {strides = array<i32>} : memref<16x32xf32, #tpu.memory_space<vmem>>, vector<16x32xf32>,
    return
  }
}

module attributes {stable_mosaic.version = 11 : i64} {
  func.func @_decoder_layer_kernel(%arg0: memref<16x32xf32, #tpu.memory_space<vmem>>, %arg1: memref<16x32xf32, #tpu.memory_space<vmem>>, %arg2: memref<16x16xf32, #tpu.memory_space<vmem>>, %arg3: memref<1x32xf32, #tpu.memory_space<vmem>>, %arg4: memref<1x32xf32, #tpu.memory_space<vmem>>, %arg5: memref<32x96xf32, #tpu.memory_space<vmem>>, %arg6: memref<1x96xf32, #tpu.memory_space<vmem>>, %arg7: memref<32x32xf32, #tpu.memory_space<vmem>>, %arg8: memref<1x32xf32, #tpu.memory_space<vmem>>, %arg9: memref<1x32xf32, #tpu.memory_space<vmem>>, %arg10: memref<1x32xf32, #tpu.memory_space<vmem>>, %arg11: memref<32x96xf32, #tpu.memory_space<vmem>>, %arg12: memref<1x96xf32, #tpu.memory_space<vmem>>, %arg13: memref<32x32xf32, #tpu.memory_space<vmem>>, %arg14: memref<1x32xf32, #tpu.memory_space<vmem>>, %arg15: memref<1x32xf32, #tpu.memory_space<vmem>>, %arg16: memref<1x32xf32, #tpu.memory_space<vmem>>, %arg17: memref<32x128xf32, #tpu.memory_space<vmem>>, %arg18: memref<1x128xf32, #tpu.memory_space<vmem>>, %arg19: memref<128x32xf32, #tpu.memory_space<vmem>>, %arg20: memref<1x32xf32, #tpu.memory_space<vmem>>, %arg21: memref<2x16xf32, #tpu.memory_space<vmem>>, %arg22: memref<32x2xf32, #tpu.memory_space<vmem>>, %arg23: memref<1x2xf32, #tpu.memory_space<vmem>>, %arg24: memref<16x32xf32, #tpu.memory_space<vmem>>, %arg25: memref<2x2xf32, #tpu.memory_space<vmem>>) attributes {dimension_semantics = [], scalar_prefetch = 0 : i64, scratch_operands = 0 : i64, tpu.core_type = #tpu.core_type<tc>} {
    %c0 = arith.constant 0 : index
    %c0_0 = arith.constant 0 : index
    %0 = vector.load %arg0[%c0, %c0_0] : memref<16x32xf32, #tpu.memory_space<vmem>>, vector<16x32xf32>
    %c0_1 = arith.constant 0 : index
    %c0_2 = arith.constant 0 : index
    %1 = vector.load %arg1[%c0_1, %c0_2] : memref<16x32xf32, #tpu.memory_space<vmem>>, vector<16x32xf32>
    %c0_3 = arith.constant 0 : index
    %c0_4 = arith.constant 0 : index
    %2 = vector.load %arg2[%c0_3, %c0_4] : memref<16x16xf32, #tpu.memory_space<vmem>>, vector<16x16xf32>
    %c0_5 = arith.constant 0 : index
    %c0_6 = arith.constant 0 : index
    %3 = vector.load %arg3[%c0_5, %c0_6] : memref<1x32xf32, #tpu.memory_space<vmem>>, vector<1x32xf32>
    %c0_7 = arith.constant 0 : index
    %c0_8 = arith.constant 0 : index
    %4 = vector.load %arg4[%c0_7, %c0_8] : memref<1x32xf32, #tpu.memory_space<vmem>>, vector<1x32xf32>
    %cst = arith.constant dense<0.000000e+00> : vector<16xf32>
    %5 = vector.multi_reduction <add>, %0, %cst [1] : vector<16x32xf32> to vector<16xf32>
    %6 = vector.shape_cast %5 : vector<16xf32> to vector<16x1xf32>
    %cst_9 = arith.constant 3.200000e+01 : f32
    %7 = vector.broadcast %cst_9 : f32 to vector<16x1xf32>
    %8 = arith.divf %6, %7 : vector<16x1xf32>
    %9 = vector.broadcast %8 : vector<16x1xf32> to vector<16x32xf32>
    %10 = arith.subf %0, %9 : vector<16x32xf32>
    %11 = arith.mulf %10, %10 : vector<16x32xf32>
    %cst_10 = arith.constant dense<0.000000e+00> : vector<16xf32>
    %12 = vector.multi_reduction <add>, %11, %cst_10 [1] : vector<16x32xf32> to vector<16xf32>
    %13 = vector.shape_cast %12 : vector<16xf32> to vector<16x1xf32>
    %cst_11 = arith.constant 3.200000e+01 : f32
    %14 = vector.broadcast %cst_11 : f32 to vector<16x1xf32>
    %15 = arith.divf %13, %14 : vector<16x1xf32>
    %16 = vector.broadcast %8 : vector<16x1xf32> to vector<16x32xf32>
    %17 = arith.subf %0, %16 : vector<16x32xf32>
    %cst_12 = arith.constant 9.99999974E-6 : f32
    %18 = vector.broadcast %cst_12 : f32 to vector<16x1xf32>
    %19 = arith.addf %15, %18 : vector<16x1xf32>
    %20 = math.rsqrt %19 : vector<16x1xf32>
    %21 = vector.broadcast %20 : vector<16x1xf32> to vector<16x32xf32>
    %22 = arith.mulf %17, %21 : vector<16x32xf32>
    %23 = vector.broadcast %3 : vector<1x32xf32> to vector<16x32xf32>
    %24 = arith.mulf %22, %23 : vector<16x32xf32>
    %25 = vector.broadcast %4 : vector<1x32xf32> to vector<16x32xf32>
    %26 = arith.addf %24, %25 : vector<16x32xf32>
    %c0_13 = arith.constant 0 : index
    %c0_14 = arith.constant 0 : index
    %27 = vector.load %arg5[%c0_13, %c0_14] : memref<32x96xf32, #tpu.memory_space<vmem>>, vector<32x96xf32>
    %c0_15 = arith.constant 0 : index
    %c0_16 = arith.constant 0 : index
    %28 = vector.load %arg6[%c0_15, %c0_16] : memref<1x96xf32, #tpu.memory_space<vmem>>, vector<1x96xf32>
    %c0_17 = arith.constant 0 : index
    %c0_18 = arith.constant 0 : index
    %29 = vector.load %arg7[%c0_17, %c0_18] : memref<32x32xf32, #tpu.memory_space<vmem>>, vector<32x32xf32>
    %c0_19 = arith.constant 0 : index
    %c0_20 = arith.constant 0 : index
    %30 = vector.load %arg8[%c0_19, %c0_20] : memref<1x32xf32, #tpu.memory_space<vmem>>, vector<1x32xf32>
    %31 = vector.extract_strided_slice %27 {offsets = [0, 0], sizes = [32, 32], strides = [1, 1]} : vector<32x96xf32> to vector<32x32xf32>
    %32 = arith.truncf %26 : vector<16x32xf32> to vector<16x32xbf16>
    %33 = arith.truncf %31 : vector<32x32xf32> to vector<32x32xbf16>
    %cst_21 = arith.constant dense<0.000000e+00> : vector<16x32xf32>
    %34 = tpu.matmul %32, %33, %cst_21 {dimension_numbers = #tpu.dot_dimension_numbers<[1], [0], [0], [1], [0, 0, 1, 1], [], []>} : vector<16x32xbf16>, vector<32x32xbf16>, vector<16x32xf32> -> vector<16x32xf32>
    %cst_22 = arith.constant 0.176776692 : f32
    %35 = vector.broadcast %cst_22 : f32 to vector<16x32xf32>
    %36 = arith.mulf %34, %35 : vector<16x32xf32>
    %37 = vector.extract_strided_slice %28 {offsets = [0, 0], sizes = [1, 32], strides = [1, 1]} : vector<1x96xf32> to vector<1x32xf32>
    %38 = vector.broadcast %37 : vector<1x32xf32> to vector<16x32xf32>
    %39 = arith.addf %36, %38 : vector<16x32xf32>
    %40 = vector.extract_strided_slice %27 {offsets = [0, 32], sizes = [32, 32], strides = [1, 1]} : vector<32x96xf32> to vector<32x32xf32>
    %41 = arith.truncf %26 : vector<16x32xf32> to vector<16x32xbf16>
    %42 = arith.truncf %40 : vector<32x32xf32> to vector<32x32xbf16>
    %cst_23 = arith.constant dense<0.000000e+00> : vector<16x32xf32>
    %43 = tpu.matmul %41, %42, %cst_23 {dimension_numbers = #tpu.dot_dimension_numbers<[1], [0], [0], [1], [0, 0, 1, 1], [], []>} : vector<16x32xbf16>, vector<32x32xbf16>, vector<16x32xf32> -> vector<16x32xf32>
    %44 = vector.extract_strided_slice %28 {offsets = [0, 32], sizes = [1, 32], strides = [1, 1]} : vector<1x96xf32> to vector<1x32xf32>
    %45 = vector.broadcast %44 : vector<1x32xf32> to vector<16x32xf32>
    %46 = arith.addf %43, %45 : vector<16x32xf32>
    %47 = vector.extract_strided_slice %27 {offsets = [0, 64], sizes = [32, 32], strides = [1, 1]} : vector<32x96xf32> to vector<32x32xf32>
    %48 = arith.truncf %26 : vector<16x32xf32> to vector<16x32xbf16>
    %49 = arith.truncf %47 : vector<32x32xf32> to vector<32x32xbf16>
    %cst_24 = arith.constant dense<0.000000e+00> : vector<16x32xf32>
    %50 = tpu.matmul %48, %49, %cst_24 {dimension_numbers = #tpu.dot_dimension_numbers<[1], [0], [0], [1], [0, 0, 1, 1], [], []>} : vector<16x32xbf16>, vector<32x32xbf16>, vector<16x32xf32> -> vector<16x32xf32>
    %51 = vector.extract_strided_slice %28 {offsets = [0, 64], sizes = [1, 32], strides = [1, 1]} : vector<1x96xf32> to vector<1x32xf32>
    %52 = vector.broadcast %51 : vector<1x32xf32> to vector<16x32xf32>
    %53 = arith.addf %50, %52 : vector<16x32xf32>
    %54 = vector.extract_strided_slice %39 {offsets = [0, 0], sizes = [16, 8], strides = [1, 1]} : vector<16x32xf32> to vector<16x8xf32>
    %55 = vector.extract_strided_slice %46 {offsets = [0, 0], sizes = [16, 8], strides = [1, 1]} : vector<16x32xf32> to vector<16x8xf32>
    %56 = arith.truncf %54 : vector<16x8xf32> to vector<16x8xbf16>
    %57 = arith.truncf %55 : vector<16x8xf32> to vector<16x8xbf16>
    %cst_25 = arith.constant dense<0.000000e+00> : vector<16x16xf32>
    %58 = tpu.matmul %56, %57, %cst_25 {dimension_numbers = #tpu.dot_dimension_numbers<[1], [1], [0], [0], [0, 0, 1, 0], [], []>} : vector<16x8xbf16>, vector<16x8xbf16>, vector<16x16xf32> -> vector<16x16xf32>
    %cst_26 = arith.constant 0.353553385 : f32
    %59 = vector.broadcast %cst_26 : f32 to vector<16x16xf32>
    %60 = arith.mulf %58, %59 : vector<16x16xf32>
    %61 = arith.addf %60, %2 : vector<16x16xf32>
    %cst_27 = arith.constant dense<0xFF800000> : vector<16xf32>
    %62 = vector.multi_reduction <maximumf>, %61, %cst_27 [1] : vector<16x16xf32> to vector<16xf32>
    %63 = vector.shape_cast %62 : vector<16xf32> to vector<16x1xf32>
    %64 = vector.broadcast %63 : vector<16x1xf32> to vector<16x16xf32>
    %65 = arith.subf %61, %64 : vector<16x16xf32>
    %66 = math.exp %65 : vector<16x16xf32>
    %cst_28 = arith.constant dense<0.000000e+00> : vector<16xf32>
    %67 = vector.multi_reduction <add>, %66, %cst_28 [1] : vector<16x16xf32> to vector<16xf32>
    %68 = vector.shape_cast %67 : vector<16xf32> to vector<16x1xf32>
    %69 = tpu.reciprocal %68 {approx = true} : vector<16x1xf32> -> vector<16x1xf32>
    %70 = vector.broadcast %69 : vector<16x1xf32> to vector<16x16xf32>
    %71 = arith.mulf %66, %70 : vector<16x16xf32>
    %72 = vector.extract_strided_slice %53 {offsets = [0, 0], sizes = [16, 8], strides = [1, 1]} : vector<16x32xf32> to vector<16x8xf32>
    %73 = arith.truncf %71 : vector<16x16xf32> to vector<16x16xbf16>
    %74 = arith.truncf %72 : vector<16x8xf32> to vector<16x8xbf16>
    %cst_29 = arith.constant dense<0.000000e+00> : vector<16x8xf32>
    %75 = tpu.matmul %73, %74, %cst_29 {dimension_numbers = #tpu.dot_dimension_numbers<[1], [0], [0], [1], [0, 0, 1, 1], [], []>} : vector<16x16xbf16>, vector<16x8xbf16>, vector<16x8xf32> -> vector<16x8xf32>
    %76 = vector.extract_strided_slice %29 {offsets = [0, 0], sizes = [8, 32], strides = [1, 1]} : vector<32x32xf32> to vector<8x32xf32>
    %77 = arith.truncf %75 : vector<16x8xf32> to vector<16x8xbf16>
    %78 = arith.truncf %76 : vector<8x32xf32> to vector<8x32xbf16>
    %cst_30 = arith.constant dense<0.000000e+00> : vector<16x32xf32>
    %79 = tpu.matmul %77, %78, %cst_30 {dimension_numbers = #tpu.dot_dimension_numbers<[1], [0], [0], [1], [0, 0, 1, 1], [], []>} : vector<16x8xbf16>, vector<8x32xbf16>, vector<16x32xf32> -> vector<16x32xf32>
    %80 = vector.broadcast %30 : vector<1x32xf32> to vector<16x32xf32>
    %81 = arith.addf %80, %79 : vector<16x32xf32>
    %82 = vector.extract_strided_slice %39 {offsets = [0, 8], sizes = [16, 8], strides = [1, 1]} : vector<16x32xf32> to vector<16x8xf32>
    %83 = vector.extract_strided_slice %46 {offsets = [0, 8], sizes = [16, 8], strides = [1, 1]} : vector<16x32xf32> to vector<16x8xf32>
    %84 = arith.truncf %82 : vector<16x8xf32> to vector<16x8xbf16>
    %85 = arith.truncf %83 : vector<16x8xf32> to vector<16x8xbf16>
    %cst_31 = arith.constant dense<0.000000e+00> : vector<16x16xf32>
    %86 = tpu.matmul %84, %85, %cst_31 {dimension_numbers = #tpu.dot_dimension_numbers<[1], [1], [0], [0], [0, 0, 1, 0], [], []>} : vector<16x8xbf16>, vector<16x8xbf16>, vector<16x16xf32> -> vector<16x16xf32>
    %cst_32 = arith.constant 0.353553385 : f32
    %87 = vector.broadcast %cst_32 : f32 to vector<16x16xf32>
    %88 = arith.mulf %86, %87 : vector<16x16xf32>
    %89 = arith.addf %88, %2 : vector<16x16xf32>
    %cst_33 = arith.constant dense<0xFF800000> : vector<16xf32>
    %90 = vector.multi_reduction <maximumf>, %89, %cst_33 [1] : vector<16x16xf32> to vector<16xf32>
    %91 = vector.shape_cast %90 : vector<16xf32> to vector<16x1xf32>
    %92 = vector.broadcast %91 : vector<16x1xf32> to vector<16x16xf32>
    %93 = arith.subf %89, %92 : vector<16x16xf32>
    %94 = math.exp %93 : vector<16x16xf32>
    %cst_34 = arith.constant dense<0.000000e+00> : vector<16xf32>
    %95 = vector.multi_reduction <add>, %94, %cst_34 [1] : vector<16x16xf32> to vector<16xf32>
    %96 = vector.shape_cast %95 : vector<16xf32> to vector<16x1xf32>
    %97 = tpu.reciprocal %96 {approx = true} : vector<16x1xf32> -> vector<16x1xf32>
    %98 = vector.broadcast %97 : vector<16x1xf32> to vector<16x16xf32>
    %99 = arith.mulf %94, %98 : vector<16x16xf32>
    %100 = vector.extract_strided_slice %53 {offsets = [0, 8], sizes = [16, 8], strides = [1, 1]} : vector<16x32xf32> to vector<16x8xf32>
    %101 = arith.truncf %99 : vector<16x16xf32> to vector<16x16xbf16>
    %102 = arith.truncf %100 : vector<16x8xf32> to vector<16x8xbf16>
    %cst_35 = arith.constant dense<0.000000e+00> : vector<16x8xf32>
    %103 = tpu.matmul %101, %102, %cst_35 {dimension_numbers = #tpu.dot_dimension_numbers<[1], [0], [0], [1], [0, 0, 1, 1], [], []>} : vector<16x16xbf16>, vector<16x8xbf16>, vector<16x8xf32> -> vector<16x8xf32>
    %104 = vector.extract_strided_slice %29 {offsets = [8, 0], sizes = [8, 32], strides = [1, 1]} : vector<32x32xf32> to vector<8x32xf32>
    %105 = arith.truncf %103 : vector<16x8xf32> to vector<16x8xbf16>
    %106 = arith.truncf %104 : vector<8x32xf32> to vector<8x32xbf16>
    %cst_36 = arith.constant dense<0.000000e+00> : vector<16x32xf32>
    %107 = tpu.matmul %105, %106, %cst_36 {dimension_numbers = #tpu.dot_dimension_numbers<[1], [0], [0], [1], [0, 0, 1, 1], [], []>} : vector<16x8xbf16>, vector<8x32xbf16>, vector<16x32xf32> -> vector<16x32xf32>
    %108 = arith.addf %81, %107 : vector<16x32xf32>
    %109 = vector.extract_strided_slice %39 {offsets = [0, 16], sizes = [16, 8], strides = [1, 1]} : vector<16x32xf32> to vector<16x8xf32>
    %110 = vector.extract_strided_slice %46 {offsets = [0, 16], sizes = [16, 8], strides = [1, 1]} : vector<16x32xf32> to vector<16x8xf32>
    %111 = arith.truncf %109 : vector<16x8xf32> to vector<16x8xbf16>
    %112 = arith.truncf %110 : vector<16x8xf32> to vector<16x8xbf16>
    %cst_37 = arith.constant dense<0.000000e+00> : vector<16x16xf32>
    %113 = tpu.matmul %111, %112, %cst_37 {dimension_numbers = #tpu.dot_dimension_numbers<[1], [1], [0], [0], [0, 0, 1, 0], [], []>} : vector<16x8xbf16>, vector<16x8xbf16>, vector<16x16xf32> -> vector<16x16xf32>
    %cst_38 = arith.constant 0.353553385 : f32
    %114 = vector.broadcast %cst_38 : f32 to vector<16x16xf32>
    %115 = arith.mulf %113, %114 : vector<16x16xf32>
    %116 = arith.addf %115, %2 : vector<16x16xf32>
    %cst_39 = arith.constant dense<0xFF800000> : vector<16xf32>
    %117 = vector.multi_reduction <maximumf>, %116, %cst_39 [1] : vector<16x16xf32> to vector<16xf32>
    %118 = vector.shape_cast %117 : vector<16xf32> to vector<16x1xf32>
    %119 = vector.broadcast %118 : vector<16x1xf32> to vector<16x16xf32>
    %120 = arith.subf %116, %119 : vector<16x16xf32>
    %121 = math.exp %120 : vector<16x16xf32>
    %cst_40 = arith.constant dense<0.000000e+00> : vector<16xf32>
    %122 = vector.multi_reduction <add>, %121, %cst_40 [1] : vector<16x16xf32> to vector<16xf32>
    %123 = vector.shape_cast %122 : vector<16xf32> to vector<16x1xf32>
    %124 = tpu.reciprocal %123 {approx = true} : vector<16x1xf32> -> vector<16x1xf32>
    %125 = vector.broadcast %124 : vector<16x1xf32> to vector<16x16xf32>
    %126 = arith.mulf %121, %125 : vector<16x16xf32>
    %127 = vector.extract_strided_slice %53 {offsets = [0, 16], sizes = [16, 8], strides = [1, 1]} : vector<16x32xf32> to vector<16x8xf32>
    %128 = arith.truncf %126 : vector<16x16xf32> to vector<16x16xbf16>
    %129 = arith.truncf %127 : vector<16x8xf32> to vector<16x8xbf16>
    %cst_41 = arith.constant dense<0.000000e+00> : vector<16x8xf32>
    %130 = tpu.matmul %128, %129, %cst_41 {dimension_numbers = #tpu.dot_dimension_numbers<[1], [0], [0], [1], [0, 0, 1, 1], [], []>} : vector<16x16xbf16>, vector<16x8xbf16>, vector<16x8xf32> -> vector<16x8xf32>
    %131 = vector.extract_strided_slice %29 {offsets = [16, 0], sizes = [8, 32], strides = [1, 1]} : vector<32x32xf32> to vector<8x32xf32>
    %132 = arith.truncf %130 : vector<16x8xf32> to vector<16x8xbf16>
    %133 = arith.truncf %131 : vector<8x32xf32> to vector<8x32xbf16>
    %cst_42 = arith.constant dense<0.000000e+00> : vector<16x32xf32>
    %134 = tpu.matmul %132, %133, %cst_42 {dimension_numbers = #tpu.dot_dimension_numbers<[1], [0], [0], [1], [0, 0, 1, 1], [], []>} : vector<16x8xbf16>, vector<8x32xbf16>, vector<16x32xf32> -> vector<16x32xf32>
    %135 = arith.addf %108, %134 : vector<16x32xf32>
    %136 = vector.extract_strided_slice %39 {offsets = [0, 24], sizes = [16, 8], strides = [1, 1]} : vector<16x32xf32> to vector<16x8xf32>
    %137 = vector.extract_strided_slice %46 {offsets = [0, 24], sizes = [16, 8], strides = [1, 1]} : vector<16x32xf32> to vector<16x8xf32>
    %138 = arith.truncf %136 : vector<16x8xf32> to vector<16x8xbf16>
    %139 = arith.truncf %137 : vector<16x8xf32> to vector<16x8xbf16>
    %cst_43 = arith.constant dense<0.000000e+00> : vector<16x16xf32>
    %140 = tpu.matmul %138, %139, %cst_43 {dimension_numbers = #tpu.dot_dimension_numbers<[1], [1], [0], [0], [0, 0, 1, 0], [], []>} : vector<16x8xbf16>, vector<16x8xbf16>, vector<16x16xf32> -> vector<16x16xf32>
    %cst_44 = arith.constant 0.353553385 : f32
    %141 = vector.broadcast %cst_44 : f32 to vector<16x16xf32>
    %142 = arith.mulf %140, %141 : vector<16x16xf32>
    %143 = arith.addf %142, %2 : vector<16x16xf32>
    %cst_45 = arith.constant dense<0xFF800000> : vector<16xf32>
    %144 = vector.multi_reduction <maximumf>, %143, %cst_45 [1] : vector<16x16xf32> to vector<16xf32>
    %145 = vector.shape_cast %144 : vector<16xf32> to vector<16x1xf32>
    %146 = vector.broadcast %145 : vector<16x1xf32> to vector<16x16xf32>
    %147 = arith.subf %143, %146 : vector<16x16xf32>
    %148 = math.exp %147 : vector<16x16xf32>
    %cst_46 = arith.constant dense<0.000000e+00> : vector<16xf32>
    %149 = vector.multi_reduction <add>, %148, %cst_46 [1] : vector<16x16xf32> to vector<16xf32>
    %150 = vector.shape_cast %149 : vector<16xf32> to vector<16x1xf32>
    %151 = tpu.reciprocal %150 {approx = true} : vector<16x1xf32> -> vector<16x1xf32>
    %152 = vector.broadcast %151 : vector<16x1xf32> to vector<16x16xf32>
    %153 = arith.mulf %148, %152 : vector<16x16xf32>
    %154 = vector.extract_strided_slice %53 {offsets = [0, 24], sizes = [16, 8], strides = [1, 1]} : vector<16x32xf32> to vector<16x8xf32>
    %155 = arith.truncf %153 : vector<16x16xf32> to vector<16x16xbf16>
    %156 = arith.truncf %154 : vector<16x8xf32> to vector<16x8xbf16>
    %cst_47 = arith.constant dense<0.000000e+00> : vector<16x8xf32>
    %157 = tpu.matmul %155, %156, %cst_47 {dimension_numbers = #tpu.dot_dimension_numbers<[1], [0], [0], [1], [0, 0, 1, 1], [], []>} : vector<16x16xbf16>, vector<16x8xbf16>, vector<16x8xf32> -> vector<16x8xf32>
    %158 = vector.extract_strided_slice %29 {offsets = [24, 0], sizes = [8, 32], strides = [1, 1]} : vector<32x32xf32> to vector<8x32xf32>
    %159 = arith.truncf %157 : vector<16x8xf32> to vector<16x8xbf16>
    %160 = arith.truncf %158 : vector<8x32xf32> to vector<8x32xbf16>
    %cst_48 = arith.constant dense<0.000000e+00> : vector<16x32xf32>
    %161 = tpu.matmul %159, %160, %cst_48 {dimension_numbers = #tpu.dot_dimension_numbers<[1], [0], [0], [1], [0, 0, 1, 1], [], []>} : vector<16x8xbf16>, vector<8x32xbf16>, vector<16x32xf32> -> vector<16x32xf32>
    %162 = arith.addf %135, %161 : vector<16x32xf32>
    %163 = arith.addf %0, %162 : vector<16x32xf32>
    %c0_49 = arith.constant 0 : index
    %c0_50 = arith.constant 0 : index
    %164 = vector.load %arg9[%c0_49, %c0_50] : memref<1x32xf32, #tpu.memory_space<vmem>>, vector<1x32xf32>
    %c0_51 = arith.constant 0 : index
    %c0_52 = arith.constant 0 : index
    %165 = vector.load %arg10[%c0_51, %c0_52] : memref<1x32xf32, #tpu.memory_space<vmem>>, vector<1x32xf32>
    %cst_53 = arith.constant dense<0.000000e+00> : vector<16xf32>
    %166 = vector.multi_reduction <add>, %163, %cst_53 [1] : vector<16x32xf32> to vector<16xf32>
    %167 = vector.shape_cast %166 : vector<16xf32> to vector<16x1xf32>
    %cst_54 = arith.constant 3.200000e+01 : f32
    %168 = vector.broadcast %cst_54 : f32 to vector<16x1xf32>
    %169 = arith.divf %167, %168 : vector<16x1xf32>
    %170 = vector.broadcast %169 : vector<16x1xf32> to vector<16x32xf32>
    %171 = arith.subf %163, %170 : vector<16x32xf32>
    %172 = arith.mulf %171, %171 : vector<16x32xf32>
    %cst_55 = arith.constant dense<0.000000e+00> : vector<16xf32>
    %173 = vector.multi_reduction <add>, %172, %cst_55 [1] : vector<16x32xf32> to vector<16xf32>
    %174 = vector.shape_cast %173 : vector<16xf32> to vector<16x1xf32>
    %cst_56 = arith.constant 3.200000e+01 : f32
    %175 = vector.broadcast %cst_56 : f32 to vector<16x1xf32>
    %176 = arith.divf %174, %175 : vector<16x1xf32>
    %177 = vector.broadcast %169 : vector<16x1xf32> to vector<16x32xf32>
    %178 = arith.subf %163, %177 : vector<16x32xf32>
    %cst_57 = arith.constant 9.99999974E-6 : f32
    %179 = vector.broadcast %cst_57 : f32 to vector<16x1xf32>
    %180 = arith.addf %176, %179 : vector<16x1xf32>
    %181 = math.rsqrt %180 : vector<16x1xf32>
    %182 = vector.broadcast %181 : vector<16x1xf32> to vector<16x32xf32>
    %183 = arith.mulf %178, %182 : vector<16x32xf32>
    %184 = vector.broadcast %164 : vector<1x32xf32> to vector<16x32xf32>
    %185 = arith.mulf %183, %184 : vector<16x32xf32>
    %186 = vector.broadcast %165 : vector<1x32xf32> to vector<16x32xf32>
    %187 = arith.addf %185, %186 : vector<16x32xf32>
    %c0_58 = arith.constant 0 : index
    %c0_59 = arith.constant 0 : index
    %188 = vector.load %arg11[%c0_58, %c0_59] : memref<32x96xf32, #tpu.memory_space<vmem>>, vector<32x96xf32>
    %c0_60 = arith.constant 0 : index
    %c0_61 = arith.constant 0 : index
    %189 = vector.load %arg12[%c0_60, %c0_61] : memref<1x96xf32, #tpu.memory_space<vmem>>, vector<1x96xf32>
    %c0_62 = arith.constant 0 : index
    %c0_63 = arith.constant 0 : index
    %190 = vector.load %arg13[%c0_62, %c0_63] : memref<32x32xf32, #tpu.memory_space<vmem>>, vector<32x32xf32>
    %c0_64 = arith.constant 0 : index
    %c0_65 = arith.constant 0 : index
    %191 = vector.load %arg14[%c0_64, %c0_65] : memref<1x32xf32, #tpu.memory_space<vmem>>, vector<1x32xf32>
    %192 = vector.extract_strided_slice %188 {offsets = [0, 0], sizes = [32, 32], strides = [1, 1]} : vector<32x96xf32> to vector<32x32xf32>
    %193 = arith.truncf %187 : vector<16x32xf32> to vector<16x32xbf16>
    %194 = arith.truncf %192 : vector<32x32xf32> to vector<32x32xbf16>
    %cst_66 = arith.constant dense<0.000000e+00> : vector<16x32xf32>
    %195 = tpu.matmul %193, %194, %cst_66 {dimension_numbers = #tpu.dot_dimension_numbers<[1], [0], [0], [1], [0, 0, 1, 1], [], []>} : vector<16x32xbf16>, vector<32x32xbf16>, vector<16x32xf32> -> vector<16x32xf32>
    %cst_67 = arith.constant 0.176776692 : f32
    %196 = vector.broadcast %cst_67 : f32 to vector<16x32xf32>
    %197 = arith.mulf %195, %196 : vector<16x32xf32>
    %198 = vector.extract_strided_slice %189 {offsets = [0, 0], sizes = [1, 32], strides = [1, 1]} : vector<1x96xf32> to vector<1x32xf32>
    %199 = vector.broadcast %198 : vector<1x32xf32> to vector<16x32xf32>
    %200 = arith.addf %197, %199 : vector<16x32xf32>
    %201 = vector.extract_strided_slice %188 {offsets = [0, 32], sizes = [32, 32], strides = [1, 1]} : vector<32x96xf32> to vector<32x32xf32>
    %202 = arith.truncf %1 : vector<16x32xf32> to vector<16x32xbf16>
    %203 = arith.truncf %201 : vector<32x32xf32> to vector<32x32xbf16>
    %cst_68 = arith.constant dense<0.000000e+00> : vector<16x32xf32>
    %204 = tpu.matmul %202, %203, %cst_68 {dimension_numbers = #tpu.dot_dimension_numbers<[1], [0], [0], [1], [0, 0, 1, 1], [], []>} : vector<16x32xbf16>, vector<32x32xbf16>, vector<16x32xf32> -> vector<16x32xf32>
    %205 = vector.extract_strided_slice %189 {offsets = [0, 32], sizes = [1, 32], strides = [1, 1]} : vector<1x96xf32> to vector<1x32xf32>
    %206 = vector.broadcast %205 : vector<1x32xf32> to vector<16x32xf32>
    %207 = arith.addf %204, %206 : vector<16x32xf32>
    %208 = vector.extract_strided_slice %188 {offsets = [0, 64], sizes = [32, 32], strides = [1, 1]} : vector<32x96xf32> to vector<32x32xf32>
    %209 = arith.truncf %1 : vector<16x32xf32> to vector<16x32xbf16>
    %210 = arith.truncf %208 : vector<32x32xf32> to vector<32x32xbf16>
    %cst_69 = arith.constant dense<0.000000e+00> : vector<16x32xf32>
    %211 = tpu.matmul %209, %210, %cst_69 {dimension_numbers = #tpu.dot_dimension_numbers<[1], [0], [0], [1], [0, 0, 1, 1], [], []>} : vector<16x32xbf16>, vector<32x32xbf16>, vector<16x32xf32> -> vector<16x32xf32>
    %212 = vector.extract_strided_slice %189 {offsets = [0, 64], sizes = [1, 32], strides = [1, 1]} : vector<1x96xf32> to vector<1x32xf32>
    %213 = vector.broadcast %212 : vector<1x32xf32> to vector<16x32xf32>
    %214 = arith.addf %211, %213 : vector<16x32xf32>
    %215 = vector.extract_strided_slice %200 {offsets = [0, 0], sizes = [16, 8], strides = [1, 1]} : vector<16x32xf32> to vector<16x8xf32>
    %216 = vector.extract_strided_slice %207 {offsets = [0, 0], sizes = [16, 8], strides = [1, 1]} : vector<16x32xf32> to vector<16x8xf32>
    %217 = arith.truncf %215 : vector<16x8xf32> to vector<16x8xbf16>
    %218 = arith.truncf %216 : vector<16x8xf32> to vector<16x8xbf16>
    %cst_70 = arith.constant dense<0.000000e+00> : vector<16x16xf32>
    %219 = tpu.matmul %217, %218, %cst_70 {dimension_numbers = #tpu.dot_dimension_numbers<[1], [1], [0], [0], [0, 0, 1, 0], [], []>} : vector<16x8xbf16>, vector<16x8xbf16>, vector<16x16xf32> -> vector<16x16xf32>
    %cst_71 = arith.constant 0.353553385 : f32
    %220 = vector.broadcast %cst_71 : f32 to vector<16x16xf32>
    %221 = arith.mulf %219, %220 : vector<16x16xf32>
    %222 = arith.addf %221, %2 : vector<16x16xf32>
    %cst_72 = arith.constant dense<0xFF800000> : vector<16xf32>
    %223 = vector.multi_reduction <maximumf>, %222, %cst_72 [1] : vector<16x16xf32> to vector<16xf32>
    %224 = vector.shape_cast %223 : vector<16xf32> to vector<16x1xf32>
    %225 = vector.broadcast %224 : vector<16x1xf32> to vector<16x16xf32>
    %226 = arith.subf %222, %225 : vector<16x16xf32>
    %227 = math.exp %226 : vector<16x16xf32>
    %cst_73 = arith.constant dense<0.000000e+00> : vector<16xf32>
    %228 = vector.multi_reduction <add>, %227, %cst_73 [1] : vector<16x16xf32> to vector<16xf32>
    %229 = vector.shape_cast %228 : vector<16xf32> to vector<16x1xf32>
    %230 = tpu.reciprocal %229 {approx = true} : vector<16x1xf32> -> vector<16x1xf32>
    %231 = vector.broadcast %230 : vector<16x1xf32> to vector<16x16xf32>
    %232 = arith.mulf %227, %231 : vector<16x16xf32>
    %233 = vector.extract_strided_slice %214 {offsets = [0, 0], sizes = [16, 8], strides = [1, 1]} : vector<16x32xf32> to vector<16x8xf32>
    %234 = arith.truncf %232 : vector<16x16xf32> to vector<16x16xbf16>
    %235 = arith.truncf %233 : vector<16x8xf32> to vector<16x8xbf16>
    %cst_74 = arith.constant dense<0.000000e+00> : vector<16x8xf32>
    %236 = tpu.matmul %234, %235, %cst_74 {dimension_numbers = #tpu.dot_dimension_numbers<[1], [0], [0], [1], [0, 0, 1, 1], [], []>} : vector<16x16xbf16>, vector<16x8xbf16>, vector<16x8xf32> -> vector<16x8xf32>
    %237 = vector.extract_strided_slice %190 {offsets = [0, 0], sizes = [8, 32], strides = [1, 1]} : vector<32x32xf32> to vector<8x32xf32>
    %238 = arith.truncf %236 : vector<16x8xf32> to vector<16x8xbf16>
    %239 = arith.truncf %237 : vector<8x32xf32> to vector<8x32xbf16>
    %cst_75 = arith.constant dense<0.000000e+00> : vector<16x32xf32>
    %240 = tpu.matmul %238, %239, %cst_75 {dimension_numbers = #tpu.dot_dimension_numbers<[1], [0], [0], [1], [0, 0, 1, 1], [], []>} : vector<16x8xbf16>, vector<8x32xbf16>, vector<16x32xf32> -> vector<16x32xf32>
    %241 = vector.broadcast %191 : vector<1x32xf32> to vector<16x32xf32>
    %242 = arith.addf %241, %240 : vector<16x32xf32>
    %243 = vector.extract_strided_slice %200 {offsets = [0, 8], sizes = [16, 8], strides = [1, 1]} : vector<16x32xf32> to vector<16x8xf32>
    %244 = vector.extract_strided_slice %207 {offsets = [0, 8], sizes = [16, 8], strides = [1, 1]} : vector<16x32xf32> to vector<16x8xf32>
    %245 = arith.truncf %243 : vector<16x8xf32> to vector<16x8xbf16>
    %246 = arith.truncf %244 : vector<16x8xf32> to vector<16x8xbf16>
    %cst_76 = arith.constant dense<0.000000e+00> : vector<16x16xf32>
    %247 = tpu.matmul %245, %246, %cst_76 {dimension_numbers = #tpu.dot_dimension_numbers<[1], [1], [0], [0], [0, 0, 1, 0], [], []>} : vector<16x8xbf16>, vector<16x8xbf16>, vector<16x16xf32> -> vector<16x16xf32>
    %cst_77 = arith.constant 0.353553385 : f32
    %248 = vector.broadcast %cst_77 : f32 to vector<16x16xf32>
    %249 = arith.mulf %247, %248 : vector<16x16xf32>
    %250 = arith.addf %249, %2 : vector<16x16xf32>
    %cst_78 = arith.constant dense<0xFF800000> : vector<16xf32>
    %251 = vector.multi_reduction <maximumf>, %250, %cst_78 [1] : vector<16x16xf32> to vector<16xf32>
    %252 = vector.shape_cast %251 : vector<16xf32> to vector<16x1xf32>
    %253 = vector.broadcast %252 : vector<16x1xf32> to vector<16x16xf32>
    %254 = arith.subf %250, %253 : vector<16x16xf32>
    %255 = math.exp %254 : vector<16x16xf32>
    %cst_79 = arith.constant dense<0.000000e+00> : vector<16xf32>
    %256 = vector.multi_reduction <add>, %255, %cst_79 [1] : vector<16x16xf32> to vector<16xf32>
    %257 = vector.shape_cast %256 : vector<16xf32> to vector<16x1xf32>
    %258 = tpu.reciprocal %257 {approx = true} : vector<16x1xf32> -> vector<16x1xf32>
    %259 = vector.broadcast %258 : vector<16x1xf32> to vector<16x16xf32>
    %260 = arith.mulf %255, %259 : vector<16x16xf32>
    %261 = vector.extract_strided_slice %214 {offsets = [0, 8], sizes = [16, 8], strides = [1, 1]} : vector<16x32xf32> to vector<16x8xf32>
    %262 = arith.truncf %260 : vector<16x16xf32> to vector<16x16xbf16>
    %263 = arith.truncf %261 : vector<16x8xf32> to vector<16x8xbf16>
    %cst_80 = arith.constant dense<0.000000e+00> : vector<16x8xf32>
    %264 = tpu.matmul %262, %263, %cst_80 {dimension_numbers = #tpu.dot_dimension_numbers<[1], [0], [0], [1], [0, 0, 1, 1], [], []>} : vector<16x16xbf16>, vector<16x8xbf16>, vector<16x8xf32> -> vector<16x8xf32>
    %265 = vector.extract_strided_slice %190 {offsets = [8, 0], sizes = [8, 32], strides = [1, 1]} : vector<32x32xf32> to vector<8x32xf32>
    %266 = arith.truncf %264 : vector<16x8xf32> to vector<16x8xbf16>
    %267 = arith.truncf %265 : vector<8x32xf32> to vector<8x32xbf16>
    %cst_81 = arith.constant dense<0.000000e+00> : vector<16x32xf32>
    %268 = tpu.matmul %266, %267, %cst_81 {dimension_numbers = #tpu.dot_dimension_numbers<[1], [0], [0], [1], [0, 0, 1, 1], [], []>} : vector<16x8xbf16>, vector<8x32xbf16>, vector<16x32xf32> -> vector<16x32xf32>
    %269 = arith.addf %242, %268 : vector<16x32xf32>
    %270 = vector.extract_strided_slice %200 {offsets = [0, 16], sizes = [16, 8], strides = [1, 1]} : vector<16x32xf32> to vector<16x8xf32>
    %271 = vector.extract_strided_slice %207 {offsets = [0, 16], sizes = [16, 8], strides = [1, 1]} : vector<16x32xf32> to vector<16x8xf32>
    %272 = arith.truncf %270 : vector<16x8xf32> to vector<16x8xbf16>
    %273 = arith.truncf %271 : vector<16x8xf32> to vector<16x8xbf16>
    %cst_82 = arith.constant dense<0.000000e+00> : vector<16x16xf32>
    %274 = tpu.matmul %272, %273, %cst_82 {dimension_numbers = #tpu.dot_dimension_numbers<[1], [1], [0], [0], [0, 0, 1, 0], [], []>} : vector<16x8xbf16>, vector<16x8xbf16>, vector<16x16xf32> -> vector<16x16xf32>
    %cst_83 = arith.constant 0.353553385 : f32
    %275 = vector.broadcast %cst_83 : f32 to vector<16x16xf32>
    %276 = arith.mulf %274, %275 : vector<16x16xf32>
    %277 = arith.addf %276, %2 : vector<16x16xf32>
    %cst_84 = arith.constant dense<0xFF800000> : vector<16xf32>
    %278 = vector.multi_reduction <maximumf>, %277, %cst_84 [1] : vector<16x16xf32> to vector<16xf32>
    %279 = vector.shape_cast %278 : vector<16xf32> to vector<16x1xf32>
    %280 = vector.broadcast %279 : vector<16x1xf32> to vector<16x16xf32>
    %281 = arith.subf %277, %280 : vector<16x16xf32>
    %282 = math.exp %281 : vector<16x16xf32>
    %cst_85 = arith.constant dense<0.000000e+00> : vector<16xf32>
    %283 = vector.multi_reduction <add>, %282, %cst_85 [1] : vector<16x16xf32> to vector<16xf32>
    %284 = vector.shape_cast %283 : vector<16xf32> to vector<16x1xf32>
    %285 = tpu.reciprocal %284 {approx = true} : vector<16x1xf32> -> vector<16x1xf32>
    %286 = vector.broadcast %285 : vector<16x1xf32> to vector<16x16xf32>
    %287 = arith.mulf %282, %286 : vector<16x16xf32>
    %288 = vector.extract_strided_slice %214 {offsets = [0, 16], sizes = [16, 8], strides = [1, 1]} : vector<16x32xf32> to vector<16x8xf32>
    %289 = arith.truncf %287 : vector<16x16xf32> to vector<16x16xbf16>
    %290 = arith.truncf %288 : vector<16x8xf32> to vector<16x8xbf16>
    %cst_86 = arith.constant dense<0.000000e+00> : vector<16x8xf32>
    %291 = tpu.matmul %289, %290, %cst_86 {dimension_numbers = #tpu.dot_dimension_numbers<[1], [0], [0], [1], [0, 0, 1, 1], [], []>} : vector<16x16xbf16>, vector<16x8xbf16>, vector<16x8xf32> -> vector<16x8xf32>
    %292 = vector.extract_strided_slice %190 {offsets = [16, 0], sizes = [8, 32], strides = [1, 1]} : vector<32x32xf32> to vector<8x32xf32>
    %293 = arith.truncf %291 : vector<16x8xf32> to vector<16x8xbf16>
    %294 = arith.truncf %292 : vector<8x32xf32> to vector<8x32xbf16>
    %cst_87 = arith.constant dense<0.000000e+00> : vector<16x32xf32>
    %295 = tpu.matmul %293, %294, %cst_87 {dimension_numbers = #tpu.dot_dimension_numbers<[1], [0], [0], [1], [0, 0, 1, 1], [], []>} : vector<16x8xbf16>, vector<8x32xbf16>, vector<16x32xf32> -> vector<16x32xf32>
    %296 = arith.addf %269, %295 : vector<16x32xf32>
    %297 = vector.extract_strided_slice %200 {offsets = [0, 24], sizes = [16, 8], strides = [1, 1]} : vector<16x32xf32> to vector<16x8xf32>
    %298 = vector.extract_strided_slice %207 {offsets = [0, 24], sizes = [16, 8], strides = [1, 1]} : vector<16x32xf32> to vector<16x8xf32>
    %299 = arith.truncf %297 : vector<16x8xf32> to vector<16x8xbf16>
    %300 = arith.truncf %298 : vector<16x8xf32> to vector<16x8xbf16>
    %cst_88 = arith.constant dense<0.000000e+00> : vector<16x16xf32>
    %301 = tpu.matmul %299, %300, %cst_88 {dimension_numbers = #tpu.dot_dimension_numbers<[1], [1], [0], [0], [0, 0, 1, 0], [], []>} : vector<16x8xbf16>, vector<16x8xbf16>, vector<16x16xf32> -> vector<16x16xf32>
    %cst_89 = arith.constant 0.353553385 : f32
    %302 = vector.broadcast %cst_89 : f32 to vector<16x16xf32>
    %303 = arith.mulf %301, %302 : vector<16x16xf32>
    %304 = arith.addf %303, %2 : vector<16x16xf32>
    %cst_90 = arith.constant dense<0xFF800000> : vector<16xf32>
    %305 = vector.multi_reduction <maximumf>, %304, %cst_90 [1] : vector<16x16xf32> to vector<16xf32>
    %306 = vector.shape_cast %305 : vector<16xf32> to vector<16x1xf32>
    %307 = vector.broadcast %306 : vector<16x1xf32> to vector<16x16xf32>
    %308 = arith.subf %304, %307 : vector<16x16xf32>
    %309 = math.exp %308 : vector<16x16xf32>
    %cst_91 = arith.constant dense<0.000000e+00> : vector<16xf32>
    %310 = vector.multi_reduction <add>, %309, %cst_91 [1] : vector<16x16xf32> to vector<16xf32>
    %311 = vector.shape_cast %310 : vector<16xf32> to vector<16x1xf32>
    %312 = tpu.reciprocal %311 {approx = true} : vector<16x1xf32> -> vector<16x1xf32>
    %313 = vector.broadcast %312 : vector<16x1xf32> to vector<16x16xf32>
    %314 = arith.mulf %309, %313 : vector<16x16xf32>
    %315 = vector.extract_strided_slice %214 {offsets = [0, 24], sizes = [16, 8], strides = [1, 1]} : vector<16x32xf32> to vector<16x8xf32>
    %316 = arith.truncf %314 : vector<16x16xf32> to vector<16x16xbf16>
    %317 = arith.truncf %315 : vector<16x8xf32> to vector<16x8xbf16>
    %cst_92 = arith.constant dense<0.000000e+00> : vector<16x8xf32>
    %318 = tpu.matmul %316, %317, %cst_92 {dimension_numbers = #tpu.dot_dimension_numbers<[1], [0], [0], [1], [0, 0, 1, 1], [], []>} : vector<16x16xbf16>, vector<16x8xbf16>, vector<16x8xf32> -> vector<16x8xf32>
    %319 = vector.extract_strided_slice %190 {offsets = [24, 0], sizes = [8, 32], strides = [1, 1]} : vector<32x32xf32> to vector<8x32xf32>
    %320 = arith.truncf %318 : vector<16x8xf32> to vector<16x8xbf16>
    %321 = arith.truncf %319 : vector<8x32xf32> to vector<8x32xbf16>
    %cst_93 = arith.constant dense<0.000000e+00> : vector<16x32xf32>
    %322 = tpu.matmul %320, %321, %cst_93 {dimension_numbers = #tpu.dot_dimension_numbers<[1], [0], [0], [1], [0, 0, 1, 1], [], []>} : vector<16x8xbf16>, vector<8x32xbf16>, vector<16x32xf32> -> vector<16x32xf32>
    %323 = arith.addf %296, %322 : vector<16x32xf32>
    %324 = arith.addf %163, %323 : vector<16x32xf32>
    %c0_94 = arith.constant 0 : index
    %c0_95 = arith.constant 0 : index
    %325 = vector.load %arg15[%c0_94, %c0_95] : memref<1x32xf32, #tpu.memory_space<vmem>>, vector<1x32xf32>
    %c0_96 = arith.constant 0 : index
    %c0_97 = arith.constant 0 : index
    %326 = vector.load %arg16[%c0_96, %c0_97] : memref<1x32xf32, #tpu.memory_space<vmem>>, vector<1x32xf32>
    %cst_98 = arith.constant dense<0.000000e+00> : vector<16xf32>
    %327 = vector.multi_reduction <add>, %324, %cst_98 [1] : vector<16x32xf32> to vector<16xf32>
    %328 = vector.shape_cast %327 : vector<16xf32> to vector<16x1xf32>
    %cst_99 = arith.constant 3.200000e+01 : f32
    %329 = vector.broadcast %cst_99 : f32 to vector<16x1xf32>
    %330 = arith.divf %328, %329 : vector<16x1xf32>
    %331 = vector.broadcast %330 : vector<16x1xf32> to vector<16x32xf32>
    %332 = arith.subf %324, %331 : vector<16x32xf32>
    %333 = arith.mulf %332, %332 : vector<16x32xf32>
    %cst_100 = arith.constant dense<0.000000e+00> : vector<16xf32>
    %334 = vector.multi_reduction <add>, %333, %cst_100 [1] : vector<16x32xf32> to vector<16xf32>
    %335 = vector.shape_cast %334 : vector<16xf32> to vector<16x1xf32>
    %cst_101 = arith.constant 3.200000e+01 : f32
    %336 = vector.broadcast %cst_101 : f32 to vector<16x1xf32>
    %337 = arith.divf %335, %336 : vector<16x1xf32>
    %338 = vector.broadcast %330 : vector<16x1xf32> to vector<16x32xf32>
    %339 = arith.subf %324, %338 : vector<16x32xf32>
    %cst_102 = arith.constant 9.99999974E-6 : f32
    %340 = vector.broadcast %cst_102 : f32 to vector<16x1xf32>
    %341 = arith.addf %337, %340 : vector<16x1xf32>
    %342 = math.rsqrt %341 : vector<16x1xf32>
    %343 = vector.broadcast %342 : vector<16x1xf32> to vector<16x32xf32>
    %344 = arith.mulf %339, %343 : vector<16x32xf32>
    %345 = vector.broadcast %325 : vector<1x32xf32> to vector<16x32xf32>
    %346 = arith.mulf %344, %345 : vector<16x32xf32>
    %347 = vector.broadcast %326 : vector<1x32xf32> to vector<16x32xf32>
    %348 = arith.addf %346, %347 : vector<16x32xf32>
    %c0_103 = arith.constant 0 : index
    %c0_104 = arith.constant 0 : index
    %349 = vector.load %arg17[%c0_103, %c0_104] : memref<32x128xf32, #tpu.memory_space<vmem>>, vector<32x128xf32>
    %c0_105 = arith.constant 0 : index
    %c0_106 = arith.constant 0 : index
    %350 = vector.load %arg18[%c0_105, %c0_106] : memref<1x128xf32, #tpu.memory_space<vmem>>, vector<1x128xf32>
    %c0_107 = arith.constant 0 : index
    %c0_108 = arith.constant 0 : index
    %351 = vector.load %arg19[%c0_107, %c0_108] : memref<128x32xf32, #tpu.memory_space<vmem>>, vector<128x32xf32>
    %c0_109 = arith.constant 0 : index
    %c0_110 = arith.constant 0 : index
    %352 = vector.load %arg20[%c0_109, %c0_110] : memref<1x32xf32, #tpu.memory_space<vmem>>, vector<1x32xf32>
    %353 = arith.truncf %348 : vector<16x32xf32> to vector<16x32xbf16>
    %354 = arith.truncf %349 : vector<32x128xf32> to vector<32x128xbf16>
    %cst_111 = arith.constant dense<0.000000e+00> : vector<16x128xf32>
    %355 = tpu.matmul %353, %354, %cst_111 {dimension_numbers = #tpu.dot_dimension_numbers<[1], [0], [0], [1], [0, 0, 1, 1], [], []>} : vector<16x32xbf16>, vector<32x128xbf16>, vector<16x128xf32> -> vector<16x128xf32>
    %356 = vector.broadcast %350 : vector<1x128xf32> to vector<16x128xf32>
    %357 = arith.addf %355, %356 : vector<16x128xf32>
    %cst_112 = arith.constant 0.000000e+00 : f32
    %358 = vector.broadcast %cst_112 : f32 to vector<16x128xf32>
    %359 = arith.maximumf %357, %358 : vector<16x128xf32>
    %360 = arith.truncf %359 : vector<16x128xf32> to vector<16x128xbf16>
    %361 = arith.truncf %351 : vector<128x32xf32> to vector<128x32xbf16>
    %cst_113 = arith.constant dense<0.000000e+00> : vector<16x32xf32>
    %362 = tpu.matmul %360, %361, %cst_113 {dimension_numbers = #tpu.dot_dimension_numbers<[1], [0], [0], [1], [0, 0, 1, 1], [], []>} : vector<16x128xbf16>, vector<128x32xbf16>, vector<16x32xf32> -> vector<16x32xf32>
    %363 = vector.broadcast %352 : vector<1x32xf32> to vector<16x32xf32>
    %364 = arith.addf %362, %363 : vector<16x32xf32>
    %365 = arith.addf %324, %364 : vector<16x32xf32>
    %c0_114 = arith.constant 0 : index
    %c0_115 = arith.constant 0 : index
    %366 = vector.load %arg24[%c0_114, %c0_115] : memref<16x32xf32, #tpu.memory_space<vmem>>, vector<16x32xf32>
    tpu.vector_store %arg24[%c0_114, %c0_115], %365 {strides = array<i32>} : memref<16x32xf32, #tpu.memory_space<vmem>>, vector<16x32xf32>,
    %c0_116 = arith.constant 0 : index
    %c0_117 = arith.constant 0 : index
    %367 = vector.load %arg21[%c0_116, %c0_117] : memref<2x16xf32, #tpu.memory_space<vmem>>, vector<2x16xf32>
    %cst_118 = arith.constant dense<0.000000e+00> : vector<2x32xf32>
    %368 = tpu.matmul %367, %365, %cst_118 {dimension_numbers = #tpu.dot_dimension_numbers<[1], [0], [0], [1], [0, 0, 1, 1], [], []>} : vector<2x16xf32>, vector<16x32xf32>, vector<2x32xf32> -> vector<2x32xf32>
    %c0_119 = arith.constant 0 : index
    %c0_120 = arith.constant 0 : index
    %369 = vector.load %arg22[%c0_119, %c0_120] : memref<32x2xf32, #tpu.memory_space<vmem>>, vector<32x2xf32>
    %cst_121 = arith.constant dense<0.000000e+00> : vector<2x2xf32>
    %370 = tpu.matmul %368, %369, %cst_121 {dimension_numbers = #tpu.dot_dimension_numbers<[1], [0], [0], [1], [0, 0, 1, 1], [], []>} : vector<2x32xf32>, vector<32x2xf32>, vector<2x2xf32> -> vector<2x2xf32>
    %c0_122 = arith.constant 0 : index
    %c0_123 = arith.constant 0 : index
    %371 = vector.load %arg23[%c0_122, %c0_123] : memref<1x2xf32, #tpu.memory_space<vmem>>, vector<1x2xf32>
    %372 = vector.broadcast %371 : vector<1x2xf32> to vector<2x2xf32>
    %373 = arith.addf %370, %372 : vector<2x2xf32>
    %cst_124 = arith.constant dense<0xFF800000> : vector<2xf32>
    %374 = vector.multi_reduction <maximumf>, %373, %cst_124 [1] : vector<2x2xf32> to vector<2xf32>
    %375 = vector.shape_cast %374 : vector<2xf32> to vector<2x1xf32>
    %376 = vector.broadcast %375 : vector<2x1xf32> to vector<2x2xf32>
    %377 = arith.subf %373, %376 : vector<2x2xf32>
    %378 = math.exp %377 : vector<2x2xf32>
    %cst_125 = arith.constant dense<0.000000e+00> : vector<2xf32>
    %379 = vector.multi_reduction <add>, %378, %cst_125 [1] : vector<2x2xf32> to vector<2xf32>
    %380 = vector.shape_cast %379 : vector<2xf32> to vector<2x1xf32>
    %381 = tpu.reciprocal %380 {approx = true} : vector<2x1xf32> -> vector<2x1xf32>
    %382 = vector.broadcast %381 : vector<2x1xf32> to vector<2x2xf32>
    %383 = arith.mulf %378, %382 : vector<2x2xf32>
    %c0_126 = arith.constant 0 : index
    %c0_127 = arith.constant 0 : index
    %384 = vector.load %arg25[%c0_126, %c0_127] : memref<2x2xf32, #tpu.memory_space<vmem>>, vector<2x2xf32>
    tpu.vector_store %arg25[%c0_126, %c0_127], %383 {strides = array<i32>} : memref<2x2xf32, #tpu.memory_space<vmem>>, vector<2x2xf32>,
    return
  }
}

module attributes {stable_mosaic.version = 11 : i64} {
  func.func @_decoder_layer_kernel(%arg0: memref<16x32xf32, #tpu.memory_space<vmem>>, %arg1: memref<16x32xf32, #tpu.memory_space<vmem>>, %arg2: memref<16x16xf32, #tpu.memory_space<vmem>>, %arg3: memref<1x32xf32, #tpu.memory_space<vmem>>, %arg4: memref<1x32xf32, #tpu.memory_space<vmem>>, %arg5: memref<32x96xf32, #tpu.memory_space<vmem>>, %arg6: memref<1x96xf32, #tpu.memory_space<vmem>>, %arg7: memref<32x32xf32, #tpu.memory_space<vmem>>, %arg8: memref<1x32xf32, #tpu.memory_space<vmem>>, %arg9: memref<1x32xf32, #tpu.memory_space<vmem>>, %arg10: memref<1x32xf32, #tpu.memory_space<vmem>>, %arg11: memref<32x96xf32, #tpu.memory_space<vmem>>, %arg12: memref<1x96xf32, #tpu.memory_space<vmem>>, %arg13: memref<32x32xf32, #tpu.memory_space<vmem>>, %arg14: memref<1x32xf32, #tpu.memory_space<vmem>>, %arg15: memref<1x32xf32, #tpu.memory_space<vmem>>, %arg16: memref<1x32xf32, #tpu.memory_space<vmem>>, %arg17: memref<32x128xf32, #tpu.memory_space<vmem>>, %arg18: memref<1x128xf32, #tpu.memory_space<vmem>>, %arg19: memref<128x32xf32, #tpu.memory_space<vmem>>, %arg20: memref<1x32xf32, #tpu.memory_space<vmem>>, %arg21: memref<2x16xf32, #tpu.memory_space<vmem>>, %arg22: memref<32x2xf32, #tpu.memory_space<vmem>>, %arg23: memref<1x2xf32, #tpu.memory_space<vmem>>, %arg24: memref<16x32xf32, #tpu.memory_space<vmem>>, %arg25: memref<2x2xf32, #tpu.memory_space<vmem>>) attributes {dimension_semantics = [], scalar_prefetch = 0 : i64, scratch_operands = 0 : i64, tpu.core_type = #tpu.core_type<tc>} {
    %c0 = arith.constant 0 : index
    %c0_0 = arith.constant 0 : index
    %0 = vector.load %arg0[%c0, %c0_0] : memref<16x32xf32, #tpu.memory_space<vmem>>, vector<16x32xf32>
    %c0_1 = arith.constant 0 : index
    %c0_2 = arith.constant 0 : index
    %1 = vector.load %arg1[%c0_1, %c0_2] : memref<16x32xf32, #tpu.memory_space<vmem>>, vector<16x32xf32>
    %c0_3 = arith.constant 0 : index
    %c0_4 = arith.constant 0 : index
    %2 = vector.load %arg2[%c0_3, %c0_4] : memref<16x16xf32, #tpu.memory_space<vmem>>, vector<16x16xf32>
    %c0_5 = arith.constant 0 : index
    %c0_6 = arith.constant 0 : index
    %3 = vector.load %arg3[%c0_5, %c0_6] : memref<1x32xf32, #tpu.memory_space<vmem>>, vector<1x32xf32>
    %c0_7 = arith.constant 0 : index
    %c0_8 = arith.constant 0 : index
    %4 = vector.load %arg4[%c0_7, %c0_8] : memref<1x32xf32, #tpu.memory_space<vmem>>, vector<1x32xf32>
    %cst = arith.constant dense<0.000000e+00> : vector<16xf32>
    %5 = vector.multi_reduction <add>, %0, %cst [1] : vector<16x32xf32> to vector<16xf32>
    %6 = vector.shape_cast %5 : vector<16xf32> to vector<16x1xf32>
    %cst_9 = arith.constant 3.200000e+01 : f32
    %7 = vector.broadcast %cst_9 : f32 to vector<16x1xf32>
    %8 = arith.divf %6, %7 : vector<16x1xf32>
    %9 = vector.broadcast %8 : vector<16x1xf32> to vector<16x32xf32>
    %10 = arith.subf %0, %9 : vector<16x32xf32>
    %11 = arith.mulf %10, %10 : vector<16x32xf32>
    %cst_10 = arith.constant dense<0.000000e+00> : vector<16xf32>
    %12 = vector.multi_reduction <add>, %11, %cst_10 [1] : vector<16x32xf32> to vector<16xf32>
    %13 = vector.shape_cast %12 : vector<16xf32> to vector<16x1xf32>
    %cst_11 = arith.constant 3.200000e+01 : f32
    %14 = vector.broadcast %cst_11 : f32 to vector<16x1xf32>
    %15 = arith.divf %13, %14 : vector<16x1xf32>
    %16 = vector.broadcast %8 : vector<16x1xf32> to vector<16x32xf32>
    %17 = arith.subf %0, %16 : vector<16x32xf32>
    %cst_12 = arith.constant 9.99999974E-6 : f32
    %18 = vector.broadcast %cst_12 : f32 to vector<16x1xf32>
    %19 = arith.addf %15, %18 : vector<16x1xf32>
    %20 = math.rsqrt %19 : vector<16x1xf32>
    %21 = vector.broadcast %20 : vector<16x1xf32> to vector<16x32xf32>
    %22 = arith.mulf %17, %21 : vector<16x32xf32>
    %23 = vector.broadcast %3 : vector<1x32xf32> to vector<16x32xf32>
    %24 = arith.mulf %22, %23 : vector<16x32xf32>
    %25 = vector.broadcast %4 : vector<1x32xf32> to vector<16x32xf32>
    %26 = arith.addf %24, %25 : vector<16x32xf32>
    %c0_13 = arith.constant 0 : index
    %c0_14 = arith.constant 0 : index
    %27 = vector.load %arg5[%c0_13, %c0_14] : memref<32x96xf32, #tpu.memory_space<vmem>>, vector<32x96xf32>
    %c0_15 = arith.constant 0 : index
    %c0_16 = arith.constant 0 : index
    %28 = vector.load %arg6[%c0_15, %c0_16] : memref<1x96xf32, #tpu.memory_space<vmem>>, vector<1x96xf32>
    %c0_17 = arith.constant 0 : index
    %c0_18 = arith.constant 0 : index
    %29 = vector.load %arg7[%c0_17, %c0_18] : memref<32x32xf32, #tpu.memory_space<vmem>>, vector<32x32xf32>
    %c0_19 = arith.constant 0 : index
    %c0_20 = arith.constant 0 : index
    %30 = vector.load %arg8[%c0_19, %c0_20] : memref<1x32xf32, #tpu.memory_space<vmem>>, vector<1x32xf32>
    %31 = vector.extract_strided_slice %27 {offsets = [0, 0], sizes = [32, 32], strides = [1, 1]} : vector<32x96xf32> to vector<32x32xf32>
    %32 = arith.truncf %26 : vector<16x32xf32> to vector<16x32xbf16>
    %33 = arith.truncf %31 : vector<32x32xf32> to vector<32x32xbf16>
    %cst_21 = arith.constant dense<0.000000e+00> : vector<16x32xf32>
    %34 = tpu.matmul %32, %33, %cst_21 {dimension_numbers = #tpu.dot_dimension_numbers<[1], [0], [0], [1], [0, 0, 1, 1], [], []>} : vector<16x32xbf16>, vector<32x32xbf16>, vector<16x32xf32> -> vector<16x32xf32>
    %cst_22 = arith.constant 0.176776692 : f32
    %35 = vector.broadcast %cst_22 : f32 to vector<16x32xf32>
    %36 = arith.mulf %34, %35 : vector<16x32xf32>
    %37 = vector.extract_strided_slice %28 {offsets = [0, 0], sizes = [1, 32], strides = [1, 1]} : vector<1x96xf32> to vector<1x32xf32>
    %38 = vector.broadcast %37 : vector<1x32xf32> to vector<16x32xf32>
    %39 = arith.addf %36, %38 : vector<16x32xf32>
    %40 = vector.extract_strided_slice %27 {offsets = [0, 32], sizes = [32, 32], strides = [1, 1]} : vector<32x96xf32> to vector<32x32xf32>
    %41 = arith.truncf %26 : vector<16x32xf32> to vector<16x32xbf16>
    %42 = arith.truncf %40 : vector<32x32xf32> to vector<32x32xbf16>
    %cst_23 = arith.constant dense<0.000000e+00> : vector<16x32xf32>
    %43 = tpu.matmul %41, %42, %cst_23 {dimension_numbers = #tpu.dot_dimension_numbers<[1], [0], [0], [1], [0, 0, 1, 1], [], []>} : vector<16x32xbf16>, vector<32x32xbf16>, vector<16x32xf32> -> vector<16x32xf32>
    %44 = vector.extract_strided_slice %28 {offsets = [0, 32], sizes = [1, 32], strides = [1, 1]} : vector<1x96xf32> to vector<1x32xf32>
    %45 = vector.broadcast %44 : vector<1x32xf32> to vector<16x32xf32>
    %46 = arith.addf %43, %45 : vector<16x32xf32>
    %47 = vector.extract_strided_slice %27 {offsets = [0, 64], sizes = [32, 32], strides = [1, 1]} : vector<32x96xf32> to vector<32x32xf32>
    %48 = arith.truncf %26 : vector<16x32xf32> to vector<16x32xbf16>
    %49 = arith.truncf %47 : vector<32x32xf32> to vector<32x32xbf16>
    %cst_24 = arith.constant dense<0.000000e+00> : vector<16x32xf32>
    %50 = tpu.matmul %48, %49, %cst_24 {dimension_numbers = #tpu.dot_dimension_numbers<[1], [0], [0], [1], [0, 0, 1, 1], [], []>} : vector<16x32xbf16>, vector<32x32xbf16>, vector<16x32xf32> -> vector<16x32xf32>
    %51 = vector.extract_strided_slice %28 {offsets = [0, 64], sizes = [1, 32], strides = [1, 1]} : vector<1x96xf32> to vector<1x32xf32>
    %52 = vector.broadcast %51 : vector<1x32xf32> to vector<16x32xf32>
    %53 = arith.addf %50, %52 : vector<16x32xf32>
    %54 = vector.extract_strided_slice %39 {offsets = [0, 0], sizes = [16, 8], strides = [1, 1]} : vector<16x32xf32> to vector<16x8xf32>
    %55 = vector.extract_strided_slice %46 {offsets = [0, 0], sizes = [16, 8], strides = [1, 1]} : vector<16x32xf32> to vector<16x8xf32>
    %56 = arith.truncf %54 : vector<16x8xf32> to vector<16x8xbf16>
    %57 = arith.truncf %55 : vector<16x8xf32> to vector<16x8xbf16>
    %cst_25 = arith.constant dense<0.000000e+00> : vector<16x16xf32>
    %58 = tpu.matmul %56, %57, %cst_25 {dimension_numbers = #tpu.dot_dimension_numbers<[1], [1], [0], [0], [0, 0, 1, 0], [], []>} : vector<16x8xbf16>, vector<16x8xbf16>, vector<16x16xf32> -> vector<16x16xf32>
    %cst_26 = arith.constant 0.353553385 : f32
    %59 = vector.broadcast %cst_26 : f32 to vector<16x16xf32>
    %60 = arith.mulf %58, %59 : vector<16x16xf32>
    %61 = arith.addf %60, %2 : vector<16x16xf32>
    %cst_27 = arith.constant dense<0xFF800000> : vector<16xf32>
    %62 = vector.multi_reduction <maximumf>, %61, %cst_27 [1] : vector<16x16xf32> to vector<16xf32>
    %63 = vector.shape_cast %62 : vector<16xf32> to vector<16x1xf32>
    %64 = vector.broadcast %63 : vector<16x1xf32> to vector<16x16xf32>
    %65 = arith.subf %61, %64 : vector<16x16xf32>
    %66 = math.exp %65 : vector<16x16xf32>
    %cst_28 = arith.constant dense<0.000000e+00> : vector<16xf32>
    %67 = vector.multi_reduction <add>, %66, %cst_28 [1] : vector<16x16xf32> to vector<16xf32>
    %68 = vector.shape_cast %67 : vector<16xf32> to vector<16x1xf32>
    %69 = tpu.reciprocal %68 {approx = true} : vector<16x1xf32> -> vector<16x1xf32>
    %70 = vector.broadcast %69 : vector<16x1xf32> to vector<16x16xf32>
    %71 = arith.mulf %66, %70 : vector<16x16xf32>
    %72 = vector.extract_strided_slice %53 {offsets = [0, 0], sizes = [16, 8], strides = [1, 1]} : vector<16x32xf32> to vector<16x8xf32>
    %73 = arith.truncf %71 : vector<16x16xf32> to vector<16x16xbf16>
    %74 = arith.truncf %72 : vector<16x8xf32> to vector<16x8xbf16>
    %cst_29 = arith.constant dense<0.000000e+00> : vector<16x8xf32>
    %75 = tpu.matmul %73, %74, %cst_29 {dimension_numbers = #tpu.dot_dimension_numbers<[1], [0], [0], [1], [0, 0, 1, 1], [], []>} : vector<16x16xbf16>, vector<16x8xbf16>, vector<16x8xf32> -> vector<16x8xf32>
    %76 = vector.extract_strided_slice %29 {offsets = [0, 0], sizes = [8, 32], strides = [1, 1]} : vector<32x32xf32> to vector<8x32xf32>
    %77 = arith.truncf %75 : vector<16x8xf32> to vector<16x8xbf16>
    %78 = arith.truncf %76 : vector<8x32xf32> to vector<8x32xbf16>
    %cst_30 = arith.constant dense<0.000000e+00> : vector<16x32xf32>
    %79 = tpu.matmul %77, %78, %cst_30 {dimension_numbers = #tpu.dot_dimension_numbers<[1], [0], [0], [1], [0, 0, 1, 1], [], []>} : vector<16x8xbf16>, vector<8x32xbf16>, vector<16x32xf32> -> vector<16x32xf32>
    %80 = vector.broadcast %30 : vector<1x32xf32> to vector<16x32xf32>
    %81 = arith.addf %80, %79 : vector<16x32xf32>
    %82 = vector.extract_strided_slice %39 {offsets = [0, 8], sizes = [16, 8], strides = [1, 1]} : vector<16x32xf32> to vector<16x8xf32>
    %83 = vector.extract_strided_slice %46 {offsets = [0, 8], sizes = [16, 8], strides = [1, 1]} : vector<16x32xf32> to vector<16x8xf32>
    %84 = arith.truncf %82 : vector<16x8xf32> to vector<16x8xbf16>
    %85 = arith.truncf %83 : vector<16x8xf32> to vector<16x8xbf16>
    %cst_31 = arith.constant dense<0.000000e+00> : vector<16x16xf32>
    %86 = tpu.matmul %84, %85, %cst_31 {dimension_numbers = #tpu.dot_dimension_numbers<[1], [1], [0], [0], [0, 0, 1, 0], [], []>} : vector<16x8xbf16>, vector<16x8xbf16>, vector<16x16xf32> -> vector<16x16xf32>
    %cst_32 = arith.constant 0.353553385 : f32
    %87 = vector.broadcast %cst_32 : f32 to vector<16x16xf32>
    %88 = arith.mulf %86, %87 : vector<16x16xf32>
    %89 = arith.addf %88, %2 : vector<16x16xf32>
    %cst_33 = arith.constant dense<0xFF800000> : vector<16xf32>
    %90 = vector.multi_reduction <maximumf>, %89, %cst_33 [1] : vector<16x16xf32> to vector<16xf32>
    %91 = vector.shape_cast %90 : vector<16xf32> to vector<16x1xf32>
    %92 = vector.broadcast %91 : vector<16x1xf32> to vector<16x16xf32>
    %93 = arith.subf %89, %92 : vector<16x16xf32>
    %94 = math.exp %93 : vector<16x16xf32>
    %cst_34 = arith.constant dense<0.000000e+00> : vector<16xf32>
    %95 = vector.multi_reduction <add>, %94, %cst_34 [1] : vector<16x16xf32> to vector<16xf32>
    %96 = vector.shape_cast %95 : vector<16xf32> to vector<16x1xf32>
    %97 = tpu.reciprocal %96 {approx = true} : vector<16x1xf32> -> vector<16x1xf32>
    %98 = vector.broadcast %97 : vector<16x1xf32> to vector<16x16xf32>
    %99 = arith.mulf %94, %98 : vector<16x16xf32>
    %100 = vector.extract_strided_slice %53 {offsets = [0, 8], sizes = [16, 8], strides = [1, 1]} : vector<16x32xf32> to vector<16x8xf32>
    %101 = arith.truncf %99 : vector<16x16xf32> to vector<16x16xbf16>
    %102 = arith.truncf %100 : vector<16x8xf32> to vector<16x8xbf16>
    %cst_35 = arith.constant dense<0.000000e+00> : vector<16x8xf32>
    %103 = tpu.matmul %101, %102, %cst_35 {dimension_numbers = #tpu.dot_dimension_numbers<[1], [0], [0], [1], [0, 0, 1, 1], [], []>} : vector<16x16xbf16>, vector<16x8xbf16>, vector<16x8xf32> -> vector<16x8xf32>
    %104 = vector.extract_strided_slice %29 {offsets = [8, 0], sizes = [8, 32], strides = [1, 1]} : vector<32x32xf32> to vector<8x32xf32>
    %105 = arith.truncf %103 : vector<16x8xf32> to vector<16x8xbf16>
    %106 = arith.truncf %104 : vector<8x32xf32> to vector<8x32xbf16>
    %cst_36 = arith.constant dense<0.000000e+00> : vector<16x32xf32>
    %107 = tpu.matmul %105, %106, %cst_36 {dimension_numbers = #tpu.dot_dimension_numbers<[1], [0], [0], [1], [0, 0, 1, 1], [], []>} : vector<16x8xbf16>, vector<8x32xbf16>, vector<16x32xf32> -> vector<16x32xf32>
    %108 = arith.addf %81, %107 : vector<16x32xf32>
    %109 = vector.extract_strided_slice %39 {offsets = [0, 16], sizes = [16, 8], strides = [1, 1]} : vector<16x32xf32> to vector<16x8xf32>
    %110 = vector.extract_strided_slice %46 {offsets = [0, 16], sizes = [16, 8], strides = [1, 1]} : vector<16x32xf32> to vector<16x8xf32>
    %111 = arith.truncf %109 : vector<16x8xf32> to vector<16x8xbf16>
    %112 = arith.truncf %110 : vector<16x8xf32> to vector<16x8xbf16>
    %cst_37 = arith.constant dense<0.000000e+00> : vector<16x16xf32>
    %113 = tpu.matmul %111, %112, %cst_37 {dimension_numbers = #tpu.dot_dimension_numbers<[1], [1], [0], [0], [0, 0, 1, 0], [], []>} : vector<16x8xbf16>, vector<16x8xbf16>, vector<16x16xf32> -> vector<16x16xf32>
    %cst_38 = arith.constant 0.353553385 : f32
    %114 = vector.broadcast %cst_38 : f32 to vector<16x16xf32>
    %115 = arith.mulf %113, %114 : vector<16x16xf32>
    %116 = arith.addf %115, %2 : vector<16x16xf32>
    %cst_39 = arith.constant dense<0xFF800000> : vector<16xf32>
    %117 = vector.multi_reduction <maximumf>, %116, %cst_39 [1] : vector<16x16xf32> to vector<16xf32>
    %118 = vector.shape_cast %117 : vector<16xf32> to vector<16x1xf32>
    %119 = vector.broadcast %118 : vector<16x1xf32> to vector<16x16xf32>
    %120 = arith.subf %116, %119 : vector<16x16xf32>
    %121 = math.exp %120 : vector<16x16xf32>
    %cst_40 = arith.constant dense<0.000000e+00> : vector<16xf32>
    %122 = vector.multi_reduction <add>, %121, %cst_40 [1] : vector<16x16xf32> to vector<16xf32>
    %123 = vector.shape_cast %122 : vector<16xf32> to vector<16x1xf32>
    %124 = tpu.reciprocal %123 {approx = true} : vector<16x1xf32> -> vector<16x1xf32>
    %125 = vector.broadcast %124 : vector<16x1xf32> to vector<16x16xf32>
    %126 = arith.mulf %121, %125 : vector<16x16xf32>
    %127 = vector.extract_strided_slice %53 {offsets = [0, 16], sizes = [16, 8], strides = [1, 1]} : vector<16x32xf32> to vector<16x8xf32>
    %128 = arith.truncf %126 : vector<16x16xf32> to vector<16x16xbf16>
    %129 = arith.truncf %127 : vector<16x8xf32> to vector<16x8xbf16>
    %cst_41 = arith.constant dense<0.000000e+00> : vector<16x8xf32>
    %130 = tpu.matmul %128, %129, %cst_41 {dimension_numbers = #tpu.dot_dimension_numbers<[1], [0], [0], [1], [0, 0, 1, 1], [], []>} : vector<16x16xbf16>, vector<16x8xbf16>, vector<16x8xf32> -> vector<16x8xf32>
    %131 = vector.extract_strided_slice %29 {offsets = [16, 0], sizes = [8, 32], strides = [1, 1]} : vector<32x32xf32> to vector<8x32xf32>
    %132 = arith.truncf %130 : vector<16x8xf32> to vector<16x8xbf16>
    %133 = arith.truncf %131 : vector<8x32xf32> to vector<8x32xbf16>
    %cst_42 = arith.constant dense<0.000000e+00> : vector<16x32xf32>
    %134 = tpu.matmul %132, %133, %cst_42 {dimension_numbers = #tpu.dot_dimension_numbers<[1], [0], [0], [1], [0, 0, 1, 1], [], []>} : vector<16x8xbf16>, vector<8x32xbf16>, vector<16x32xf32> -> vector<16x32xf32>
    %135 = arith.addf %108, %134 : vector<16x32xf32>
    %136 = vector.extract_strided_slice %39 {offsets = [0, 24], sizes = [16, 8], strides = [1, 1]} : vector<16x32xf32> to vector<16x8xf32>
    %137 = vector.extract_strided_slice %46 {offsets = [0, 24], sizes = [16, 8], strides = [1, 1]} : vector<16x32xf32> to vector<16x8xf32>
    %138 = arith.truncf %136 : vector<16x8xf32> to vector<16x8xbf16>
    %139 = arith.truncf %137 : vector<16x8xf32> to vector<16x8xbf16>
    %cst_43 = arith.constant dense<0.000000e+00> : vector<16x16xf32>
    %140 = tpu.matmul %138, %139, %cst_43 {dimension_numbers = #tpu.dot_dimension_numbers<[1], [1], [0], [0], [0, 0, 1, 0], [], []>} : vector<16x8xbf16>, vector<16x8xbf16>, vector<16x16xf32> -> vector<16x16xf32>
    %cst_44 = arith.constant 0.353553385 : f32
    %141 = vector.broadcast %cst_44 : f32 to vector<16x16xf32>
    %142 = arith.mulf %140, %141 : vector<16x16xf32>
    %143 = arith.addf %142, %2 : vector<16x16xf32>
    %cst_45 = arith.constant dense<0xFF800000> : vector<16xf32>
    %144 = vector.multi_reduction <maximumf>, %143, %cst_45 [1] : vector<16x16xf32> to vector<16xf32>
    %145 = vector.shape_cast %144 : vector<16xf32> to vector<16x1xf32>
    %146 = vector.broadcast %145 : vector<16x1xf32> to vector<16x16xf32>
    %147 = arith.subf %143, %146 : vector<16x16xf32>
    %148 = math.exp %147 : vector<16x16xf32>
    %cst_46 = arith.constant dense<0.000000e+00> : vector<16xf32>
    %149 = vector.multi_reduction <add>, %148, %cst_46 [1] : vector<16x16xf32> to vector<16xf32>
    %150 = vector.shape_cast %149 : vector<16xf32> to vector<16x1xf32>
    %151 = tpu.reciprocal %150 {approx = true} : vector<16x1xf32> -> vector<16x1xf32>
    %152 = vector.broadcast %151 : vector<16x1xf32> to vector<16x16xf32>
    %153 = arith.mulf %148, %152 : vector<16x16xf32>
    %154 = vector.extract_strided_slice %53 {offsets = [0, 24], sizes = [16, 8], strides = [1, 1]} : vector<16x32xf32> to vector<16x8xf32>
    %155 = arith.truncf %153 : vector<16x16xf32> to vector<16x16xbf16>
    %156 = arith.truncf %154 : vector<16x8xf32> to vector<16x8xbf16>
    %cst_47 = arith.constant dense<0.000000e+00> : vector<16x8xf32>
    %157 = tpu.matmul %155, %156, %cst_47 {dimension_numbers = #tpu.dot_dimension_numbers<[1], [0], [0], [1], [0, 0, 1, 1], [], []>} : vector<16x16xbf16>, vector<16x8xbf16>, vector<16x8xf32> -> vector<16x8xf32>
    %158 = vector.extract_strided_slice %29 {offsets = [24, 0], sizes = [8, 32], strides = [1, 1]} : vector<32x32xf32> to vector<8x32xf32>
    %159 = arith.truncf %157 : vector<16x8xf32> to vector<16x8xbf16>
    %160 = arith.truncf %158 : vector<8x32xf32> to vector<8x32xbf16>
    %cst_48 = arith.constant dense<0.000000e+00> : vector<16x32xf32>
    %161 = tpu.matmul %159, %160, %cst_48 {dimension_numbers = #tpu.dot_dimension_numbers<[1], [0], [0], [1], [0, 0, 1, 1], [], []>} : vector<16x8xbf16>, vector<8x32xbf16>, vector<16x32xf32> -> vector<16x32xf32>
    %162 = arith.addf %135, %161 : vector<16x32xf32>
    %163 = arith.addf %0, %162 : vector<16x32xf32>
    %c0_49 = arith.constant 0 : index
    %c0_50 = arith.constant 0 : index
    %164 = vector.load %arg9[%c0_49, %c0_50] : memref<1x32xf32, #tpu.memory_space<vmem>>, vector<1x32xf32>
    %c0_51 = arith.constant 0 : index
    %c0_52 = arith.constant 0 : index
    %165 = vector.load %arg10[%c0_51, %c0_52] : memref<1x32xf32, #tpu.memory_space<vmem>>, vector<1x32xf32>
    %cst_53 = arith.constant dense<0.000000e+00> : vector<16xf32>
    %166 = vector.multi_reduction <add>, %163, %cst_53 [1] : vector<16x32xf32> to vector<16xf32>
    %167 = vector.shape_cast %166 : vector<16xf32> to vector<16x1xf32>
    %cst_54 = arith.constant 3.200000e+01 : f32
    %168 = vector.broadcast %cst_54 : f32 to vector<16x1xf32>
    %169 = arith.divf %167, %168 : vector<16x1xf32>
    %170 = vector.broadcast %169 : vector<16x1xf32> to vector<16x32xf32>
    %171 = arith.subf %163, %170 : vector<16x32xf32>
    %172 = arith.mulf %171, %171 : vector<16x32xf32>
    %cst_55 = arith.constant dense<0.000000e+00> : vector<16xf32>
    %173 = vector.multi_reduction <add>, %172, %cst_55 [1] : vector<16x32xf32> to vector<16xf32>
    %174 = vector.shape_cast %173 : vector<16xf32> to vector<16x1xf32>
    %cst_56 = arith.constant 3.200000e+01 : f32
    %175 = vector.broadcast %cst_56 : f32 to vector<16x1xf32>
    %176 = arith.divf %174, %175 : vector<16x1xf32>
    %177 = vector.broadcast %169 : vector<16x1xf32> to vector<16x32xf32>
    %178 = arith.subf %163, %177 : vector<16x32xf32>
    %cst_57 = arith.constant 9.99999974E-6 : f32
    %179 = vector.broadcast %cst_57 : f32 to vector<16x1xf32>
    %180 = arith.addf %176, %179 : vector<16x1xf32>
    %181 = math.rsqrt %180 : vector<16x1xf32>
    %182 = vector.broadcast %181 : vector<16x1xf32> to vector<16x32xf32>
    %183 = arith.mulf %178, %182 : vector<16x32xf32>
    %184 = vector.broadcast %164 : vector<1x32xf32> to vector<16x32xf32>
    %185 = arith.mulf %183, %184 : vector<16x32xf32>
    %186 = vector.broadcast %165 : vector<1x32xf32> to vector<16x32xf32>
    %187 = arith.addf %185, %186 : vector<16x32xf32>
    %c0_58 = arith.constant 0 : index
    %c0_59 = arith.constant 0 : index
    %188 = vector.load %arg11[%c0_58, %c0_59] : memref<32x96xf32, #tpu.memory_space<vmem>>, vector<32x96xf32>
    %c0_60 = arith.constant 0 : index
    %c0_61 = arith.constant 0 : index
    %189 = vector.load %arg12[%c0_60, %c0_61] : memref<1x96xf32, #tpu.memory_space<vmem>>, vector<1x96xf32>
    %c0_62 = arith.constant 0 : index
    %c0_63 = arith.constant 0 : index
    %190 = vector.load %arg13[%c0_62, %c0_63] : memref<32x32xf32, #tpu.memory_space<vmem>>, vector<32x32xf32>
    %c0_64 = arith.constant 0 : index
    %c0_65 = arith.constant 0 : index
    %191 = vector.load %arg14[%c0_64, %c0_65] : memref<1x32xf32, #tpu.memory_space<vmem>>, vector<1x32xf32>
    %192 = vector.extract_strided_slice %188 {offsets = [0, 0], sizes = [32, 32], strides = [1, 1]} : vector<32x96xf32> to vector<32x32xf32>
    %193 = arith.truncf %187 : vector<16x32xf32> to vector<16x32xbf16>
    %194 = arith.truncf %192 : vector<32x32xf32> to vector<32x32xbf16>
    %cst_66 = arith.constant dense<0.000000e+00> : vector<16x32xf32>
    %195 = tpu.matmul %193, %194, %cst_66 {dimension_numbers = #tpu.dot_dimension_numbers<[1], [0], [0], [1], [0, 0, 1, 1], [], []>} : vector<16x32xbf16>, vector<32x32xbf16>, vector<16x32xf32> -> vector<16x32xf32>
    %cst_67 = arith.constant 0.176776692 : f32
    %196 = vector.broadcast %cst_67 : f32 to vector<16x32xf32>
    %197 = arith.mulf %195, %196 : vector<16x32xf32>
    %198 = vector.extract_strided_slice %189 {offsets = [0, 0], sizes = [1, 32], strides = [1, 1]} : vector<1x96xf32> to vector<1x32xf32>
    %199 = vector.broadcast %198 : vector<1x32xf32> to vector<16x32xf32>
    %200 = arith.addf %197, %199 : vector<16x32xf32>
    %201 = vector.extract_strided_slice %188 {offsets = [0, 32], sizes = [32, 32], strides = [1, 1]} : vector<32x96xf32> to vector<32x32xf32>
    %202 = arith.truncf %1 : vector<16x32xf32> to vector<16x32xbf16>
    %203 = arith.truncf %201 : vector<32x32xf32> to vector<32x32xbf16>
    %cst_68 = arith.constant dense<0.000000e+00> : vector<16x32xf32>
    %204 = tpu.matmul %202, %203, %cst_68 {dimension_numbers = #tpu.dot_dimension_numbers<[1], [0], [0], [1], [0, 0, 1, 1], [], []>} : vector<16x32xbf16>, vector<32x32xbf16>, vector<16x32xf32> -> vector<16x32xf32>
    %205 = vector.extract_strided_slice %189 {offsets = [0, 32], sizes = [1, 32], strides = [1, 1]} : vector<1x96xf32> to vector<1x32xf32>
    %206 = vector.broadcast %205 : vector<1x32xf32> to vector<16x32xf32>
    %207 = arith.addf %204, %206 : vector<16x32xf32>
    %208 = vector.extract_strided_slice %188 {offsets = [0, 64], sizes = [32, 32], strides = [1, 1]} : vector<32x96xf32> to vector<32x32xf32>
    %209 = arith.truncf %1 : vector<16x32xf32> to vector<16x32xbf16>
    %210 = arith.truncf %208 : vector<32x32xf32> to vector<32x32xbf16>
    %cst_69 = arith.constant dense<0.000000e+00> : vector<16x32xf32>
    %211 = tpu.matmul %209, %210, %cst_69 {dimension_numbers = #tpu.dot_dimension_numbers<[1], [0], [0], [1], [0, 0, 1, 1], [], []>} : vector<16x32xbf16>, vector<32x32xbf16>, vector<16x32xf32> -> vector<16x32xf32>
    %212 = vector.extract_strided_slice %189 {offsets = [0, 64], sizes = [1, 32], strides = [1, 1]} : vector<1x96xf32> to vector<1x32xf32>
    %213 = vector.broadcast %212 : vector<1x32xf32> to vector<16x32xf32>
    %214 = arith.addf %211, %213 : vector<16x32xf32>
    %215 = vector.extract_strided_slice %200 {offsets = [0, 0], sizes = [16, 8], strides = [1, 1]} : vector<16x32xf32> to vector<16x8xf32>
    %216 = vector.extract_strided_slice %207 {offsets = [0, 0], sizes = [16, 8], strides = [1, 1]} : vector<16x32xf32> to vector<16x8xf32>
    %217 = arith.truncf %215 : vector<16x8xf32> to vector<16x8xbf16>
    %218 = arith.truncf %216 : vector<16x8xf32> to vector<16x8xbf16>
    %cst_70 = arith.constant dense<0.000000e+00> : vector<16x16xf32>
    %219 = tpu.matmul %217, %218, %cst_70 {dimension_numbers = #tpu.dot_dimension_numbers<[1], [1], [0], [0], [0, 0, 1, 0], [], []>} : vector<16x8xbf16>, vector<16x8xbf16>, vector<16x16xf32> -> vector<16x16xf32>
    %cst_71 = arith.constant 0.353553385 : f32
    %220 = vector.broadcast %cst_71 : f32 to vector<16x16xf32>
    %221 = arith.mulf %219, %220 : vector<16x16xf32>
    %222 = arith.addf %221, %2 : vector<16x16xf32>
    %cst_72 = arith.constant dense<0xFF800000> : vector<16xf32>
    %223 = vector.multi_reduction <maximumf>, %222, %cst_72 [1] : vector<16x16xf32> to vector<16xf32>
    %224 = vector.shape_cast %223 : vector<16xf32> to vector<16x1xf32>
    %225 = vector.broadcast %224 : vector<16x1xf32> to vector<16x16xf32>
    %226 = arith.subf %222, %225 : vector<16x16xf32>
    %227 = math.exp %226 : vector<16x16xf32>
    %cst_73 = arith.constant dense<0.000000e+00> : vector<16xf32>
    %228 = vector.multi_reduction <add>, %227, %cst_73 [1] : vector<16x16xf32> to vector<16xf32>
    %229 = vector.shape_cast %228 : vector<16xf32> to vector<16x1xf32>
    %230 = tpu.reciprocal %229 {approx = true} : vector<16x1xf32> -> vector<16x1xf32>
    %231 = vector.broadcast %230 : vector<16x1xf32> to vector<16x16xf32>
    %232 = arith.mulf %227, %231 : vector<16x16xf32>
    %233 = vector.extract_strided_slice %214 {offsets = [0, 0], sizes = [16, 8], strides = [1, 1]} : vector<16x32xf32> to vector<16x8xf32>
    %234 = arith.truncf %232 : vector<16x16xf32> to vector<16x16xbf16>
    %235 = arith.truncf %233 : vector<16x8xf32> to vector<16x8xbf16>
    %cst_74 = arith.constant dense<0.000000e+00> : vector<16x8xf32>
    %236 = tpu.matmul %234, %235, %cst_74 {dimension_numbers = #tpu.dot_dimension_numbers<[1], [0], [0], [1], [0, 0, 1, 1], [], []>} : vector<16x16xbf16>, vector<16x8xbf16>, vector<16x8xf32> -> vector<16x8xf32>
    %237 = vector.extract_strided_slice %190 {offsets = [0, 0], sizes = [8, 32], strides = [1, 1]} : vector<32x32xf32> to vector<8x32xf32>
    %238 = arith.truncf %236 : vector<16x8xf32> to vector<16x8xbf16>
    %239 = arith.truncf %237 : vector<8x32xf32> to vector<8x32xbf16>
    %cst_75 = arith.constant dense<0.000000e+00> : vector<16x32xf32>
    %240 = tpu.matmul %238, %239, %cst_75 {dimension_numbers = #tpu.dot_dimension_numbers<[1], [0], [0], [1], [0, 0, 1, 1], [], []>} : vector<16x8xbf16>, vector<8x32xbf16>, vector<16x32xf32> -> vector<16x32xf32>
    %241 = vector.broadcast %191 : vector<1x32xf32> to vector<16x32xf32>
    %242 = arith.addf %241, %240 : vector<16x32xf32>
    %243 = vector.extract_strided_slice %200 {offsets = [0, 8], sizes = [16, 8], strides = [1, 1]} : vector<16x32xf32> to vector<16x8xf32>
    %244 = vector.extract_strided_slice %207 {offsets = [0, 8], sizes = [16, 8], strides = [1, 1]} : vector<16x32xf32> to vector<16x8xf32>
    %245 = arith.truncf %243 : vector<16x8xf32> to vector<16x8xbf16>
    %246 = arith.truncf %244 : vector<16x8xf32> to vector<16x8xbf16>
    %cst_76 = arith.constant dense<0.000000e+00> : vector<16x16xf32>
    %247 = tpu.matmul %245, %246, %cst_76 {dimension_numbers = #tpu.dot_dimension_numbers<[1], [1], [0], [0], [0, 0, 1, 0], [], []>} : vector<16x8xbf16>, vector<16x8xbf16>, vector<16x16xf32> -> vector<16x16xf32>
    %cst_77 = arith.constant 0.353553385 : f32
    %248 = vector.broadcast %cst_77 : f32 to vector<16x16xf32>
    %249 = arith.mulf %247, %248 : vector<16x16xf32>
    %250 = arith.addf %249, %2 : vector<16x16xf32>
    %cst_78 = arith.constant dense<0xFF800000> : vector<16xf32>
    %251 = vector.multi_reduction <maximumf>, %250, %cst_78 [1] : vector<16x16xf32> to vector<16xf32>
    %252 = vector.shape_cast %251 : vector<16xf32> to vector<16x1xf32>
    %253 = vector.broadcast %252 : vector<16x1xf32> to vector<16x16xf32>
    %254 = arith.subf %250, %253 : vector<16x16xf32>
    %255 = math.exp %254 : vector<16x16xf32>
    %cst_79 = arith.constant dense<0.000000e+00> : vector<16xf32>
    %256 = vector.multi_reduction <add>, %255, %cst_79 [1] : vector<16x16xf32> to vector<16xf32>
    %257 = vector.shape_cast %256 : vector<16xf32> to vector<16x1xf32>
    %258 = tpu.reciprocal %257 {approx = true} : vector<16x1xf32> -> vector<16x1xf32>
    %259 = vector.broadcast %258 : vector<16x1xf32> to vector<16x16xf32>
    %260 = arith.mulf %255, %259 : vector<16x16xf32>
    %261 = vector.extract_strided_slice %214 {offsets = [0, 8], sizes = [16, 8], strides = [1, 1]} : vector<16x32xf32> to vector<16x8xf32>
    %262 = arith.truncf %260 : vector<16x16xf32> to vector<16x16xbf16>
    %263 = arith.truncf %261 : vector<16x8xf32> to vector<16x8xbf16>
    %cst_80 = arith.constant dense<0.000000e+00> : vector<16x8xf32>
    %264 = tpu.matmul %262, %263, %cst_80 {dimension_numbers = #tpu.dot_dimension_numbers<[1], [0], [0], [1], [0, 0, 1, 1], [], []>} : vector<16x16xbf16>, vector<16x8xbf16>, vector<16x8xf32> -> vector<16x8xf32>
    %265 = vector.extract_strided_slice %190 {offsets = [8, 0], sizes = [8, 32], strides = [1, 1]} : vector<32x32xf32> to vector<8x32xf32>
    %266 = arith.truncf %264 : vector<16x8xf32> to vector<16x8xbf16>
    %267 = arith.truncf %265 : vector<8x32xf32> to vector<8x32xbf16>
    %cst_81 = arith.constant dense<0.000000e+00> : vector<16x32xf32>
    %268 = tpu.matmul %266, %267, %cst_81 {dimension_numbers = #tpu.dot_dimension_numbers<[1], [0], [0], [1], [0, 0, 1, 1], [], []>} : vector<16x8xbf16>, vector<8x32xbf16>, vector<16x32xf32> -> vector<16x32xf32>
    %269 = arith.addf %242, %268 : vector<16x32xf32>
    %270 = vector.extract_strided_slice %200 {offsets = [0, 16], sizes = [16, 8], strides = [1, 1]} : vector<16x32xf32> to vector<16x8xf32>
    %271 = vector.extract_strided_slice %207 {offsets = [0, 16], sizes = [16, 8], strides = [1, 1]} : vector<16x32xf32> to vector<16x8xf32>
    %272 = arith.truncf %270 : vector<16x8xf32> to vector<16x8xbf16>
    %273 = arith.truncf %271 : vector<16x8xf32> to vector<16x8xbf16>
    %cst_82 = arith.constant dense<0.000000e+00> : vector<16x16xf32>
    %274 = tpu.matmul %272, %273, %cst_82 {dimension_numbers = #tpu.dot_dimension_numbers<[1], [1], [0], [0], [0, 0, 1, 0], [], []>} : vector<16x8xbf16>, vector<16x8xbf16>, vector<16x16xf32> -> vector<16x16xf32>
    %cst_83 = arith.constant 0.353553385 : f32
    %275 = vector.broadcast %cst_83 : f32 to vector<16x16xf32>
    %276 = arith.mulf %274, %275 : vector<16x16xf32>
    %277 = arith.addf %276, %2 : vector<16x16xf32>
    %cst_84 = arith.constant dense<0xFF800000> : vector<16xf32>
    %278 = vector.multi_reduction <maximumf>, %277, %cst_84 [1] : vector<16x16xf32> to vector<16xf32>
    %279 = vector.shape_cast %278 : vector<16xf32> to vector<16x1xf32>
    %280 = vector.broadcast %279 : vector<16x1xf32> to vector<16x16xf32>
    %281 = arith.subf %277, %280 : vector<16x16xf32>
    %282 = math.exp %281 : vector<16x16xf32>
    %cst_85 = arith.constant dense<0.000000e+00> : vector<16xf32>
    %283 = vector.multi_reduction <add>, %282, %cst_85 [1] : vector<16x16xf32> to vector<16xf32>
    %284 = vector.shape_cast %283 : vector<16xf32> to vector<16x1xf32>
    %285 = tpu.reciprocal %284 {approx = true} : vector<16x1xf32> -> vector<16x1xf32>
    %286 = vector.broadcast %285 : vector<16x1xf32> to vector<16x16xf32>
    %287 = arith.mulf %282, %286 : vector<16x16xf32>
    %288 = vector.extract_strided_slice %214 {offsets = [0, 16], sizes = [16, 8], strides = [1, 1]} : vector<16x32xf32> to vector<16x8xf32>
    %289 = arith.truncf %287 : vector<16x16xf32> to vector<16x16xbf16>
    %290 = arith.truncf %288 : vector<16x8xf32> to vector<16x8xbf16>
    %cst_86 = arith.constant dense<0.000000e+00> : vector<16x8xf32>
    %291 = tpu.matmul %289, %290, %cst_86 {dimension_numbers = #tpu.dot_dimension_numbers<[1], [0], [0], [1], [0, 0, 1, 1], [], []>} : vector<16x16xbf16>, vector<16x8xbf16>, vector<16x8xf32> -> vector<16x8xf32>
    %292 = vector.extract_strided_slice %190 {offsets = [16, 0], sizes = [8, 32], strides = [1, 1]} : vector<32x32xf32> to vector<8x32xf32>
    %293 = arith.truncf %291 : vector<16x8xf32> to vector<16x8xbf16>
    %294 = arith.truncf %292 : vector<8x32xf32> to vector<8x32xbf16>
    %cst_87 = arith.constant dense<0.000000e+00> : vector<16x32xf32>
    %295 = tpu.matmul %293, %294, %cst_87 {dimension_numbers = #tpu.dot_dimension_numbers<[1], [0], [0], [1], [0, 0, 1, 1], [], []>} : vector<16x8xbf16>, vector<8x32xbf16>, vector<16x32xf32> -> vector<16x32xf32>
    %296 = arith.addf %269, %295 : vector<16x32xf32>
    %297 = vector.extract_strided_slice %200 {offsets = [0, 24], sizes = [16, 8], strides = [1, 1]} : vector<16x32xf32> to vector<16x8xf32>
    %298 = vector.extract_strided_slice %207 {offsets = [0, 24], sizes = [16, 8], strides = [1, 1]} : vector<16x32xf32> to vector<16x8xf32>
    %299 = arith.truncf %297 : vector<16x8xf32> to vector<16x8xbf16>
    %300 = arith.truncf %298 : vector<16x8xf32> to vector<16x8xbf16>
    %cst_88 = arith.constant dense<0.000000e+00> : vector<16x16xf32>
    %301 = tpu.matmul %299, %300, %cst_88 {dimension_numbers = #tpu.dot_dimension_numbers<[1], [1], [0], [0], [0, 0, 1, 0], [], []>} : vector<16x8xbf16>, vector<16x8xbf16>, vector<16x16xf32> -> vector<16x16xf32>
    %cst_89 = arith.constant 0.353553385 : f32
    %302 = vector.broadcast %cst_89 : f32 to vector<16x16xf32>
    %303 = arith.mulf %301, %302 : vector<16x16xf32>
    %304 = arith.addf %303, %2 : vector<16x16xf32>
    %cst_90 = arith.constant dense<0xFF800000> : vector<16xf32>
    %305 = vector.multi_reduction <maximumf>, %304, %cst_90 [1] : vector<16x16xf32> to vector<16xf32>
    %306 = vector.shape_cast %305 : vector<16xf32> to vector<16x1xf32>
    %307 = vector.broadcast %306 : vector<16x1xf32> to vector<16x16xf32>
    %308 = arith.subf %304, %307 : vector<16x16xf32>
    %309 = math.exp %308 : vector<16x16xf32>
    %cst_91 = arith.constant dense<0.000000e+00> : vector<16xf32>
    %310 = vector.multi_reduction <add>, %309, %cst_91 [1] : vector<16x16xf32> to vector<16xf32>
    %311 = vector.shape_cast %310 : vector<16xf32> to vector<16x1xf32>
    %312 = tpu.reciprocal %311 {approx = true} : vector<16x1xf32> -> vector<16x1xf32>
    %313 = vector.broadcast %312 : vector<16x1xf32> to vector<16x16xf32>
    %314 = arith.mulf %309, %313 : vector<16x16xf32>
    %315 = vector.extract_strided_slice %214 {offsets = [0, 24], sizes = [16, 8], strides = [1, 1]} : vector<16x32xf32> to vector<16x8xf32>
    %316 = arith.truncf %314 : vector<16x16xf32> to vector<16x16xbf16>
    %317 = arith.truncf %315 : vector<16x8xf32> to vector<16x8xbf16>
    %cst_92 = arith.constant dense<0.000000e+00> : vector<16x8xf32>
    %318 = tpu.matmul %316, %317, %cst_92 {dimension_numbers = #tpu.dot_dimension_numbers<[1], [0], [0], [1], [0, 0, 1, 1], [], []>} : vector<16x16xbf16>, vector<16x8xbf16>, vector<16x8xf32> -> vector<16x8xf32>
    %319 = vector.extract_strided_slice %190 {offsets = [24, 0], sizes = [8, 32], strides = [1, 1]} : vector<32x32xf32> to vector<8x32xf32>
    %320 = arith.truncf %318 : vector<16x8xf32> to vector<16x8xbf16>
    %321 = arith.truncf %319 : vector<8x32xf32> to vector<8x32xbf16>
    %cst_93 = arith.constant dense<0.000000e+00> : vector<16x32xf32>
    %322 = tpu.matmul %320, %321, %cst_93 {dimension_numbers = #tpu.dot_dimension_numbers<[1], [0], [0], [1], [0, 0, 1, 1], [], []>} : vector<16x8xbf16>, vector<8x32xbf16>, vector<16x32xf32> -> vector<16x32xf32>
    %323 = arith.addf %296, %322 : vector<16x32xf32>
    %324 = arith.addf %163, %323 : vector<16x32xf32>
    %c0_94 = arith.constant 0 : index
    %c0_95 = arith.constant 0 : index
    %325 = vector.load %arg15[%c0_94, %c0_95] : memref<1x32xf32, #tpu.memory_space<vmem>>, vector<1x32xf32>
    %c0_96 = arith.constant 0 : index
    %c0_97 = arith.constant 0 : index
    %326 = vector.load %arg16[%c0_96, %c0_97] : memref<1x32xf32, #tpu.memory_space<vmem>>, vector<1x32xf32>
    %cst_98 = arith.constant dense<0.000000e+00> : vector<16xf32>
    %327 = vector.multi_reduction <add>, %324, %cst_98 [1] : vector<16x32xf32> to vector<16xf32>
    %328 = vector.shape_cast %327 : vector<16xf32> to vector<16x1xf32>
    %cst_99 = arith.constant 3.200000e+01 : f32
    %329 = vector.broadcast %cst_99 : f32 to vector<16x1xf32>
    %330 = arith.divf %328, %329 : vector<16x1xf32>
    %331 = vector.broadcast %330 : vector<16x1xf32> to vector<16x32xf32>
    %332 = arith.subf %324, %331 : vector<16x32xf32>
    %333 = arith.mulf %332, %332 : vector<16x32xf32>
    %cst_100 = arith.constant dense<0.000000e+00> : vector<16xf32>
    %334 = vector.multi_reduction <add>, %333, %cst_100 [1] : vector<16x32xf32> to vector<16xf32>
    %335 = vector.shape_cast %334 : vector<16xf32> to vector<16x1xf32>
    %cst_101 = arith.constant 3.200000e+01 : f32
    %336 = vector.broadcast %cst_101 : f32 to vector<16x1xf32>
    %337 = arith.divf %335, %336 : vector<16x1xf32>
    %338 = vector.broadcast %330 : vector<16x1xf32> to vector<16x32xf32>
    %339 = arith.subf %324, %338 : vector<16x32xf32>
    %cst_102 = arith.constant 9.99999974E-6 : f32
    %340 = vector.broadcast %cst_102 : f32 to vector<16x1xf32>
    %341 = arith.addf %337, %340 : vector<16x1xf32>
    %342 = math.rsqrt %341 : vector<16x1xf32>
    %343 = vector.broadcast %342 : vector<16x1xf32> to vector<16x32xf32>
    %344 = arith.mulf %339, %343 : vector<16x32xf32>
    %345 = vector.broadcast %325 : vector<1x32xf32> to vector<16x32xf32>
    %346 = arith.mulf %344, %345 : vector<16x32xf32>
    %347 = vector.broadcast %326 : vector<1x32xf32> to vector<16x32xf32>
    %348 = arith.addf %346, %347 : vector<16x32xf32>
    %c0_103 = arith.constant 0 : index
    %c0_104 = arith.constant 0 : index
    %349 = vector.load %arg17[%c0_103, %c0_104] : memref<32x128xf32, #tpu.memory_space<vmem>>, vector<32x128xf32>
    %c0_105 = arith.constant 0 : index
    %c0_106 = arith.constant 0 : index
    %350 = vector.load %arg18[%c0_105, %c0_106] : memref<1x128xf32, #tpu.memory_space<vmem>>, vector<1x128xf32>
    %c0_107 = arith.constant 0 : index
    %c0_108 = arith.constant 0 : index
    %351 = vector.load %arg19[%c0_107, %c0_108] : memref<128x32xf32, #tpu.memory_space<vmem>>, vector<128x32xf32>
    %c0_109 = arith.constant 0 : index
    %c0_110 = arith.constant 0 : index
    %352 = vector.load %arg20[%c0_109, %c0_110] : memref<1x32xf32, #tpu.memory_space<vmem>>, vector<1x32xf32>
    %353 = arith.truncf %348 : vector<16x32xf32> to vector<16x32xbf16>
    %354 = arith.truncf %349 : vector<32x128xf32> to vector<32x128xbf16>
    %cst_111 = arith.constant dense<0.000000e+00> : vector<16x128xf32>
    %355 = tpu.matmul %353, %354, %cst_111 {dimension_numbers = #tpu.dot_dimension_numbers<[1], [0], [0], [1], [0, 0, 1, 1], [], []>} : vector<16x32xbf16>, vector<32x128xbf16>, vector<16x128xf32> -> vector<16x128xf32>
    %356 = vector.broadcast %350 : vector<1x128xf32> to vector<16x128xf32>
    %357 = arith.addf %355, %356 : vector<16x128xf32>
    %cst_112 = arith.constant 0.000000e+00 : f32
    %358 = vector.broadcast %cst_112 : f32 to vector<16x128xf32>
    %359 = arith.maximumf %357, %358 : vector<16x128xf32>
    %360 = arith.truncf %359 : vector<16x128xf32> to vector<16x128xbf16>
    %361 = arith.truncf %351 : vector<128x32xf32> to vector<128x32xbf16>
    %cst_113 = arith.constant dense<0.000000e+00> : vector<16x32xf32>
    %362 = tpu.matmul %360, %361, %cst_113 {dimension_numbers = #tpu.dot_dimension_numbers<[1], [0], [0], [1], [0, 0, 1, 1], [], []>} : vector<16x128xbf16>, vector<128x32xbf16>, vector<16x32xf32> -> vector<16x32xf32>
    %363 = vector.broadcast %352 : vector<1x32xf32> to vector<16x32xf32>
    %364 = arith.addf %362, %363 : vector<16x32xf32>
    %365 = arith.addf %324, %364 : vector<16x32xf32>
    %c0_114 = arith.constant 0 : index
    %c0_115 = arith.constant 0 : index
    %366 = vector.load %arg24[%c0_114, %c0_115] : memref<16x32xf32, #tpu.memory_space<vmem>>, vector<16x32xf32>
    tpu.vector_store %arg24[%c0_114, %c0_115], %365 {strides = array<i32>} : memref<16x32xf32, #tpu.memory_space<vmem>>, vector<16x32xf32>,
    %c0_116 = arith.constant 0 : index
    %c0_117 = arith.constant 0 : index
    %367 = vector.load %arg21[%c0_116, %c0_117] : memref<2x16xf32, #tpu.memory_space<vmem>>, vector<2x16xf32>
    %cst_118 = arith.constant dense<0.000000e+00> : vector<2x32xf32>
    %368 = tpu.matmul %367, %365, %cst_118 {dimension_numbers = #tpu.dot_dimension_numbers<[1], [0], [0], [1], [0, 0, 1, 1], [], []>} : vector<2x16xf32>, vector<16x32xf32>, vector<2x32xf32> -> vector<2x32xf32>
    %c0_119 = arith.constant 0 : index
    %c0_120 = arith.constant 0 : index
    %369 = vector.load %arg22[%c0_119, %c0_120] : memref<32x2xf32, #tpu.memory_space<vmem>>, vector<32x2xf32>
    %cst_121 = arith.constant dense<0.000000e+00> : vector<2x2xf32>
    %370 = tpu.matmul %368, %369, %cst_121 {dimension_numbers = #tpu.dot_dimension_numbers<[1], [0], [0], [1], [0, 0, 1, 1], [], []>} : vector<2x32xf32>, vector<32x2xf32>, vector<2x2xf32> -> vector<2x2xf32>
    %c0_122 = arith.constant 0 : index
    %c0_123 = arith.constant 0 : index
    %371 = vector.load %arg23[%c0_122, %c0_123] : memref<1x2xf32, #tpu.memory_space<vmem>>, vector<1x2xf32>
    %372 = vector.broadcast %371 : vector<1x2xf32> to vector<2x2xf32>
    %373 = arith.addf %370, %372 : vector<2x2xf32>
    %cst_124 = arith.constant dense<0xFF800000> : vector<2xf32>
    %374 = vector.multi_reduction <maximumf>, %373, %cst_124 [1] : vector<2x2xf32> to vector<2xf32>
    %375 = vector.shape_cast %374 : vector<2xf32> to vector<2x1xf32>
    %376 = vector.broadcast %375 : vector<2x1xf32> to vector<2x2xf32>
    %377 = arith.subf %373, %376 : vector<2x2xf32>
    %378 = math.exp %377 : vector<2x2xf32>
    %cst_125 = arith.constant dense<0.000000e+00> : vector<2xf32>
    %379 = vector.multi_reduction <add>, %378, %cst_125 [1] : vector<2x2xf32> to vector<2xf32>
    %380 = vector.shape_cast %379 : vector<2xf32> to vector<2x1xf32>
    %381 = tpu.reciprocal %380 {approx = true} : vector<2x1xf32> -> vector<2x1xf32>
    %382 = vector.broadcast %381 : vector<2x1xf32> to vector<2x2xf32>
    %383 = arith.mulf %378, %382 : vector<2x2xf32>
    %c0_126 = arith.constant 0 : index
    %c0_127 = arith.constant 0 : index
    %384 = vector.load %arg25[%c0_126, %c0_127] : memref<2x2xf32, #tpu.memory_space<vmem>>, vector<2x2xf32>
    tpu.vector_store %arg25[%c0_126, %c0_127], %383 {strides = array<i32>} : memref<2x2xf32, #tpu.memory_space<vmem>>, vector<2x2xf32>,
    return
  }
}

</mosaic_0001>

<llo_original>
// kernel: transformer_forward.4
$region0: #{transformer_forward.4}
  #allocation0 [shape = 'u32[]', space=smem, size = 0x4, offset = 0x4, fixed_abs, tag = 'smem constant byte address 0x4 - core index']
  #allocation1 [shape = 'u32[144,128]{1,0:T(1,128)}', space=vmem, size = 0x12000, scoped, tag = 'internal scratch']
  %s0 = inlined_call_operand.vmem [shape: f32[16,32], index: 0, kind: input, shape index: {}]
  %s1 = inlined_call_operand.vmem [shape: f32[16,16], index: 1, kind: input, shape index: {}]
  %s2 = inlined_call_operand.vmem [shape: f32[1,32], index: 2, kind: input, shape index: {}]
  %s3 = inlined_call_operand.vmem [shape: f32[1,32], index: 3, kind: input, shape index: {}]
  %s4 = inlined_call_operand.vmem [shape: f32[32,96], index: 4, kind: input, shape index: {}]
  %s5 = inlined_call_operand.vmem [shape: f32[1,96], index: 5, kind: input, shape index: {}]
  %s6 = inlined_call_operand.vmem [shape: f32[32,32], index: 6, kind: input, shape index: {}]
  %s7 = inlined_call_operand.vmem [shape: f32[1,32], index: 7, kind: input, shape index: {}]
  %s8 = inlined_call_operand.vmem [shape: f32[1,32], index: 8, kind: input, shape index: {}]
  %s9 = inlined_call_operand.vmem [shape: f32[1,32], index: 9, kind: input, shape index: {}]
  %s10 = inlined_call_operand.vmem [shape: f32[32,128], index: 10, kind: input, shape index: {}]
  %s11 = inlined_call_operand.vmem [shape: f32[1,128], index: 11, kind: input, shape index: {}]
  %s12 = inlined_call_operand.vmem [shape: f32[128,32], index: 12, kind: input, shape index: {}]
  %s13 = inlined_call_operand.vmem [shape: f32[1,32], index: 13, kind: input, shape index: {}]
  %s14 = inlined_call_operand.vmem [shape: f32[16,32], index: 14, kind: output, shape index: {}]
  %s15 = sld [smem:[#allocation0]]
  $region66: #{transformer_forward.4} parent=0
    _
  %s17 = ssub.s32 1, %s15
  %s18 = scalar_select 0, %s17, %s15
  // Predicated region
  $region2: #{transformer_forward.4} parent=0 // pred_check
    _
  $region3: #{transformer_forward.4} parent=0 // pred_check_branch
    %20 = sbr.rel (0) target = $region5
  $region4: #{transformer_forward.4} parent=0 // pred_region
    _
  $region5: #{transformer_forward.4} parent=0 // pred_fallthru
    _
  // Predicated region
  $region6: #{transformer_forward.4} parent=0 // pred_check
    _
  $region7: #{transformer_forward.4} parent=0 // pred_check_branch
    %22 = sbr.rel (0) target = $region9
  $region8: #{transformer_forward.4} parent=0 // pred_region
    _
  $region9: #{transformer_forward.4} parent=0 // pred_fallthru
    _
  // Predicated region
  $region10: #{transformer_forward.4} parent=0 // pred_check
    _
  $region11: #{transformer_forward.4} parent=0 // pred_check_branch
    %24 = sbr.rel (0) target = $region13
  $region12: #{transformer_forward.4} parent=0 // pred_region
    _
  $region13: #{transformer_forward.4} parent=0 // pred_fallthru
    _
  // Predicated region
  $region14: #{transformer_forward.4} parent=0 // pred_check
    _
  $region15: #{transformer_forward.4} parent=0 // pred_check_branch
    %26 = sbr.rel (0) target = $region17
  $region16: #{transformer_forward.4} parent=0 // pred_region
    _
  $region17: #{transformer_forward.4} parent=0 // pred_fallthru
    _
  // Predicated region
  $region18: #{transformer_forward.4} parent=0 // pred_check
    _
  $region19: #{transformer_forward.4} parent=0 // pred_check_branch
    %28 = sbr.rel (0) target = $region21
  $region20: #{transformer_forward.4} parent=0 // pred_region
    _
  $region21: #{transformer_forward.4} parent=0 // pred_fallthru
    _
  // Predicated region
  $region22: #{transformer_forward.4} parent=0 // pred_check
    _
  $region23: #{transformer_forward.4} parent=0 // pred_check_branch
    %30 = sbr.rel (0) target = $region25
  $region24: #{transformer_forward.4} parent=0 // pred_region
    _
  $region25: #{transformer_forward.4} parent=0 // pred_fallthru
    _
  // Predicated region
  $region26: #{transformer_forward.4} parent=0 // pred_check
    _
  $region27: #{transformer_forward.4} parent=0 // pred_check_branch
    %32 = sbr.rel (0) target = $region29
  $region28: #{transformer_forward.4} parent=0 // pred_region
    _
  $region29: #{transformer_forward.4} parent=0 // pred_fallthru
    _
  // Predicated region
  $region30: #{transformer_forward.4} parent=0 // pred_check
    _
  $region31: #{transformer_forward.4} parent=0 // pred_check_branch
    %34 = sbr.rel (0) target = $region33
  $region32: #{transformer_forward.4} parent=0 // pred_region
    _
  $region33: #{transformer_forward.4} parent=0 // pred_fallthru
    _
  // Predicated region
  $region34: #{transformer_forward.4} parent=0 // pred_check
    _
  $region35: #{transformer_forward.4} parent=0 // pred_check_branch
    %36 = sbr.rel (0) target = $region37
  $region36: #{transformer_forward.4} parent=0 // pred_region
    _
  $region37: #{transformer_forward.4} parent=0 // pred_fallthru
    _
  // Predicated region
  $region38: #{transformer_forward.4} parent=0 // pred_check
    _
  $region39: #{transformer_forward.4} parent=0 // pred_check_branch
    %38 = sbr.rel (0) target = $region41
  $region40: #{transformer_forward.4} parent=0 // pred_region
    _
  $region41: #{transformer_forward.4} parent=0 // pred_fallthru
    _
  // Predicated region
  $region42: #{transformer_forward.4} parent=0 // pred_check
    _
  $region43: #{transformer_forward.4} parent=0 // pred_check_branch
    %40 = sbr.rel (0) target = $region45
  $region44: #{transformer_forward.4} parent=0 // pred_region
    _
  $region45: #{transformer_forward.4} parent=0 // pred_fallthru
    _
  // Predicated region
  $region46: #{transformer_forward.4} parent=0 // pred_check
    _
  $region47: #{transformer_forward.4} parent=0 // pred_check_branch
    %42 = sbr.rel (0) target = $region49
  $region48: #{transformer_forward.4} parent=0 // pred_region
    _
  $region49: #{transformer_forward.4} parent=0 // pred_fallthru
    _
  // Predicated region
  $region50: #{transformer_forward.4} parent=0 // pred_check
    _
  $region51: #{transformer_forward.4} parent=0 // pred_check_branch
    %44 = sbr.rel (0) target = $region53
  $region52: #{transformer_forward.4} parent=0 // pred_region
    _
  $region53: #{transformer_forward.4} parent=0 // pred_fallthru
    _
  // Predicated region
  $region54: #{transformer_forward.4} parent=0 // pred_check
    _
  $region55: #{transformer_forward.4} parent=0 // pred_check_branch
    %46 = sbr.rel (0) target = $region57
  $region56: #{transformer_forward.4} parent=0 // pred_region
    _
  $region57: #{transformer_forward.4} parent=0 // pred_fallthru
    _
  %v48 = vld [vmem:[%s0] sm:$0xff]
  %v49 = vld [vmem:[%s0 + $0x8] sm:$0xff]
  %v50 = vld [vmem:[%s2] sm:$0x1]
  %v51 = vld [vmem:[%s3] sm:$0x1]
  %vm52 = vcmask 261120
  %v53 = vsel %vm52, %v48, 0.0
  %54 = vadd.xlane.f32.xlu0 %v53
  %v55 = vpop.xlane.xlu0 %54
  %v56 = vsel %vm52, %v49, 0.0
  %57 = vadd.xlane.f32.xlu0 %v56
  %v58 = vpop.xlane.xlu0 %57
  %v59 = vrcp.pop 32.0
  %v60 = vmul.f32 %v55, %v59
  %v61 = vmul.f32 %v58, %v59
  %v62 = vsub.f32 %v48, %v60
  %v63 = vsub.f32 %v49, %v61
  %v64 = vmul.f32 %v62, %v62
  %v65 = vmul.f32 %v63, %v63
  %v66 = vsel %vm52, %v64, 0.0
  %67 = vadd.xlane.f32.xlu0 %v66
  %v68 = vpop.xlane.xlu0 %67
  %v69 = vsel %vm52, %v65, 0.0
  %70 = vadd.xlane.f32.xlu0 %v69
  %v71 = vpop.xlane.xlu0 %70
  %v72 = vmul.f32 %v68, %v59
  %v73 = vmul.f32 %v71, %v59
  %v74 = vadd.f32 %v72, 1e-05
  %v75 = vadd.f32 %v73, 1e-05
  %v76 = vrsqrt.pop %v74
  %v77 = vrsqrt.pop %v75
  %v78 = vmul.f32 %v62, %v76
  %v79 = vmul.f32 %v63, %v77
  %v81 = vlaneseq
  %v82 = vshrl.u32 %v81, 7
  %v83 = vsub.s32 0, %v82
  %v84 = vrot.slane %v50, %v83
  %v86 = vmul.f32 %v78, %v84
  %v87 = vmul.f32 %v79, %v84
  %v89 = vlaneseq
  %v90 = vshrl.u32 %v89, 7
  %v91 = vsub.s32 0, %v90
  %v92 = vrot.slane %v51, %v91
  %v94 = vadd.f32 %v86, %v92
  %v95 = vadd.f32 %v87, %v92
  %v96 = vld [vmem:[%s1] sm:$0xff]
  %v97 = vld [vmem:[%s1 + $0x8] sm:$0xff]
  %v98 = vld [vmem:[%s4] sm:$0xff]
  %v99 = vld [vmem:[%s4 + $0x8] sm:$0xff]
  %v100 = vld [vmem:[%s4 + $0x10] sm:$0xff]
  %v101 = vld [vmem:[%s4 + $0x18] sm:$0xff]
  %v102 = vld [vmem:[%s5] sm:$0x1]
  %v103 = vld [vmem:[%s6] sm:$0xff]
  %v104 = vld [vmem:[%s6 + $0x8] sm:$0xff]
  %v105 = vld [vmem:[%s6 + $0x10] sm:$0xff]
  %v106 = vld [vmem:[%s6 + $0x18] sm:$0xff]
  %v107 = vld [vmem:[%s7] sm:$0x1]
  %v108 = vpack.c.bf16 %v95, %v94
  %v109 = vpack.c.bf16 %v99, %v98
  %v110 = vpack.c.bf16 %v101, %v100
  %v112 = vsel %vm52, %v108, 0
  %114 = vmatprep.subr.bf16.mxu0 0
  %115 = vmatpush1.bf16.msra.mxu0 %v109
  %116 = vmatprep.subr.bf16.mxu0 0
  %117 = vmatpush1.bf16.msra.mxu0 %v110
  %118 = vmatprep.subr.bf16.mxu0 0
  %119 = vmatpush1.bf16.msra.mxu0 0
  %120 = vmatprep.subr.bf16.mxu0 0
  %121 = vmatpush1.bf16.msra.mxu0 0
  %122 = vmatprep.subr.bf16.mxu0 0
  %123 = vmatpush1.bf16.msra.mxu0 0
  %124 = vmatprep.subr.bf16.mxu0 0
  %125 = vmatpush1.bf16.msra.mxu0 0
  %126 = vmatprep.subr.bf16.mxu0 0
  %127 = vmatpush1.bf16.msra.mxu0 0
  %128 = vmatprep.subr.bf16.mxu0 0
  %129 = vmatpush1.bf16.msra.mxu0 0
  %130 = vmatprep.subr.bf16.mxu0 0
  %131 = vmatpush1.bf16.msra.mxu0 0
  %132 = vmatprep.subr.bf16.mxu0 0
  %133 = vmatpush1.bf16.msra.mxu0 0
  %134 = vmatprep.subr.bf16.mxu0 0
  %135 = vmatpush1.bf16.msra.mxu0 0
  %136 = vmatprep.subr.bf16.mxu0 0
  %137 = vmatpush1.bf16.msra.mxu0 0
  %138 = vmatprep.subr.bf16.mxu0 0
  %139 = vmatpush1.bf16.msra.mxu0 0
  %140 = vmatprep.subr.bf16.mxu0 0
  %141 = vmatpush1.bf16.msra.mxu0 0
  %142 = vmatprep.subr.bf16.mxu0 0
  %143 = vmatpush1.bf16.msra.mxu0 0
  %144 = vmatprep.subr.bf16.mxu0 0
  %145 = vmatpush1.bf16.msra.mxu0 0
  %146 = vmatprep.mubr.bf16.mxu0 0
  %147 = vmatmul.mubr.bf16.gmra.mrb[0].mxu0 %v112
  %v148 = vpop.f32.mrb[0].mxu0
  %v149 = vadd.f32 0.0, %v148
  %v150 = vpop.f32.mrb[0].mxu0
  %v151 = vpop.f32.mrb[0].mxu0
  %v152 = vadd.f32 0.0, %v151
  %v153 = vpop.f32.mrb[0].mxu0
  %154 = vdwg.mxu0
  %v155 = vmul.f32 %v149, 0.17677669
  %v156 = vmul.f32 %v152, 0.17677669
  %v158 = vlaneseq
  %v159 = vshrl.u32 %v158, 7
  %v160 = vsub.s32 0, %v159
  %v161 = vrot.slane %v102, %v160
  %v163 = vadd.f32 %v155, %v161
  %v164 = vadd.f32 %v156, %v161
  %167 = vrot.lane.b32.xlu0 %v109, 96
  %v168 = vpop.permute.xlu0 %167
  %169 = vrot.lane.b32.xlu0 %v110, 96
  %v170 = vpop.permute.xlu0 %169
  %173 = vrot.lane.b32.xlu0 %v161, 96
  %v174 = vpop.permute.xlu0 %173
  %176 = vmatprep.subr.bf16.mxu0 0
  %177 = vmatpush1.bf16.msra.mxu0 %v168
  %178 = vmatprep.subr.bf16.mxu0 0
  %179 = vmatpush1.bf16.msra.mxu0 %v170
  %180 = vmatprep.subr.bf16.mxu0 0
  %181 = vmatpush1.bf16.msra.mxu0 0
  %182 = vmatprep.subr.bf16.mxu0 0
  %183 = vmatpush1.bf16.msra.mxu0 0
  %184 = vmatprep.subr.bf16.mxu0 0
  %185 = vmatpush1.bf16.msra.mxu0 0
  %186 = vmatprep.subr.bf16.mxu0 0
  %187 = vmatpush1.bf16.msra.mxu0 0
  %188 = vmatprep.subr.bf16.mxu0 0
  %189 = vmatpush1.bf16.msra.mxu0 0
  %190 = vmatprep.subr.bf16.mxu0 0
  %191 = vmatpush1.bf16.msra.mxu0 0
  %192 = vmatprep.subr.bf16.mxu0 0
  %193 = vmatpush1.bf16.msra.mxu0 0
  %194 = vmatprep.subr.bf16.mxu0 0
  %195 = vmatpush1.bf16.msra.mxu0 0
  %196 = vmatprep.subr.bf16.mxu0 0
  %197 = vmatpush1.bf16.msra.mxu0 0
  %198 = vmatprep.subr.bf16.mxu0 0
  %199 = vmatpush1.bf16.msra.mxu0 0
  %200 = vmatprep.subr.bf16.mxu0 0
  %201 = vmatpush1.bf16.msra.mxu0 0
  %202 = vmatprep.subr.bf16.mxu0 0
  %203 = vmatpush1.bf16.msra.mxu0 0
  %204 = vmatprep.subr.bf16.mxu0 0
  %205 = vmatpush1.bf16.msra.mxu0 0
  %206 = vmatprep.subr.bf16.mxu0 0
  %207 = vmatpush1.bf16.msra.mxu0 0
  %208 = vmatprep.mubr.bf16.mxu0 0
  %209 = vmatmul.mubr.bf16.gmra.mrb[0].mxu0 %v112
  %v210 = vpop.f32.mrb[0].mxu0
  %v211 = vadd.f32 %v174, %v210
  %v212 = vpop.f32.mrb[0].mxu0
  %v213 = vpop.f32.mrb[0].mxu0
  %v214 = vadd.f32 %v174, %v213
  %v215 = vpop.f32.mrb[0].mxu0
  %216 = vdwg.mxu0
  %217 = vrot.lane.b32.xlu0 %v109, 64
  %v218 = vpop.permute.xlu0 %217
  %219 = vrot.lane.b32.xlu0 %v110, 64
  %v220 = vpop.permute.xlu0 %219
  %223 = vrot.lane.b32.xlu0 %v161, 64
  %v224 = vpop.permute.xlu0 %223
  %226 = vmatprep.subr.bf16.mxu0 0
  %227 = vmatpush1.bf16.msra.mxu0 %v218
  %228 = vmatprep.subr.bf16.mxu0 0
  %229 = vmatpush1.bf16.msra.mxu0 %v220
  %230 = vmatprep.subr.bf16.mxu0 0
  %231 = vmatpush1.bf16.msra.mxu0 0
  %232 = vmatprep.subr.bf16.mxu0 0
  %233 = vmatpush1.bf16.msra.mxu0 0
  %234 = vmatprep.subr.bf16.mxu0 0
  %235 = vmatpush1.bf16.msra.mxu0 0
  %236 = vmatprep.subr.bf16.mxu0 0
  %237 = vmatpush1.bf16.msra.mxu0 0
  %238 = vmatprep.subr.bf16.mxu0 0
  %239 = vmatpush1.bf16.msra.mxu0 0
  %240 = vmatprep.subr.bf16.mxu0 0
  %241 = vmatpush1.bf16.msra.mxu0 0
  %242 = vmatprep.subr.bf16.mxu0 0
  %243 = vmatpush1.bf16.msra.mxu0 0
  %244 = vmatprep.subr.bf16.mxu0 0
  %245 = vmatpush1.bf16.msra.mxu0 0
  %246 = vmatprep.subr.bf16.mxu0 0
  %247 = vmatpush1.bf16.msra.mxu0 0
  %248 = vmatprep.subr.bf16.mxu0 0
  %249 = vmatpush1.bf16.msra.mxu0 0
  %250 = vmatprep.subr.bf16.mxu0 0
  %251 = vmatpush1.bf16.msra.mxu0 0
  %252 = vmatprep.subr.bf16.mxu0 0
  %253 = vmatpush1.bf16.msra.mxu0 0
  %254 = vmatprep.subr.bf16.mxu0 0
  %255 = vmatpush1.bf16.msra.mxu0 0
  %256 = vmatprep.subr.bf16.mxu0 0
  %257 = vmatpush1.bf16.msra.mxu0 0
  %258 = vmatprep.mubr.bf16.mxu0 0
  %259 = vmatmul.mubr.bf16.gmra.mrb[0].mxu0 %v112
  %v260 = vpop.f32.mrb[0].mxu0
  %v261 = vadd.f32 %v224, %v260
  %v262 = vpop.f32.mrb[0].mxu0
  %v263 = vpop.f32.mrb[0].mxu0
  %v264 = vadd.f32 %v224, %v263
  %v265 = vpop.f32.mrb[0].mxu0
  %266 = vdwg.mxu0
  %v267 = vpack.c.bf16 %v164, %v163
  %v268 = vpack.c.bf16 %v214, %v211
  %vm269 = vcmask 64512
  %v271 = vsel %vm269, %v267, 0
  %v274 = vsel %vm269, %v268, 0
  %276 = vmatprep.subr.bf16.mxu0 0
  %277 = vmatpush1.bf16.xpose.msra.mxu0 %v274
  %278 = vmatprep.subr.bf16.mxu0 0
  %279 = vmatpush1.bf16.xpose.msra.mxu0 0
  %280 = vmatprep.subr.bf16.mxu0 0
  %281 = vmatpush1.bf16.xpose.msra.mxu0 0
  %282 = vmatprep.subr.bf16.mxu0 0
  %283 = vmatpush1.bf16.xpose.msra.mxu0 0
  %284 = vmatprep.subr.bf16.mxu0 0
  %285 = vmatpush1.bf16.xpose.msra.mxu0 0
  %286 = vmatprep.subr.bf16.mxu0 0
  %287 = vmatpush1.bf16.xpose.msra.mxu0 0
  %288 = vmatprep.subr.bf16.mxu0 0
  %289 = vmatpush1.bf16.xpose.msra.mxu0 0
  %290 = vmatprep.subr.bf16.mxu0 0
  %291 = vmatpush1.bf16.xpose.msra.mxu0 0
  %292 = vmatprep.subr.bf16.mxu0 0
  %293 = vmatpush1.bf16.xpose.msra.mxu0 0
  %294 = vmatprep.subr.bf16.mxu0 0
  %295 = vmatpush1.bf16.xpose.msra.mxu0 0
  %296 = vmatprep.subr.bf16.mxu0 0
  %297 = vmatpush1.bf16.xpose.msra.mxu0 0
  %298 = vmatprep.subr.bf16.mxu0 0
  %299 = vmatpush1.bf16.xpose.msra.mxu0 0
  %300 = vmatprep.subr.bf16.mxu0 0
  %301 = vmatpush1.bf16.xpose.msra.mxu0 0
  %302 = vmatprep.subr.bf16.mxu0 0
  %303 = vmatpush1.bf16.xpose.msra.mxu0 0
  %304 = vmatprep.subr.bf16.mxu0 0
  %305 = vmatpush1.bf16.xpose.msra.mxu0 0
  %306 = vmatprep.subr.bf16.mxu0 0
  %307 = vmatpush1.bf16.xpose.msra.mxu0 0
  %308 = vmatprep.mubr.bf16.mxu0 0
  %309 = vmatmul.mubr.bf16.gmra.mrb[0].mxu0 %v271
  %v310 = vpop.f32.mrb[0].mxu0
  %v311 = vadd.f32 0.0, %v310
  %v312 = vpop.f32.mrb[0].mxu0
  %v313 = vpop.f32.mrb[0].mxu0
  %v314 = vadd.f32 0.0, %v313
  %v315 = vpop.f32.mrb[0].mxu0
  %316 = vdwg.mxu0
  %v317 = vmul.f32 %v311, 0.35355338
  %v318 = vmul.f32 %v314, 0.35355338
  %v319 = vadd.f32 %v317, %v96
  %v320 = vadd.f32 %v318, %v97
  %vm321 = vcmask 130048
  %v322 = vsel %vm321, %v319, -inf
  %323 = vmax.xlane.f32.xlu0 %v322
  %v324 = vpop.xlane.xlu0 %323
  %v325 = vsel %vm321, %v320, -inf
  %326 = vmax.xlane.f32.xlu0 %v325
  %v327 = vpop.xlane.xlu0 %326
  %v328 = vsub.f32 %v319, %v324
  %v329 = vsub.f32 %v320, %v327
  %v330 = vmul.f32 %v328, 1.442695
  %v331 = vpow.pop %v330
  %v332 = vmul.f32 %v329, 1.442695
  %v333 = vpow.pop %v332
  %v334 = vsel %vm321, %v331, 0.0
  %335 = vadd.xlane.f32.xlu0 %v334
  %v336 = vpop.xlane.xlu0 %335
  %v337 = vsel %vm321, %v333, 0.0
  %338 = vadd.xlane.f32.xlu0 %v337
  %v339 = vpop.xlane.xlu0 %338
  %v340 = vrcp.pop %v336
  %v341 = vrcp.pop %v339
  %v342 = vmul.f32 %v331, %v340
  %v343 = vmul.f32 %v333, %v341
  %v344 = vpack.c.bf16 %v343, %v342
  %v345 = vpack.c.bf16 %v264, %v261
  %v347 = vsel %vm321, %v344, 0
  %349 = vmatprep.subr.bf16.mxu0 0
  %350 = vmatpush1.bf16.msra.mxu0 %v345
  %351 = vmatprep.subr.bf16.mxu0 0
  %352 = vmatpush1.bf16.msra.mxu0 0
  %353 = vmatprep.subr.bf16.mxu0 0
  %354 = vmatpush1.bf16.msra.mxu0 0
  %355 = vmatprep.subr.bf16.mxu0 0
  %356 = vmatpush1.bf16.msra.mxu0 0
  %357 = vmatprep.subr.bf16.mxu0 0
  %358 = vmatpush1.bf16.msra.mxu0 0
  %359 = vmatprep.subr.bf16.mxu0 0
  %360 = vmatpush1.bf16.msra.mxu0 0
  %361 = vmatprep.subr.bf16.mxu0 0
  %362 = vmatpush1.bf16.msra.mxu0 0
  %363 = vmatprep.subr.bf16.mxu0 0
  %364 = vmatpush1.bf16.msra.mxu0 0
  %365 = vmatprep.subr.bf16.mxu0 0
  %366 = vmatpush1.bf16.msra.mxu0 0
  %367 = vmatprep.subr.bf16.mxu0 0
  %368 = vmatpush1.bf16.msra.mxu0 0
  %369 = vmatprep.subr.bf16.mxu0 0
  %370 = vmatpush1.bf16.msra.mxu0 0
  %371 = vmatprep.subr.bf16.mxu0 0
  %372 = vmatpush1.bf16.msra.mxu0 0
  %373 = vmatprep.subr.bf16.mxu0 0
  %374 = vmatpush1.bf16.msra.mxu0 0
  %375 = vmatprep.subr.bf16.mxu0 0
  %376 = vmatpush1.bf16.msra.mxu0 0
  %377 = vmatprep.subr.bf16.mxu0 0
  %378 = vmatpush1.bf16.msra.mxu0 0
  %379 = vmatprep.subr.bf16.mxu0 0
  %380 = vmatpush1.bf16.msra.mxu0 0
  %381 = vmatprep.mubr.bf16.mxu0 0
  %382 = vmatmul.mubr.bf16.gmra.mrb[0].mxu0 %v347
  %v383 = vpop.f32.mrb[0].mxu0
  %v384 = vadd.f32 0.0, %v383
  %v385 = vpop.f32.mrb[0].mxu0
  %v386 = vpop.f32.mrb[0].mxu0
  %v387 = vadd.f32 0.0, %v386
  %v388 = vpop.f32.mrb[0].mxu0
  %389 = vdwg.mxu0
  %v390 = vpack.c.bf16 %v387, %v384
  %v391 = vpack.c.bf16 %v103, %v103
  %v393 = vsel %vm269, %v390, 0
  %vm395 = vcmask 1043456
  %v397 = vsel %vm395, %v391, 0
  %399 = vmatprep.subr.bf16.mxu0 0
  %400 = vmatpush1.bf16.msra.mxu0 %v397
  %401 = vmatprep.subr.bf16.mxu0 0
  %402 = vmatpush1.bf16.msra.mxu0 0
  %403 = vmatprep.subr.bf16.mxu0 0
  %404 = vmatpush1.bf16.msra.mxu0 0
  %405 = vmatprep.subr.bf16.mxu0 0
  %406 = vmatpush1.bf16.msra.mxu0 0
  %407 = vmatprep.subr.bf16.mxu0 0
  %408 = vmatpush1.bf16.msra.mxu0 0
  %409 = vmatprep.subr.bf16.mxu0 0
  %410 = vmatpush1.bf16.msra.mxu0 0
  %411 = vmatprep.subr.bf16.mxu0 0
  %412 = vmatpush1.bf16.msra.mxu0 0
  %413 = vmatprep.subr.bf16.mxu0 0
  %414 = vmatpush1.bf16.msra.mxu0 0
  %415 = vmatprep.subr.bf16.mxu0 0
  %416 = vmatpush1.bf16.msra.mxu0 0
  %417 = vmatprep.subr.bf16.mxu0 0
  %418 = vmatpush1.bf16.msra.mxu0 0
  %419 = vmatprep.subr.bf16.mxu0 0
  %420 = vmatpush1.bf16.msra.mxu0 0
  %421 = vmatprep.subr.bf16.mxu0 0
  %422 = vmatpush1.bf16.msra.mxu0 0
  %423 = vmatprep.subr.bf16.mxu0 0
  %424 = vmatpush1.bf16.msra.mxu0 0
  %425 = vmatprep.subr.bf16.mxu0 0
  %426 = vmatpush1.bf16.msra.mxu0 0
  %427 = vmatprep.subr.bf16.mxu0 0
  %428 = vmatpush1.bf16.msra.mxu0 0
  %429 = vmatprep.subr.bf16.mxu0 0
  %430 = vmatpush1.bf16.msra.mxu0 0
  %431 = vmatprep.mubr.bf16.mxu0 0
  %432 = vmatmul.mubr.bf16.gmra.mrb[0].mxu0 %v393
  %v433 = vpop.f32.mrb[0].mxu0
  %v434 = vadd.f32 0.0, %v433
  %v435 = vpop.f32.mrb[0].mxu0
  %v436 = vpop.f32.mrb[0].mxu0
  %v437 = vadd.f32 0.0, %v436
  %v438 = vpop.f32.mrb[0].mxu0
  %439 = vdwg.mxu0
  %v441 = vlaneseq
  %v442 = vshrl.u32 %v441, 7
  %v443 = vsub.s32 0, %v442
  %v444 = vrot.slane %v107, %v443
  %v446 = vadd.f32 %v444, %v434
  %v447 = vadd.f32 %v444, %v437
  %449 = vrot.lane.b32.xlu0 %v267, 120
  %v450 = vpop.permute.xlu0 %449
  %452 = vrot.lane.b32.xlu0 %v268, 120
  %v453 = vpop.permute.xlu0 %452
  %v455 = vsel %vm269, %v450, 0
  %v458 = vsel %vm269, %v453, 0
  %460 = vmatprep.subr.bf16.mxu0 0
  %461 = vmatpush1.bf16.xpose.msra.mxu0 %v458
  %462 = vmatprep.subr.bf16.mxu0 0
  %463 = vmatpush1.bf16.xpose.msra.mxu0 0
  %464 = vmatprep.subr.bf16.mxu0 0
  %465 = vmatpush1.bf16.xpose.msra.mxu0 0
  %466 = vmatprep.subr.bf16.mxu0 0
  %467 = vmatpush1.bf16.xpose.msra.mxu0 0
  %468 = vmatprep.subr.bf16.mxu0 0
  %469 = vmatpush1.bf16.xpose.msra.mxu0 0
  %470 = vmatprep.subr.bf16.mxu0 0
  %471 = vmatpush1.bf16.xpose.msra.mxu0 0
  %472 = vmatprep.subr.bf16.mxu0 0
  %473 = vmatpush1.bf16.xpose.msra.mxu0 0
  %474 = vmatprep.subr.bf16.mxu0 0
  %475 = vmatpush1.bf16.xpose.msra.mxu0 0
  %476 = vmatprep.subr.bf16.mxu0 0
  %477 = vmatpush1.bf16.xpose.msra.mxu0 0
  %478 = vmatprep.subr.bf16.mxu0 0
  %479 = vmatpush1.bf16.xpose.msra.mxu0 0
  %480 = vmatprep.subr.bf16.mxu0 0
  %481 = vmatpush1.bf16.xpose.msra.mxu0 0
  %482 = vmatprep.subr.bf16.mxu0 0
  %483 = vmatpush1.bf16.xpose.msra.mxu0 0
  %484 = vmatprep.subr.bf16.mxu0 0
  %485 = vmatpush1.bf16.xpose.msra.mxu0 0
  %486 = vmatprep.subr.bf16.mxu0 0
  %487 = vmatpush1.bf16.xpose.msra.mxu0 0
  %488 = vmatprep.subr.bf16.mxu0 0
  %489 = vmatpush1.bf16.xpose.msra.mxu0 0
  %490 = vmatprep.subr.bf16.mxu0 0
  %491 = vmatpush1.bf16.xpose.msra.mxu0 0
  %492 = vmatprep.mubr.bf16.mxu0 0
  %493 = vmatmul.mubr.bf16.gmra.mrb[0].mxu0 %v455
  %v494 = vpop.f32.mrb[0].mxu0
  %v495 = vadd.f32 0.0, %v494
  %v496 = vpop.f32.mrb[0].mxu0
  %v497 = vpop.f32.mrb[0].mxu0
  %v498 = vadd.f32 0.0, %v497
  %v499 = vpop.f32.mrb[0].mxu0
  %500 = vdwg.mxu0
  %v501 = vmul.f32 %v495, 0.35355338
  %v502 = vmul.f32 %v498, 0.35355338
  %v503 = vadd.f32 %v501, %v96
  %v504 = vadd.f32 %v502, %v97
  %v505 = vsel %vm321, %v503, -inf
  %506 = vmax.xlane.f32.xlu0 %v505
  %v507 = vpop.xlane.xlu0 %506
  %v508 = vsel %vm321, %v504, -inf
  %509 = vmax.xlane.f32.xlu0 %v508
  %v510 = vpop.xlane.xlu0 %509
  %v511 = vsub.f32 %v503, %v507
  %v512 = vsub.f32 %v504, %v510
  %v513 = vmul.f32 %v511, 1.442695
  %v514 = vpow.pop %v513
  %v515 = vmul.f32 %v512, 1.442695
  %v516 = vpow.pop %v515
  %v517 = vsel %vm321, %v514, 0.0
  %518 = vadd.xlane.f32.xlu0 %v517
  %v519 = vpop.xlane.xlu0 %518
  %v520 = vsel %vm321, %v516, 0.0
  %521 = vadd.xlane.f32.xlu0 %v520
  %v522 = vpop.xlane.xlu0 %521
  %v523 = vrcp.pop %v519
  %v524 = vrcp.pop %v522
  %v525 = vmul.f32 %v514, %v523
  %v526 = vmul.f32 %v516, %v524
  %v527 = vpack.c.bf16 %v526, %v525
  %529 = vrot.lane.b32.xlu0 %v345, 120
  %v530 = vpop.permute.xlu0 %529
  %v533 = vsel %vm321, %v527, 0
  %535 = vmatprep.subr.bf16.mxu0 0
  %536 = vmatpush1.bf16.msra.mxu0 %v530
  %537 = vmatprep.subr.bf16.mxu0 0
  %538 = vmatpush1.bf16.msra.mxu0 0
  %539 = vmatprep.subr.bf16.mxu0 0
  %540 = vmatpush1.bf16.msra.mxu0 0
  %541 = vmatprep.subr.bf16.mxu0 0
  %542 = vmatpush1.bf16.msra.mxu0 0
  %543 = vmatprep.subr.bf16.mxu0 0
  %544 = vmatpush1.bf16.msra.mxu0 0
  %545 = vmatprep.subr.bf16.mxu0 0
  %546 = vmatpush1.bf16.msra.mxu0 0
  %547 = vmatprep.subr.bf16.mxu0 0
  %548 = vmatpush1.bf16.msra.mxu0 0
  %549 = vmatprep.subr.bf16.mxu0 0
  %550 = vmatpush1.bf16.msra.mxu0 0
  %551 = vmatprep.subr.bf16.mxu0 0
  %552 = vmatpush1.bf16.msra.mxu0 0
  %553 = vmatprep.subr.bf16.mxu0 0
  %554 = vmatpush1.bf16.msra.mxu0 0
  %555 = vmatprep.subr.bf16.mxu0 0
  %556 = vmatpush1.bf16.msra.mxu0 0
  %557 = vmatprep.subr.bf16.mxu0 0
  %558 = vmatpush1.bf16.msra.mxu0 0
  %559 = vmatprep.subr.bf16.mxu0 0
  %560 = vmatpush1.bf16.msra.mxu0 0
  %561 = vmatprep.subr.bf16.mxu0 0
  %562 = vmatpush1.bf16.msra.mxu0 0
  %563 = vmatprep.subr.bf16.mxu0 0
  %564 = vmatpush1.bf16.msra.mxu0 0
  %565 = vmatprep.subr.bf16.mxu0 0
  %566 = vmatpush1.bf16.msra.mxu0 0
  %567 = vmatprep.mubr.bf16.mxu0 0
  %568 = vmatmul.mubr.bf16.gmra.mrb[0].mxu0 %v533
  %v569 = vpop.f32.mrb[0].mxu0
  %v570 = vadd.f32 0.0, %v569
  %v571 = vpop.f32.mrb[0].mxu0
  %v572 = vpop.f32.mrb[0].mxu0
  %v573 = vadd.f32 0.0, %v572
  %v574 = vpop.f32.mrb[0].mxu0
  %575 = vdwg.mxu0
  %v576 = vpack.c.bf16 %v573, %v570
  %v577 = vpack.c.bf16 %v104, %v104
  %v579 = vsel %vm269, %v576, 0
  %v582 = vsel %vm395, %v577, 0
  %584 = vmatprep.subr.bf16.mxu0 0
  %585 = vmatpush1.bf16.msra.mxu0 %v582
  %586 = vmatprep.subr.bf16.mxu0 0
  %587 = vmatpush1.bf16.msra.mxu0 0
  %588 = vmatprep.subr.bf16.mxu0 0
  %589 = vmatpush1.bf16.msra.mxu0 0
  %590 = vmatprep.subr.bf16.mxu0 0
  %591 = vmatpush1.bf16.msra.mxu0 0
  %592 = vmatprep.subr.bf16.mxu0 0
  %593 = vmatpush1.bf16.msra.mxu0 0
  %594 = vmatprep.subr.bf16.mxu0 0
  %595 = vmatpush1.bf16.msra.mxu0 0
  %596 = vmatprep.subr.bf16.mxu0 0
  %597 = vmatpush1.bf16.msra.mxu0 0
  %598 = vmatprep.subr.bf16.mxu0 0
  %599 = vmatpush1.bf16.msra.mxu0 0
  %600 = vmatprep.subr.bf16.mxu0 0
  %601 = vmatpush1.bf16.msra.mxu0 0
  %602 = vmatprep.subr.bf16.mxu0 0
  %603 = vmatpush1.bf16.msra.mxu0 0
  %604 = vmatprep.subr.bf16.mxu0 0
  %605 = vmatpush1.bf16.msra.mxu0 0
  %606 = vmatprep.subr.bf16.mxu0 0
  %607 = vmatpush1.bf16.msra.mxu0 0
  %608 = vmatprep.subr.bf16.mxu0 0
  %609 = vmatpush1.bf16.msra.mxu0 0
  %610 = vmatprep.subr.bf16.mxu0 0
  %611 = vmatpush1.bf16.msra.mxu0 0
  %612 = vmatprep.subr.bf16.mxu0 0
  %613 = vmatpush1.bf16.msra.mxu0 0
  %614 = vmatprep.subr.bf16.mxu0 0
  %615 = vmatpush1.bf16.msra.mxu0 0
  %616 = vmatprep.mubr.bf16.mxu0 0
  %617 = vmatmul.mubr.bf16.gmra.mrb[0].mxu0 %v579
  %v618 = vpop.f32.mrb[0].mxu0
  %v619 = vadd.f32 0.0, %v618
  %v620 = vpop.f32.mrb[0].mxu0
  %v621 = vpop.f32.mrb[0].mxu0
  %v622 = vadd.f32 0.0, %v621
  %v623 = vpop.f32.mrb[0].mxu0
  %624 = vdwg.mxu0
  %v625 = vadd.f32 %v446, %v619
  %v626 = vadd.f32 %v447, %v622
  %627 = vrot.lane.b32.xlu0 %v267, 112
  %v628 = vpop.permute.xlu0 %627
  %629 = vrot.lane.b32.xlu0 %v268, 112
  %v630 = vpop.permute.xlu0 %629
  %v632 = vsel %vm269, %v628, 0
  %v635 = vsel %vm269, %v630, 0
  %637 = vmatprep.subr.bf16.mxu0 0
  %638 = vmatpush1.bf16.xpose.msra.mxu0 %v635
  %639 = vmatprep.subr.bf16.mxu0 0
  %640 = vmatpush1.bf16.xpose.msra.mxu0 0
  %641 = vmatprep.subr.bf16.mxu0 0
  %642 = vmatpush1.bf16.xpose.msra.mxu0 0
  %643 = vmatprep.subr.bf16.mxu0 0
  %644 = vmatpush1.bf16.xpose.msra.mxu0 0
  %645 = vmatprep.subr.bf16.mxu0 0
  %646 = vmatpush1.bf16.xpose.msra.mxu0 0
  %647 = vmatprep.subr.bf16.mxu0 0
  %648 = vmatpush1.bf16.xpose.msra.mxu0 0
  %649 = vmatprep.subr.bf16.mxu0 0
  %650 = vmatpush1.bf16.xpose.msra.mxu0 0
  %651 = vmatprep.subr.bf16.mxu0 0
  %652 = vmatpush1.bf16.xpose.msra.mxu0 0
  %653 = vmatprep.subr.bf16.mxu0 0
  %654 = vmatpush1.bf16.xpose.msra.mxu0 0
  %655 = vmatprep.subr.bf16.mxu0 0
  %656 = vmatpush1.bf16.xpose.msra.mxu0 0
  %657 = vmatprep.subr.bf16.mxu0 0
  %658 = vmatpush1.bf16.xpose.msra.mxu0 0
  %659 = vmatprep.subr.bf16.mxu0 0
  %660 = vmatpush1.bf16.xpose.msra.mxu0 0
  %661 = vmatprep.subr.bf16.mxu0 0
  %662 = vmatpush1.bf16.xpose.msra.mxu0 0
  %663 = vmatprep.subr.bf16.mxu0 0
  %664 = vmatpush1.bf16.xpose.msra.mxu0 0
  %665 = vmatprep.subr.bf16.mxu0 0
  %666 = vmatpush1.bf16.xpose.msra.mxu0 0
  %667 = vmatprep.subr.bf16.mxu0 0
  %668 = vmatpush1.bf16.xpose.msra.mxu0 0
  %669 = vmatprep.mubr.bf16.mxu0 0
  %670 = vmatmul.mubr.bf16.gmra.mrb[0].mxu0 %v632
  %v671 = vpop.f32.mrb[0].mxu0
  %v672 = vadd.f32 0.0, %v671
  %v673 = vpop.f32.mrb[0].mxu0
  %v674 = vpop.f32.mrb[0].mxu0
  %v675 = vadd.f32 0.0, %v674
  %v676 = vpop.f32.mrb[0].mxu0
  %677 = vdwg.mxu0
  %v678 = vmul.f32 %v672, 0.35355338
  %v679 = vmul.f32 %v675, 0.35355338
  %v680 = vadd.f32 %v678, %v96
  %v681 = vadd.f32 %v679, %v97
  %v682 = vsel %vm321, %v680, -inf
  %683 = vmax.xlane.f32.xlu0 %v682
  %v684 = vpop.xlane.xlu0 %683
  %v685 = vsel %vm321, %v681, -inf
  %686 = vmax.xlane.f32.xlu0 %v685
  %v687 = vpop.xlane.xlu0 %686
  %v688 = vsub.f32 %v680, %v684
  %v689 = vsub.f32 %v681, %v687
  %v690 = vmul.f32 %v688, 1.442695
  %v691 = vpow.pop %v690
  %v692 = vmul.f32 %v689, 1.442695
  %v693 = vpow.pop %v692
  %v694 = vsel %vm321, %v691, 0.0
  %695 = vadd.xlane.f32.xlu0 %v694
  %v696 = vpop.xlane.xlu0 %695
  %v697 = vsel %vm321, %v693, 0.0
  %698 = vadd.xlane.f32.xlu0 %v697
  %v699 = vpop.xlane.xlu0 %698
  %v700 = vrcp.pop %v696
  %v701 = vrcp.pop %v699
  %v702 = vmul.f32 %v691, %v700
  %v703 = vmul.f32 %v693, %v701
  %v704 = vpack.c.bf16 %v703, %v702
  %705 = vrot.lane.b32.xlu0 %v345, 112
  %v706 = vpop.permute.xlu0 %705
  %v709 = vsel %vm321, %v704, 0
  %711 = vmatprep.subr.bf16.mxu0 0
  %712 = vmatpush1.bf16.msra.mxu0 %v706
  %713 = vmatprep.subr.bf16.mxu0 0
  %714 = vmatpush1.bf16.msra.mxu0 0
  %715 = vmatprep.subr.bf16.mxu0 0
  %716 = vmatpush1.bf16.msra.mxu0 0
  %717 = vmatprep.subr.bf16.mxu0 0
  %718 = vmatpush1.bf16.msra.mxu0 0
  %719 = vmatprep.subr.bf16.mxu0 0
  %720 = vmatpush1.bf16.msra.mxu0 0
  %721 = vmatprep.subr.bf16.mxu0 0
  %722 = vmatpush1.bf16.msra.mxu0 0
  %723 = vmatprep.subr.bf16.mxu0 0
  %724 = vmatpush1.bf16.msra.mxu0 0
  %725 = vmatprep.subr.bf16.mxu0 0
  %726 = vmatpush1.bf16.msra.mxu0 0
  %727 = vmatprep.subr.bf16.mxu0 0
  %728 = vmatpush1.bf16.msra.mxu0 0
  %729 = vmatprep.subr.bf16.mxu0 0
  %730 = vmatpush1.bf16.msra.mxu0 0
  %731 = vmatprep.subr.bf16.mxu0 0
  %732 = vmatpush1.bf16.msra.mxu0 0
  %733 = vmatprep.subr.bf16.mxu0 0
  %734 = vmatpush1.bf16.msra.mxu0 0
  %735 = vmatprep.subr.bf16.mxu0 0
  %736 = vmatpush1.bf16.msra.mxu0 0
  %737 = vmatprep.subr.bf16.mxu0 0
  %738 = vmatpush1.bf16.msra.mxu0 0
  %739 = vmatprep.subr.bf16.mxu0 0
  %740 = vmatpush1.bf16.msra.mxu0 0
  %741 = vmatprep.subr.bf16.mxu0 0
  %742 = vmatpush1.bf16.msra.mxu0 0
  %743 = vmatprep.mubr.bf16.mxu0 0
  %744 = vmatmul.mubr.bf16.gmra.mrb[0].mxu0 %v709
  %v745 = vpop.f32.mrb[0].mxu0
  %v746 = vadd.f32 0.0, %v745
  %v747 = vpop.f32.mrb[0].mxu0
  %v748 = vpop.f32.mrb[0].mxu0
  %v749 = vadd.f32 0.0, %v748
  %v750 = vpop.f32.mrb[0].mxu0
  %751 = vdwg.mxu0
  %v752 = vpack.c.bf16 %v749, %v746
  %v753 = vpack.c.bf16 %v105, %v105
  %v755 = vsel %vm269, %v752, 0
  %v758 = vsel %vm395, %v753, 0
  %760 = vmatprep.subr.bf16.mxu0 0
  %761 = vmatpush1.bf16.msra.mxu0 %v758
  %762 = vmatprep.subr.bf16.mxu0 0
  %763 = vmatpush1.bf16.msra.mxu0 0
  %764 = vmatprep.subr.bf16.mxu0 0
  %765 = vmatpush1.bf16.msra.mxu0 0
  %766 = vmatprep.subr.bf16.mxu0 0
  %767 = vmatpush1.bf16.msra.mxu0 0
  %768 = vmatprep.subr.bf16.mxu0 0
  %769 = vmatpush1.bf16.msra.mxu0 0
  %770 = vmatprep.subr.bf16.mxu0 0
  %771 = vmatpush1.bf16.msra.mxu0 0
  %772 = vmatprep.subr.bf16.mxu0 0
  %773 = vmatpush1.bf16.msra.mxu0 0
  %774 = vmatprep.subr.bf16.mxu0 0
  %775 = vmatpush1.bf16.msra.mxu0 0
  %776 = vmatprep.subr.bf16.mxu0 0
  %777 = vmatpush1.bf16.msra.mxu0 0
  %778 = vmatprep.subr.bf16.mxu0 0
  %779 = vmatpush1.bf16.msra.mxu0 0
  %780 = vmatprep.subr.bf16.mxu0 0
  %781 = vmatpush1.bf16.msra.mxu0 0
  %782 = vmatprep.subr.bf16.mxu0 0
  %783 = vmatpush1.bf16.msra.mxu0 0
  %784 = vmatprep.subr.bf16.mxu0 0
  %785 = vmatpush1.bf16.msra.mxu0 0
  %786 = vmatprep.subr.bf16.mxu0 0
  %787 = vmatpush1.bf16.msra.mxu0 0
  %788 = vmatprep.subr.bf16.mxu0 0
  %789 = vmatpush1.bf16.msra.mxu0 0
  %790 = vmatprep.subr.bf16.mxu0 0
  %791 = vmatpush1.bf16.msra.mxu0 0
  %792 = vmatprep.mubr.bf16.mxu0 0
  %793 = vmatmul.mubr.bf16.gmra.mrb[0].mxu0 %v755
  %v794 = vpop.f32.mrb[0].mxu0
  %v795 = vadd.f32 0.0, %v794
  %v796 = vpop.f32.mrb[0].mxu0
  %v797 = vpop.f32.mrb[0].mxu0
  %v798 = vadd.f32 0.0, %v797
  %v799 = vpop.f32.mrb[0].mxu0
  %800 = vdwg.mxu0
  %v801 = vadd.f32 %v625, %v795
  %v802 = vadd.f32 %v626, %v798
  %803 = vrot.lane.b32.xlu0 %v267, 104
  %v804 = vpop.permute.xlu0 %803
  %805 = vrot.lane.b32.xlu0 %v268, 104
  %v806 = vpop.permute.xlu0 %805
  %v808 = vsel %vm269, %v804, 0
  %v811 = vsel %vm269, %v806, 0
  %813 = vmatprep.subr.bf16.mxu0 0
  %814 = vmatpush1.bf16.xpose.msra.mxu0 %v811
  %815 = vmatprep.subr.bf16.mxu0 0
  %816 = vmatpush1.bf16.xpose.msra.mxu0 0
  %817 = vmatprep.subr.bf16.mxu0 0
  %818 = vmatpush1.bf16.xpose.msra.mxu0 0
  %819 = vmatprep.subr.bf16.mxu0 0
  %820 = vmatpush1.bf16.xpose.msra.mxu0 0
  %821 = vmatprep.subr.bf16.mxu0 0
  %822 = vmatpush1.bf16.xpose.msra.mxu0 0
  %823 = vmatprep.subr.bf16.mxu0 0
  %824 = vmatpush1.bf16.xpose.msra.mxu0 0
  %825 = vmatprep.subr.bf16.mxu0 0
  %826 = vmatpush1.bf16.xpose.msra.mxu0 0
  %827 = vmatprep.subr.bf16.mxu0 0
  %828 = vmatpush1.bf16.xpose.msra.mxu0 0
  %829 = vmatprep.subr.bf16.mxu0 0
  %830 = vmatpush1.bf16.xpose.msra.mxu0 0
  %831 = vmatprep.subr.bf16.mxu0 0
  %832 = vmatpush1.bf16.xpose.msra.mxu0 0
  %833 = vmatprep.subr.bf16.mxu0 0
  %834 = vmatpush1.bf16.xpose.msra.mxu0 0
  %835 = vmatprep.subr.bf16.mxu0 0
  %836 = vmatpush1.bf16.xpose.msra.mxu0 0
  %837 = vmatprep.subr.bf16.mxu0 0
  %838 = vmatpush1.bf16.xpose.msra.mxu0 0
  %839 = vmatprep.subr.bf16.mxu0 0
  %840 = vmatpush1.bf16.xpose.msra.mxu0 0
  %841 = vmatprep.subr.bf16.mxu0 0
  %842 = vmatpush1.bf16.xpose.msra.mxu0 0
  %843 = vmatprep.subr.bf16.mxu0 0
  %844 = vmatpush1.bf16.xpose.msra.mxu0 0
  %845 = vmatprep.mubr.bf16.mxu0 0
  %846 = vmatmul.mubr.bf16.gmra.mrb[0].mxu0 %v808
  %v847 = vpop.f32.mrb[0].mxu0
  %v848 = vadd.f32 0.0, %v847
  %v849 = vpop.f32.mrb[0].mxu0
  %v850 = vpop.f32.mrb[0].mxu0
  %v851 = vadd.f32 0.0, %v850
  %v852 = vpop.f32.mrb[0].mxu0
  %853 = vdwg.mxu0
  %v854 = vmul.f32 %v848, 0.35355338
  %v855 = vmul.f32 %v851, 0.35355338
  %v856 = vadd.f32 %v854, %v96
  %v857 = vadd.f32 %v855, %v97
  %v858 = vsel %vm321, %v856, -inf
  %859 = vmax.xlane.f32.xlu0 %v858
  %v860 = vpop.xlane.xlu0 %859
  %v861 = vsel %vm321, %v857, -inf
  %862 = vmax.xlane.f32.xlu0 %v861
  %v863 = vpop.xlane.xlu0 %862
  %v864 = vsub.f32 %v856, %v860
  %v865 = vsub.f32 %v857, %v863
  %v866 = vmul.f32 %v864, 1.442695
  %v867 = vpow.pop %v866
  %v868 = vmul.f32 %v865, 1.442695
  %v869 = vpow.pop %v868
  %v870 = vsel %vm321, %v867, 0.0
  %871 = vadd.xlane.f32.xlu0 %v870
  %v872 = vpop.xlane.xlu0 %871
  %v873 = vsel %vm321, %v869, 0.0
  %874 = vadd.xlane.f32.xlu0 %v873
  %v875 = vpop.xlane.xlu0 %874
  %v876 = vrcp.pop %v872
  %v877 = vrcp.pop %v875
  %v878 = vmul.f32 %v867, %v876
  %v879 = vmul.f32 %v869, %v877
  %v880 = vpack.c.bf16 %v879, %v878
  %881 = vrot.lane.b32.xlu0 %v345, 104
  %v882 = vpop.permute.xlu0 %881
  %v885 = vsel %vm321, %v880, 0
  %887 = vmatprep.subr.bf16.mxu0 0
  %888 = vmatpush1.bf16.msra.mxu0 %v882
  %889 = vmatprep.subr.bf16.mxu0 0
  %890 = vmatpush1.bf16.msra.mxu0 0
  %891 = vmatprep.subr.bf16.mxu0 0
  %892 = vmatpush1.bf16.msra.mxu0 0
  %893 = vmatprep.subr.bf16.mxu0 0
  %894 = vmatpush1.bf16.msra.mxu0 0
  %895 = vmatprep.subr.bf16.mxu0 0
  %896 = vmatpush1.bf16.msra.mxu0 0
  %897 = vmatprep.subr.bf16.mxu0 0
  %898 = vmatpush1.bf16.msra.mxu0 0
  %899 = vmatprep.subr.bf16.mxu0 0
  %900 = vmatpush1.bf16.msra.mxu0 0
  %901 = vmatprep.subr.bf16.mxu0 0
  %902 = vmatpush1.bf16.msra.mxu0 0
  %903 = vmatprep.subr.bf16.mxu0 0
  %904 = vmatpush1.bf16.msra.mxu0 0
  %905 = vmatprep.subr.bf16.mxu0 0
  %906 = vmatpush1.bf16.msra.mxu0 0
  %907 = vmatprep.subr.bf16.mxu0 0
  %908 = vmatpush1.bf16.msra.mxu0 0
  %909 = vmatprep.subr.bf16.mxu0 0
  %910 = vmatpush1.bf16.msra.mxu0 0
  %911 = vmatprep.subr.bf16.mxu0 0
  %912 = vmatpush1.bf16.msra.mxu0 0
  %913 = vmatprep.subr.bf16.mxu0 0
  %914 = vmatpush1.bf16.msra.mxu0 0
  %915 = vmatprep.subr.bf16.mxu0 0
  %916 = vmatpush1.bf16.msra.mxu0 0
  %917 = vmatprep.subr.bf16.mxu0 0
  %918 = vmatpush1.bf16.msra.mxu0 0
  %919 = vmatprep.mubr.bf16.mxu0 0
  %920 = vmatmul.mubr.bf16.gmra.mrb[0].mxu0 %v885
  %v921 = vpop.f32.mrb[0].mxu0
  %v922 = vadd.f32 0.0, %v921
  %v923 = vpop.f32.mrb[0].mxu0
  %v924 = vpop.f32.mrb[0].mxu0
  %v925 = vadd.f32 0.0, %v924
  %v926 = vpop.f32.mrb[0].mxu0
  %927 = vdwg.mxu0
  %v928 = vpack.c.bf16 %v925, %v922
  %v929 = vpack.c.bf16 %v106, %v106
  %v931 = vsel %vm269, %v928, 0
  %v934 = vsel %vm395, %v929, 0
  %936 = vmatprep.subr.bf16.mxu0 0
  %937 = vmatpush1.bf16.msra.mxu0 %v934
  %938 = vmatprep.subr.bf16.mxu0 0
  %939 = vmatpush1.bf16.msra.mxu0 0
  %940 = vmatprep.subr.bf16.mxu0 0
  %941 = vmatpush1.bf16.msra.mxu0 0
  %942 = vmatprep.subr.bf16.mxu0 0
  %943 = vmatpush1.bf16.msra.mxu0 0
  %944 = vmatprep.subr.bf16.mxu0 0
  %945 = vmatpush1.bf16.msra.mxu0 0
  %946 = vmatprep.subr.bf16.mxu0 0
  %947 = vmatpush1.bf16.msra.mxu0 0
  %948 = vmatprep.subr.bf16.mxu0 0
  %949 = vmatpush1.bf16.msra.mxu0 0
  %950 = vmatprep.subr.bf16.mxu0 0
  %951 = vmatpush1.bf16.msra.mxu0 0
  %952 = vmatprep.subr.bf16.mxu0 0
  %953 = vmatpush1.bf16.msra.mxu0 0
  %954 = vmatprep.subr.bf16.mxu0 0
  %955 = vmatpush1.bf16.msra.mxu0 0
  %956 = vmatprep.subr.bf16.mxu0 0
  %957 = vmatpush1.bf16.msra.mxu0 0
  %958 = vmatprep.subr.bf16.mxu0 0
  %959 = vmatpush1.bf16.msra.mxu0 0
  %960 = vmatprep.subr.bf16.mxu0 0
  %961 = vmatpush1.bf16.msra.mxu0 0
  %962 = vmatprep.subr.bf16.mxu0 0
  %963 = vmatpush1.bf16.msra.mxu0 0
  %964 = vmatprep.subr.bf16.mxu0 0
  %965 = vmatpush1.bf16.msra.mxu0 0
  %966 = vmatprep.subr.bf16.mxu0 0
  %967 = vmatpush1.bf16.msra.mxu0 0
  %968 = vmatprep.mubr.bf16.mxu0 0
  %969 = vmatmul.mubr.bf16.gmra.mrb[0].mxu0 %v931
  %v970 = vpop.f32.mrb[0].mxu0
  %v971 = vadd.f32 0.0, %v970
  %v972 = vpop.f32.mrb[0].mxu0
  %v973 = vpop.f32.mrb[0].mxu0
  %v974 = vadd.f32 0.0, %v973
  %v975 = vpop.f32.mrb[0].mxu0
  %976 = vdwg.mxu0
  %v977 = vadd.f32 %v801, %v971
  %v978 = vadd.f32 %v802, %v974
  %v979 = vadd.f32 %v48, %v977
  %v980 = vadd.f32 %v49, %v978
  %v981 = vld [vmem:[%s8] sm:$0x1]
  %v982 = vld [vmem:[%s9] sm:$0x1]
  %v983 = vsel %vm52, %v979, 0.0
  %984 = vadd.xlane.f32.xlu0 %v983
  %v985 = vpop.xlane.xlu0 %984
  %v986 = vsel %vm52, %v980, 0.0
  %987 = vadd.xlane.f32.xlu0 %v986
  %v988 = vpop.xlane.xlu0 %987
  %v989 = vmul.f32 %v985, %v59
  %v990 = vmul.f32 %v988, %v59
  %v991 = vsub.f32 %v979, %v989
  %v992 = vsub.f32 %v980, %v990
  %v993 = vmul.f32 %v991, %v991
  %v994 = vmul.f32 %v992, %v992
  %v995 = vsel %vm52, %v993, 0.0
  %996 = vadd.xlane.f32.xlu0 %v995
  %v997 = vpop.xlane.xlu0 %996
  %v998 = vsel %vm52, %v994, 0.0
  %999 = vadd.xlane.f32.xlu0 %v998
  %v1000 = vpop.xlane.xlu0 %999
  %v1001 = vmul.f32 %v997, %v59
  %v1002 = vmul.f32 %v1000, %v59
  %v1003 = vadd.f32 %v1001, 1e-05
  %v1004 = vadd.f32 %v1002, 1e-05
  %v1005 = vrsqrt.pop %v1003
  %v1006 = vrsqrt.pop %v1004
  %v1007 = vmul.f32 %v991, %v1005
  %v1008 = vmul.f32 %v992, %v1006
  %v1010 = vlaneseq
  %v1011 = vshrl.u32 %v1010, 7
  %v1012 = vsub.s32 0, %v1011
  %v1013 = vrot.slane %v981, %v1012
  %v1015 = vmul.f32 %v1007, %v1013
  %v1016 = vmul.f32 %v1008, %v1013
  %v1018 = vlaneseq
  %v1019 = vshrl.u32 %v1018, 7
  %v1020 = vsub.s32 0, %v1019
  %v1021 = vrot.slane %v982, %v1020
  %v1023 = vadd.f32 %v1015, %v1021
  %v1024 = vadd.f32 %v1016, %v1021
  %v1025 = vld [vmem:[%s10] sm:$0xff]
  %v1026 = vld [vmem:[%s10 + $0x8] sm:$0xff]
  %v1027 = vld [vmem:[%s10 + $0x10] sm:$0xff]
  %v1028 = vld [vmem:[%s10 + $0x18] sm:$0xff]
  %v1029 = vld [vmem:[%s11] sm:$0x1]
  %v1030 = vld [vmem:[%s12] sm:$0xff]
  %v1031 = vld [vmem:[%s12 + $0x8] sm:$0xff]
  %v1032 = vld [vmem:[%s12 + $0x10] sm:$0xff]
  %v1033 = vld [vmem:[%s12 + $0x18] sm:$0xff]
  %v1034 = vld [vmem:[%s12 + $0x20] sm:$0xff]
  %v1035 = vld [vmem:[%s12 + $0x28] sm:$0xff]
  %v1036 = vld [vmem:[%s12 + $0x30] sm:$0xff]
  %v1037 = vld [vmem:[%s12 + $0x38] sm:$0xff]
  %v1038 = vld [vmem:[%s12 + $0x40] sm:$0xff]
  %v1039 = vld [vmem:[%s12 + $0x48] sm:$0xff]
  %v1040 = vld [vmem:[%s12 + $0x50] sm:$0xff]
  %v1041 = vld [vmem:[%s12 + $0x58] sm:$0xff]
  %v1042 = vld [vmem:[%s12 + $0x60] sm:$0xff]
  %v1043 = vld [vmem:[%s12 + $0x68] sm:$0xff]
  %v1044 = vld [vmem:[%s12 + $0x70] sm:$0xff]
  %v1045 = vld [vmem:[%s12 + $0x78] sm:$0xff]
  %v1046 = vld [vmem:[%s13] sm:$0x1]
  %v1047 = vpack.c.bf16 %v1024, %v1023
  %v1048 = vpack.c.bf16 %v1026, %v1025
  %v1049 = vpack.c.bf16 %v1028, %v1027
  %v1051 = vlaneseq
  %v1052 = vshrl.u32 %v1051, 7
  %v1053 = vsub.s32 0, %v1052
  %v1054 = vrot.slane %v1029, %v1053
  %v1057 = vsel %vm52, %v1047, 0
  %1059 = vmatprep.subr.bf16.mxu0 0
  %1060 = vmatpush1.bf16.msra.mxu0 %v1048
  %1061 = vmatprep.subr.bf16.mxu0 0
  %1062 = vmatpush1.bf16.msra.mxu0 %v1049
  %1063 = vmatprep.subr.bf16.mxu0 0
  %1064 = vmatpush1.bf16.msra.mxu0 0
  %1065 = vmatprep.subr.bf16.mxu0 0
  %1066 = vmatpush1.bf16.msra.mxu0 0
  %1067 = vmatprep.subr.bf16.mxu0 0
  %1068 = vmatpush1.bf16.msra.mxu0 0
  %1069 = vmatprep.subr.bf16.mxu0 0
  %1070 = vmatpush1.bf16.msra.mxu0 0
  %1071 = vmatprep.subr.bf16.mxu0 0
  %1072 = vmatpush1.bf16.msra.mxu0 0
  %1073 = vmatprep.subr.bf16.mxu0 0
  %1074 = vmatpush1.bf16.msra.mxu0 0
  %1075 = vmatprep.subr.bf16.mxu0 0
  %1076 = vmatpush1.bf16.msra.mxu0 0
  %1077 = vmatprep.subr.bf16.mxu0 0
  %1078 = vmatpush1.bf16.msra.mxu0 0
  %1079 = vmatprep.subr.bf16.mxu0 0
  %1080 = vmatpush1.bf16.msra.mxu0 0
  %1081 = vmatprep.subr.bf16.mxu0 0
  %1082 = vmatpush1.bf16.msra.mxu0 0
  %1083 = vmatprep.subr.bf16.mxu0 0
  %1084 = vmatpush1.bf16.msra.mxu0 0
  %1085 = vmatprep.subr.bf16.mxu0 0
  %1086 = vmatpush1.bf16.msra.mxu0 0
  %1087 = vmatprep.subr.bf16.mxu0 0
  %1088 = vmatpush1.bf16.msra.mxu0 0
  %1089 = vmatprep.subr.bf16.mxu0 0
  %1090 = vmatpush1.bf16.msra.mxu0 0
  %1091 = vmatprep.mubr.bf16.mxu0 0
  %1092 = vmatmul.mubr.bf16.gmra.mrb[0].mxu0 %v1057
  %v1093 = vpop.f32.mrb[0].mxu0
  %v1094 = vadd.f32 %v1054, %v1093
  %v1095 = vpop.f32.mrb[0].mxu0
  %v1096 = vpop.f32.mrb[0].mxu0
  %v1097 = vadd.f32 %v1054, %v1096
  %v1098 = vpop.f32.mrb[0].mxu0
  %1099 = vdwg.mxu0
  %v1100 = vmax.f32 %v1094, 0.0
  %v1101 = vmax.f32 %v1097, 0.0
  %v1102 = vpack.c.bf16 %v1101, %v1100
  %v1103 = vpack.c.bf16 %v1031, %v1030
  %v1104 = vpack.c.bf16 %v1033, %v1032
  %v1105 = vpack.c.bf16 %v1035, %v1034
  %v1106 = vpack.c.bf16 %v1037, %v1036
  %v1107 = vpack.c.bf16 %v1039, %v1038
  %v1108 = vpack.c.bf16 %v1041, %v1040
  %v1109 = vpack.c.bf16 %v1043, %v1042
  %v1110 = vpack.c.bf16 %v1045, %v1044
  %v1112 = vlaneseq
  %v1113 = vshrl.u32 %v1112, 7
  %v1114 = vsub.s32 0, %v1113
  %v1115 = vrot.slane %v1046, %v1114
  %1117 = vmatprep.subr.bf16.mxu0 0
  %1118 = vmatpush1.bf16.msra.mxu0 %v1103
  %1119 = vmatprep.subr.bf16.mxu0 0
  %1120 = vmatpush1.bf16.msra.mxu0 %v1104
  %1121 = vmatprep.subr.bf16.mxu0 0
  %1122 = vmatpush1.bf16.msra.mxu0 %v1105
  %1123 = vmatprep.subr.bf16.mxu0 0
  %1124 = vmatpush1.bf16.msra.mxu0 %v1106
  %1125 = vmatprep.subr.bf16.mxu0 0
  %1126 = vmatpush1.bf16.msra.mxu0 %v1107
  %1127 = vmatprep.subr.bf16.mxu0 0
  %1128 = vmatpush1.bf16.msra.mxu0 %v1108
  %1129 = vmatprep.subr.bf16.mxu0 0
  %1130 = vmatpush1.bf16.msra.mxu0 %v1109
  %1131 = vmatprep.subr.bf16.mxu0 0
  %1132 = vmatpush1.bf16.msra.mxu0 %v1110
  %1133 = vmatprep.subr.bf16.mxu0 0
  %1134 = vmatpush1.bf16.msra.mxu0 0
  %1135 = vmatprep.subr.bf16.mxu0 0
  %1136 = vmatpush1.bf16.msra.mxu0 0
  %1137 = vmatprep.subr.bf16.mxu0 0
  %1138 = vmatpush1.bf16.msra.mxu0 0
  %1139 = vmatprep.subr.bf16.mxu0 0
  %1140 = vmatpush1.bf16.msra.mxu0 0
  %1141 = vmatprep.subr.bf16.mxu0 0
  %1142 = vmatpush1.bf16.msra.mxu0 0
  %1143 = vmatprep.subr.bf16.mxu0 0
  %1144 = vmatpush1.bf16.msra.mxu0 0
  %1145 = vmatprep.subr.bf16.mxu0 0
  %1146 = vmatpush1.bf16.msra.mxu0 0
  %1147 = vmatprep.subr.bf16.mxu0 0
  %1148 = vmatpush1.bf16.msra.mxu0 0
  %1149 = vmatprep.mubr.bf16.mxu0 0
  %1150 = vmatmul.mubr.bf16.gmra.mrb[0].mxu0 %v1102
  %v1151 = vpop.f32.mrb[0].mxu0
  %v1152 = vadd.f32 %v1115, %v1151
  %v1153 = vpop.f32.mrb[0].mxu0
  %v1154 = vpop.f32.mrb[0].mxu0
  %v1155 = vadd.f32 %v1115, %v1154
  %v1156 = vpop.f32.mrb[0].mxu0
  %1157 = vdwg.mxu0
  %v1158 = vadd.f32 %v979, %v1152
  %v1159 = vadd.f32 %v980, %v1155
  %1160 = vst.msk [vmem:[%s14] sm:$0xff] %vm52, %v1158
  %1161 = vst.msk [vmem:[%s14 + $0x8] sm:$0xff] %vm52, %v1159
  // Predicated region
  $region58: #{transformer_forward.4} parent=0 // pred_check
    _
  $region59: #{transformer_forward.4} parent=0 // pred_check_branch
    %1163 = sbr.rel (0) target = $region61
  $region60: #{transformer_forward.4} parent=0 // pred_region
    _
  $region61: #{transformer_forward.4} parent=0 // pred_fallthru
    _
  // Predicated region
  $region62: #{transformer_forward.4} parent=0 // pred_check
    _
  $region63: #{transformer_forward.4} parent=0 // pred_check_branch
    %1165 = sbr.rel (0) target = $region65
  $region64: #{transformer_forward.4} parent=0 // pred_region
    _
  $region65: #{transformer_forward.4} parent=0 // pred_fallthru
    _

// kernel: transformer_forward.7
$region0: #{transformer_forward.7}
  #allocation0 [shape = 'u32[]', space=smem, size = 0x4, offset = 0x4, fixed_abs, tag = 'smem constant byte address 0x4 - core index']
  #allocation1 [shape = 'u32[144,128]{1,0:T(1,128)}', space=vmem, size = 0x12000, scoped, tag = 'internal scratch']
  %s0 = inlined_call_operand.vmem [shape: f32[16,32], index: 0, kind: input, shape index: {}]
  %s1 = inlined_call_operand.vmem [shape: f32[16,32], index: 1, kind: input, shape index: {}]
  %s2 = inlined_call_operand.vmem [shape: f32[16,16], index: 2, kind: input, shape index: {}]
  %s3 = inlined_call_operand.vmem [shape: f32[1,32], index: 3, kind: input, shape index: {}]
  %s4 = inlined_call_operand.vmem [shape: f32[1,32], index: 4, kind: input, shape index: {}]
  %s5 = inlined_call_operand.vmem [shape: f32[32,96], index: 5, kind: input, shape index: {}]
  %s6 = inlined_call_operand.vmem [shape: f32[1,96], index: 6, kind: input, shape index: {}]
  %s7 = inlined_call_operand.vmem [shape: f32[32,32], index: 7, kind: input, shape index: {}]
  %s8 = inlined_call_operand.vmem [shape: f32[1,32], index: 8, kind: input, shape index: {}]
  %s9 = inlined_call_operand.vmem [shape: f32[1,32], index: 9, kind: input, shape index: {}]
  %s10 = inlined_call_operand.vmem [shape: f32[1,32], index: 10, kind: input, shape index: {}]
  %s11 = inlined_call_operand.vmem [shape: f32[32,96], index: 11, kind: input, shape index: {}]
  %s12 = inlined_call_operand.vmem [shape: f32[1,96], index: 12, kind: input, shape index: {}]
  %s13 = inlined_call_operand.vmem [shape: f32[32,32], index: 13, kind: input, shape index: {}]
  %s14 = inlined_call_operand.vmem [shape: f32[1,32], index: 14, kind: input, shape index: {}]
  %s15 = inlined_call_operand.vmem [shape: f32[1,32], index: 15, kind: input, shape index: {}]
  %s16 = inlined_call_operand.vmem [shape: f32[1,32], index: 16, kind: input, shape index: {}]
  %s17 = inlined_call_operand.vmem [shape: f32[32,128], index: 17, kind: input, shape index: {}]
  %s18 = inlined_call_operand.vmem [shape: f32[1,128], index: 18, kind: input, shape index: {}]
  %s19 = inlined_call_operand.vmem [shape: f32[128,32], index: 19, kind: input, shape index: {}]
  %s20 = inlined_call_operand.vmem [shape: f32[1,32], index: 20, kind: input, shape index: {}]
  %s21 = inlined_call_operand.vmem [shape: f32[2,16], index: 21, kind: input, shape index: {}]
  %s22 = inlined_call_operand.vmem [shape: f32[32,2], index: 22, kind: input, shape index: {}]
  %s23 = inlined_call_operand.vmem [shape: f32[1,2], index: 23, kind: input, shape index: {}]
  %s24 = inlined_call_operand.hbm [shape: f32[16,32], index: 24, kind: output, shape index: {0}]
  %s25 = inlined_call_operand.hbm [shape: f32[2,2], index: 25, kind: output, shape index: {1}]
  %26 = xla_tuple %s24, %s25
  %s27 = sld [smem:[#allocation0]]
  $region114: #{transformer_forward.7} parent=0
    _
  %s29 = ssub.s32 1, %s27
  %s30 = scalar_select 0, %s29, %s27
  $region1: #{transformer_forward.7} parent=0
    #allocation2 [shape = 'u8[8192]{0}', space=vmem, size = 0x2000, scoped, tag = 'output window, operand 0, single buffered']
    #allocation3 [shape = 's32[1]{0}', space=sflag, size = 0x4, scoped, tag = 'scoped memory for transformer_forward.7']
    #allocation4 [shape = 'u8[1024]{0}', space=vmem, size = 0x400, scoped, tag = 'output window, operand 1, single buffered']
    #allocation5 [shape = 's32[1]{0}', space=sflag, size = 0x4, scoped, tag = 'scoped memory for transformer_forward.7']
    %31 = vsyncpa [#allocation3], 0
    %32 = vsyncpa [#allocation5], 0
    // Predicated region
    $region2: #{transformer_forward.7} parent=1 // pred_check
      _
    $region3: #{transformer_forward.7} parent=1 // pred_check_branch
      %34 = sbr.rel (0) target = $region5
    $region4: #{transformer_forward.7} parent=1 // pred_region
      _
    $region5: #{transformer_forward.7} parent=1 // pred_fallthru
      _
    // Predicated region
    $region6: #{transformer_forward.7} parent=1 // pred_check
      _
    $region7: #{transformer_forward.7} parent=1 // pred_check_branch
      %36 = sbr.rel (0) target = $region9
    $region8: #{transformer_forward.7} parent=1 // pred_region
      _
    $region9: #{transformer_forward.7} parent=1 // pred_fallthru
      _
    // Predicated region
    $region10: #{transformer_forward.7} parent=1 // pred_check
      _
    $region11: #{transformer_forward.7} parent=1 // pred_check_branch
      %38 = sbr.rel (0) target = $region13
    $region12: #{transformer_forward.7} parent=1 // pred_region
      _
    $region13: #{transformer_forward.7} parent=1 // pred_fallthru
      _
    // Predicated region
    $region14: #{transformer_forward.7} parent=1 // pred_check
      _
    $region15: #{transformer_forward.7} parent=1 // pred_check_branch
      %40 = sbr.rel (0) target = $region17
    $region16: #{transformer_forward.7} parent=1 // pred_region
      _
    $region17: #{transformer_forward.7} parent=1 // pred_fallthru
      _
    // Predicated region
    $region18: #{transformer_forward.7} parent=1 // pred_check
      _
    $region19: #{transformer_forward.7} parent=1 // pred_check_branch
      %42 = sbr.rel (0) target = $region21
    $region20: #{transformer_forward.7} parent=1 // pred_region
      _
    $region21: #{transformer_forward.7} parent=1 // pred_fallthru
      _
    // Predicated region
    $region22: #{transformer_forward.7} parent=1 // pred_check
      _
    $region23: #{transformer_forward.7} parent=1 // pred_check_branch
      %44 = sbr.rel (0) target = $region25
    $region24: #{transformer_forward.7} parent=1 // pred_region
      _
    $region25: #{transformer_forward.7} parent=1 // pred_fallthru
      _
    // Predicated region
    $region26: #{transformer_forward.7} parent=1 // pred_check
      _
    $region27: #{transformer_forward.7} parent=1 // pred_check_branch
      %46 = sbr.rel (0) target = $region29
    $region28: #{transformer_forward.7} parent=1 // pred_region
      _
    $region29: #{transformer_forward.7} parent=1 // pred_fallthru
      _
    // Predicated region
    $region30: #{transformer_forward.7} parent=1 // pred_check
      _
    $region31: #{transformer_forward.7} parent=1 // pred_check_branch
      %48 = sbr.rel (0) target = $region33
    $region32: #{transformer_forward.7} parent=1 // pred_region
      _
    $region33: #{transformer_forward.7} parent=1 // pred_fallthru
      _
    // Predicated region
    $region34: #{transformer_forward.7} parent=1 // pred_check
      _
    $region35: #{transformer_forward.7} parent=1 // pred_check_branch
      %50 = sbr.rel (0) target = $region37
    $region36: #{transformer_forward.7} parent=1 // pred_region
      _
    $region37: #{transformer_forward.7} parent=1 // pred_fallthru
      _
    // Predicated region
    $region38: #{transformer_forward.7} parent=1 // pred_check
      _
    $region39: #{transformer_forward.7} parent=1 // pred_check_branch
      %52 = sbr.rel (0) target = $region41
    $region40: #{transformer_forward.7} parent=1 // pred_region
      _
    $region41: #{transformer_forward.7} parent=1 // pred_fallthru
      _
    // Predicated region
    $region42: #{transformer_forward.7} parent=1 // pred_check
      _
    $region43: #{transformer_forward.7} parent=1 // pred_check_branch
      %54 = sbr.rel (0) target = $region45
    $region44: #{transformer_forward.7} parent=1 // pred_region
      _
    $region45: #{transformer_forward.7} parent=1 // pred_fallthru
      _
    // Predicated region
    $region46: #{transformer_forward.7} parent=1 // pred_check
      _
    $region47: #{transformer_forward.7} parent=1 // pred_check_branch
      %56 = sbr.rel (0) target = $region49
    $region48: #{transformer_forward.7} parent=1 // pred_region
      _
    $region49: #{transformer_forward.7} parent=1 // pred_fallthru
      _
    // Predicated region
    $region50: #{transformer_forward.7} parent=1 // pred_check
      _
    $region51: #{transformer_forward.7} parent=1 // pred_check_branch
      %58 = sbr.rel (0) target = $region53
    $region52: #{transformer_forward.7} parent=1 // pred_region
      _
    $region53: #{transformer_forward.7} parent=1 // pred_fallthru
      _
    // Predicated region
    $region54: #{transformer_forward.7} parent=1 // pred_check
      _
    $region55: #{transformer_forward.7} parent=1 // pred_check_branch
      %60 = sbr.rel (0) target = $region57
    $region56: #{transformer_forward.7} parent=1 // pred_region
      _
    $region57: #{transformer_forward.7} parent=1 // pred_fallthru
      _
    // Predicated region
    $region58: #{transformer_forward.7} parent=1 // pred_check
      _
    $region59: #{transformer_forward.7} parent=1 // pred_check_branch
      %62 = sbr.rel (0) target = $region61
    $region60: #{transformer_forward.7} parent=1 // pred_region
      _
    $region61: #{transformer_forward.7} parent=1 // pred_fallthru
      _
    // Predicated region
    $region62: #{transformer_forward.7} parent=1 // pred_check
      _
    $region63: #{transformer_forward.7} parent=1 // pred_check_branch
      %64 = sbr.rel (0) target = $region65
    $region64: #{transformer_forward.7} parent=1 // pred_region
      _
    $region65: #{transformer_forward.7} parent=1 // pred_fallthru
      _
    // Predicated region
    $region66: #{transformer_forward.7} parent=1 // pred_check
      _
    $region67: #{transformer_forward.7} parent=1 // pred_check_branch
      %66 = sbr.rel (0) target = $region69
    $region68: #{transformer_forward.7} parent=1 // pred_region
      _
    $region69: #{transformer_forward.7} parent=1 // pred_fallthru
      _
    // Predicated region
    $region70: #{transformer_forward.7} parent=1 // pred_check
      _
    $region71: #{transformer_forward.7} parent=1 // pred_check_branch
      %68 = sbr.rel (0) target = $region73
    $region72: #{transformer_forward.7} parent=1 // pred_region
      _
    $region73: #{transformer_forward.7} parent=1 // pred_fallthru
      _
    // Predicated region
    $region74: #{transformer_forward.7} parent=1 // pred_check
      _
    $region75: #{transformer_forward.7} parent=1 // pred_check_branch
      %70 = sbr.rel (0) target = $region77
    $region76: #{transformer_forward.7} parent=1 // pred_region
      _
    $region77: #{transformer_forward.7} parent=1 // pred_fallthru
      _
    // Predicated region
    $region78: #{transformer_forward.7} parent=1 // pred_check
      _
    $region79: #{transformer_forward.7} parent=1 // pred_check_branch
      %72 = sbr.rel (0) target = $region81
    $region80: #{transformer_forward.7} parent=1 // pred_region
      _
    $region81: #{transformer_forward.7} parent=1 // pred_fallthru
      _
    // Predicated region
    $region82: #{transformer_forward.7} parent=1 // pred_check
      _
    $region83: #{transformer_forward.7} parent=1 // pred_check_branch
      %74 = sbr.rel (0) target = $region85
    $region84: #{transformer_forward.7} parent=1 // pred_region
      _
    $region85: #{transformer_forward.7} parent=1 // pred_fallthru
      _
    // Predicated region
    $region86: #{transformer_forward.7} parent=1 // pred_check
      _
    $region87: #{transformer_forward.7} parent=1 // pred_check_branch
      %76 = sbr.rel (0) target = $region89
    $region88: #{transformer_forward.7} parent=1 // pred_region
      _
    $region89: #{transformer_forward.7} parent=1 // pred_fallthru
      _
    // Predicated region
    $region90: #{transformer_forward.7} parent=1 // pred_check
      _
    $region91: #{transformer_forward.7} parent=1 // pred_check_branch
      %78 = sbr.rel (0) target = $region93
    $region92: #{transformer_forward.7} parent=1 // pred_region
      _
    $region93: #{transformer_forward.7} parent=1 // pred_fallthru
      _
    // Predicated region
    $region94: #{transformer_forward.7} parent=1 // pred_check
      _
    $region95: #{transformer_forward.7} parent=1 // pred_check_branch
      %80 = sbr.rel (0) target = $region97
    $region96: #{transformer_forward.7} parent=1 // pred_region
      _
    $region97: #{transformer_forward.7} parent=1 // pred_fallthru
      _
    %v82 = vld [vmem:[%s0] sm:$0xff]
    %v83 = vld [vmem:[%s0 + $0x8] sm:$0xff]
    %v84 = vld [vmem:[%s1] sm:$0xff]
    %v85 = vld [vmem:[%s1 + $0x8] sm:$0xff]
    %v86 = vld [vmem:[%s2] sm:$0xff]
    %v87 = vld [vmem:[%s2 + $0x8] sm:$0xff]
    %v88 = vld [vmem:[%s3] sm:$0x1]
    %v89 = vld [vmem:[%s4] sm:$0x1]
    %vm90 = vcmask 261120
    %v91 = vsel %vm90, %v82, 0.0
    %92 = vadd.xlane.f32.xlu0 %v91
    %v93 = vpop.xlane.xlu0 %92
    %v94 = vsel %vm90, %v83, 0.0
    %95 = vadd.xlane.f32.xlu0 %v94
    %v96 = vpop.xlane.xlu0 %95
    %v97 = vrcp.pop 32.0
    %v98 = vmul.f32 %v93, %v97
    %v99 = vmul.f32 %v96, %v97
    %v100 = vsub.f32 %v82, %v98
    %v101 = vsub.f32 %v83, %v99
    %v102 = vmul.f32 %v100, %v100
    %v103 = vmul.f32 %v101, %v101
    %v104 = vsel %vm90, %v102, 0.0
    %105 = vadd.xlane.f32.xlu0 %v104
    %v106 = vpop.xlane.xlu0 %105
    %v107 = vsel %vm90, %v103, 0.0
    %108 = vadd.xlane.f32.xlu0 %v107
    %v109 = vpop.xlane.xlu0 %108
    %v110 = vmul.f32 %v106, %v97
    %v111 = vmul.f32 %v109, %v97
    %v112 = vadd.f32 %v110, 1e-05
    %v113 = vadd.f32 %v111, 1e-05
    %v114 = vrsqrt.pop %v112
    %v115 = vrsqrt.pop %v113
    %v116 = vmul.f32 %v100, %v114
    %v117 = vmul.f32 %v101, %v115
    %v119 = vlaneseq
    %v120 = vshrl.u32 %v119, 7
    %v121 = vsub.s32 0, %v120
    %v122 = vrot.slane %v88, %v121
    %v124 = vmul.f32 %v116, %v122
    %v125 = vmul.f32 %v117, %v122
    %v127 = vlaneseq
    %v128 = vshrl.u32 %v127, 7
    %v129 = vsub.s32 0, %v128
    %v130 = vrot.slane %v89, %v129
    %v132 = vadd.f32 %v124, %v130
    %v133 = vadd.f32 %v125, %v130
    %v134 = vld [vmem:[%s5] sm:$0xff]
    %v135 = vld [vmem:[%s5 + $0x8] sm:$0xff]
    %v136 = vld [vmem:[%s5 + $0x10] sm:$0xff]
    %v137 = vld [vmem:[%s5 + $0x18] sm:$0xff]
    %v138 = vld [vmem:[%s6] sm:$0x1]
    %v139 = vld [vmem:[%s7] sm:$0xff]
    %v140 = vld [vmem:[%s7 + $0x8] sm:$0xff]
    %v141 = vld [vmem:[%s7 + $0x10] sm:$0xff]
    %v142 = vld [vmem:[%s7 + $0x18] sm:$0xff]
    %v143 = vld [vmem:[%s8] sm:$0x1]
    %v144 = vpack.c.bf16 %v133, %v132
    %v145 = vpack.c.bf16 %v135, %v134
    %v146 = vpack.c.bf16 %v137, %v136
    %v148 = vsel %vm90, %v144, 0
    %150 = vmatprep.subr.bf16.mxu0 0
    %151 = vmatpush1.bf16.msra.mxu0 %v145
    %152 = vmatprep.subr.bf16.mxu0 0
    %153 = vmatpush1.bf16.msra.mxu0 %v146
    %154 = vmatprep.subr.bf16.mxu0 0
    %155 = vmatpush1.bf16.msra.mxu0 0
    %156 = vmatprep.subr.bf16.mxu0 0
    %157 = vmatpush1.bf16.msra.mxu0 0
    %158 = vmatprep.subr.bf16.mxu0 0
    %159 = vmatpush1.bf16.msra.mxu0 0
    %160 = vmatprep.subr.bf16.mxu0 0
    %161 = vmatpush1.bf16.msra.mxu0 0
    %162 = vmatprep.subr.bf16.mxu0 0
    %163 = vmatpush1.bf16.msra.mxu0 0
    %164 = vmatprep.subr.bf16.mxu0 0
    %165 = vmatpush1.bf16.msra.mxu0 0
    %166 = vmatprep.subr.bf16.mxu0 0
    %167 = vmatpush1.bf16.msra.mxu0 0
    %168 = vmatprep.subr.bf16.mxu0 0
    %169 = vmatpush1.bf16.msra.mxu0 0
    %170 = vmatprep.subr.bf16.mxu0 0
    %171 = vmatpush1.bf16.msra.mxu0 0
    %172 = vmatprep.subr.bf16.mxu0 0
    %173 = vmatpush1.bf16.msra.mxu0 0
    %174 = vmatprep.subr.bf16.mxu0 0
    %175 = vmatpush1.bf16.msra.mxu0 0
    %176 = vmatprep.subr.bf16.mxu0 0
    %177 = vmatpush1.bf16.msra.mxu0 0
    %178 = vmatprep.subr.bf16.mxu0 0
    %179 = vmatpush1.bf16.msra.mxu0 0
    %180 = vmatprep.subr.bf16.mxu0 0
    %181 = vmatpush1.bf16.msra.mxu0 0
    %182 = vmatprep.mubr.bf16.mxu0 0
    %183 = vmatmul.mubr.bf16.gmra.mrb[0].mxu0 %v148
    %v184 = vpop.f32.mrb[0].mxu0
    %v185 = vadd.f32 0.0, %v184
    %v186 = vpop.f32.mrb[0].mxu0
    %v187 = vpop.f32.mrb[0].mxu0
    %v188 = vadd.f32 0.0, %v187
    %v189 = vpop.f32.mrb[0].mxu0
    %190 = vdwg.mxu0
    %v191 = vmul.f32 %v185, 0.17677669
    %v192 = vmul.f32 %v188, 0.17677669
    %v194 = vlaneseq
    %v195 = vshrl.u32 %v194, 7
    %v196 = vsub.s32 0, %v195
    %v197 = vrot.slane %v138, %v196
    %v199 = vadd.f32 %v191, %v197
    %v200 = vadd.f32 %v192, %v197
    %203 = vrot.lane.b32.xlu0 %v145, 96
    %v204 = vpop.permute.xlu0 %203
    %205 = vrot.lane.b32.xlu0 %v146, 96
    %v206 = vpop.permute.xlu0 %205
    %209 = vrot.lane.b32.xlu0 %v197, 96
    %v210 = vpop.permute.xlu0 %209
    %212 = vmatprep.subr.bf16.mxu0 0
    %213 = vmatpush1.bf16.msra.mxu0 %v204
    %214 = vmatprep.subr.bf16.mxu0 0
    %215 = vmatpush1.bf16.msra.mxu0 %v206
    %216 = vmatprep.subr.bf16.mxu0 0
    %217 = vmatpush1.bf16.msra.mxu0 0
    %218 = vmatprep.subr.bf16.mxu0 0
    %219 = vmatpush1.bf16.msra.mxu0 0
    %220 = vmatprep.subr.bf16.mxu0 0
    %221 = vmatpush1.bf16.msra.mxu0 0
    %222 = vmatprep.subr.bf16.mxu0 0
    %223 = vmatpush1.bf16.msra.mxu0 0
    %224 = vmatprep.subr.bf16.mxu0 0
    %225 = vmatpush1.bf16.msra.mxu0 0
    %226 = vmatprep.subr.bf16.mxu0 0
    %227 = vmatpush1.bf16.msra.mxu0 0
    %228 = vmatprep.subr.bf16.mxu0 0
    %229 = vmatpush1.bf16.msra.mxu0 0
    %230 = vmatprep.subr.bf16.mxu0 0
    %231 = vmatpush1.bf16.msra.mxu0 0
    %232 = vmatprep.subr.bf16.mxu0 0
    %233 = vmatpush1.bf16.msra.mxu0 0
    %234 = vmatprep.subr.bf16.mxu0 0
    %235 = vmatpush1.bf16.msra.mxu0 0
    %236 = vmatprep.subr.bf16.mxu0 0
    %237 = vmatpush1.bf16.msra.mxu0 0
    %238 = vmatprep.subr.bf16.mxu0 0
    %239 = vmatpush1.bf16.msra.mxu0 0
    %240 = vmatprep.subr.bf16.mxu0 0
    %241 = vmatpush1.bf16.msra.mxu0 0
    %242 = vmatprep.subr.bf16.mxu0 0
    %243 = vmatpush1.bf16.msra.mxu0 0
    %244 = vmatprep.mubr.bf16.mxu0 0
    %245 = vmatmul.mubr.bf16.gmra.mrb[0].mxu0 %v148
    %v246 = vpop.f32.mrb[0].mxu0
    %v247 = vadd.f32 %v210, %v246
    %v248 = vpop.f32.mrb[0].mxu0
    %v249 = vpop.f32.mrb[0].mxu0
    %v250 = vadd.f32 %v210, %v249
    %v251 = vpop.f32.mrb[0].mxu0
    %252 = vdwg.mxu0
    %253 = vrot.lane.b32.xlu0 %v145, 64
    %v254 = vpop.permute.xlu0 %253
    %255 = vrot.lane.b32.xlu0 %v146, 64
    %v256 = vpop.permute.xlu0 %255
    %259 = vrot.lane.b32.xlu0 %v197, 64
    %v260 = vpop.permute.xlu0 %259
    %262 = vmatprep.subr.bf16.mxu0 0
    %263 = vmatpush1.bf16.msra.mxu0 %v254
    %264 = vmatprep.subr.bf16.mxu0 0
    %265 = vmatpush1.bf16.msra.mxu0 %v256
    %266 = vmatprep.subr.bf16.mxu0 0
    %267 = vmatpush1.bf16.msra.mxu0 0
    %268 = vmatprep.subr.bf16.mxu0 0
    %269 = vmatpush1.bf16.msra.mxu0 0
    %270 = vmatprep.subr.bf16.mxu0 0
    %271 = vmatpush1.bf16.msra.mxu0 0
    %272 = vmatprep.subr.bf16.mxu0 0
    %273 = vmatpush1.bf16.msra.mxu0 0
    %274 = vmatprep.subr.bf16.mxu0 0
    %275 = vmatpush1.bf16.msra.mxu0 0
    %276 = vmatprep.subr.bf16.mxu0 0
    %277 = vmatpush1.bf16.msra.mxu0 0
    %278 = vmatprep.subr.bf16.mxu0 0
    %279 = vmatpush1.bf16.msra.mxu0 0
    %280 = vmatprep.subr.bf16.mxu0 0
    %281 = vmatpush1.bf16.msra.mxu0 0
    %282 = vmatprep.subr.bf16.mxu0 0
    %283 = vmatpush1.bf16.msra.mxu0 0
    %284 = vmatprep.subr.bf16.mxu0 0
    %285 = vmatpush1.bf16.msra.mxu0 0
    %286 = vmatprep.subr.bf16.mxu0 0
    %287 = vmatpush1.bf16.msra.mxu0 0
    %288 = vmatprep.subr.bf16.mxu0 0
    %289 = vmatpush1.bf16.msra.mxu0 0
    %290 = vmatprep.subr.bf16.mxu0 0
    %291 = vmatpush1.bf16.msra.mxu0 0
    %292 = vmatprep.subr.bf16.mxu0 0
    %293 = vmatpush1.bf16.msra.mxu0 0
    %294 = vmatprep.mubr.bf16.mxu0 0
    %295 = vmatmul.mubr.bf16.gmra.mrb[0].mxu0 %v148
    %v296 = vpop.f32.mrb[0].mxu0
    %v297 = vadd.f32 %v260, %v296
    %v298 = vpop.f32.mrb[0].mxu0
    %v299 = vpop.f32.mrb[0].mxu0
    %v300 = vadd.f32 %v260, %v299
    %v301 = vpop.f32.mrb[0].mxu0
    %302 = vdwg.mxu0
    %v303 = vpack.c.bf16 %v200, %v199
    %v304 = vpack.c.bf16 %v250, %v247
    %vm305 = vcmask 64512
    %v307 = vsel %vm305, %v303, 0
    %v310 = vsel %vm305, %v304, 0
    %312 = vmatprep.subr.bf16.mxu0 0
    %313 = vmatpush1.bf16.xpose.msra.mxu0 %v310
    %314 = vmatprep.subr.bf16.mxu0 0
    %315 = vmatpush1.bf16.xpose.msra.mxu0 0
    %316 = vmatprep.subr.bf16.mxu0 0
    %317 = vmatpush1.bf16.xpose.msra.mxu0 0
    %318 = vmatprep.subr.bf16.mxu0 0
    %319 = vmatpush1.bf16.xpose.msra.mxu0 0
    %320 = vmatprep.subr.bf16.mxu0 0
    %321 = vmatpush1.bf16.xpose.msra.mxu0 0
    %322 = vmatprep.subr.bf16.mxu0 0
    %323 = vmatpush1.bf16.xpose.msra.mxu0 0
    %324 = vmatprep.subr.bf16.mxu0 0
    %325 = vmatpush1.bf16.xpose.msra.mxu0 0
    %326 = vmatprep.subr.bf16.mxu0 0
    %327 = vmatpush1.bf16.xpose.msra.mxu0 0
    %328 = vmatprep.subr.bf16.mxu0 0
    %329 = vmatpush1.bf16.xpose.msra.mxu0 0
    %330 = vmatprep.subr.bf16.mxu0 0
    %331 = vmatpush1.bf16.xpose.msra.mxu0 0
    %332 = vmatprep.subr.bf16.mxu0 0
    %333 = vmatpush1.bf16.xpose.msra.mxu0 0
    %334 = vmatprep.subr.bf16.mxu0 0
    %335 = vmatpush1.bf16.xpose.msra.mxu0 0
    %336 = vmatprep.subr.bf16.mxu0 0
    %337 = vmatpush1.bf16.xpose.msra.mxu0 0
    %338 = vmatprep.subr.bf16.mxu0 0
    %339 = vmatpush1.bf16.xpose.msra.mxu0 0
    %340 = vmatprep.subr.bf16.mxu0 0
    %341 = vmatpush1.bf16.xpose.msra.mxu0 0
    %342 = vmatprep.subr.bf16.mxu0 0
    %343 = vmatpush1.bf16.xpose.msra.mxu0 0
    %344 = vmatprep.mubr.bf16.mxu0 0
    %345 = vmatmul.mubr.bf16.gmra.mrb[0].mxu0 %v307
    %v346 = vpop.f32.mrb[0].mxu0
    %v347 = vadd.f32 0.0, %v346
    %v348 = vpop.f32.mrb[0].mxu0
    %v349 = vpop.f32.mrb[0].mxu0
    %v350 = vadd.f32 0.0, %v349
    %v351 = vpop.f32.mrb[0].mxu0
    %352 = vdwg.mxu0
    %v353 = vmul.f32 %v347, 0.35355338
    %v354 = vmul.f32 %v350, 0.35355338
    %v355 = vadd.f32 %v353, %v86
    %v356 = vadd.f32 %v354, %v87
    %vm357 = vcmask 130048
    %v358 = vsel %vm357, %v355, -inf
    %359 = vmax.xlane.f32.xlu0 %v358
    %v360 = vpop.xlane.xlu0 %359
    %v361 = vsel %vm357, %v356, -inf
    %362 = vmax.xlane.f32.xlu0 %v361
    %v363 = vpop.xlane.xlu0 %362
    %v364 = vsub.f32 %v355, %v360
    %v365 = vsub.f32 %v356, %v363
    %v366 = vmul.f32 %v364, 1.442695
    %v367 = vpow.pop %v366
    %v368 = vmul.f32 %v365, 1.442695
    %v369 = vpow.pop %v368
    %v370 = vsel %vm357, %v367, 0.0
    %371 = vadd.xlane.f32.xlu0 %v370
    %v372 = vpop.xlane.xlu0 %371
    %v373 = vsel %vm357, %v369, 0.0
    %374 = vadd.xlane.f32.xlu0 %v373
    %v375 = vpop.xlane.xlu0 %374
    %v376 = vrcp.pop %v372
    %v377 = vrcp.pop %v375
    %v378 = vmul.f32 %v367, %v376
    %v379 = vmul.f32 %v369, %v377
    %v380 = vpack.c.bf16 %v379, %v378
    %v381 = vpack.c.bf16 %v300, %v297
    %v383 = vsel %vm357, %v380, 0
    %385 = vmatprep.subr.bf16.mxu0 0
    %386 = vmatpush1.bf16.msra.mxu0 %v381
    %387 = vmatprep.subr.bf16.mxu0 0
    %388 = vmatpush1.bf16.msra.mxu0 0
    %389 = vmatprep.subr.bf16.mxu0 0
    %390 = vmatpush1.bf16.msra.mxu0 0
    %391 = vmatprep.subr.bf16.mxu0 0
    %392 = vmatpush1.bf16.msra.mxu0 0
    %393 = vmatprep.subr.bf16.mxu0 0
    %394 = vmatpush1.bf16.msra.mxu0 0
    %395 = vmatprep.subr.bf16.mxu0 0
    %396 = vmatpush1.bf16.msra.mxu0 0
    %397 = vmatprep.subr.bf16.mxu0 0
    %398 = vmatpush1.bf16.msra.mxu0 0
    %399 = vmatprep.subr.bf16.mxu0 0
    %400 = vmatpush1.bf16.msra.mxu0 0
    %401 = vmatprep.subr.bf16.mxu0 0
    %402 = vmatpush1.bf16.msra.mxu0 0
    %403 = vmatprep.subr.bf16.mxu0 0
    %404 = vmatpush1.bf16.msra.mxu0 0
    %405 = vmatprep.subr.bf16.mxu0 0
    %406 = vmatpush1.bf16.msra.mxu0 0
    %407 = vmatprep.subr.bf16.mxu0 0
    %408 = vmatpush1.bf16.msra.mxu0 0
    %409 = vmatprep.subr.bf16.mxu0 0
    %410 = vmatpush1.bf16.msra.mxu0 0
    %411 = vmatprep.subr.bf16.mxu0 0
    %412 = vmatpush1.bf16.msra.mxu0 0
    %413 = vmatprep.subr.bf16.mxu0 0
    %414 = vmatpush1.bf16.msra.mxu0 0
    %415 = vmatprep.subr.bf16.mxu0 0
    %416 = vmatpush1.bf16.msra.mxu0 0
    %417 = vmatprep.mubr.bf16.mxu0 0
    %418 = vmatmul.mubr.bf16.gmra.mrb[0].mxu0 %v383
    %v419 = vpop.f32.mrb[0].mxu0
    %v420 = vadd.f32 0.0, %v419
    %v421 = vpop.f32.mrb[0].mxu0
    %v422 = vpop.f32.mrb[0].mxu0
    %v423 = vadd.f32 0.0, %v422
    %v424 = vpop.f32.mrb[0].mxu0
    %425 = vdwg.mxu0
    %v426 = vpack.c.bf16 %v423, %v420
    %v427 = vpack.c.bf16 %v139, %v139
    %v429 = vsel %vm305, %v426, 0
    %vm431 = vcmask 1043456
    %v433 = vsel %vm431, %v427, 0
    %435 = vmatprep.subr.bf16.mxu0 0
    %436 = vmatpush1.bf16.msra.mxu0 %v433
    %437 = vmatprep.subr.bf16.mxu0 0
    %438 = vmatpush1.bf16.msra.mxu0 0
    %439 = vmatprep.subr.bf16.mxu0 0
    %440 = vmatpush1.bf16.msra.mxu0 0
    %441 = vmatprep.subr.bf16.mxu0 0
    %442 = vmatpush1.bf16.msra.mxu0 0
    %443 = vmatprep.subr.bf16.mxu0 0
    %444 = vmatpush1.bf16.msra.mxu0 0
    %445 = vmatprep.subr.bf16.mxu0 0
    %446 = vmatpush1.bf16.msra.mxu0 0
    %447 = vmatprep.subr.bf16.mxu0 0
    %448 = vmatpush1.bf16.msra.mxu0 0
    %449 = vmatprep.subr.bf16.mxu0 0
    %450 = vmatpush1.bf16.msra.mxu0 0
    %451 = vmatprep.subr.bf16.mxu0 0
    %452 = vmatpush1.bf16.msra.mxu0 0
    %453 = vmatprep.subr.bf16.mxu0 0
    %454 = vmatpush1.bf16.msra.mxu0 0
    %455 = vmatprep.subr.bf16.mxu0 0
    %456 = vmatpush1.bf16.msra.mxu0 0
    %457 = vmatprep.subr.bf16.mxu0 0
    %458 = vmatpush1.bf16.msra.mxu0 0
    %459 = vmatprep.subr.bf16.mxu0 0
    %460 = vmatpush1.bf16.msra.mxu0 0
    %461 = vmatprep.subr.bf16.mxu0 0
    %462 = vmatpush1.bf16.msra.mxu0 0
    %463 = vmatprep.subr.bf16.mxu0 0
    %464 = vmatpush1.bf16.msra.mxu0 0
    %465 = vmatprep.subr.bf16.mxu0 0
    %466 = vmatpush1.bf16.msra.mxu0 0
    %467 = vmatprep.mubr.bf16.mxu0 0
    %468 = vmatmul.mubr.bf16.gmra.mrb[0].mxu0 %v429
    %v469 = vpop.f32.mrb[0].mxu0
    %v470 = vadd.f32 0.0, %v469
    %v471 = vpop.f32.mrb[0].mxu0
    %v472 = vpop.f32.mrb[0].mxu0
    %v473 = vadd.f32 0.0, %v472
    %v474 = vpop.f32.mrb[0].mxu0
    %475 = vdwg.mxu0
    %v477 = vlaneseq
    %v478 = vshrl.u32 %v477, 7
    %v479 = vsub.s32 0, %v478
    %v480 = vrot.slane %v143, %v479
    %v482 = vadd.f32 %v480, %v470
    %v483 = vadd.f32 %v480, %v473
    %485 = vrot.lane.b32.xlu0 %v303, 120
    %v486 = vpop.permute.xlu0 %485
    %488 = vrot.lane.b32.xlu0 %v304, 120
    %v489 = vpop.permute.xlu0 %488
    %v491 = vsel %vm305, %v486, 0
    %v494 = vsel %vm305, %v489, 0
    %496 = vmatprep.subr.bf16.mxu0 0
    %497 = vmatpush1.bf16.xpose.msra.mxu0 %v494
    %498 = vmatprep.subr.bf16.mxu0 0
    %499 = vmatpush1.bf16.xpose.msra.mxu0 0
    %500 = vmatprep.subr.bf16.mxu0 0
    %501 = vmatpush1.bf16.xpose.msra.mxu0 0
    %502 = vmatprep.subr.bf16.mxu0 0
    %503 = vmatpush1.bf16.xpose.msra.mxu0 0
    %504 = vmatprep.subr.bf16.mxu0 0
    %505 = vmatpush1.bf16.xpose.msra.mxu0 0
    %506 = vmatprep.subr.bf16.mxu0 0
    %507 = vmatpush1.bf16.xpose.msra.mxu0 0
    %508 = vmatprep.subr.bf16.mxu0 0
    %509 = vmatpush1.bf16.xpose.msra.mxu0 0
    %510 = vmatprep.subr.bf16.mxu0 0
    %511 = vmatpush1.bf16.xpose.msra.mxu0 0
    %512 = vmatprep.subr.bf16.mxu0 0
    %513 = vmatpush1.bf16.xpose.msra.mxu0 0
    %514 = vmatprep.subr.bf16.mxu0 0
    %515 = vmatpush1.bf16.xpose.msra.mxu0 0
    %516 = vmatprep.subr.bf16.mxu0 0
    %517 = vmatpush1.bf16.xpose.msra.mxu0 0
    %518 = vmatprep.subr.bf16.mxu0 0
    %519 = vmatpush1.bf16.xpose.msra.mxu0 0
    %520 = vmatprep.subr.bf16.mxu0 0
    %521 = vmatpush1.bf16.xpose.msra.mxu0 0
    %522 = vmatprep.subr.bf16.mxu0 0
    %523 = vmatpush1.bf16.xpose.msra.mxu0 0
    %524 = vmatprep.subr.bf16.mxu0 0
    %525 = vmatpush1.bf16.xpose.msra.mxu0 0
    %526 = vmatprep.subr.bf16.mxu0 0
    %527 = vmatpush1.bf16.xpose.msra.mxu0 0
    %528 = vmatprep.mubr.bf16.mxu0 0
    %529 = vmatmul.mubr.bf16.gmra.mrb[0].mxu0 %v491
    %v530 = vpop.f32.mrb[0].mxu0
    %v531 = vadd.f32 0.0, %v530
    %v532 = vpop.f32.mrb[0].mxu0
    %v533 = vpop.f32.mrb[0].mxu0
    %v534 = vadd.f32 0.0, %v533
    %v535 = vpop.f32.mrb[0].mxu0
    %536 = vdwg.mxu0
    %v537 = vmul.f32 %v531, 0.35355338
    %v538 = vmul.f32 %v534, 0.35355338
    %v539 = vadd.f32 %v537, %v86
    %v540 = vadd.f32 %v538, %v87
    %v541 = vsel %vm357, %v539, -inf
    %542 = vmax.xlane.f32.xlu0 %v541
    %v543 = vpop.xlane.xlu0 %542
    %v544 = vsel %vm357, %v540, -inf
    %545 = vmax.xlane.f32.xlu0 %v544
    %v546 = vpop.xlane.xlu0 %545
    %v547 = vsub.f32 %v539, %v543
    %v548 = vsub.f32 %v540, %v546
    %v549 = vmul.f32 %v547, 1.442695
    %v550 = vpow.pop %v549
    %v551 = vmul.f32 %v548, 1.442695
    %v552 = vpow.pop %v551
    %v553 = vsel %vm357, %v550, 0.0
    %554 = vadd.xlane.f32.xlu0 %v553
    %v555 = vpop.xlane.xlu0 %554
    %v556 = vsel %vm357, %v552, 0.0
    %557 = vadd.xlane.f32.xlu0 %v556
    %v558 = vpop.xlane.xlu0 %557
    %v559 = vrcp.pop %v555
    %v560 = vrcp.pop %v558
    %v561 = vmul.f32 %v550, %v559
    %v562 = vmul.f32 %v552, %v560
    %v563 = vpack.c.bf16 %v562, %v561
    %565 = vrot.lane.b32.xlu0 %v381, 120
    %v566 = vpop.permute.xlu0 %565
    %v569 = vsel %vm357, %v563, 0
    %571 = vmatprep.subr.bf16.mxu0 0
    %572 = vmatpush1.bf16.msra.mxu0 %v566
    %573 = vmatprep.subr.bf16.mxu0 0
    %574 = vmatpush1.bf16.msra.mxu0 0
    %575 = vmatprep.subr.bf16.mxu0 0
    %576 = vmatpush1.bf16.msra.mxu0 0
    %577 = vmatprep.subr.bf16.mxu0 0
    %578 = vmatpush1.bf16.msra.mxu0 0
    %579 = vmatprep.subr.bf16.mxu0 0
    %580 = vmatpush1.bf16.msra.mxu0 0
    %581 = vmatprep.subr.bf16.mxu0 0
    %582 = vmatpush1.bf16.msra.mxu0 0
    %583 = vmatprep.subr.bf16.mxu0 0
    %584 = vmatpush1.bf16.msra.mxu0 0
    %585 = vmatprep.subr.bf16.mxu0 0
    %586 = vmatpush1.bf16.msra.mxu0 0
    %587 = vmatprep.subr.bf16.mxu0 0
    %588 = vmatpush1.bf16.msra.mxu0 0
    %589 = vmatprep.subr.bf16.mxu0 0
    %590 = vmatpush1.bf16.msra.mxu0 0
    %591 = vmatprep.subr.bf16.mxu0 0
    %592 = vmatpush1.bf16.msra.mxu0 0
    %593 = vmatprep.subr.bf16.mxu0 0
    %594 = vmatpush1.bf16.msra.mxu0 0
    %595 = vmatprep.subr.bf16.mxu0 0
    %596 = vmatpush1.bf16.msra.mxu0 0
    %597 = vmatprep.subr.bf16.mxu0 0
    %598 = vmatpush1.bf16.msra.mxu0 0
    %599 = vmatprep.subr.bf16.mxu0 0
    %600 = vmatpush1.bf16.msra.mxu0 0
    %601 = vmatprep.subr.bf16.mxu0 0
    %602 = vmatpush1.bf16.msra.mxu0 0
    %603 = vmatprep.mubr.bf16.mxu0 0
    %604 = vmatmul.mubr.bf16.gmra.mrb[0].mxu0 %v569
    %v605 = vpop.f32.mrb[0].mxu0
    %v606 = vadd.f32 0.0, %v605
    %v607 = vpop.f32.mrb[0].mxu0
    %v608 = vpop.f32.mrb[0].mxu0
    %v609 = vadd.f32 0.0, %v608
    %v610 = vpop.f32.mrb[0].mxu0
    %611 = vdwg.mxu0
    %v612 = vpack.c.bf16 %v609, %v606
    %v613 = vpack.c.bf16 %v140, %v140
    %v615 = vsel %vm305, %v612, 0
    %v618 = vsel %vm431, %v613, 0
    %620 = vmatprep.subr.bf16.mxu0 0
    %621 = vmatpush1.bf16.msra.mxu0 %v618
    %622 = vmatprep.subr.bf16.mxu0 0
    %623 = vmatpush1.bf16.msra.mxu0 0
    %624 = vmatprep.subr.bf16.mxu0 0
    %625 = vmatpush1.bf16.msra.mxu0 0
    %626 = vmatprep.subr.bf16.mxu0 0
    %627 = vmatpush1.bf16.msra.mxu0 0
    %628 = vmatprep.subr.bf16.mxu0 0
    %629 = vmatpush1.bf16.msra.mxu0 0
    %630 = vmatprep.subr.bf16.mxu0 0
    %631 = vmatpush1.bf16.msra.mxu0 0
    %632 = vmatprep.subr.bf16.mxu0 0
    %633 = vmatpush1.bf16.msra.mxu0 0
    %634 = vmatprep.subr.bf16.mxu0 0
    %635 = vmatpush1.bf16.msra.mxu0 0
    %636 = vmatprep.subr.bf16.mxu0 0
    %637 = vmatpush1.bf16.msra.mxu0 0
    %638 = vmatprep.subr.bf16.mxu0 0
    %639 = vmatpush1.bf16.msra.mxu0 0
    %640 = vmatprep.subr.bf16.mxu0 0
    %641 = vmatpush1.bf16.msra.mxu0 0
    %642 = vmatprep.subr.bf16.mxu0 0
    %643 = vmatpush1.bf16.msra.mxu0 0
    %644 = vmatprep.subr.bf16.mxu0 0
    %645 = vmatpush1.bf16.msra.mxu0 0
    %646 = vmatprep.subr.bf16.mxu0 0
    %647 = vmatpush1.bf16.msra.mxu0 0
    %648 = vmatprep.subr.bf16.mxu0 0
    %649 = vmatpush1.bf16.msra.mxu0 0
    %650 = vmatprep.subr.bf16.mxu0 0
    %651 = vmatpush1.bf16.msra.mxu0 0
    %652 = vmatprep.mubr.bf16.mxu0 0
    %653 = vmatmul.mubr.bf16.gmra.mrb[0].mxu0 %v615
    %v654 = vpop.f32.mrb[0].mxu0
    %v655 = vadd.f32 0.0, %v654
    %v656 = vpop.f32.mrb[0].mxu0
    %v657 = vpop.f32.mrb[0].mxu0
    %v658 = vadd.f32 0.0, %v657
    %v659 = vpop.f32.mrb[0].mxu0
    %660 = vdwg.mxu0
    %v661 = vadd.f32 %v482, %v655
    %v662 = vadd.f32 %v483, %v658
    %663 = vrot.lane.b32.xlu0 %v303, 112
    %v664 = vpop.permute.xlu0 %663
    %665 = vrot.lane.b32.xlu0 %v304, 112
    %v666 = vpop.permute.xlu0 %665
    %v668 = vsel %vm305, %v664, 0
    %v671 = vsel %vm305, %v666, 0
    %673 = vmatprep.subr.bf16.mxu0 0
    %674 = vmatpush1.bf16.xpose.msra.mxu0 %v671
    %675 = vmatprep.subr.bf16.mxu0 0
    %676 = vmatpush1.bf16.xpose.msra.mxu0 0
    %677 = vmatprep.subr.bf16.mxu0 0
    %678 = vmatpush1.bf16.xpose.msra.mxu0 0
    %679 = vmatprep.subr.bf16.mxu0 0
    %680 = vmatpush1.bf16.xpose.msra.mxu0 0
    %681 = vmatprep.subr.bf16.mxu0 0
    %682 = vmatpush1.bf16.xpose.msra.mxu0 0
    %683 = vmatprep.subr.bf16.mxu0 0
    %684 = vmatpush1.bf16.xpose.msra.mxu0 0
    %685 = vmatprep.subr.bf16.mxu0 0
    %686 = vmatpush1.bf16.xpose.msra.mxu0 0
    %687 = vmatprep.subr.bf16.mxu0 0
    %688 = vmatpush1.bf16.xpose.msra.mxu0 0
    %689 = vmatprep.subr.bf16.mxu0 0
    %690 = vmatpush1.bf16.xpose.msra.mxu0 0
    %691 = vmatprep.subr.bf16.mxu0 0
    %692 = vmatpush1.bf16.xpose.msra.mxu0 0
    %693 = vmatprep.subr.bf16.mxu0 0
    %694 = vmatpush1.bf16.xpose.msra.mxu0 0
    %695 = vmatprep.subr.bf16.mxu0 0
    %696 = vmatpush1.bf16.xpose.msra.mxu0 0
    %697 = vmatprep.subr.bf16.mxu0 0
    %698 = vmatpush1.bf16.xpose.msra.mxu0 0
    %699 = vmatprep.subr.bf16.mxu0 0
    %700 = vmatpush1.bf16.xpose.msra.mxu0 0
    %701 = vmatprep.subr.bf16.mxu0 0
    %702 = vmatpush1.bf16.xpose.msra.mxu0 0
    %703 = vmatprep.subr.bf16.mxu0 0
    %704 = vmatpush1.bf16.xpose.msra.mxu0 0
    %705 = vmatprep.mubr.bf16.mxu0 0
    %706 = vmatmul.mubr.bf16.gmra.mrb[0].mxu0 %v668
    %v707 = vpop.f32.mrb[0].mxu0
    %v708 = vadd.f32 0.0, %v707
    %v709 = vpop.f32.mrb[0].mxu0
    %v710 = vpop.f32.mrb[0].mxu0
    %v711 = vadd.f32 0.0, %v710
    %v712 = vpop.f32.mrb[0].mxu0
    %713 = vdwg.mxu0
    %v714 = vmul.f32 %v708, 0.35355338
    %v715 = vmul.f32 %v711, 0.35355338
    %v716 = vadd.f32 %v714, %v86
    %v717 = vadd.f32 %v715, %v87
    %v718 = vsel %vm357, %v716, -inf
    %719 = vmax.xlane.f32.xlu0 %v718
    %v720 = vpop.xlane.xlu0 %719
    %v721 = vsel %vm357, %v717, -inf
    %722 = vmax.xlane.f32.xlu0 %v721
    %v723 = vpop.xlane.xlu0 %722
    %v724 = vsub.f32 %v716, %v720
    %v725 = vsub.f32 %v717, %v723
    %v726 = vmul.f32 %v724, 1.442695
    %v727 = vpow.pop %v726
    %v728 = vmul.f32 %v725, 1.442695
    %v729 = vpow.pop %v728
    %v730 = vsel %vm357, %v727, 0.0
    %731 = vadd.xlane.f32.xlu0 %v730
    %v732 = vpop.xlane.xlu0 %731
    %v733 = vsel %vm357, %v729, 0.0
    %734 = vadd.xlane.f32.xlu0 %v733
    %v735 = vpop.xlane.xlu0 %734
    %v736 = vrcp.pop %v732
    %v737 = vrcp.pop %v735
    %v738 = vmul.f32 %v727, %v736
    %v739 = vmul.f32 %v729, %v737
    %v740 = vpack.c.bf16 %v739, %v738
    %741 = vrot.lane.b32.xlu0 %v381, 112
    %v742 = vpop.permute.xlu0 %741
    %v745 = vsel %vm357, %v740, 0
    %747 = vmatprep.subr.bf16.mxu0 0
    %748 = vmatpush1.bf16.msra.mxu0 %v742
    %749 = vmatprep.subr.bf16.mxu0 0
    %750 = vmatpush1.bf16.msra.mxu0 0
    %751 = vmatprep.subr.bf16.mxu0 0
    %752 = vmatpush1.bf16.msra.mxu0 0
    %753 = vmatprep.subr.bf16.mxu0 0
    %754 = vmatpush1.bf16.msra.mxu0 0
    %755 = vmatprep.subr.bf16.mxu0 0
    %756 = vmatpush1.bf16.msra.mxu0 0
    %757 = vmatprep.subr.bf16.mxu0 0
    %758 = vmatpush1.bf16.msra.mxu0 0
    %759 = vmatprep.subr.bf16.mxu0 0
    %760 = vmatpush1.bf16.msra.mxu0 0
    %761 = vmatprep.subr.bf16.mxu0 0
    %762 = vmatpush1.bf16.msra.mxu0 0
    %763 = vmatprep.subr.bf16.mxu0 0
    %764 = vmatpush1.bf16.msra.mxu0 0
    %765 = vmatprep.subr.bf16.mxu0 0
    %766 = vmatpush1.bf16.msra.mxu0 0
    %767 = vmatprep.subr.bf16.mxu0 0
    %768 = vmatpush1.bf16.msra.mxu0 0
    %769 = vmatprep.subr.bf16.mxu0 0
    %770 = vmatpush1.bf16.msra.mxu0 0
    %771 = vmatprep.subr.bf16.mxu0 0
    %772 = vmatpush1.bf16.msra.mxu0 0
    %773 = vmatprep.subr.bf16.mxu0 0
    %774 = vmatpush1.bf16.msra.mxu0 0
    %775 = vmatprep.subr.bf16.mxu0 0
    %776 = vmatpush1.bf16.msra.mxu0 0
    %777 = vmatprep.subr.bf16.mxu0 0
    %778 = vmatpush1.bf16.msra.mxu0 0
    %779 = vmatprep.mubr.bf16.mxu0 0
    %780 = vmatmul.mubr.bf16.gmra.mrb[0].mxu0 %v745
    %v781 = vpop.f32.mrb[0].mxu0
    %v782 = vadd.f32 0.0, %v781
    %v783 = vpop.f32.mrb[0].mxu0
    %v784 = vpop.f32.mrb[0].mxu0
    %v785 = vadd.f32 0.0, %v784
    %v786 = vpop.f32.mrb[0].mxu0
    %787 = vdwg.mxu0
    %v788 = vpack.c.bf16 %v785, %v782
    %v789 = vpack.c.bf16 %v141, %v141
    %v791 = vsel %vm305, %v788, 0
    %v794 = vsel %vm431, %v789, 0
    %796 = vmatprep.subr.bf16.mxu0 0
    %797 = vmatpush1.bf16.msra.mxu0 %v794
    %798 = vmatprep.subr.bf16.mxu0 0
    %799 = vmatpush1.bf16.msra.mxu0 0
    %800 = vmatprep.subr.bf16.mxu0 0
    %801 = vmatpush1.bf16.msra.mxu0 0
    %802 = vmatprep.subr.bf16.mxu0 0
    %803 = vmatpush1.bf16.msra.mxu0 0
    %804 = vmatprep.subr.bf16.mxu0 0
    %805 = vmatpush1.bf16.msra.mxu0 0
    %806 = vmatprep.subr.bf16.mxu0 0
    %807 = vmatpush1.bf16.msra.mxu0 0
    %808 = vmatprep.subr.bf16.mxu0 0
    %809 = vmatpush1.bf16.msra.mxu0 0
    %810 = vmatprep.subr.bf16.mxu0 0
    %811 = vmatpush1.bf16.msra.mxu0 0
    %812 = vmatprep.subr.bf16.mxu0 0
    %813 = vmatpush1.bf16.msra.mxu0 0
    %814 = vmatprep.subr.bf16.mxu0 0
    %815 = vmatpush1.bf16.msra.mxu0 0
    %816 = vmatprep.subr.bf16.mxu0 0
    %817 = vmatpush1.bf16.msra.mxu0 0
    %818 = vmatprep.subr.bf16.mxu0 0
    %819 = vmatpush1.bf16.msra.mxu0 0
    %820 = vmatprep.subr.bf16.mxu0 0
    %821 = vmatpush1.bf16.msra.mxu0 0
    %822 = vmatprep.subr.bf16.mxu0 0
    %823 = vmatpush1.bf16.msra.mxu0 0
    %824 = vmatprep.subr.bf16.mxu0 0
    %825 = vmatpush1.bf16.msra.mxu0 0
    %826 = vmatprep.subr.bf16.mxu0 0
    %827 = vmatpush1.bf16.msra.mxu0 0
    %828 = vmatprep.mubr.bf16.mxu0 0
    %829 = vmatmul.mubr.bf16.gmra.mrb[0].mxu0 %v791
    %v830 = vpop.f32.mrb[0].mxu0
    %v831 = vadd.f32 0.0, %v830
    %v832 = vpop.f32.mrb[0].mxu0
    %v833 = vpop.f32.mrb[0].mxu0
    %v834 = vadd.f32 0.0, %v833
    %v835 = vpop.f32.mrb[0].mxu0
    %836 = vdwg.mxu0
    %v837 = vadd.f32 %v661, %v831
    %v838 = vadd.f32 %v662, %v834
    %839 = vrot.lane.b32.xlu0 %v303, 104
    %v840 = vpop.permute.xlu0 %839
    %841 = vrot.lane.b32.xlu0 %v304, 104
    %v842 = vpop.permute.xlu0 %841
    %v844 = vsel %vm305, %v840, 0
    %v847 = vsel %vm305, %v842, 0
    %849 = vmatprep.subr.bf16.mxu0 0
    %850 = vmatpush1.bf16.xpose.msra.mxu0 %v847
    %851 = vmatprep.subr.bf16.mxu0 0
    %852 = vmatpush1.bf16.xpose.msra.mxu0 0
    %853 = vmatprep.subr.bf16.mxu0 0
    %854 = vmatpush1.bf16.xpose.msra.mxu0 0
    %855 = vmatprep.subr.bf16.mxu0 0
    %856 = vmatpush1.bf16.xpose.msra.mxu0 0
    %857 = vmatprep.subr.bf16.mxu0 0
    %858 = vmatpush1.bf16.xpose.msra.mxu0 0
    %859 = vmatprep.subr.bf16.mxu0 0
    %860 = vmatpush1.bf16.xpose.msra.mxu0 0
    %861 = vmatprep.subr.bf16.mxu0 0
    %862 = vmatpush1.bf16.xpose.msra.mxu0 0
    %863 = vmatprep.subr.bf16.mxu0 0
    %864 = vmatpush1.bf16.xpose.msra.mxu0 0
    %865 = vmatprep.subr.bf16.mxu0 0
    %866 = vmatpush1.bf16.xpose.msra.mxu0 0
    %867 = vmatprep.subr.bf16.mxu0 0
    %868 = vmatpush1.bf16.xpose.msra.mxu0 0
    %869 = vmatprep.subr.bf16.mxu0 0
    %870 = vmatpush1.bf16.xpose.msra.mxu0 0
    %871 = vmatprep.subr.bf16.mxu0 0
    %872 = vmatpush1.bf16.xpose.msra.mxu0 0
    %873 = vmatprep.subr.bf16.mxu0 0
    %874 = vmatpush1.bf16.xpose.msra.mxu0 0
    %875 = vmatprep.subr.bf16.mxu0 0
    %876 = vmatpush1.bf16.xpose.msra.mxu0 0
    %877 = vmatprep.subr.bf16.mxu0 0
    %878 = vmatpush1.bf16.xpose.msra.mxu0 0
    %879 = vmatprep.subr.bf16.mxu0 0
    %880 = vmatpush1.bf16.xpose.msra.mxu0 0
    %881 = vmatprep.mubr.bf16.mxu0 0
    %882 = vmatmul.mubr.bf16.gmra.mrb[0].mxu0 %v844
    %v883 = vpop.f32.mrb[0].mxu0
    %v884 = vadd.f32 0.0, %v883
    %v885 = vpop.f32.mrb[0].mxu0
    %v886 = vpop.f32.mrb[0].mxu0
    %v887 = vadd.f32 0.0, %v886
    %v888 = vpop.f32.mrb[0].mxu0
    %889 = vdwg.mxu0
    %v890 = vmul.f32 %v884, 0.35355338
    %v891 = vmul.f32 %v887, 0.35355338
    %v892 = vadd.f32 %v890, %v86
    %v893 = vadd.f32 %v891, %v87
    %v894 = vsel %vm357, %v892, -inf
    %895 = vmax.xlane.f32.xlu0 %v894
    %v896 = vpop.xlane.xlu0 %895
    %v897 = vsel %vm357, %v893, -inf
    %898 = vmax.xlane.f32.xlu0 %v897
    %v899 = vpop.xlane.xlu0 %898
    %v900 = vsub.f32 %v892, %v896
    %v901 = vsub.f32 %v893, %v899
    %v902 = vmul.f32 %v900, 1.442695
    %v903 = vpow.pop %v902
    %v904 = vmul.f32 %v901, 1.442695
    %v905 = vpow.pop %v904
    %v906 = vsel %vm357, %v903, 0.0
    %907 = vadd.xlane.f32.xlu0 %v906
    %v908 = vpop.xlane.xlu0 %907
    %v909 = vsel %vm357, %v905, 0.0
    %910 = vadd.xlane.f32.xlu0 %v909
    %v911 = vpop.xlane.xlu0 %910
    %v912 = vrcp.pop %v908
    %v913 = vrcp.pop %v911
    %v914 = vmul.f32 %v903, %v912
    %v915 = vmul.f32 %v905, %v913
    %v916 = vpack.c.bf16 %v915, %v914
    %917 = vrot.lane.b32.xlu0 %v381, 104
    %v918 = vpop.permute.xlu0 %917
    %v921 = vsel %vm357, %v916, 0
    %923 = vmatprep.subr.bf16.mxu0 0
    %924 = vmatpush1.bf16.msra.mxu0 %v918
    %925 = vmatprep.subr.bf16.mxu0 0
    %926 = vmatpush1.bf16.msra.mxu0 0
    %927 = vmatprep.subr.bf16.mxu0 0
    %928 = vmatpush1.bf16.msra.mxu0 0
    %929 = vmatprep.subr.bf16.mxu0 0
    %930 = vmatpush1.bf16.msra.mxu0 0
    %931 = vmatprep.subr.bf16.mxu0 0
    %932 = vmatpush1.bf16.msra.mxu0 0
    %933 = vmatprep.subr.bf16.mxu0 0
    %934 = vmatpush1.bf16.msra.mxu0 0
    %935 = vmatprep.subr.bf16.mxu0 0
    %936 = vmatpush1.bf16.msra.mxu0 0
    %937 = vmatprep.subr.bf16.mxu0 0
    %938 = vmatpush1.bf16.msra.mxu0 0
    %939 = vmatprep.subr.bf16.mxu0 0
    %940 = vmatpush1.bf16.msra.mxu0 0
    %941 = vmatprep.subr.bf16.mxu0 0
    %942 = vmatpush1.bf16.msra.mxu0 0
    %943 = vmatprep.subr.bf16.mxu0 0
    %944 = vmatpush1.bf16.msra.mxu0 0
    %945 = vmatprep.subr.bf16.mxu0 0
    %946 = vmatpush1.bf16.msra.mxu0 0
    %947 = vmatprep.subr.bf16.mxu0 0
    %948 = vmatpush1.bf16.msra.mxu0 0
    %949 = vmatprep.subr.bf16.mxu0 0
    %950 = vmatpush1.bf16.msra.mxu0 0
    %951 = vmatprep.subr.bf16.mxu0 0
    %952 = vmatpush1.bf16.msra.mxu0 0
    %953 = vmatprep.subr.bf16.mxu0 0
    %954 = vmatpush1.bf16.msra.mxu0 0
    %955 = vmatprep.mubr.bf16.mxu0 0
    %956 = vmatmul.mubr.bf16.gmra.mrb[0].mxu0 %v921
    %v957 = vpop.f32.mrb[0].mxu0
    %v958 = vadd.f32 0.0, %v957
    %v959 = vpop.f32.mrb[0].mxu0
    %v960 = vpop.f32.mrb[0].mxu0
    %v961 = vadd.f32 0.0, %v960
    %v962 = vpop.f32.mrb[0].mxu0
    %963 = vdwg.mxu0
    %v964 = vpack.c.bf16 %v961, %v958
    %v965 = vpack.c.bf16 %v142, %v142
    %v967 = vsel %vm305, %v964, 0
    %v970 = vsel %vm431, %v965, 0
    %972 = vmatprep.subr.bf16.mxu0 0
    %973 = vmatpush1.bf16.msra.mxu0 %v970
    %974 = vmatprep.subr.bf16.mxu0 0
    %975 = vmatpush1.bf16.msra.mxu0 0
    %976 = vmatprep.subr.bf16.mxu0 0
    %977 = vmatpush1.bf16.msra.mxu0 0
    %978 = vmatprep.subr.bf16.mxu0 0
    %979 = vmatpush1.bf16.msra.mxu0 0
    %980 = vmatprep.subr.bf16.mxu0 0
    %981 = vmatpush1.bf16.msra.mxu0 0
    %982 = vmatprep.subr.bf16.mxu0 0
    %983 = vmatpush1.bf16.msra.mxu0 0
    %984 = vmatprep.subr.bf16.mxu0 0
    %985 = vmatpush1.bf16.msra.mxu0 0
    %986 = vmatprep.subr.bf16.mxu0 0
    %987 = vmatpush1.bf16.msra.mxu0 0
    %988 = vmatprep.subr.bf16.mxu0 0
    %989 = vmatpush1.bf16.msra.mxu0 0
    %990 = vmatprep.subr.bf16.mxu0 0
    %991 = vmatpush1.bf16.msra.mxu0 0
    %992 = vmatprep.subr.bf16.mxu0 0
    %993 = vmatpush1.bf16.msra.mxu0 0
    %994 = vmatprep.subr.bf16.mxu0 0
    %995 = vmatpush1.bf16.msra.mxu0 0
    %996 = vmatprep.subr.bf16.mxu0 0
    %997 = vmatpush1.bf16.msra.mxu0 0
    %998 = vmatprep.subr.bf16.mxu0 0
    %999 = vmatpush1.bf16.msra.mxu0 0
    %1000 = vmatprep.subr.bf16.mxu0 0
    %1001 = vmatpush1.bf16.msra.mxu0 0
    %1002 = vmatprep.subr.bf16.mxu0 0
    %1003 = vmatpush1.bf16.msra.mxu0 0
    %1004 = vmatprep.mubr.bf16.mxu0 0
    %1005 = vmatmul.mubr.bf16.gmra.mrb[0].mxu0 %v967
    %v1006 = vpop.f32.mrb[0].mxu0
    %v1007 = vadd.f32 0.0, %v1006
    %v1008 = vpop.f32.mrb[0].mxu0
    %v1009 = vpop.f32.mrb[0].mxu0
    %v1010 = vadd.f32 0.0, %v1009
    %v1011 = vpop.f32.mrb[0].mxu0
    %1012 = vdwg.mxu0
    %v1013 = vadd.f32 %v837, %v1007
    %v1014 = vadd.f32 %v838, %v1010
    %v1015 = vadd.f32 %v82, %v1013
    %v1016 = vadd.f32 %v83, %v1014
    %v1017 = vld [vmem:[%s9] sm:$0x1]
    %v1018 = vld [vmem:[%s10] sm:$0x1]
    %v1019 = vsel %vm90, %v1015, 0.0
    %1020 = vadd.xlane.f32.xlu0 %v1019
    %v1021 = vpop.xlane.xlu0 %1020
    %v1022 = vsel %vm90, %v1016, 0.0
    %1023 = vadd.xlane.f32.xlu0 %v1022
    %v1024 = vpop.xlane.xlu0 %1023
    %v1025 = vmul.f32 %v1021, %v97
    %v1026 = vmul.f32 %v1024, %v97
    %v1027 = vsub.f32 %v1015, %v1025
    %v1028 = vsub.f32 %v1016, %v1026
    %v1029 = vmul.f32 %v1027, %v1027
    %v1030 = vmul.f32 %v1028, %v1028
    %v1031 = vsel %vm90, %v1029, 0.0
    %1032 = vadd.xlane.f32.xlu0 %v1031
    %v1033 = vpop.xlane.xlu0 %1032
    %v1034 = vsel %vm90, %v1030, 0.0
    %1035 = vadd.xlane.f32.xlu0 %v1034
    %v1036 = vpop.xlane.xlu0 %1035
    %v1037 = vmul.f32 %v1033, %v97
    %v1038 = vmul.f32 %v1036, %v97
    %v1039 = vadd.f32 %v1037, 1e-05
    %v1040 = vadd.f32 %v1038, 1e-05
    %v1041 = vrsqrt.pop %v1039
    %v1042 = vrsqrt.pop %v1040
    %v1043 = vmul.f32 %v1027, %v1041
    %v1044 = vmul.f32 %v1028, %v1042
    %v1046 = vlaneseq
    %v1047 = vshrl.u32 %v1046, 7
    %v1048 = vsub.s32 0, %v1047
    %v1049 = vrot.slane %v1017, %v1048
    %v1051 = vmul.f32 %v1043, %v1049
    %v1052 = vmul.f32 %v1044, %v1049
    %v1054 = vlaneseq
    %v1055 = vshrl.u32 %v1054, 7
    %v1056 = vsub.s32 0, %v1055
    %v1057 = vrot.slane %v1018, %v1056
    %v1059 = vadd.f32 %v1051, %v1057
    %v1060 = vadd.f32 %v1052, %v1057
    %v1061 = vld [vmem:[%s11] sm:$0xff]
    %v1062 = vld [vmem:[%s11 + $0x8] sm:$0xff]
    %v1063 = vld [vmem:[%s11 + $0x10] sm:$0xff]
    %v1064 = vld [vmem:[%s11 + $0x18] sm:$0xff]
    %v1065 = vld [vmem:[%s12] sm:$0x1]
    %v1066 = vld [vmem:[%s13] sm:$0xff]
    %v1067 = vld [vmem:[%s13 + $0x8] sm:$0xff]
    %v1068 = vld [vmem:[%s13 + $0x10] sm:$0xff]
    %v1069 = vld [vmem:[%s13 + $0x18] sm:$0xff]
    %v1070 = vld [vmem:[%s14] sm:$0x1]
    %v1071 = vpack.c.bf16 %v1060, %v1059
    %v1072 = vpack.c.bf16 %v1062, %v1061
    %v1073 = vpack.c.bf16 %v1064, %v1063
    %v1075 = vsel %vm90, %v1071, 0
    %1077 = vmatprep.subr.bf16.mxu0 0
    %1078 = vmatpush1.bf16.msra.mxu0 %v1072
    %1079 = vmatprep.subr.bf16.mxu0 0
    %1080 = vmatpush1.bf16.msra.mxu0 %v1073
    %1081 = vmatprep.subr.bf16.mxu0 0
    %1082 = vmatpush1.bf16.msra.mxu0 0
    %1083 = vmatprep.subr.bf16.mxu0 0
    %1084 = vmatpush1.bf16.msra.mxu0 0
    %1085 = vmatprep.subr.bf16.mxu0 0
    %1086 = vmatpush1.bf16.msra.mxu0 0
    %1087 = vmatprep.subr.bf16.mxu0 0
    %1088 = vmatpush1.bf16.msra.mxu0 0
    %1089 = vmatprep.subr.bf16.mxu0 0
    %1090 = vmatpush1.bf16.msra.mxu0 0
    %1091 = vmatprep.subr.bf16.mxu0 0
    %1092 = vmatpush1.bf16.msra.mxu0 0
    %1093 = vmatprep.subr.bf16.mxu0 0
    %1094 = vmatpush1.bf16.msra.mxu0 0
    %1095 = vmatprep.subr.bf16.mxu0 0
    %1096 = vmatpush1.bf16.msra.mxu0 0
    %1097 = vmatprep.subr.bf16.mxu0 0
    %1098 = vmatpush1.bf16.msra.mxu0 0
    %1099 = vmatprep.subr.bf16.mxu0 0
    %1100 = vmatpush1.bf16.msra.mxu0 0
    %1101 = vmatprep.subr.bf16.mxu0 0
    %1102 = vmatpush1.bf16.msra.mxu0 0
    %1103 = vmatprep.subr.bf16.mxu0 0
    %1104 = vmatpush1.bf16.msra.mxu0 0
    %1105 = vmatprep.subr.bf16.mxu0 0
    %1106 = vmatpush1.bf16.msra.mxu0 0
    %1107 = vmatprep.subr.bf16.mxu0 0
    %1108 = vmatpush1.bf16.msra.mxu0 0
    %1109 = vmatprep.mubr.bf16.mxu0 0
    %1110 = vmatmul.mubr.bf16.gmra.mrb[0].mxu0 %v1075
    %v1111 = vpop.f32.mrb[0].mxu0
    %v1112 = vadd.f32 0.0, %v1111
    %v1113 = vpop.f32.mrb[0].mxu0
    %v1114 = vpop.f32.mrb[0].mxu0
    %v1115 = vadd.f32 0.0, %v1114
    %v1116 = vpop.f32.mrb[0].mxu0
    %1117 = vdwg.mxu0
    %v1118 = vmul.f32 %v1112, 0.17677669
    %v1119 = vmul.f32 %v1115, 0.17677669
    %v1121 = vlaneseq
    %v1122 = vshrl.u32 %v1121, 7
    %v1123 = vsub.s32 0, %v1122
    %v1124 = vrot.slane %v1065, %v1123
    %v1126 = vadd.f32 %v1118, %v1124
    %v1127 = vadd.f32 %v1119, %v1124
    %v1128 = vpack.c.bf16 %v85, %v84
    %1131 = vrot.lane.b32.xlu0 %v1072, 96
    %v1132 = vpop.permute.xlu0 %1131
    %1133 = vrot.lane.b32.xlu0 %v1073, 96
    %v1134 = vpop.permute.xlu0 %1133
    %1137 = vrot.lane.b32.xlu0 %v1124, 96
    %v1138 = vpop.permute.xlu0 %1137
    %v1141 = vsel %vm90, %v1128, 0
    %1143 = vmatprep.subr.bf16.mxu0 0
    %1144 = vmatpush1.bf16.msra.mxu0 %v1132
    %1145 = vmatprep.subr.bf16.mxu0 0
    %1146 = vmatpush1.bf16.msra.mxu0 %v1134
    %1147 = vmatprep.subr.bf16.mxu0 0
    %1148 = vmatpush1.bf16.msra.mxu0 0
    %1149 = vmatprep.subr.bf16.mxu0 0
    %1150 = vmatpush1.bf16.msra.mxu0 0
    %1151 = vmatprep.subr.bf16.mxu0 0
    %1152 = vmatpush1.bf16.msra.mxu0 0
    %1153 = vmatprep.subr.bf16.mxu0 0
    %1154 = vmatpush1.bf16.msra.mxu0 0
    %1155 = vmatprep.subr.bf16.mxu0 0
    %1156 = vmatpush1.bf16.msra.mxu0 0
    %1157 = vmatprep.subr.bf16.mxu0 0
    %1158 = vmatpush1.bf16.msra.mxu0 0
    %1159 = vmatprep.subr.bf16.mxu0 0
    %1160 = vmatpush1.bf16.msra.mxu0 0
    %1161 = vmatprep.subr.bf16.mxu0 0
    %1162 = vmatpush1.bf16.msra.mxu0 0
    %1163 = vmatprep.subr.bf16.mxu0 0
    %1164 = vmatpush1.bf16.msra.mxu0 0
    %1165 = vmatprep.subr.bf16.mxu0 0
    %1166 = vmatpush1.bf16.msra.mxu0 0
    %1167 = vmatprep.subr.bf16.mxu0 0
    %1168 = vmatpush1.bf16.msra.mxu0 0
    %1169 = vmatprep.subr.bf16.mxu0 0
    %1170 = vmatpush1.bf16.msra.mxu0 0
    %1171 = vmatprep.subr.bf16.mxu0 0
    %1172 = vmatpush1.bf16.msra.mxu0 0
    %1173 = vmatprep.subr.bf16.mxu0 0
    %1174 = vmatpush1.bf16.msra.mxu0 0
    %1175 = vmatprep.mubr.bf16.mxu0 0
    %1176 = vmatmul.mubr.bf16.gmra.mrb[0].mxu0 %v1141
    %v1177 = vpop.f32.mrb[0].mxu0
    %v1178 = vadd.f32 %v1138, %v1177
    %v1179 = vpop.f32.mrb[0].mxu0
    %v1180 = vpop.f32.mrb[0].mxu0
    %v1181 = vadd.f32 %v1138, %v1180
    %v1182 = vpop.f32.mrb[0].mxu0
    %1183 = vdwg.mxu0
    %1184 = vrot.lane.b32.xlu0 %v1072, 64
    %v1185 = vpop.permute.xlu0 %1184
    %1186 = vrot.lane.b32.xlu0 %v1073, 64
    %v1187 = vpop.permute.xlu0 %1186
    %1190 = vrot.lane.b32.xlu0 %v1124, 64
    %v1191 = vpop.permute.xlu0 %1190
    %1193 = vmatprep.subr.bf16.mxu0 0
    %1194 = vmatpush1.bf16.msra.mxu0 %v1185
    %1195 = vmatprep.subr.bf16.mxu0 0
    %1196 = vmatpush1.bf16.msra.mxu0 %v1187
    %1197 = vmatprep.subr.bf16.mxu0 0
    %1198 = vmatpush1.bf16.msra.mxu0 0
    %1199 = vmatprep.subr.bf16.mxu0 0
    %1200 = vmatpush1.bf16.msra.mxu0 0
    %1201 = vmatprep.subr.bf16.mxu0 0
    %1202 = vmatpush1.bf16.msra.mxu0 0
    %1203 = vmatprep.subr.bf16.mxu0 0
    %1204 = vmatpush1.bf16.msra.mxu0 0
    %1205 = vmatprep.subr.bf16.mxu0 0
    %1206 = vmatpush1.bf16.msra.mxu0 0
    %1207 = vmatprep.subr.bf16.mxu0 0
    %1208 = vmatpush1.bf16.msra.mxu0 0
    %1209 = vmatprep.subr.bf16.mxu0 0
    %1210 = vmatpush1.bf16.msra.mxu0 0
    %1211 = vmatprep.subr.bf16.mxu0 0
    %1212 = vmatpush1.bf16.msra.mxu0 0
    %1213 = vmatprep.subr.bf16.mxu0 0
    %1214 = vmatpush1.bf16.msra.mxu0 0
    %1215 = vmatprep.subr.bf16.mxu0 0
    %1216 = vmatpush1.bf16.msra.mxu0 0
    %1217 = vmatprep.subr.bf16.mxu0 0
    %1218 = vmatpush1.bf16.msra.mxu0 0
    %1219 = vmatprep.subr.bf16.mxu0 0
    %1220 = vmatpush1.bf16.msra.mxu0 0
    %1221 = vmatprep.subr.bf16.mxu0 0
    %1222 = vmatpush1.bf16.msra.mxu0 0
    %1223 = vmatprep.subr.bf16.mxu0 0
    %1224 = vmatpush1.bf16.msra.mxu0 0
    %1225 = vmatprep.mubr.bf16.mxu0 0
    %1226 = vmatmul.mubr.bf16.gmra.mrb[0].mxu0 %v1141
    %v1227 = vpop.f32.mrb[0].mxu0
    %v1228 = vadd.f32 %v1191, %v1227
    %v1229 = vpop.f32.mrb[0].mxu0
    %v1230 = vpop.f32.mrb[0].mxu0
    %v1231 = vadd.f32 %v1191, %v1230
    %v1232 = vpop.f32.mrb[0].mxu0
    %1233 = vdwg.mxu0
    %v1234 = vpack.c.bf16 %v1127, %v1126
    %v1235 = vpack.c.bf16 %v1181, %v1178
    %v1237 = vsel %vm305, %v1234, 0
    %v1240 = vsel %vm305, %v1235, 0
    %1242 = vmatprep.subr.bf16.mxu0 0
    %1243 = vmatpush1.bf16.xpose.msra.mxu0 %v1240
    %1244 = vmatprep.subr.bf16.mxu0 0
    %1245 = vmatpush1.bf16.xpose.msra.mxu0 0
    %1246 = vmatprep.subr.bf16.mxu0 0
    %1247 = vmatpush1.bf16.xpose.msra.mxu0 0
    %1248 = vmatprep.subr.bf16.mxu0 0
    %1249 = vmatpush1.bf16.xpose.msra.mxu0 0
    %1250 = vmatprep.subr.bf16.mxu0 0
    %1251 = vmatpush1.bf16.xpose.msra.mxu0 0
    %1252 = vmatprep.subr.bf16.mxu0 0
    %1253 = vmatpush1.bf16.xpose.msra.mxu0 0
    %1254 = vmatprep.subr.bf16.mxu0 0
    %1255 = vmatpush1.bf16.xpose.msra.mxu0 0
    %1256 = vmatprep.subr.bf16.mxu0 0
    %1257 = vmatpush1.bf16.xpose.msra.mxu0 0
    %1258 = vmatprep.subr.bf16.mxu0 0
    %1259 = vmatpush1.bf16.xpose.msra.mxu0 0
    %1260 = vmatprep.subr.bf16.mxu0 0
    %1261 = vmatpush1.bf16.xpose.msra.mxu0 0
    %1262 = vmatprep.subr.bf16.mxu0 0
    %1263 = vmatpush1.bf16.xpose.msra.mxu0 0
    %1264 = vmatprep.subr.bf16.mxu0 0
    %1265 = vmatpush1.bf16.xpose.msra.mxu0 0
    %1266 = vmatprep.subr.bf16.mxu0 0
    %1267 = vmatpush1.bf16.xpose.msra.mxu0 0
    %1268 = vmatprep.subr.bf16.mxu0 0
    %1269 = vmatpush1.bf16.xpose.msra.mxu0 0
    %1270 = vmatprep.subr.bf16.mxu0 0
    %1271 = vmatpush1.bf16.xpose.msra.mxu0 0
    %1272 = vmatprep.subr.bf16.mxu0 0
    %1273 = vmatpush1.bf16.xpose.msra.mxu0 0
    %1274 = vmatprep.mubr.bf16.mxu0 0
    %1275 = vmatmul.mubr.bf16.gmra.mrb[0].mxu0 %v1237
    %v1276 = vpop.f32.mrb[0].mxu0
    %v1277 = vadd.f32 0.0, %v1276
    %v1278 = vpop.f32.mrb[0].mxu0
    %v1279 = vpop.f32.mrb[0].mxu0
    %v1280 = vadd.f32 0.0, %v1279
    %v1281 = vpop.f32.mrb[0].mxu0
    %1282 = vdwg.mxu0
    %v1283 = vmul.f32 %v1277, 0.35355338
    %v1284 = vmul.f32 %v1280, 0.35355338
    %v1285 = vadd.f32 %v1283, %v86
    %v1286 = vadd.f32 %v1284, %v87
    %v1287 = vsel %vm357, %v1285, -inf
    %1288 = vmax.xlane.f32.xlu0 %v1287
    %v1289 = vpop.xlane.xlu0 %1288
    %v1290 = vsel %vm357, %v1286, -inf
    %1291 = vmax.xlane.f32.xlu0 %v1290
    %v1292 = vpop.xlane.xlu0 %1291
    %v1293 = vsub.f32 %v1285, %v1289
    %v1294 = vsub.f32 %v1286, %v1292
    %v1295 = vmul.f32 %v1293, 1.442695
    %v1296 = vpow.pop %v1295
    %v1297 = vmul.f32 %v1294, 1.442695
    %v1298 = vpow.pop %v1297
    %v1299 = vsel %vm357, %v1296, 0.0
    %1300 = vadd.xlane.f32.xlu0 %v1299
    %v1301 = vpop.xlane.xlu0 %1300
    %v1302 = vsel %vm357, %v1298, 0.0
    %1303 = vadd.xlane.f32.xlu0 %v1302
    %v1304 = vpop.xlane.xlu0 %1303
    %v1305 = vrcp.pop %v1301
    %v1306 = vrcp.pop %v1304
    %v1307 = vmul.f32 %v1296, %v1305
    %v1308 = vmul.f32 %v1298, %v1306
    %v1309 = vpack.c.bf16 %v1308, %v1307
    %v1310 = vpack.c.bf16 %v1231, %v1228
    %v1312 = vsel %vm357, %v1309, 0
    %1314 = vmatprep.subr.bf16.mxu0 0
    %1315 = vmatpush1.bf16.msra.mxu0 %v1310
    %1316 = vmatprep.subr.bf16.mxu0 0
    %1317 = vmatpush1.bf16.msra.mxu0 0
    %1318 = vmatprep.subr.bf16.mxu0 0
    %1319 = vmatpush1.bf16.msra.mxu0 0
    %1320 = vmatprep.subr.bf16.mxu0 0
    %1321 = vmatpush1.bf16.msra.mxu0 0
    %1322 = vmatprep.subr.bf16.mxu0 0
    %1323 = vmatpush1.bf16.msra.mxu0 0
    %1324 = vmatprep.subr.bf16.mxu0 0
    %1325 = vmatpush1.bf16.msra.mxu0 0
    %1326 = vmatprep.subr.bf16.mxu0 0
    %1327 = vmatpush1.bf16.msra.mxu0 0
    %1328 = vmatprep.subr.bf16.mxu0 0
    %1329 = vmatpush1.bf16.msra.mxu0 0
    %1330 = vmatprep.subr.bf16.mxu0 0
    %1331 = vmatpush1.bf16.msra.mxu0 0
    %1332 = vmatprep.subr.bf16.mxu0 0
    %1333 = vmatpush1.bf16.msra.mxu0 0
    %1334 = vmatprep.subr.bf16.mxu0 0
    %1335 = vmatpush1.bf16.msra.mxu0 0
    %1336 = vmatprep.subr.bf16.mxu0 0
    %1337 = vmatpush1.bf16.msra.mxu0 0
    %1338 = vmatprep.subr.bf16.mxu0 0
    %1339 = vmatpush1.bf16.msra.mxu0 0
    %1340 = vmatprep.subr.bf16.mxu0 0
    %1341 = vmatpush1.bf16.msra.mxu0 0
    %1342 = vmatprep.subr.bf16.mxu0 0
    %1343 = vmatpush1.bf16.msra.mxu0 0
    %1344 = vmatprep.subr.bf16.mxu0 0
    %1345 = vmatpush1.bf16.msra.mxu0 0
    %1346 = vmatprep.mubr.bf16.mxu0 0
    %1347 = vmatmul.mubr.bf16.gmra.mrb[0].mxu0 %v1312
    %v1348 = vpop.f32.mrb[0].mxu0
    %v1349 = vadd.f32 0.0, %v1348
    %v1350 = vpop.f32.mrb[0].mxu0
    %v1351 = vpop.f32.mrb[0].mxu0
    %v1352 = vadd.f32 0.0, %v1351
    %v1353 = vpop.f32.mrb[0].mxu0
    %1354 = vdwg.mxu0
    %v1355 = vpack.c.bf16 %v1352, %v1349
    %v1356 = vpack.c.bf16 %v1066, %v1066
    %v1358 = vsel %vm305, %v1355, 0
    %v1361 = vsel %vm431, %v1356, 0
    %1363 = vmatprep.subr.bf16.mxu0 0
    %1364 = vmatpush1.bf16.msra.mxu0 %v1361
    %1365 = vmatprep.subr.bf16.mxu0 0
    %1366 = vmatpush1.bf16.msra.mxu0 0
    %1367 = vmatprep.subr.bf16.mxu0 0
    %1368 = vmatpush1.bf16.msra.mxu0 0
    %1369 = vmatprep.subr.bf16.mxu0 0
    %1370 = vmatpush1.bf16.msra.mxu0 0
    %1371 = vmatprep.subr.bf16.mxu0 0
    %1372 = vmatpush1.bf16.msra.mxu0 0
    %1373 = vmatprep.subr.bf16.mxu0 0
    %1374 = vmatpush1.bf16.msra.mxu0 0
    %1375 = vmatprep.subr.bf16.mxu0 0
    %1376 = vmatpush1.bf16.msra.mxu0 0
    %1377 = vmatprep.subr.bf16.mxu0 0
    %1378 = vmatpush1.bf16.msra.mxu0 0
    %1379 = vmatprep.subr.bf16.mxu0 0
    %1380 = vmatpush1.bf16.msra.mxu0 0
    %1381 = vmatprep.subr.bf16.mxu0 0
    %1382 = vmatpush1.bf16.msra.mxu0 0
    %1383 = vmatprep.subr.bf16.mxu0 0
    %1384 = vmatpush1.bf16.msra.mxu0 0
    %1385 = vmatprep.subr.bf16.mxu0 0
    %1386 = vmatpush1.bf16.msra.mxu0 0
    %1387 = vmatprep.subr.bf16.mxu0 0
    %1388 = vmatpush1.bf16.msra.mxu0 0
    %1389 = vmatprep.subr.bf16.mxu0 0
    %1390 = vmatpush1.bf16.msra.mxu0 0
    %1391 = vmatprep.subr.bf16.mxu0 0
    %1392 = vmatpush1.bf16.msra.mxu0 0
    %1393 = vmatprep.subr.bf16.mxu0 0
    %1394 = vmatpush1.bf16.msra.mxu0 0
    %1395 = vmatprep.mubr.bf16.mxu0 0
    %1396 = vmatmul.mubr.bf16.gmra.mrb[0].mxu0 %v1358
    %v1397 = vpop.f32.mrb[0].mxu0
    %v1398 = vadd.f32 0.0, %v1397
    %v1399 = vpop.f32.mrb[0].mxu0
    %v1400 = vpop.f32.mrb[0].mxu0
    %v1401 = vadd.f32 0.0, %v1400
    %v1402 = vpop.f32.mrb[0].mxu0
    %1403 = vdwg.mxu0
    %v1405 = vlaneseq
    %v1406 = vshrl.u32 %v1405, 7
    %v1407 = vsub.s32 0, %v1406
    %v1408 = vrot.slane %v1070, %v1407
    %v1410 = vadd.f32 %v1408, %v1398
    %v1411 = vadd.f32 %v1408, %v1401
    %1413 = vrot.lane.b32.xlu0 %v1234, 120
    %v1414 = vpop.permute.xlu0 %1413
    %1416 = vrot.lane.b32.xlu0 %v1235, 120
    %v1417 = vpop.permute.xlu0 %1416
    %v1419 = vsel %vm305, %v1414, 0
    %v1422 = vsel %vm305, %v1417, 0
    %1424 = vmatprep.subr.bf16.mxu0 0
    %1425 = vmatpush1.bf16.xpose.msra.mxu0 %v1422
    %1426 = vmatprep.subr.bf16.mxu0 0
    %1427 = vmatpush1.bf16.xpose.msra.mxu0 0
    %1428 = vmatprep.subr.bf16.mxu0 0
    %1429 = vmatpush1.bf16.xpose.msra.mxu0 0
    %1430 = vmatprep.subr.bf16.mxu0 0
    %1431 = vmatpush1.bf16.xpose.msra.mxu0 0
    %1432 = vmatprep.subr.bf16.mxu0 0
    %1433 = vmatpush1.bf16.xpose.msra.mxu0 0
    %1434 = vmatprep.subr.bf16.mxu0 0
    %1435 = vmatpush1.bf16.xpose.msra.mxu0 0
    %1436 = vmatprep.subr.bf16.mxu0 0
    %1437 = vmatpush1.bf16.xpose.msra.mxu0 0
    %1438 = vmatprep.subr.bf16.mxu0 0
    %1439 = vmatpush1.bf16.xpose.msra.mxu0 0
    %1440 = vmatprep.subr.bf16.mxu0 0
    %1441 = vmatpush1.bf16.xpose.msra.mxu0 0
    %1442 = vmatprep.subr.bf16.mxu0 0
    %1443 = vmatpush1.bf16.xpose.msra.mxu0 0
    %1444 = vmatprep.subr.bf16.mxu0 0
    %1445 = vmatpush1.bf16.xpose.msra.mxu0 0
    %1446 = vmatprep.subr.bf16.mxu0 0
    %1447 = vmatpush1.bf16.xpose.msra.mxu0 0
    %1448 = vmatprep.subr.bf16.mxu0 0
    %1449 = vmatpush1.bf16.xpose.msra.mxu0 0
    %1450 = vmatprep.subr.bf16.mxu0 0
    %1451 = vmatpush1.bf16.xpose.msra.mxu0 0
    %1452 = vmatprep.subr.bf16.mxu0 0
    %1453 = vmatpush1.bf16.xpose.msra.mxu0 0
    %1454 = vmatprep.subr.bf16.mxu0 0
    %1455 = vmatpush1.bf16.xpose.msra.mxu0 0
    %1456 = vmatprep.mubr.bf16.mxu0 0
    %1457 = vmatmul.mubr.bf16.gmra.mrb[0].mxu0 %v1419
    %v1458 = vpop.f32.mrb[0].mxu0
    %v1459 = vadd.f32 0.0, %v1458
    %v1460 = vpop.f32.mrb[0].mxu0
    %v1461 = vpop.f32.mrb[0].mxu0
    %v1462 = vadd.f32 0.0, %v1461
    %v1463 = vpop.f32.mrb[0].mxu0
    %1464 = vdwg.mxu0
    %v1465 = vmul.f32 %v1459, 0.35355338
    %v1466 = vmul.f32 %v1462, 0.35355338
    %v1467 = vadd.f32 %v1465, %v86
    %v1468 = vadd.f32 %v1466, %v87
    %v1469 = vsel %vm357, %v1467, -inf
    %1470 = vmax.xlane.f32.xlu0 %v1469
    %v1471 = vpop.xlane.xlu0 %1470
    %v1472 = vsel %vm357, %v1468, -inf
    %1473 = vmax.xlane.f32.xlu0 %v1472
    %v1474 = vpop.xlane.xlu0 %1473
    %v1475 = vsub.f32 %v1467, %v1471
    %v1476 = vsub.f32 %v1468, %v1474
    %v1477 = vmul.f32 %v1475, 1.442695
    %v1478 = vpow.pop %v1477
    %v1479 = vmul.f32 %v1476, 1.442695
    %v1480 = vpow.pop %v1479
    %v1481 = vsel %vm357, %v1478, 0.0
    %1482 = vadd.xlane.f32.xlu0 %v1481
    %v1483 = vpop.xlane.xlu0 %1482
    %v1484 = vsel %vm357, %v1480, 0.0
    %1485 = vadd.xlane.f32.xlu0 %v1484
    %v1486 = vpop.xlane.xlu0 %1485
    %v1487 = vrcp.pop %v1483
    %v1488 = vrcp.pop %v1486
    %v1489 = vmul.f32 %v1478, %v1487
    %v1490 = vmul.f32 %v1480, %v1488
    %v1491 = vpack.c.bf16 %v1490, %v1489
    %1493 = vrot.lane.b32.xlu0 %v1310, 120
    %v1494 = vpop.permute.xlu0 %1493
    %v1497 = vsel %vm357, %v1491, 0
    %1499 = vmatprep.subr.bf16.mxu0 0
    %1500 = vmatpush1.bf16.msra.mxu0 %v1494
    %1501 = vmatprep.subr.bf16.mxu0 0
    %1502 = vmatpush1.bf16.msra.mxu0 0
    %1503 = vmatprep.subr.bf16.mxu0 0
    %1504 = vmatpush1.bf16.msra.mxu0 0
    %1505 = vmatprep.subr.bf16.mxu0 0
    %1506 = vmatpush1.bf16.msra.mxu0 0
    %1507 = vmatprep.subr.bf16.mxu0 0
    %1508 = vmatpush1.bf16.msra.mxu0 0
    %1509 = vmatprep.subr.bf16.mxu0 0
    %1510 = vmatpush1.bf16.msra.mxu0 0
    %1511 = vmatprep.subr.bf16.mxu0 0
    %1512 = vmatpush1.bf16.msra.mxu0 0
    %1513 = vmatprep.subr.bf16.mxu0 0
    %1514 = vmatpush1.bf16.msra.mxu0 0
    %1515 = vmatprep.subr.bf16.mxu0 0
    %1516 = vmatpush1.bf16.msra.mxu0 0
    %1517 = vmatprep.subr.bf16.mxu0 0
    %1518 = vmatpush1.bf16.msra.mxu0 0
    %1519 = vmatprep.subr.bf16.mxu0 0
    %1520 = vmatpush1.bf16.msra.mxu0 0
    %1521 = vmatprep.subr.bf16.mxu0 0
    %1522 = vmatpush1.bf16.msra.mxu0 0
    %1523 = vmatprep.subr.bf16.mxu0 0
    %1524 = vmatpush1.bf16.msra.mxu0 0
    %1525 = vmatprep.subr.bf16.mxu0 0
    %1526 = vmatpush1.bf16.msra.mxu0 0
    %1527 = vmatprep.subr.bf16.mxu0 0
    %1528 = vmatpush1.bf16.msra.mxu0 0
    %1529 = vmatprep.subr.bf16.mxu0 0
    %1530 = vmatpush1.bf16.msra.mxu0 0
    %1531 = vmatprep.mubr.bf16.mxu0 0
    %1532 = vmatmul.mubr.bf16.gmra.mrb[0].mxu0 %v1497
    %v1533 = vpop.f32.mrb[0].mxu0
    %v1534 = vadd.f32 0.0, %v1533
    %v1535 = vpop.f32.mrb[0].mxu0
    %v1536 = vpop.f32.mrb[0].mxu0
    %v1537 = vadd.f32 0.0, %v1536
    %v1538 = vpop.f32.mrb[0].mxu0
    %1539 = vdwg.mxu0
    %v1540 = vpack.c.bf16 %v1537, %v1534
    %v1541 = vpack.c.bf16 %v1067, %v1067
    %v1543 = vsel %vm305, %v1540, 0
    %v1546 = vsel %vm431, %v1541, 0
    %1548 = vmatprep.subr.bf16.mxu0 0
    %1549 = vmatpush1.bf16.msra.mxu0 %v1546
    %1550 = vmatprep.subr.bf16.mxu0 0
    %1551 = vmatpush1.bf16.msra.mxu0 0
    %1552 = vmatprep.subr.bf16.mxu0 0
    %1553 = vmatpush1.bf16.msra.mxu0 0
    %1554 = vmatprep.subr.bf16.mxu0 0
    %1555 = vmatpush1.bf16.msra.mxu0 0
    %1556 = vmatprep.subr.bf16.mxu0 0
    %1557 = vmatpush1.bf16.msra.mxu0 0
    %1558 = vmatprep.subr.bf16.mxu0 0
    %1559 = vmatpush1.bf16.msra.mxu0 0
    %1560 = vmatprep.subr.bf16.mxu0 0
    %1561 = vmatpush1.bf16.msra.mxu0 0
    %1562 = vmatprep.subr.bf16.mxu0 0
    %1563 = vmatpush1.bf16.msra.mxu0 0
    %1564 = vmatprep.subr.bf16.mxu0 0
    %1565 = vmatpush1.bf16.msra.mxu0 0
    %1566 = vmatprep.subr.bf16.mxu0 0
    %1567 = vmatpush1.bf16.msra.mxu0 0
    %1568 = vmatprep.subr.bf16.mxu0 0
    %1569 = vmatpush1.bf16.msra.mxu0 0
    %1570 = vmatprep.subr.bf16.mxu0 0
    %1571 = vmatpush1.bf16.msra.mxu0 0
    %1572 = vmatprep.subr.bf16.mxu0 0
    %1573 = vmatpush1.bf16.msra.mxu0 0
    %1574 = vmatprep.subr.bf16.mxu0 0
    %1575 = vmatpush1.bf16.msra.mxu0 0
    %1576 = vmatprep.subr.bf16.mxu0 0
    %1577 = vmatpush1.bf16.msra.mxu0 0
    %1578 = vmatprep.subr.bf16.mxu0 0
    %1579 = vmatpush1.bf16.msra.mxu0 0
    %1580 = vmatprep.mubr.bf16.mxu0 0
    %1581 = vmatmul.mubr.bf16.gmra.mrb[0].mxu0 %v1543
    %v1582 = vpop.f32.mrb[0].mxu0
    %v1583 = vadd.f32 0.0, %v1582
    %v1584 = vpop.f32.mrb[0].mxu0
    %v1585 = vpop.f32.mrb[0].mxu0
    %v1586 = vadd.f32 0.0, %v1585
    %v1587 = vpop.f32.mrb[0].mxu0
    %1588 = vdwg.mxu0
    %v1589 = vadd.f32 %v1410, %v1583
    %v1590 = vadd.f32 %v1411, %v1586
    %1591 = vrot.lane.b32.xlu0 %v1234, 112
    %v1592 = vpop.permute.xlu0 %1591
    %1593 = vrot.lane.b32.xlu0 %v1235, 112
    %v1594 = vpop.permute.xlu0 %1593
    %v1596 = vsel %vm305, %v1592, 0
    %v1599 = vsel %vm305, %v1594, 0
    %1601 = vmatprep.subr.bf16.mxu0 0
    %1602 = vmatpush1.bf16.xpose.msra.mxu0 %v1599
    %1603 = vmatprep.subr.bf16.mxu0 0
    %1604 = vmatpush1.bf16.xpose.msra.mxu0 0
    %1605 = vmatprep.subr.bf16.mxu0 0
    %1606 = vmatpush1.bf16.xpose.msra.mxu0 0
    %1607 = vmatprep.subr.bf16.mxu0 0
    %1608 = vmatpush1.bf16.xpose.msra.mxu0 0
    %1609 = vmatprep.subr.bf16.mxu0 0
    %1610 = vmatpush1.bf16.xpose.msra.mxu0 0
    %1611 = vmatprep.subr.bf16.mxu0 0
    %1612 = vmatpush1.bf16.xpose.msra.mxu0 0
    %1613 = vmatprep.subr.bf16.mxu0 0
    %1614 = vmatpush1.bf16.xpose.msra.mxu0 0
    %1615 = vmatprep.subr.bf16.mxu0 0
    %1616 = vmatpush1.bf16.xpose.msra.mxu0 0
    %1617 = vmatprep.subr.bf16.mxu0 0
    %1618 = vmatpush1.bf16.xpose.msra.mxu0 0
    %1619 = vmatprep.subr.bf16.mxu0 0
    %1620 = vmatpush1.bf16.xpose.msra.mxu0 0
    %1621 = vmatprep.subr.bf16.mxu0 0
    %1622 = vmatpush1.bf16.xpose.msra.mxu0 0
    %1623 = vmatprep.subr.bf16.mxu0 0
    %1624 = vmatpush1.bf16.xpose.msra.mxu0 0
    %1625 = vmatprep.subr.bf16.mxu0 0
    %1626 = vmatpush1.bf16.xpose.msra.mxu0 0
    %1627 = vmatprep.subr.bf16.mxu0 0
    %1628 = vmatpush1.bf16.xpose.msra.mxu0 0
    %1629 = vmatprep.subr.bf16.mxu0 0
    %1630 = vmatpush1.bf16.xpose.msra.mxu0 0
    %1631 = vmatprep.subr.bf16.mxu0 0
    %1632 = vmatpush1.bf16.xpose.msra.mxu0 0
    %1633 = vmatprep.mubr.bf16.mxu0 0
    %1634 = vmatmul.mubr.bf16.gmra.mrb[0].mxu0 %v1596
    %v1635 = vpop.f32.mrb[0].mxu0
    %v1636 = vadd.f32 0.0, %v1635
    %v1637 = vpop.f32.mrb[0].mxu0
    %v1638 = vpop.f32.mrb[0].mxu0
    %v1639 = vadd.f32 0.0, %v1638
    %v1640 = vpop.f32.mrb[0].mxu0
    %1641 = vdwg.mxu0
    %v1642 = vmul.f32 %v1636, 0.35355338
    %v1643 = vmul.f32 %v1639, 0.35355338
    %v1644 = vadd.f32 %v1642, %v86
    %v1645 = vadd.f32 %v1643, %v87
    %v1646 = vsel %vm357, %v1644, -inf
    %1647 = vmax.xlane.f32.xlu0 %v1646
    %v1648 = vpop.xlane.xlu0 %1647
    %v1649 = vsel %vm357, %v1645, -inf
    %1650 = vmax.xlane.f32.xlu0 %v1649
    %v1651 = vpop.xlane.xlu0 %1650
    %v1652 = vsub.f32 %v1644, %v1648
    %v1653 = vsub.f32 %v1645, %v1651
    %v1654 = vmul.f32 %v1652, 1.442695
    %v1655 = vpow.pop %v1654
    %v1656 = vmul.f32 %v1653, 1.442695
    %v1657 = vpow.pop %v1656
    %v1658 = vsel %vm357, %v1655, 0.0
    %1659 = vadd.xlane.f32.xlu0 %v1658
    %v1660 = vpop.xlane.xlu0 %1659
    %v1661 = vsel %vm357, %v1657, 0.0
    %1662 = vadd.xlane.f32.xlu0 %v1661
    %v1663 = vpop.xlane.xlu0 %1662
    %v1664 = vrcp.pop %v1660
    %v1665 = vrcp.pop %v1663
    %v1666 = vmul.f32 %v1655, %v1664
    %v1667 = vmul.f32 %v1657, %v1665
    %v1668 = vpack.c.bf16 %v1667, %v1666
    %1669 = vrot.lane.b32.xlu0 %v1310, 112
    %v1670 = vpop.permute.xlu0 %1669
    %v1673 = vsel %vm357, %v1668, 0
    %1675 = vmatprep.subr.bf16.mxu0 0
    %1676 = vmatpush1.bf16.msra.mxu0 %v1670
    %1677 = vmatprep.subr.bf16.mxu0 0
    %1678 = vmatpush1.bf16.msra.mxu0 0
    %1679 = vmatprep.subr.bf16.mxu0 0
    %1680 = vmatpush1.bf16.msra.mxu0 0
    %1681 = vmatprep.subr.bf16.mxu0 0
    %1682 = vmatpush1.bf16.msra.mxu0 0
    %1683 = vmatprep.subr.bf16.mxu0 0
    %1684 = vmatpush1.bf16.msra.mxu0 0
    %1685 = vmatprep.subr.bf16.mxu0 0
    %1686 = vmatpush1.bf16.msra.mxu0 0
    %1687 = vmatprep.subr.bf16.mxu0 0
    %1688 = vmatpush1.bf16.msra.mxu0 0
    %1689 = vmatprep.subr.bf16.mxu0 0
    %1690 = vmatpush1.bf16.msra.mxu0 0
    %1691 = vmatprep.subr.bf16.mxu0 0
    %1692 = vmatpush1.bf16.msra.mxu0 0
    %1693 = vmatprep.subr.bf16.mxu0 0
    %1694 = vmatpush1.bf16.msra.mxu0 0
    %1695 = vmatprep.subr.bf16.mxu0 0
    %1696 = vmatpush1.bf16.msra.mxu0 0
    %1697 = vmatprep.subr.bf16.mxu0 0
    %1698 = vmatpush1.bf16.msra.mxu0 0
    %1699 = vmatprep.subr.bf16.mxu0 0
    %1700 = vmatpush1.bf16.msra.mxu0 0
    %1701 = vmatprep.subr.bf16.mxu0 0
    %1702 = vmatpush1.bf16.msra.mxu0 0
    %1703 = vmatprep.subr.bf16.mxu0 0
    %1704 = vmatpush1.bf16.msra.mxu0 0
    %1705 = vmatprep.subr.bf16.mxu0 0
    %1706 = vmatpush1.bf16.msra.mxu0 0
    %1707 = vmatprep.mubr.bf16.mxu0 0
    %1708 = vmatmul.mubr.bf16.gmra.mrb[0].mxu0 %v1673
    %v1709 = vpop.f32.mrb[0].mxu0
    %v1710 = vadd.f32 0.0, %v1709
    %v1711 = vpop.f32.mrb[0].mxu0
    %v1712 = vpop.f32.mrb[0].mxu0
    %v1713 = vadd.f32 0.0, %v1712
    %v1714 = vpop.f32.mrb[0].mxu0
    %1715 = vdwg.mxu0
    %v1716 = vpack.c.bf16 %v1713, %v1710
    %v1717 = vpack.c.bf16 %v1068, %v1068
    %v1719 = vsel %vm305, %v1716, 0
    %v1722 = vsel %vm431, %v1717, 0
    %1724 = vmatprep.subr.bf16.mxu0 0
    %1725 = vmatpush1.bf16.msra.mxu0 %v1722
    %1726 = vmatprep.subr.bf16.mxu0 0
    %1727 = vmatpush1.bf16.msra.mxu0 0
    %1728 = vmatprep.subr.bf16.mxu0 0
    %1729 = vmatpush1.bf16.msra.mxu0 0
    %1730 = vmatprep.subr.bf16.mxu0 0
    %1731 = vmatpush1.bf16.msra.mxu0 0
    %1732 = vmatprep.subr.bf16.mxu0 0
    %1733 = vmatpush1.bf16.msra.mxu0 0
    %1734 = vmatprep.subr.bf16.mxu0 0
    %1735 = vmatpush1.bf16.msra.mxu0 0
    %1736 = vmatprep.subr.bf16.mxu0 0
    %1737 = vmatpush1.bf16.msra.mxu0 0
    %1738 = vmatprep.subr.bf16.mxu0 0
    %1739 = vmatpush1.bf16.msra.mxu0 0
    %1740 = vmatprep.subr.bf16.mxu0 0
    %1741 = vmatpush1.bf16.msra.mxu0 0
    %1742 = vmatprep.subr.bf16.mxu0 0
    %1743 = vmatpush1.bf16.msra.mxu0 0
    %1744 = vmatprep.subr.bf16.mxu0 0
    %1745 = vmatpush1.bf16.msra.mxu0 0
    %1746 = vmatprep.subr.bf16.mxu0 0
    %1747 = vmatpush1.bf16.msra.mxu0 0
    %1748 = vmatprep.subr.bf16.mxu0 0
    %1749 = vmatpush1.bf16.msra.mxu0 0
    %1750 = vmatprep.subr.bf16.mxu0 0
    %1751 = vmatpush1.bf16.msra.mxu0 0
    %1752 = vmatprep.subr.bf16.mxu0 0
    %1753 = vmatpush1.bf16.msra.mxu0 0
    %1754 = vmatprep.subr.bf16.mxu0 0
    %1755 = vmatpush1.bf16.msra.mxu0 0
    %1756 = vmatprep.mubr.bf16.mxu0 0
    %1757 = vmatmul.mubr.bf16.gmra.mrb[0].mxu0 %v1719
    %v1758 = vpop.f32.mrb[0].mxu0
    %v1759 = vadd.f32 0.0, %v1758
    %v1760 = vpop.f32.mrb[0].mxu0
    %v1761 = vpop.f32.mrb[0].mxu0
    %v1762 = vadd.f32 0.0, %v1761
    %v1763 = vpop.f32.mrb[0].mxu0
    %1764 = vdwg.mxu0
    %v1765 = vadd.f32 %v1589, %v1759
    %v1766 = vadd.f32 %v1590, %v1762
    %1767 = vrot.lane.b32.xlu0 %v1234, 104
    %v1768 = vpop.permute.xlu0 %1767
    %1769 = vrot.lane.b32.xlu0 %v1235, 104
    %v1770 = vpop.permute.xlu0 %1769
    %v1772 = vsel %vm305, %v1768, 0
    %v1775 = vsel %vm305, %v1770, 0
    %1777 = vmatprep.subr.bf16.mxu0 0
    %1778 = vmatpush1.bf16.xpose.msra.mxu0 %v1775
    %1779 = vmatprep.subr.bf16.mxu0 0
    %1780 = vmatpush1.bf16.xpose.msra.mxu0 0
    %1781 = vmatprep.subr.bf16.mxu0 0
    %1782 = vmatpush1.bf16.xpose.msra.mxu0 0
    %1783 = vmatprep.subr.bf16.mxu0 0
    %1784 = vmatpush1.bf16.xpose.msra.mxu0 0
    %1785 = vmatprep.subr.bf16.mxu0 0
    %1786 = vmatpush1.bf16.xpose.msra.mxu0 0
    %1787 = vmatprep.subr.bf16.mxu0 0
    %1788 = vmatpush1.bf16.xpose.msra.mxu0 0
    %1789 = vmatprep.subr.bf16.mxu0 0
    %1790 = vmatpush1.bf16.xpose.msra.mxu0 0
    %1791 = vmatprep.subr.bf16.mxu0 0
    %1792 = vmatpush1.bf16.xpose.msra.mxu0 0
    %1793 = vmatprep.subr.bf16.mxu0 0
    %1794 = vmatpush1.bf16.xpose.msra.mxu0 0
    %1795 = vmatprep.subr.bf16.mxu0 0
    %1796 = vmatpush1.bf16.xpose.msra.mxu0 0
    %1797 = vmatprep.subr.bf16.mxu0 0
    %1798 = vmatpush1.bf16.xpose.msra.mxu0 0
    %1799 = vmatprep.subr.bf16.mxu0 0
    %1800 = vmatpush1.bf16.xpose.msra.mxu0 0
    %1801 = vmatprep.subr.bf16.mxu0 0
    %1802 = vmatpush1.bf16.xpose.msra.mxu0 0
    %1803 = vmatprep.subr.bf16.mxu0 0
    %1804 = vmatpush1.bf16.xpose.msra.mxu0 0
    %1805 = vmatprep.subr.bf16.mxu0 0
    %1806 = vmatpush1.bf16.xpose.msra.mxu0 0
    %1807 = vmatprep.subr.bf16.mxu0 0
    %1808 = vmatpush1.bf16.xpose.msra.mxu0 0
    %1809 = vmatprep.mubr.bf16.mxu0 0
    %1810 = vmatmul.mubr.bf16.gmra.mrb[0].mxu0 %v1772
    %v1811 = vpop.f32.mrb[0].mxu0
    %v1812 = vadd.f32 0.0, %v1811
    %v1813 = vpop.f32.mrb[0].mxu0
    %v1814 = vpop.f32.mrb[0].mxu0
    %v1815 = vadd.f32 0.0, %v1814
    %v1816 = vpop.f32.mrb[0].mxu0
    %1817 = vdwg.mxu0
    %v1818 = vmul.f32 %v1812, 0.35355338
    %v1819 = vmul.f32 %v1815, 0.35355338
    %v1820 = vadd.f32 %v1818, %v86
    %v1821 = vadd.f32 %v1819, %v87
    %v1822 = vsel %vm357, %v1820, -inf
    %1823 = vmax.xlane.f32.xlu0 %v1822
    %v1824 = vpop.xlane.xlu0 %1823
    %v1825 = vsel %vm357, %v1821, -inf
    %1826 = vmax.xlane.f32.xlu0 %v1825
    %v1827 = vpop.xlane.xlu0 %1826
    %v1828 = vsub.f32 %v1820, %v1824
    %v1829 = vsub.f32 %v1821, %v1827
    %v1830 = vmul.f32 %v1828, 1.442695
    %v1831 = vpow.pop %v1830
    %v1832 = vmul.f32 %v1829, 1.442695
    %v1833 = vpow.pop %v1832
    %v1834 = vsel %vm357, %v1831, 0.0
    %1835 = vadd.xlane.f32.xlu0 %v1834
    %v1836 = vpop.xlane.xlu0 %1835
    %v1837 = vsel %vm357, %v1833, 0.0
    %1838 = vadd.xlane.f32.xlu0 %v1837
    %v1839 = vpop.xlane.xlu0 %1838
    %v1840 = vrcp.pop %v1836
    %v1841 = vrcp.pop %v1839
    %v1842 = vmul.f32 %v1831, %v1840
    %v1843 = vmul.f32 %v1833, %v1841
    %v1844 = vpack.c.bf16 %v1843, %v1842
    %1845 = vrot.lane.b32.xlu0 %v1310, 104
    %v1846 = vpop.permute.xlu0 %1845
    %v1849 = vsel %vm357, %v1844, 0
    %1851 = vmatprep.subr.bf16.mxu0 0
    %1852 = vmatpush1.bf16.msra.mxu0 %v1846
    %1853 = vmatprep.subr.bf16.mxu0 0
    %1854 = vmatpush1.bf16.msra.mxu0 0
    %1855 = vmatprep.subr.bf16.mxu0 0
    %1856 = vmatpush1.bf16.msra.mxu0 0
    %1857 = vmatprep.subr.bf16.mxu0 0
    %1858 = vmatpush1.bf16.msra.mxu0 0
    %1859 = vmatprep.subr.bf16.mxu0 0
    %1860 = vmatpush1.bf16.msra.mxu0 0
    %1861 = vmatprep.subr.bf16.mxu0 0
    %1862 = vmatpush1.bf16.msra.mxu0 0
    %1863 = vmatprep.subr.bf16.mxu0 0
    %1864 = vmatpush1.bf16.msra.mxu0 0
    %1865 = vmatprep.subr.bf16.mxu0 0
    %1866 = vmatpush1.bf16.msra.mxu0 0
    %1867 = vmatprep.subr.bf16.mxu0 0
    %1868 = vmatpush1.bf16.msra.mxu0 0
    %1869 = vmatprep.subr.bf16.mxu0 0
    %1870 = vmatpush1.bf16.msra.mxu0 0
    %1871 = vmatprep.subr.bf16.mxu0 0
    %1872 = vmatpush1.bf16.msra.mxu0 0
    %1873 = vmatprep.subr.bf16.mxu0 0
    %1874 = vmatpush1.bf16.msra.mxu0 0
    %1875 = vmatprep.subr.bf16.mxu0 0
    %1876 = vmatpush1.bf16.msra.mxu0 0
    %1877 = vmatprep.subr.bf16.mxu0 0
    %1878 = vmatpush1.bf16.msra.mxu0 0
    %1879 = vmatprep.subr.bf16.mxu0 0
    %1880 = vmatpush1.bf16.msra.mxu0 0
    %1881 = vmatprep.subr.bf16.mxu0 0
    %1882 = vmatpush1.bf16.msra.mxu0 0
    %1883 = vmatprep.mubr.bf16.mxu0 0
    %1884 = vmatmul.mubr.bf16.gmra.mrb[0].mxu0 %v1849
    %v1885 = vpop.f32.mrb[0].mxu0
    %v1886 = vadd.f32 0.0, %v1885
    %v1887 = vpop.f32.mrb[0].mxu0
    %v1888 = vpop.f32.mrb[0].mxu0
    %v1889 = vadd.f32 0.0, %v1888
    %v1890 = vpop.f32.mrb[0].mxu0
    %1891 = vdwg.mxu0
    %v1892 = vpack.c.bf16 %v1889, %v1886
    %v1893 = vpack.c.bf16 %v1069, %v1069
    %v1895 = vsel %vm305, %v1892, 0
    %v1898 = vsel %vm431, %v1893, 0
    %1900 = vmatprep.subr.bf16.mxu0 0
    %1901 = vmatpush1.bf16.msra.mxu0 %v1898
    %1902 = vmatprep.subr.bf16.mxu0 0
    %1903 = vmatpush1.bf16.msra.mxu0 0
    %1904 = vmatprep.subr.bf16.mxu0 0
    %1905 = vmatpush1.bf16.msra.mxu0 0
    %1906 = vmatprep.subr.bf16.mxu0 0
    %1907 = vmatpush1.bf16.msra.mxu0 0
    %1908 = vmatprep.subr.bf16.mxu0 0
    %1909 = vmatpush1.bf16.msra.mxu0 0
    %1910 = vmatprep.subr.bf16.mxu0 0
    %1911 = vmatpush1.bf16.msra.mxu0 0
    %1912 = vmatprep.subr.bf16.mxu0 0
    %1913 = vmatpush1.bf16.msra.mxu0 0
    %1914 = vmatprep.subr.bf16.mxu0 0
    %1915 = vmatpush1.bf16.msra.mxu0 0
    %1916 = vmatprep.subr.bf16.mxu0 0
    %1917 = vmatpush1.bf16.msra.mxu0 0
    %1918 = vmatprep.subr.bf16.mxu0 0
    %1919 = vmatpush1.bf16.msra.mxu0 0
    %1920 = vmatprep.subr.bf16.mxu0 0
    %1921 = vmatpush1.bf16.msra.mxu0 0
    %1922 = vmatprep.subr.bf16.mxu0 0
    %1923 = vmatpush1.bf16.msra.mxu0 0
    %1924 = vmatprep.subr.bf16.mxu0 0
    %1925 = vmatpush1.bf16.msra.mxu0 0
    %1926 = vmatprep.subr.bf16.mxu0 0
    %1927 = vmatpush1.bf16.msra.mxu0 0
    %1928 = vmatprep.subr.bf16.mxu0 0
    %1929 = vmatpush1.bf16.msra.mxu0 0
    %1930 = vmatprep.subr.bf16.mxu0 0
    %1931 = vmatpush1.bf16.msra.mxu0 0
    %1932 = vmatprep.mubr.bf16.mxu0 0
    %1933 = vmatmul.mubr.bf16.gmra.mrb[0].mxu0 %v1895
    %v1934 = vpop.f32.mrb[0].mxu0
    %v1935 = vadd.f32 0.0, %v1934
    %v1936 = vpop.f32.mrb[0].mxu0
    %v1937 = vpop.f32.mrb[0].mxu0
    %v1938 = vadd.f32 0.0, %v1937
    %v1939 = vpop.f32.mrb[0].mxu0
    %1940 = vdwg.mxu0
    %v1941 = vadd.f32 %v1765, %v1935
    %v1942 = vadd.f32 %v1766, %v1938
    %v1943 = vadd.f32 %v1015, %v1941
    %v1944 = vadd.f32 %v1016, %v1942
    %v1945 = vld [vmem:[%s15] sm:$0x1]
    %v1946 = vld [vmem:[%s16] sm:$0x1]
    %v1947 = vsel %vm90, %v1943, 0.0
    %1948 = vadd.xlane.f32.xlu0 %v1947
    %v1949 = vpop.xlane.xlu0 %1948
    %v1950 = vsel %vm90, %v1944, 0.0
    %1951 = vadd.xlane.f32.xlu0 %v1950
    %v1952 = vpop.xlane.xlu0 %1951
    %v1953 = vmul.f32 %v1949, %v97
    %v1954 = vmul.f32 %v1952, %v97
    %v1955 = vsub.f32 %v1943, %v1953
    %v1956 = vsub.f32 %v1944, %v1954
    %v1957 = vmul.f32 %v1955, %v1955
    %v1958 = vmul.f32 %v1956, %v1956
    %v1959 = vsel %vm90, %v1957, 0.0
    %1960 = vadd.xlane.f32.xlu0 %v1959
    %v1961 = vpop.xlane.xlu0 %1960
    %v1962 = vsel %vm90, %v1958, 0.0
    %1963 = vadd.xlane.f32.xlu0 %v1962
    %v1964 = vpop.xlane.xlu0 %1963
    %v1965 = vmul.f32 %v1961, %v97
    %v1966 = vmul.f32 %v1964, %v97
    %v1967 = vadd.f32 %v1965, 1e-05
    %v1968 = vadd.f32 %v1966, 1e-05
    %v1969 = vrsqrt.pop %v1967
    %v1970 = vrsqrt.pop %v1968
    %v1971 = vmul.f32 %v1955, %v1969
    %v1972 = vmul.f32 %v1956, %v1970
    %v1974 = vlaneseq
    %v1975 = vshrl.u32 %v1974, 7
    %v1976 = vsub.s32 0, %v1975
    %v1977 = vrot.slane %v1945, %v1976
    %v1979 = vmul.f32 %v1971, %v1977
    %v1980 = vmul.f32 %v1972, %v1977
    %v1982 = vlaneseq
    %v1983 = vshrl.u32 %v1982, 7
    %v1984 = vsub.s32 0, %v1983
    %v1985 = vrot.slane %v1946, %v1984
    %v1987 = vadd.f32 %v1979, %v1985
    %v1988 = vadd.f32 %v1980, %v1985
    %v1989 = vld [vmem:[%s17] sm:$0xff]
    %v1990 = vld [vmem:[%s17 + $0x8] sm:$0xff]
    %v1991 = vld [vmem:[%s17 + $0x10] sm:$0xff]
    %v1992 = vld [vmem:[%s17 + $0x18] sm:$0xff]
    %v1993 = vld [vmem:[%s18] sm:$0x1]
    %v1994 = vld [vmem:[%s19] sm:$0xff]
    %v1995 = vld [vmem:[%s19 + $0x8] sm:$0xff]
    %v1996 = vld [vmem:[%s19 + $0x10] sm:$0xff]
    %v1997 = vld [vmem:[%s19 + $0x18] sm:$0xff]
    %v1998 = vld [vmem:[%s19 + $0x20] sm:$0xff]
    %v1999 = vld [vmem:[%s19 + $0x28] sm:$0xff]
    %v2000 = vld [vmem:[%s19 + $0x30] sm:$0xff]
    %v2001 = vld [vmem:[%s19 + $0x38] sm:$0xff]
    %v2002 = vld [vmem:[%s19 + $0x40] sm:$0xff]
    %v2003 = vld [vmem:[%s19 + $0x48] sm:$0xff]
    %v2004 = vld [vmem:[%s19 + $0x50] sm:$0xff]
    %v2005 = vld [vmem:[%s19 + $0x58] sm:$0xff]
    %v2006 = vld [vmem:[%s19 + $0x60] sm:$0xff]
    %v2007 = vld [vmem:[%s19 + $0x68] sm:$0xff]
    %v2008 = vld [vmem:[%s19 + $0x70] sm:$0xff]
    %v2009 = vld [vmem:[%s19 + $0x78] sm:$0xff]
    %v2010 = vld [vmem:[%s20] sm:$0x1]
    %v2011 = vpack.c.bf16 %v1988, %v1987
    %v2012 = vpack.c.bf16 %v1990, %v1989
    %v2013 = vpack.c.bf16 %v1992, %v1991
    %v2015 = vlaneseq
    %v2016 = vshrl.u32 %v2015, 7
    %v2017 = vsub.s32 0, %v2016
    %v2018 = vrot.slane %v1993, %v2017
    %v2021 = vsel %vm90, %v2011, 0
    %2023 = vmatprep.subr.bf16.mxu0 0
    %2024 = vmatpush1.bf16.msra.mxu0 %v2012
    %2025 = vmatprep.subr.bf16.mxu0 0
    %2026 = vmatpush1.bf16.msra.mxu0 %v2013
    %2027 = vmatprep.subr.bf16.mxu0 0
    %2028 = vmatpush1.bf16.msra.mxu0 0
    %2029 = vmatprep.subr.bf16.mxu0 0
    %2030 = vmatpush1.bf16.msra.mxu0 0
    %2031 = vmatprep.subr.bf16.mxu0 0
    %2032 = vmatpush1.bf16.msra.mxu0 0
    %2033 = vmatprep.subr.bf16.mxu0 0
    %2034 = vmatpush1.bf16.msra.mxu0 0
    %2035 = vmatprep.subr.bf16.mxu0 0
    %2036 = vmatpush1.bf16.msra.mxu0 0
    %2037 = vmatprep.subr.bf16.mxu0 0
    %2038 = vmatpush1.bf16.msra.mxu0 0
    %2039 = vmatprep.subr.bf16.mxu0 0
    %2040 = vmatpush1.bf16.msra.mxu0 0
    %2041 = vmatprep.subr.bf16.mxu0 0
    %2042 = vmatpush1.bf16.msra.mxu0 0
    %2043 = vmatprep.subr.bf16.mxu0 0
    %2044 = vmatpush1.bf16.msra.mxu0 0
    %2045 = vmatprep.subr.bf16.mxu0 0
    %2046 = vmatpush1.bf16.msra.mxu0 0
    %2047 = vmatprep.subr.bf16.mxu0 0
    %2048 = vmatpush1.bf16.msra.mxu0 0
    %2049 = vmatprep.subr.bf16.mxu0 0
    %2050 = vmatpush1.bf16.msra.mxu0 0
    %2051 = vmatprep.subr.bf16.mxu0 0
    %2052 = vmatpush1.bf16.msra.mxu0 0
    %2053 = vmatprep.subr.bf16.mxu0 0
    %2054 = vmatpush1.bf16.msra.mxu0 0
    %2055 = vmatprep.mubr.bf16.mxu0 0
    %2056 = vmatmul.mubr.bf16.gmra.mrb[0].mxu0 %v2021
    %v2057 = vpop.f32.mrb[0].mxu0
    %v2058 = vadd.f32 %v2018, %v2057
    %v2059 = vpop.f32.mrb[0].mxu0
    %v2060 = vpop.f32.mrb[0].mxu0
    %v2061 = vadd.f32 %v2018, %v2060
    %v2062 = vpop.f32.mrb[0].mxu0
    %2063 = vdwg.mxu0
    %v2064 = vmax.f32 %v2058, 0.0
    %v2065 = vmax.f32 %v2061, 0.0
    %v2066 = vpack.c.bf16 %v2065, %v2064
    %v2067 = vpack.c.bf16 %v1995, %v1994
    %v2068 = vpack.c.bf16 %v1997, %v1996
    %v2069 = vpack.c.bf16 %v1999, %v1998
    %v2070 = vpack.c.bf16 %v2001, %v2000
    %v2071 = vpack.c.bf16 %v2003, %v2002
    %v2072 = vpack.c.bf16 %v2005, %v2004
    %v2073 = vpack.c.bf16 %v2007, %v2006
    %v2074 = vpack.c.bf16 %v2009, %v2008
    %v2076 = vlaneseq
    %v2077 = vshrl.u32 %v2076, 7
    %v2078 = vsub.s32 0, %v2077
    %v2079 = vrot.slane %v2010, %v2078
    %2081 = vmatprep.subr.bf16.mxu0 0
    %2082 = vmatpush1.bf16.msra.mxu0 %v2067
    %2083 = vmatprep.subr.bf16.mxu0 0
    %2084 = vmatpush1.bf16.msra.mxu0 %v2068
    %2085 = vmatprep.subr.bf16.mxu0 0
    %2086 = vmatpush1.bf16.msra.mxu0 %v2069
    %2087 = vmatprep.subr.bf16.mxu0 0
    %2088 = vmatpush1.bf16.msra.mxu0 %v2070
    %2089 = vmatprep.subr.bf16.mxu0 0
    %2090 = vmatpush1.bf16.msra.mxu0 %v2071
    %2091 = vmatprep.subr.bf16.mxu0 0
    %2092 = vmatpush1.bf16.msra.mxu0 %v2072
    %2093 = vmatprep.subr.bf16.mxu0 0
    %2094 = vmatpush1.bf16.msra.mxu0 %v2073
    %2095 = vmatprep.subr.bf16.mxu0 0
    %2096 = vmatpush1.bf16.msra.mxu0 %v2074
    %2097 = vmatprep.subr.bf16.mxu0 0
    %2098 = vmatpush1.bf16.msra.mxu0 0
    %2099 = vmatprep.subr.bf16.mxu0 0
    %2100 = vmatpush1.bf16.msra.mxu0 0
    %2101 = vmatprep.subr.bf16.mxu0 0
    %2102 = vmatpush1.bf16.msra.mxu0 0
    %2103 = vmatprep.subr.bf16.mxu0 0
    %2104 = vmatpush1.bf16.msra.mxu0 0
    %2105 = vmatprep.subr.bf16.mxu0 0
    %2106 = vmatpush1.bf16.msra.mxu0 0
    %2107 = vmatprep.subr.bf16.mxu0 0
    %2108 = vmatpush1.bf16.msra.mxu0 0
    %2109 = vmatprep.subr.bf16.mxu0 0
    %2110 = vmatpush1.bf16.msra.mxu0 0
    %2111 = vmatprep.subr.bf16.mxu0 0
    %2112 = vmatpush1.bf16.msra.mxu0 0
    %2113 = vmatprep.mubr.bf16.mxu0 0
    %2114 = vmatmul.mubr.bf16.gmra.mrb[0].mxu0 %v2066
    %v2115 = vpop.f32.mrb[0].mxu0
    %v2116 = vadd.f32 %v2079, %v2115
    %v2117 = vpop.f32.mrb[0].mxu0
    %v2118 = vpop.f32.mrb[0].mxu0
    %v2119 = vadd.f32 %v2079, %v2118
    %v2120 = vpop.f32.mrb[0].mxu0
    %2121 = vdwg.mxu0
    %v2122 = vadd.f32 %v1943, %v2116
    %v2123 = vadd.f32 %v1944, %v2119
    %2124 = vst.msk [vmem:[#allocation2] sm:$0xff] %vm90, %v2122
    %2125 = vst.msk [vmem:[#allocation2 + $0x8] sm:$0xff] %vm90, %v2123
    %v2126 = vld [vmem:[%s21] sm:$0x3]
    %v2128 = vsel %vm357, %v2126, 0
    %2130 = vmatprep.subr.mxu0 0.0
    %2131 = vmatpush1.msra.mxu0 %v2122
    %2132 = vmatprep.subr.mxu0 0.0
    %2133 = vmatpush1.msra.mxu0 %v2123
    %2134 = vmatprep.subr.mxu0 0.0
    %2135 = vmatpush1.msra.mxu0 0.0
    %2136 = vmatprep.subr.mxu0 0.0
    %2137 = vmatpush1.msra.mxu0 0.0
    %2138 = vmatprep.subr.mxu0 0.0
    %2139 = vmatpush1.msra.mxu0 0.0
    %2140 = vmatprep.subr.mxu0 0.0
    %2141 = vmatpush1.msra.mxu0 0.0
    %2142 = vmatprep.subr.mxu0 0.0
    %2143 = vmatpush1.msra.mxu0 0.0
    %2144 = vmatprep.subr.mxu0 0.0
    %2145 = vmatpush1.msra.mxu0 0.0
    %2146 = vmatprep.subr.mxu0 0.0
    %2147 = vmatpush1.msra.mxu0 0.0
    %2148 = vmatprep.subr.mxu0 0.0
    %2149 = vmatpush1.msra.mxu0 0.0
    %2150 = vmatprep.subr.mxu0 0.0
    %2151 = vmatpush1.msra.mxu0 0.0
    %2152 = vmatprep.subr.mxu0 0.0
    %2153 = vmatpush1.msra.mxu0 0.0
    %2154 = vmatprep.subr.mxu0 0.0
    %2155 = vmatpush1.msra.mxu0 0.0
    %2156 = vmatprep.subr.mxu0 0.0
    %2157 = vmatpush1.msra.mxu0 0.0
    %2158 = vmatprep.subr.mxu0 0.0
    %2159 = vmatpush1.msra.mxu0 0.0
    %2160 = vmatprep.subr.mxu0 0.0
    %2161 = vmatpush1.msra.mxu0 0.0
    %2162 = vmatprep.subr.mxu0 0.0
    %2163 = vmatpush1.msra.mxu0 0.0
    %2164 = vmatprep.subr.mxu0 0.0
    %2165 = vmatpush1.msra.mxu0 0.0
    %2166 = vmatprep.subr.mxu0 0.0
    %2167 = vmatpush1.msra.mxu0 0.0
    %2168 = vmatprep.subr.mxu0 0.0
    %2169 = vmatpush1.msra.mxu0 0.0
    %2170 = vmatprep.subr.mxu0 0.0
    %2171 = vmatpush1.msra.mxu0 0.0
    %2172 = vmatprep.subr.mxu0 0.0
    %2173 = vmatpush1.msra.mxu0 0.0
    %2174 = vmatprep.subr.mxu0 0.0
    %2175 = vmatpush1.msra.mxu0 0.0
    %2176 = vmatprep.subr.mxu0 0.0
    %2177 = vmatpush1.msra.mxu0 0.0
    %2178 = vmatprep.subr.mxu0 0.0
    %2179 = vmatpush1.msra.mxu0 0.0
    %2180 = vmatprep.subr.mxu0 0.0
    %2181 = vmatpush1.msra.mxu0 0.0
    %2182 = vmatprep.subr.mxu0 0.0
    %2183 = vmatpush1.msra.mxu0 0.0
    %2184 = vmatprep.subr.mxu0 0.0
    %2185 = vmatpush1.msra.mxu0 0.0
    %2186 = vmatprep.subr.mxu0 0.0
    %2187 = vmatpush1.msra.mxu0 0.0
    %2188 = vmatprep.subr.mxu0 0.0
    %2189 = vmatpush1.msra.mxu0 0.0
    %2190 = vmatprep.subr.mxu0 0.0
    %2191 = vmatpush1.msra.mxu0 0.0
    %2192 = vmatprep.subr.mxu0 0.0
    %2193 = vmatpush1.msra.mxu0 0.0
    %2194 = vmatprep.mubr.f32.mxu0 0.0
    %2195 = vmatmul.mubr.f32.gmra.mrb[0].mxu0 %v2128
    %v2196 = vpop.f32.mrb[0].mxu0
    %v2197 = vadd.f32 0.0, %v2196
    %v2198 = vpop.f32.mrb[0].mxu0
    %2199 = vdwg.mxu0
    %v2200 = vld [vmem:[%s22] sm:$0xff]
    %v2201 = vld [vmem:[%s22 + $0x8] sm:$0xff]
    %v2202 = vld [vmem:[%s22 + $0x10] sm:$0xff]
    %v2203 = vld [vmem:[%s22 + $0x18] sm:$0xff]
    %v2204 = vld [vmem:[%s23] sm:$0x1]
    %v2206 = vlaneseq
    %v2207 = vshrl.u32 %v2206, 7
    %v2208 = vsub.s32 0, %v2207
    %v2209 = vrot.slane %v2204, %v2208
    %v2212 = vsel %vm90, %v2197, 0
    %2214 = vmatprep.subr.mxu0 0.0
    %2215 = vmatpush1.msra.mxu0 %v2200
    %2216 = vmatprep.subr.mxu0 0.0
    %2217 = vmatpush1.msra.mxu0 %v2201
    %2218 = vmatprep.subr.mxu0 0.0
    %2219 = vmatpush1.msra.mxu0 %v2202
    %2220 = vmatprep.subr.mxu0 0.0
    %2221 = vmatpush1.msra.mxu0 %v2203
    %2222 = vmatprep.subr.mxu0 0.0
    %2223 = vmatpush1.msra.mxu0 0.0
    %2224 = vmatprep.subr.mxu0 0.0
    %2225 = vmatpush1.msra.mxu0 0.0
    %2226 = vmatprep.subr.mxu0 0.0
    %2227 = vmatpush1.msra.mxu0 0.0
    %2228 = vmatprep.subr.mxu0 0.0
    %2229 = vmatpush1.msra.mxu0 0.0
    %2230 = vmatprep.subr.mxu0 0.0
    %2231 = vmatpush1.msra.mxu0 0.0
    %2232 = vmatprep.subr.mxu0 0.0
    %2233 = vmatpush1.msra.mxu0 0.0
    %2234 = vmatprep.subr.mxu0 0.0
    %2235 = vmatpush1.msra.mxu0 0.0
    %2236 = vmatprep.subr.mxu0 0.0
    %2237 = vmatpush1.msra.mxu0 0.0
    %2238 = vmatprep.subr.mxu0 0.0
    %2239 = vmatpush1.msra.mxu0 0.0
    %2240 = vmatprep.subr.mxu0 0.0
    %2241 = vmatpush1.msra.mxu0 0.0
    %2242 = vmatprep.subr.mxu0 0.0
    %2243 = vmatpush1.msra.mxu0 0.0
    %2244 = vmatprep.subr.mxu0 0.0
    %2245 = vmatpush1.msra.mxu0 0.0
    %2246 = vmatprep.subr.mxu0 0.0
    %2247 = vmatpush1.msra.mxu0 0.0
    %2248 = vmatprep.subr.mxu0 0.0
    %2249 = vmatpush1.msra.mxu0 0.0
    %2250 = vmatprep.subr.mxu0 0.0
    %2251 = vmatpush1.msra.mxu0 0.0
    %2252 = vmatprep.subr.mxu0 0.0
    %2253 = vmatpush1.msra.mxu0 0.0
    %2254 = vmatprep.subr.mxu0 0.0
    %2255 = vmatpush1.msra.mxu0 0.0
    %2256 = vmatprep.subr.mxu0 0.0
    %2257 = vmatpush1.msra.mxu0 0.0
    %2258 = vmatprep.subr.mxu0 0.0
    %2259 = vmatpush1.msra.mxu0 0.0
    %2260 = vmatprep.subr.mxu0 0.0
    %2261 = vmatpush1.msra.mxu0 0.0
    %2262 = vmatprep.subr.mxu0 0.0
    %2263 = vmatpush1.msra.mxu0 0.0
    %2264 = vmatprep.subr.mxu0 0.0
    %2265 = vmatpush1.msra.mxu0 0.0
    %2266 = vmatprep.subr.mxu0 0.0
    %2267 = vmatpush1.msra.mxu0 0.0
    %2268 = vmatprep.subr.mxu0 0.0
    %2269 = vmatpush1.msra.mxu0 0.0
    %2270 = vmatprep.subr.mxu0 0.0
    %2271 = vmatpush1.msra.mxu0 0.0
    %2272 = vmatprep.subr.mxu0 0.0
    %2273 = vmatpush1.msra.mxu0 0.0
    %2274 = vmatprep.subr.mxu0 0.0
    %2275 = vmatpush1.msra.mxu0 0.0
    %2276 = vmatprep.subr.mxu0 0.0
    %2277 = vmatpush1.msra.mxu0 0.0
    %2278 = vmatprep.mubr.f32.mxu0 0.0
    %2279 = vmatmul.mubr.f32.gmra.mrb[0].mxu0 %v2212
    %v2280 = vpop.f32.mrb[0].mxu0
    %v2281 = vadd.f32 %v2209, %v2280
    %v2282 = vpop.f32.mrb[0].mxu0
    %2283 = vdwg.mxu0
    %vm2284 = vcmask 9216
    %v2285 = vsel %vm2284, %v2281, -inf
    %2286 = vmax.xlane.f32.xlu0 %v2285
    %v2287 = vpop.xlane.xlu0 %2286
    %v2288 = vsub.f32 %v2281, %v2287
    %v2289 = vmul.f32 %v2288, 1.442695
    %v2290 = vpow.pop %v2289
    %v2291 = vsel %vm2284, %v2290, 0.0
    %2292 = vadd.xlane.f32.xlu0 %v2291
    %v2293 = vpop.xlane.xlu0 %2292
    %v2294 = vrcp.pop %v2293
    %v2295 = vmul.f32 %v2290, %v2294
    %2296 = vst.msk [vmem:[#allocation4] sm:$0x3] %vm2284, %v2295
    // Predicated region
    $region98: #{transformer_forward.7} parent=1 // pred_check
      _
    $region99: #{transformer_forward.7} parent=1 // pred_check_branch
      %2298 = sbr.rel (0) target = $region101
    $region100: #{transformer_forward.7} parent=1 // pred_region
      %s2300 = ssub.s32 256, 256
      %2301 = vsyncadd [#allocation3], %s2300
      %s2302 = sshll.u32 [#allocation2], 4
      %s2303 = int_to_ptr.vmem [resolvable:$true] %s2302
      %2308 = dma.vmem_to_hbm [thread:$0]  %s2303, 256, %s24, [#allocation3], 128, 128, 8
    $region101: #{transformer_forward.7} parent=1 // pred_fallthru
      _
    // Predicated region
    $region102: #{transformer_forward.7} parent=1 // pred_check
      _
    $region103: #{transformer_forward.7} parent=1 // pred_check_branch
      %2310 = sbr.rel (0) target = $region105
    $region104: #{transformer_forward.7} parent=1 // pred_region
      %s2312 = ssub.s32 32, 32
      %2313 = vsyncadd [#allocation5], %s2312
      %s2315 = sshll.u32 [#allocation4], 4
      %s2316 = int_to_ptr.vmem [resolvable:$true] %s2315
      %2318 = dma.vmem_to_hbm [thread:$0]  %s2316, 32, %s25, [#allocation5]
    $region105: #{transformer_forward.7} parent=1 // pred_fallthru
      _
    // Predicated region
    $region106: #{transformer_forward.7} parent=1 // pred_check
      _
    $region107: #{transformer_forward.7} parent=1 // pred_check_branch
      %2320 = sbr.rel (0) target = $region109
    $region108: #{transformer_forward.7} parent=1 // pred_region
      %2321 = dma.done [#allocation3], 256
    $region109: #{transformer_forward.7} parent=1 // pred_fallthru
      _
    // Predicated region
    $region110: #{transformer_forward.7} parent=1 // pred_check
      _
    $region111: #{transformer_forward.7} parent=1 // pred_check_branch
      %2323 = sbr.rel (0) target = $region113
    $region112: #{transformer_forward.7} parent=1 // pred_region
      %2324 = dma.done [#allocation5], 32
    $region113: #{transformer_forward.7} parent=1 // pred_fallthru
      _
    %2325 = vsyncpa [#allocation3], 1
    %2326 = vsyncpa [#allocation5], 1

// kernel: transformer_forward.6
$region0: #{transformer_forward.6}
  #allocation0 [shape = 'u32[]', space=smem, size = 0x4, offset = 0x4, fixed_abs, tag = 'smem constant byte address 0x4 - core index']
  #allocation1 [shape = 'u32[144,128]{1,0:T(1,128)}', space=vmem, size = 0x12000, scoped, tag = 'internal scratch']
  %s0 = inlined_call_operand.vmem [shape: f32[16,32], index: 0, kind: input, shape index: {}]
  %s1 = inlined_call_operand.vmem [shape: f32[16,32], index: 1, kind: input, shape index: {}]
  %s2 = inlined_call_operand.vmem [shape: f32[16,16], index: 2, kind: input, shape index: {}]
  %s3 = inlined_call_operand.vmem [shape: f32[1,32], index: 3, kind: input, shape index: {}]
  %s4 = inlined_call_operand.vmem [shape: f32[1,32], index: 4, kind: input, shape index: {}]
  %s5 = inlined_call_operand.vmem [shape: f32[32,96], index: 5, kind: input, shape index: {}]
  %s6 = inlined_call_operand.vmem [shape: f32[1,96], index: 6, kind: input, shape index: {}]
  %s7 = inlined_call_operand.vmem [shape: f32[32,32], index: 7, kind: input, shape index: {}]
  %s8 = inlined_call_operand.vmem [shape: f32[1,32], index: 8, kind: input, shape index: {}]
  %s9 = inlined_call_operand.vmem [shape: f32[1,32], index: 9, kind: input, shape index: {}]
  %s10 = inlined_call_operand.vmem [shape: f32[1,32], index: 10, kind: input, shape index: {}]
  %s11 = inlined_call_operand.vmem [shape: f32[32,96], index: 11, kind: input, shape index: {}]
  %s12 = inlined_call_operand.vmem [shape: f32[1,96], index: 12, kind: input, shape index: {}]
  %s13 = inlined_call_operand.vmem [shape: f32[32,32], index: 13, kind: input, shape index: {}]
  %s14 = inlined_call_operand.vmem [shape: f32[1,32], index: 14, kind: input, shape index: {}]
  %s15 = inlined_call_operand.vmem [shape: f32[1,32], index: 15, kind: input, shape index: {}]
  %s16 = inlined_call_operand.vmem [shape: f32[1,32], index: 16, kind: input, shape index: {}]
  %s17 = inlined_call_operand.vmem [shape: f32[32,128], index: 17, kind: input, shape index: {}]
  %s18 = inlined_call_operand.vmem [shape: f32[1,128], index: 18, kind: input, shape index: {}]
  %s19 = inlined_call_operand.vmem [shape: f32[128,32], index: 19, kind: input, shape index: {}]
  %s20 = inlined_call_operand.vmem [shape: f32[1,32], index: 20, kind: input, shape index: {}]
  %s21 = inlined_call_operand.vmem [shape: f32[2,16], index: 21, kind: input, shape index: {}]
  %s22 = inlined_call_operand.vmem [shape: f32[32,2], index: 22, kind: input, shape index: {}]
  %s23 = inlined_call_operand.vmem [shape: f32[1,2], index: 23, kind: input, shape index: {}]
  %s24 = inlined_call_operand.vmem [shape: f32[16,32], index: 24, kind: output, shape index: {0}]
  %s25 = inlined_call_operand.hbm [shape: f32[2,2], index: 25, kind: output, shape index: {1}]
  %26 = xla_tuple %s24, %s25
  %s27 = sld [smem:[#allocation0]]
  $region114: #{transformer_forward.6} parent=0
    _
  %s29 = ssub.s32 1, %s27
  %s30 = scalar_select 0, %s29, %s27
  $region1: #{transformer_forward.6} parent=0
    #allocation2 [shape = 'u8[1024]{0}', space=vmem, size = 0x400, scoped, tag = 'output window, operand 1, single buffered']
    #allocation3 [shape = 's32[1]{0}', space=sflag, size = 0x4, scoped, tag = 'scoped memory for transformer_forward.6']
    %31 = vsyncpa [#allocation3], 0
    // Predicated region
    $region2: #{transformer_forward.6} parent=1 // pred_check
      _
    $region3: #{transformer_forward.6} parent=1 // pred_check_branch
      %33 = sbr.rel (0) target = $region5
    $region4: #{transformer_forward.6} parent=1 // pred_region
      _
    $region5: #{transformer_forward.6} parent=1 // pred_fallthru
      _
    // Predicated region
    $region6: #{transformer_forward.6} parent=1 // pred_check
      _
    $region7: #{transformer_forward.6} parent=1 // pred_check_branch
      %35 = sbr.rel (0) target = $region9
    $region8: #{transformer_forward.6} parent=1 // pred_region
      _
    $region9: #{transformer_forward.6} parent=1 // pred_fallthru
      _
    // Predicated region
    $region10: #{transformer_forward.6} parent=1 // pred_check
      _
    $region11: #{transformer_forward.6} parent=1 // pred_check_branch
      %37 = sbr.rel (0) target = $region13
    $region12: #{transformer_forward.6} parent=1 // pred_region
      _
    $region13: #{transformer_forward.6} parent=1 // pred_fallthru
      _
    // Predicated region
    $region14: #{transformer_forward.6} parent=1 // pred_check
      _
    $region15: #{transformer_forward.6} parent=1 // pred_check_branch
      %39 = sbr.rel (0) target = $region17
    $region16: #{transformer_forward.6} parent=1 // pred_region
      _
    $region17: #{transformer_forward.6} parent=1 // pred_fallthru
      _
    // Predicated region
    $region18: #{transformer_forward.6} parent=1 // pred_check
      _
    $region19: #{transformer_forward.6} parent=1 // pred_check_branch
      %41 = sbr.rel (0) target = $region21
    $region20: #{transformer_forward.6} parent=1 // pred_region
      _
    $region21: #{transformer_forward.6} parent=1 // pred_fallthru
      _
    // Predicated region
    $region22: #{transformer_forward.6} parent=1 // pred_check
      _
    $region23: #{transformer_forward.6} parent=1 // pred_check_branch
      %43 = sbr.rel (0) target = $region25
    $region24: #{transformer_forward.6} parent=1 // pred_region
      _
    $region25: #{transformer_forward.6} parent=1 // pred_fallthru
      _
    // Predicated region
    $region26: #{transformer_forward.6} parent=1 // pred_check
      _
    $region27: #{transformer_forward.6} parent=1 // pred_check_branch
      %45 = sbr.rel (0) target = $region29
    $region28: #{transformer_forward.6} parent=1 // pred_region
      _
    $region29: #{transformer_forward.6} parent=1 // pred_fallthru
      _
    // Predicated region
    $region30: #{transformer_forward.6} parent=1 // pred_check
      _
    $region31: #{transformer_forward.6} parent=1 // pred_check_branch
      %47 = sbr.rel (0) target = $region33
    $region32: #{transformer_forward.6} parent=1 // pred_region
      _
    $region33: #{transformer_forward.6} parent=1 // pred_fallthru
      _
    // Predicated region
    $region34: #{transformer_forward.6} parent=1 // pred_check
      _
    $region35: #{transformer_forward.6} parent=1 // pred_check_branch
      %49 = sbr.rel (0) target = $region37
    $region36: #{transformer_forward.6} parent=1 // pred_region
      _
    $region37: #{transformer_forward.6} parent=1 // pred_fallthru
      _
    // Predicated region
    $region38: #{transformer_forward.6} parent=1 // pred_check
      _
    $region39: #{transformer_forward.6} parent=1 // pred_check_branch
      %51 = sbr.rel (0) target = $region41
    $region40: #{transformer_forward.6} parent=1 // pred_region
      _
    $region41: #{transformer_forward.6} parent=1 // pred_fallthru
      _
    // Predicated region
    $region42: #{transformer_forward.6} parent=1 // pred_check
      _
    $region43: #{transformer_forward.6} parent=1 // pred_check_branch
      %53 = sbr.rel (0) target = $region45
    $region44: #{transformer_forward.6} parent=1 // pred_region
      _
    $region45: #{transformer_forward.6} parent=1 // pred_fallthru
      _
    // Predicated region
    $region46: #{transformer_forward.6} parent=1 // pred_check
      _
    $region47: #{transformer_forward.6} parent=1 // pred_check_branch
      %55 = sbr.rel (0) target = $region49
    $region48: #{transformer_forward.6} parent=1 // pred_region
      _
    $region49: #{transformer_forward.6} parent=1 // pred_fallthru
      _
    // Predicated region
    $region50: #{transformer_forward.6} parent=1 // pred_check
      _
    $region51: #{transformer_forward.6} parent=1 // pred_check_branch
      %57 = sbr.rel (0) target = $region53
    $region52: #{transformer_forward.6} parent=1 // pred_region
      _
    $region53: #{transformer_forward.6} parent=1 // pred_fallthru
      _
    // Predicated region
    $region54: #{transformer_forward.6} parent=1 // pred_check
      _
    $region55: #{transformer_forward.6} parent=1 // pred_check_branch
      %59 = sbr.rel (0) target = $region57
    $region56: #{transformer_forward.6} parent=1 // pred_region
      _
    $region57: #{transformer_forward.6} parent=1 // pred_fallthru
      _
    // Predicated region
    $region58: #{transformer_forward.6} parent=1 // pred_check
      _
    $region59: #{transformer_forward.6} parent=1 // pred_check_branch
      %61 = sbr.rel (0) target = $region61
    $region60: #{transformer_forward.6} parent=1 // pred_region
      _
    $region61: #{transformer_forward.6} parent=1 // pred_fallthru
      _
    // Predicated region
    $region62: #{transformer_forward.6} parent=1 // pred_check
      _
    $region63: #{transformer_forward.6} parent=1 // pred_check_branch
      %63 = sbr.rel (0) target = $region65
    $region64: #{transformer_forward.6} parent=1 // pred_region
      _
    $region65: #{transformer_forward.6} parent=1 // pred_fallthru
      _
    // Predicated region
    $region66: #{transformer_forward.6} parent=1 // pred_check
      _
    $region67: #{transformer_forward.6} parent=1 // pred_check_branch
      %65 = sbr.rel (0) target = $region69
    $region68: #{transformer_forward.6} parent=1 // pred_region
      _
    $region69: #{transformer_forward.6} parent=1 // pred_fallthru
      _
    // Predicated region
    $region70: #{transformer_forward.6} parent=1 // pred_check
      _
    $region71: #{transformer_forward.6} parent=1 // pred_check_branch
      %67 = sbr.rel (0) target = $region73
    $region72: #{transformer_forward.6} parent=1 // pred_region
      _
    $region73: #{transformer_forward.6} parent=1 // pred_fallthru
      _
    // Predicated region
    $region74: #{transformer_forward.6} parent=1 // pred_check
      _
    $region75: #{transformer_forward.6} parent=1 // pred_check_branch
      %69 = sbr.rel (0) target = $region77
    $region76: #{transformer_forward.6} parent=1 // pred_region
      _
    $region77: #{transformer_forward.6} parent=1 // pred_fallthru
      _
    // Predicated region
    $region78: #{transformer_forward.6} parent=1 // pred_check
      _
    $region79: #{transformer_forward.6} parent=1 // pred_check_branch
      %71 = sbr.rel (0) target = $region81
    $region80: #{transformer_forward.6} parent=1 // pred_region
      _
    $region81: #{transformer_forward.6} parent=1 // pred_fallthru
      _
    // Predicated region
    $region82: #{transformer_forward.6} parent=1 // pred_check
      _
    $region83: #{transformer_forward.6} parent=1 // pred_check_branch
      %73 = sbr.rel (0) target = $region85
    $region84: #{transformer_forward.6} parent=1 // pred_region
      _
    $region85: #{transformer_forward.6} parent=1 // pred_fallthru
      _
    // Predicated region
    $region86: #{transformer_forward.6} parent=1 // pred_check
      _
    $region87: #{transformer_forward.6} parent=1 // pred_check_branch
      %75 = sbr.rel (0) target = $region89
    $region88: #{transformer_forward.6} parent=1 // pred_region
      _
    $region89: #{transformer_forward.6} parent=1 // pred_fallthru
      _
    // Predicated region
    $region90: #{transformer_forward.6} parent=1 // pred_check
      _
    $region91: #{transformer_forward.6} parent=1 // pred_check_branch
      %77 = sbr.rel (0) target = $region93
    $region92: #{transformer_forward.6} parent=1 // pred_region
      _
    $region93: #{transformer_forward.6} parent=1 // pred_fallthru
      _
    // Predicated region
    $region94: #{transformer_forward.6} parent=1 // pred_check
      _
    $region95: #{transformer_forward.6} parent=1 // pred_check_branch
      %79 = sbr.rel (0) target = $region97
    $region96: #{transformer_forward.6} parent=1 // pred_region
      _
    $region97: #{transformer_forward.6} parent=1 // pred_fallthru
      _
    %v81 = vld [vmem:[%s0] sm:$0xff]
    %v82 = vld [vmem:[%s0 + $0x8] sm:$0xff]
    %v83 = vld [vmem:[%s1] sm:$0xff]
    %v84 = vld [vmem:[%s1 + $0x8] sm:$0xff]
    %v85 = vld [vmem:[%s2] sm:$0xff]
    %v86 = vld [vmem:[%s2 + $0x8] sm:$0xff]
    %v87 = vld [vmem:[%s3] sm:$0x1]
    %v88 = vld [vmem:[%s4] sm:$0x1]
    %vm89 = vcmask 261120
    %v90 = vsel %vm89, %v81, 0.0
    %91 = vadd.xlane.f32.xlu0 %v90
    %v92 = vpop.xlane.xlu0 %91
    %v93 = vsel %vm89, %v82, 0.0
    %94 = vadd.xlane.f32.xlu0 %v93
    %v95 = vpop.xlane.xlu0 %94
    %v96 = vrcp.pop 32.0
    %v97 = vmul.f32 %v92, %v96
    %v98 = vmul.f32 %v95, %v96
    %v99 = vsub.f32 %v81, %v97
    %v100 = vsub.f32 %v82, %v98
    %v101 = vmul.f32 %v99, %v99
    %v102 = vmul.f32 %v100, %v100
    %v103 = vsel %vm89, %v101, 0.0
    %104 = vadd.xlane.f32.xlu0 %v103
    %v105 = vpop.xlane.xlu0 %104
    %v106 = vsel %vm89, %v102, 0.0
    %107 = vadd.xlane.f32.xlu0 %v106
    %v108 = vpop.xlane.xlu0 %107
    %v109 = vmul.f32 %v105, %v96
    %v110 = vmul.f32 %v108, %v96
    %v111 = vadd.f32 %v109, 1e-05
    %v112 = vadd.f32 %v110, 1e-05
    %v113 = vrsqrt.pop %v111
    %v114 = vrsqrt.pop %v112
    %v115 = vmul.f32 %v99, %v113
    %v116 = vmul.f32 %v100, %v114
    %v118 = vlaneseq
    %v119 = vshrl.u32 %v118, 7
    %v120 = vsub.s32 0, %v119
    %v121 = vrot.slane %v87, %v120
    %v123 = vmul.f32 %v115, %v121
    %v124 = vmul.f32 %v116, %v121
    %v126 = vlaneseq
    %v127 = vshrl.u32 %v126, 7
    %v128 = vsub.s32 0, %v127
    %v129 = vrot.slane %v88, %v128
    %v131 = vadd.f32 %v123, %v129
    %v132 = vadd.f32 %v124, %v129
    %v133 = vld [vmem:[%s5] sm:$0xff]
    %v134 = vld [vmem:[%s5 + $0x8] sm:$0xff]
    %v135 = vld [vmem:[%s5 + $0x10] sm:$0xff]
    %v136 = vld [vmem:[%s5 + $0x18] sm:$0xff]
    %v137 = vld [vmem:[%s6] sm:$0x1]
    %v138 = vld [vmem:[%s7] sm:$0xff]
    %v139 = vld [vmem:[%s7 + $0x8] sm:$0xff]
    %v140 = vld [vmem:[%s7 + $0x10] sm:$0xff]
    %v141 = vld [vmem:[%s7 + $0x18] sm:$0xff]
    %v142 = vld [vmem:[%s8] sm:$0x1]
    %v143 = vpack.c.bf16 %v132, %v131
    %v144 = vpack.c.bf16 %v134, %v133
    %v145 = vpack.c.bf16 %v136, %v135
    %v147 = vsel %vm89, %v143, 0
    %149 = vmatprep.subr.bf16.mxu0 0
    %150 = vmatpush1.bf16.msra.mxu0 %v144
    %151 = vmatprep.subr.bf16.mxu0 0
    %152 = vmatpush1.bf16.msra.mxu0 %v145
    %153 = vmatprep.subr.bf16.mxu0 0
    %154 = vmatpush1.bf16.msra.mxu0 0
    %155 = vmatprep.subr.bf16.mxu0 0
    %156 = vmatpush1.bf16.msra.mxu0 0
    %157 = vmatprep.subr.bf16.mxu0 0
    %158 = vmatpush1.bf16.msra.mxu0 0
    %159 = vmatprep.subr.bf16.mxu0 0
    %160 = vmatpush1.bf16.msra.mxu0 0
    %161 = vmatprep.subr.bf16.mxu0 0
    %162 = vmatpush1.bf16.msra.mxu0 0
    %163 = vmatprep.subr.bf16.mxu0 0
    %164 = vmatpush1.bf16.msra.mxu0 0
    %165 = vmatprep.subr.bf16.mxu0 0
    %166 = vmatpush1.bf16.msra.mxu0 0
    %167 = vmatprep.subr.bf16.mxu0 0
    %168 = vmatpush1.bf16.msra.mxu0 0
    %169 = vmatprep.subr.bf16.mxu0 0
    %170 = vmatpush1.bf16.msra.mxu0 0
    %171 = vmatprep.subr.bf16.mxu0 0
    %172 = vmatpush1.bf16.msra.mxu0 0
    %173 = vmatprep.subr.bf16.mxu0 0
    %174 = vmatpush1.bf16.msra.mxu0 0
    %175 = vmatprep.subr.bf16.mxu0 0
    %176 = vmatpush1.bf16.msra.mxu0 0
    %177 = vmatprep.subr.bf16.mxu0 0
    %178 = vmatpush1.bf16.msra.mxu0 0
    %179 = vmatprep.subr.bf16.mxu0 0
    %180 = vmatpush1.bf16.msra.mxu0 0
    %181 = vmatprep.mubr.bf16.mxu0 0
    %182 = vmatmul.mubr.bf16.gmra.mrb[0].mxu0 %v147
    %v183 = vpop.f32.mrb[0].mxu0
    %v184 = vadd.f32 0.0, %v183
    %v185 = vpop.f32.mrb[0].mxu0
    %v186 = vpop.f32.mrb[0].mxu0
    %v187 = vadd.f32 0.0, %v186
    %v188 = vpop.f32.mrb[0].mxu0
    %189 = vdwg.mxu0
    %v190 = vmul.f32 %v184, 0.17677669
    %v191 = vmul.f32 %v187, 0.17677669
    %v193 = vlaneseq
    %v194 = vshrl.u32 %v193, 7
    %v195 = vsub.s32 0, %v194
    %v196 = vrot.slane %v137, %v195
    %v198 = vadd.f32 %v190, %v196
    %v199 = vadd.f32 %v191, %v196
    %202 = vrot.lane.b32.xlu0 %v144, 96
    %v203 = vpop.permute.xlu0 %202
    %204 = vrot.lane.b32.xlu0 %v145, 96
    %v205 = vpop.permute.xlu0 %204
    %208 = vrot.lane.b32.xlu0 %v196, 96
    %v209 = vpop.permute.xlu0 %208
    %211 = vmatprep.subr.bf16.mxu0 0
    %212 = vmatpush1.bf16.msra.mxu0 %v203
    %213 = vmatprep.subr.bf16.mxu0 0
    %214 = vmatpush1.bf16.msra.mxu0 %v205
    %215 = vmatprep.subr.bf16.mxu0 0
    %216 = vmatpush1.bf16.msra.mxu0 0
    %217 = vmatprep.subr.bf16.mxu0 0
    %218 = vmatpush1.bf16.msra.mxu0 0
    %219 = vmatprep.subr.bf16.mxu0 0
    %220 = vmatpush1.bf16.msra.mxu0 0
    %221 = vmatprep.subr.bf16.mxu0 0
    %222 = vmatpush1.bf16.msra.mxu0 0
    %223 = vmatprep.subr.bf16.mxu0 0
    %224 = vmatpush1.bf16.msra.mxu0 0
    %225 = vmatprep.subr.bf16.mxu0 0
    %226 = vmatpush1.bf16.msra.mxu0 0
    %227 = vmatprep.subr.bf16.mxu0 0
    %228 = vmatpush1.bf16.msra.mxu0 0
    %229 = vmatprep.subr.bf16.mxu0 0
    %230 = vmatpush1.bf16.msra.mxu0 0
    %231 = vmatprep.subr.bf16.mxu0 0
    %232 = vmatpush1.bf16.msra.mxu0 0
    %233 = vmatprep.subr.bf16.mxu0 0
    %234 = vmatpush1.bf16.msra.mxu0 0
    %235 = vmatprep.subr.bf16.mxu0 0
    %236 = vmatpush1.bf16.msra.mxu0 0
    %237 = vmatprep.subr.bf16.mxu0 0
    %238 = vmatpush1.bf16.msra.mxu0 0
    %239 = vmatprep.subr.bf16.mxu0 0
    %240 = vmatpush1.bf16.msra.mxu0 0
    %241 = vmatprep.subr.bf16.mxu0 0
    %242 = vmatpush1.bf16.msra.mxu0 0
    %243 = vmatprep.mubr.bf16.mxu0 0
    %244 = vmatmul.mubr.bf16.gmra.mrb[0].mxu0 %v147
    %v245 = vpop.f32.mrb[0].mxu0
    %v246 = vadd.f32 %v209, %v245
    %v247 = vpop.f32.mrb[0].mxu0
    %v248 = vpop.f32.mrb[0].mxu0
    %v249 = vadd.f32 %v209, %v248
    %v250 = vpop.f32.mrb[0].mxu0
    %251 = vdwg.mxu0
    %252 = vrot.lane.b32.xlu0 %v144, 64
    %v253 = vpop.permute.xlu0 %252
    %254 = vrot.lane.b32.xlu0 %v145, 64
    %v255 = vpop.permute.xlu0 %254
    %258 = vrot.lane.b32.xlu0 %v196, 64
    %v259 = vpop.permute.xlu0 %258
    %261 = vmatprep.subr.bf16.mxu0 0
    %262 = vmatpush1.bf16.msra.mxu0 %v253
    %263 = vmatprep.subr.bf16.mxu0 0
    %264 = vmatpush1.bf16.msra.mxu0 %v255
    %265 = vmatprep.subr.bf16.mxu0 0
    %266 = vmatpush1.bf16.msra.mxu0 0
    %267 = vmatprep.subr.bf16.mxu0 0
    %268 = vmatpush1.bf16.msra.mxu0 0
    %269 = vmatprep.subr.bf16.mxu0 0
    %270 = vmatpush1.bf16.msra.mxu0 0
    %271 = vmatprep.subr.bf16.mxu0 0
    %272 = vmatpush1.bf16.msra.mxu0 0
    %273 = vmatprep.subr.bf16.mxu0 0
    %274 = vmatpush1.bf16.msra.mxu0 0
    %275 = vmatprep.subr.bf16.mxu0 0
    %276 = vmatpush1.bf16.msra.mxu0 0
    %277 = vmatprep.subr.bf16.mxu0 0
    %278 = vmatpush1.bf16.msra.mxu0 0
    %279 = vmatprep.subr.bf16.mxu0 0
    %280 = vmatpush1.bf16.msra.mxu0 0
    %281 = vmatprep.subr.bf16.mxu0 0
    %282 = vmatpush1.bf16.msra.mxu0 0
    %283 = vmatprep.subr.bf16.mxu0 0
    %284 = vmatpush1.bf16.msra.mxu0 0
    %285 = vmatprep.subr.bf16.mxu0 0
    %286 = vmatpush1.bf16.msra.mxu0 0
    %287 = vmatprep.subr.bf16.mxu0 0
    %288 = vmatpush1.bf16.msra.mxu0 0
    %289 = vmatprep.subr.bf16.mxu0 0
    %290 = vmatpush1.bf16.msra.mxu0 0
    %291 = vmatprep.subr.bf16.mxu0 0
    %292 = vmatpush1.bf16.msra.mxu0 0
    %293 = vmatprep.mubr.bf16.mxu0 0
    %294 = vmatmul.mubr.bf16.gmra.mrb[0].mxu0 %v147
    %v295 = vpop.f32.mrb[0].mxu0
    %v296 = vadd.f32 %v259, %v295
    %v297 = vpop.f32.mrb[0].mxu0
    %v298 = vpop.f32.mrb[0].mxu0
    %v299 = vadd.f32 %v259, %v298
    %v300 = vpop.f32.mrb[0].mxu0
    %301 = vdwg.mxu0
    %v302 = vpack.c.bf16 %v199, %v198
    %v303 = vpack.c.bf16 %v249, %v246
    %vm304 = vcmask 64512
    %v306 = vsel %vm304, %v302, 0
    %v309 = vsel %vm304, %v303, 0
    %311 = vmatprep.subr.bf16.mxu0 0
    %312 = vmatpush1.bf16.xpose.msra.mxu0 %v309
    %313 = vmatprep.subr.bf16.mxu0 0
    %314 = vmatpush1.bf16.xpose.msra.mxu0 0
    %315 = vmatprep.subr.bf16.mxu0 0
    %316 = vmatpush1.bf16.xpose.msra.mxu0 0
    %317 = vmatprep.subr.bf16.mxu0 0
    %318 = vmatpush1.bf16.xpose.msra.mxu0 0
    %319 = vmatprep.subr.bf16.mxu0 0
    %320 = vmatpush1.bf16.xpose.msra.mxu0 0
    %321 = vmatprep.subr.bf16.mxu0 0
    %322 = vmatpush1.bf16.xpose.msra.mxu0 0
    %323 = vmatprep.subr.bf16.mxu0 0
    %324 = vmatpush1.bf16.xpose.msra.mxu0 0
    %325 = vmatprep.subr.bf16.mxu0 0
    %326 = vmatpush1.bf16.xpose.msra.mxu0 0
    %327 = vmatprep.subr.bf16.mxu0 0
    %328 = vmatpush1.bf16.xpose.msra.mxu0 0
    %329 = vmatprep.subr.bf16.mxu0 0
    %330 = vmatpush1.bf16.xpose.msra.mxu0 0
    %331 = vmatprep.subr.bf16.mxu0 0
    %332 = vmatpush1.bf16.xpose.msra.mxu0 0
    %333 = vmatprep.subr.bf16.mxu0 0
    %334 = vmatpush1.bf16.xpose.msra.mxu0 0
    %335 = vmatprep.subr.bf16.mxu0 0
    %336 = vmatpush1.bf16.xpose.msra.mxu0 0
    %337 = vmatprep.subr.bf16.mxu0 0
    %338 = vmatpush1.bf16.xpose.msra.mxu0 0
    %339 = vmatprep.subr.bf16.mxu0 0
    %340 = vmatpush1.bf16.xpose.msra.mxu0 0
    %341 = vmatprep.subr.bf16.mxu0 0
    %342 = vmatpush1.bf16.xpose.msra.mxu0 0
    %343 = vmatprep.mubr.bf16.mxu0 0
    %344 = vmatmul.mubr.bf16.gmra.mrb[0].mxu0 %v306
    %v345 = vpop.f32.mrb[0].mxu0
    %v346 = vadd.f32 0.0, %v345
    %v347 = vpop.f32.mrb[0].mxu0
    %v348 = vpop.f32.mrb[0].mxu0
    %v349 = vadd.f32 0.0, %v348
    %v350 = vpop.f32.mrb[0].mxu0
    %351 = vdwg.mxu0
    %v352 = vmul.f32 %v346, 0.35355338
    %v353 = vmul.f32 %v349, 0.35355338
    %v354 = vadd.f32 %v352, %v85
    %v355 = vadd.f32 %v353, %v86
    %vm356 = vcmask 130048
    %v357 = vsel %vm356, %v354, -inf
    %358 = vmax.xlane.f32.xlu0 %v357
    %v359 = vpop.xlane.xlu0 %358
    %v360 = vsel %vm356, %v355, -inf
    %361 = vmax.xlane.f32.xlu0 %v360
    %v362 = vpop.xlane.xlu0 %361
    %v363 = vsub.f32 %v354, %v359
    %v364 = vsub.f32 %v355, %v362
    %v365 = vmul.f32 %v363, 1.442695
    %v366 = vpow.pop %v365
    %v367 = vmul.f32 %v364, 1.442695
    %v368 = vpow.pop %v367
    %v369 = vsel %vm356, %v366, 0.0
    %370 = vadd.xlane.f32.xlu0 %v369
    %v371 = vpop.xlane.xlu0 %370
    %v372 = vsel %vm356, %v368, 0.0
    %373 = vadd.xlane.f32.xlu0 %v372
    %v374 = vpop.xlane.xlu0 %373
    %v375 = vrcp.pop %v371
    %v376 = vrcp.pop %v374
    %v377 = vmul.f32 %v366, %v375
    %v378 = vmul.f32 %v368, %v376
    %v379 = vpack.c.bf16 %v378, %v377
    %v380 = vpack.c.bf16 %v299, %v296
    %v382 = vsel %vm356, %v379, 0
    %384 = vmatprep.subr.bf16.mxu0 0
    %385 = vmatpush1.bf16.msra.mxu0 %v380
    %386 = vmatprep.subr.bf16.mxu0 0
    %387 = vmatpush1.bf16.msra.mxu0 0
    %388 = vmatprep.subr.bf16.mxu0 0
    %389 = vmatpush1.bf16.msra.mxu0 0
    %390 = vmatprep.subr.bf16.mxu0 0
    %391 = vmatpush1.bf16.msra.mxu0 0
    %392 = vmatprep.subr.bf16.mxu0 0
    %393 = vmatpush1.bf16.msra.mxu0 0
    %394 = vmatprep.subr.bf16.mxu0 0
    %395 = vmatpush1.bf16.msra.mxu0 0
    %396 = vmatprep.subr.bf16.mxu0 0
    %397 = vmatpush1.bf16.msra.mxu0 0
    %398 = vmatprep.subr.bf16.mxu0 0
    %399 = vmatpush1.bf16.msra.mxu0 0
    %400 = vmatprep.subr.bf16.mxu0 0
    %401 = vmatpush1.bf16.msra.mxu0 0
    %402 = vmatprep.subr.bf16.mxu0 0
    %403 = vmatpush1.bf16.msra.mxu0 0
    %404 = vmatprep.subr.bf16.mxu0 0
    %405 = vmatpush1.bf16.msra.mxu0 0
    %406 = vmatprep.subr.bf16.mxu0 0
    %407 = vmatpush1.bf16.msra.mxu0 0
    %408 = vmatprep.subr.bf16.mxu0 0
    %409 = vmatpush1.bf16.msra.mxu0 0
    %410 = vmatprep.subr.bf16.mxu0 0
    %411 = vmatpush1.bf16.msra.mxu0 0
    %412 = vmatprep.subr.bf16.mxu0 0
    %413 = vmatpush1.bf16.msra.mxu0 0
    %414 = vmatprep.subr.bf16.mxu0 0
    %415 = vmatpush1.bf16.msra.mxu0 0
    %416 = vmatprep.mubr.bf16.mxu0 0
    %417 = vmatmul.mubr.bf16.gmra.mrb[0].mxu0 %v382
    %v418 = vpop.f32.mrb[0].mxu0
    %v419 = vadd.f32 0.0, %v418
    %v420 = vpop.f32.mrb[0].mxu0
    %v421 = vpop.f32.mrb[0].mxu0
    %v422 = vadd.f32 0.0, %v421
    %v423 = vpop.f32.mrb[0].mxu0
    %424 = vdwg.mxu0
    %v425 = vpack.c.bf16 %v422, %v419
    %v426 = vpack.c.bf16 %v138, %v138
    %v428 = vsel %vm304, %v425, 0
    %vm430 = vcmask 1043456
    %v432 = vsel %vm430, %v426, 0
    %434 = vmatprep.subr.bf16.mxu0 0
    %435 = vmatpush1.bf16.msra.mxu0 %v432
    %436 = vmatprep.subr.bf16.mxu0 0
    %437 = vmatpush1.bf16.msra.mxu0 0
    %438 = vmatprep.subr.bf16.mxu0 0
    %439 = vmatpush1.bf16.msra.mxu0 0
    %440 = vmatprep.subr.bf16.mxu0 0
    %441 = vmatpush1.bf16.msra.mxu0 0
    %442 = vmatprep.subr.bf16.mxu0 0
    %443 = vmatpush1.bf16.msra.mxu0 0
    %444 = vmatprep.subr.bf16.mxu0 0
    %445 = vmatpush1.bf16.msra.mxu0 0
    %446 = vmatprep.subr.bf16.mxu0 0
    %447 = vmatpush1.bf16.msra.mxu0 0
    %448 = vmatprep.subr.bf16.mxu0 0
    %449 = vmatpush1.bf16.msra.mxu0 0
    %450 = vmatprep.subr.bf16.mxu0 0
    %451 = vmatpush1.bf16.msra.mxu0 0
    %452 = vmatprep.subr.bf16.mxu0 0
    %453 = vmatpush1.bf16.msra.mxu0 0
    %454 = vmatprep.subr.bf16.mxu0 0
    %455 = vmatpush1.bf16.msra.mxu0 0
    %456 = vmatprep.subr.bf16.mxu0 0
    %457 = vmatpush1.bf16.msra.mxu0 0
    %458 = vmatprep.subr.bf16.mxu0 0
    %459 = vmatpush1.bf16.msra.mxu0 0
    %460 = vmatprep.subr.bf16.mxu0 0
    %461 = vmatpush1.bf16.msra.mxu0 0
    %462 = vmatprep.subr.bf16.mxu0 0
    %463 = vmatpush1.bf16.msra.mxu0 0
    %464 = vmatprep.subr.bf16.mxu0 0
    %465 = vmatpush1.bf16.msra.mxu0 0
    %466 = vmatprep.mubr.bf16.mxu0 0
    %467 = vmatmul.mubr.bf16.gmra.mrb[0].mxu0 %v428
    %v468 = vpop.f32.mrb[0].mxu0
    %v469 = vadd.f32 0.0, %v468
    %v470 = vpop.f32.mrb[0].mxu0
    %v471 = vpop.f32.mrb[0].mxu0
    %v472 = vadd.f32 0.0, %v471
    %v473 = vpop.f32.mrb[0].mxu0
    %474 = vdwg.mxu0
    %v476 = vlaneseq
    %v477 = vshrl.u32 %v476, 7
    %v478 = vsub.s32 0, %v477
    %v479 = vrot.slane %v142, %v478
    %v481 = vadd.f32 %v479, %v469
    %v482 = vadd.f32 %v479, %v472
    %484 = vrot.lane.b32.xlu0 %v302, 120
    %v485 = vpop.permute.xlu0 %484
    %487 = vrot.lane.b32.xlu0 %v303, 120
    %v488 = vpop.permute.xlu0 %487
    %v490 = vsel %vm304, %v485, 0
    %v493 = vsel %vm304, %v488, 0
    %495 = vmatprep.subr.bf16.mxu0 0
    %496 = vmatpush1.bf16.xpose.msra.mxu0 %v493
    %497 = vmatprep.subr.bf16.mxu0 0
    %498 = vmatpush1.bf16.xpose.msra.mxu0 0
    %499 = vmatprep.subr.bf16.mxu0 0
    %500 = vmatpush1.bf16.xpose.msra.mxu0 0
    %501 = vmatprep.subr.bf16.mxu0 0
    %502 = vmatpush1.bf16.xpose.msra.mxu0 0
    %503 = vmatprep.subr.bf16.mxu0 0
    %504 = vmatpush1.bf16.xpose.msra.mxu0 0
    %505 = vmatprep.subr.bf16.mxu0 0
    %506 = vmatpush1.bf16.xpose.msra.mxu0 0
    %507 = vmatprep.subr.bf16.mxu0 0
    %508 = vmatpush1.bf16.xpose.msra.mxu0 0
    %509 = vmatprep.subr.bf16.mxu0 0
    %510 = vmatpush1.bf16.xpose.msra.mxu0 0
    %511 = vmatprep.subr.bf16.mxu0 0
    %512 = vmatpush1.bf16.xpose.msra.mxu0 0
    %513 = vmatprep.subr.bf16.mxu0 0
    %514 = vmatpush1.bf16.xpose.msra.mxu0 0
    %515 = vmatprep.subr.bf16.mxu0 0
    %516 = vmatpush1.bf16.xpose.msra.mxu0 0
    %517 = vmatprep.subr.bf16.mxu0 0
    %518 = vmatpush1.bf16.xpose.msra.mxu0 0
    %519 = vmatprep.subr.bf16.mxu0 0
    %520 = vmatpush1.bf16.xpose.msra.mxu0 0
    %521 = vmatprep.subr.bf16.mxu0 0
    %522 = vmatpush1.bf16.xpose.msra.mxu0 0
    %523 = vmatprep.subr.bf16.mxu0 0
    %524 = vmatpush1.bf16.xpose.msra.mxu0 0
    %525 = vmatprep.subr.bf16.mxu0 0
    %526 = vmatpush1.bf16.xpose.msra.mxu0 0
    %527 = vmatprep.mubr.bf16.mxu0 0
    %528 = vmatmul.mubr.bf16.gmra.mrb[0].mxu0 %v490
    %v529 = vpop.f32.mrb[0].mxu0
    %v530 = vadd.f32 0.0, %v529
    %v531 = vpop.f32.mrb[0].mxu0
    %v532 = vpop.f32.mrb[0].mxu0
    %v533 = vadd.f32 0.0, %v532
    %v534 = vpop.f32.mrb[0].mxu0
    %535 = vdwg.mxu0
    %v536 = vmul.f32 %v530, 0.35355338
    %v537 = vmul.f32 %v533, 0.35355338
    %v538 = vadd.f32 %v536, %v85
    %v539 = vadd.f32 %v537, %v86
    %v540 = vsel %vm356, %v538, -inf
    %541 = vmax.xlane.f32.xlu0 %v540
    %v542 = vpop.xlane.xlu0 %541
    %v543 = vsel %vm356, %v539, -inf
    %544 = vmax.xlane.f32.xlu0 %v543
    %v545 = vpop.xlane.xlu0 %544
    %v546 = vsub.f32 %v538, %v542
    %v547 = vsub.f32 %v539, %v545
    %v548 = vmul.f32 %v546, 1.442695
    %v549 = vpow.pop %v548
    %v550 = vmul.f32 %v547, 1.442695
    %v551 = vpow.pop %v550
    %v552 = vsel %vm356, %v549, 0.0
    %553 = vadd.xlane.f32.xlu0 %v552
    %v554 = vpop.xlane.xlu0 %553
    %v555 = vsel %vm356, %v551, 0.0
    %556 = vadd.xlane.f32.xlu0 %v555
    %v557 = vpop.xlane.xlu0 %556
    %v558 = vrcp.pop %v554
    %v559 = vrcp.pop %v557
    %v560 = vmul.f32 %v549, %v558
    %v561 = vmul.f32 %v551, %v559
    %v562 = vpack.c.bf16 %v561, %v560
    %564 = vrot.lane.b32.xlu0 %v380, 120
    %v565 = vpop.permute.xlu0 %564
    %v568 = vsel %vm356, %v562, 0
    %570 = vmatprep.subr.bf16.mxu0 0
    %571 = vmatpush1.bf16.msra.mxu0 %v565
    %572 = vmatprep.subr.bf16.mxu0 0
    %573 = vmatpush1.bf16.msra.mxu0 0
    %574 = vmatprep.subr.bf16.mxu0 0
    %575 = vmatpush1.bf16.msra.mxu0 0
    %576 = vmatprep.subr.bf16.mxu0 0
    %577 = vmatpush1.bf16.msra.mxu0 0
    %578 = vmatprep.subr.bf16.mxu0 0
    %579 = vmatpush1.bf16.msra.mxu0 0
    %580 = vmatprep.subr.bf16.mxu0 0
    %581 = vmatpush1.bf16.msra.mxu0 0
    %582 = vmatprep.subr.bf16.mxu0 0
    %583 = vmatpush1.bf16.msra.mxu0 0
    %584 = vmatprep.subr.bf16.mxu0 0
    %585 = vmatpush1.bf16.msra.mxu0 0
    %586 = vmatprep.subr.bf16.mxu0 0
    %587 = vmatpush1.bf16.msra.mxu0 0
    %588 = vmatprep.subr.bf16.mxu0 0
    %589 = vmatpush1.bf16.msra.mxu0 0
    %590 = vmatprep.subr.bf16.mxu0 0
    %591 = vmatpush1.bf16.msra.mxu0 0
    %592 = vmatprep.subr.bf16.mxu0 0
    %593 = vmatpush1.bf16.msra.mxu0 0
    %594 = vmatprep.subr.bf16.mxu0 0
    %595 = vmatpush1.bf16.msra.mxu0 0
    %596 = vmatprep.subr.bf16.mxu0 0
    %597 = vmatpush1.bf16.msra.mxu0 0
    %598 = vmatprep.subr.bf16.mxu0 0
    %599 = vmatpush1.bf16.msra.mxu0 0
    %600 = vmatprep.subr.bf16.mxu0 0
    %601 = vmatpush1.bf16.msra.mxu0 0
    %602 = vmatprep.mubr.bf16.mxu0 0
    %603 = vmatmul.mubr.bf16.gmra.mrb[0].mxu0 %v568
    %v604 = vpop.f32.mrb[0].mxu0
    %v605 = vadd.f32 0.0, %v604
    %v606 = vpop.f32.mrb[0].mxu0
    %v607 = vpop.f32.mrb[0].mxu0
    %v608 = vadd.f32 0.0, %v607
    %v609 = vpop.f32.mrb[0].mxu0
    %610 = vdwg.mxu0
    %v611 = vpack.c.bf16 %v608, %v605
    %v612 = vpack.c.bf16 %v139, %v139
    %v614 = vsel %vm304, %v611, 0
    %v617 = vsel %vm430, %v612, 0
    %619 = vmatprep.subr.bf16.mxu0 0
    %620 = vmatpush1.bf16.msra.mxu0 %v617
    %621 = vmatprep.subr.bf16.mxu0 0
    %622 = vmatpush1.bf16.msra.mxu0 0
    %623 = vmatprep.subr.bf16.mxu0 0
    %624 = vmatpush1.bf16.msra.mxu0 0
    %625 = vmatprep.subr.bf16.mxu0 0
    %626 = vmatpush1.bf16.msra.mxu0 0
    %627 = vmatprep.subr.bf16.mxu0 0
    %628 = vmatpush1.bf16.msra.mxu0 0
    %629 = vmatprep.subr.bf16.mxu0 0
    %630 = vmatpush1.bf16.msra.mxu0 0
    %631 = vmatprep.subr.bf16.mxu0 0
    %632 = vmatpush1.bf16.msra.mxu0 0
    %633 = vmatprep.subr.bf16.mxu0 0
    %634 = vmatpush1.bf16.msra.mxu0 0
    %635 = vmatprep.subr.bf16.mxu0 0
    %636 = vmatpush1.bf16.msra.mxu0 0
    %637 = vmatprep.subr.bf16.mxu0 0
    %638 = vmatpush1.bf16.msra.mxu0 0
    %639 = vmatprep.subr.bf16.mxu0 0
    %640 = vmatpush1.bf16.msra.mxu0 0
    %641 = vmatprep.subr.bf16.mxu0 0
    %642 = vmatpush1.bf16.msra.mxu0 0
    %643 = vmatprep.subr.bf16.mxu0 0
    %644 = vmatpush1.bf16.msra.mxu0 0
    %645 = vmatprep.subr.bf16.mxu0 0
    %646 = vmatpush1.bf16.msra.mxu0 0
    %647 = vmatprep.subr.bf16.mxu0 0
    %648 = vmatpush1.bf16.msra.mxu0 0
    %649 = vmatprep.subr.bf16.mxu0 0
    %650 = vmatpush1.bf16.msra.mxu0 0
    %651 = vmatprep.mubr.bf16.mxu0 0
    %652 = vmatmul.mubr.bf16.gmra.mrb[0].mxu0 %v614
    %v653 = vpop.f32.mrb[0].mxu0
    %v654 = vadd.f32 0.0, %v653
    %v655 = vpop.f32.mrb[0].mxu0
    %v656 = vpop.f32.mrb[0].mxu0
    %v657 = vadd.f32 0.0, %v656
    %v658 = vpop.f32.mrb[0].mxu0
    %659 = vdwg.mxu0
    %v660 = vadd.f32 %v481, %v654
    %v661 = vadd.f32 %v482, %v657
    %662 = vrot.lane.b32.xlu0 %v302, 112
    %v663 = vpop.permute.xlu0 %662
    %664 = vrot.lane.b32.xlu0 %v303, 112
    %v665 = vpop.permute.xlu0 %664
    %v667 = vsel %vm304, %v663, 0
    %v670 = vsel %vm304, %v665, 0
    %672 = vmatprep.subr.bf16.mxu0 0
    %673 = vmatpush1.bf16.xpose.msra.mxu0 %v670
    %674 = vmatprep.subr.bf16.mxu0 0
    %675 = vmatpush1.bf16.xpose.msra.mxu0 0
    %676 = vmatprep.subr.bf16.mxu0 0
    %677 = vmatpush1.bf16.xpose.msra.mxu0 0
    %678 = vmatprep.subr.bf16.mxu0 0
    %679 = vmatpush1.bf16.xpose.msra.mxu0 0
    %680 = vmatprep.subr.bf16.mxu0 0
    %681 = vmatpush1.bf16.xpose.msra.mxu0 0
    %682 = vmatprep.subr.bf16.mxu0 0
    %683 = vmatpush1.bf16.xpose.msra.mxu0 0
    %684 = vmatprep.subr.bf16.mxu0 0
    %685 = vmatpush1.bf16.xpose.msra.mxu0 0
    %686 = vmatprep.subr.bf16.mxu0 0
    %687 = vmatpush1.bf16.xpose.msra.mxu0 0
    %688 = vmatprep.subr.bf16.mxu0 0
    %689 = vmatpush1.bf16.xpose.msra.mxu0 0
    %690 = vmatprep.subr.bf16.mxu0 0
    %691 = vmatpush1.bf16.xpose.msra.mxu0 0
    %692 = vmatprep.subr.bf16.mxu0 0
    %693 = vmatpush1.bf16.xpose.msra.mxu0 0
    %694 = vmatprep.subr.bf16.mxu0 0
    %695 = vmatpush1.bf16.xpose.msra.mxu0 0
    %696 = vmatprep.subr.bf16.mxu0 0
    %697 = vmatpush1.bf16.xpose.msra.mxu0 0
    %698 = vmatprep.subr.bf16.mxu0 0
    %699 = vmatpush1.bf16.xpose.msra.mxu0 0
    %700 = vmatprep.subr.bf16.mxu0 0
    %701 = vmatpush1.bf16.xpose.msra.mxu0 0
    %702 = vmatprep.subr.bf16.mxu0 0
    %703 = vmatpush1.bf16.xpose.msra.mxu0 0
    %704 = vmatprep.mubr.bf16.mxu0 0
    %705 = vmatmul.mubr.bf16.gmra.mrb[0].mxu0 %v667
    %v706 = vpop.f32.mrb[0].mxu0
    %v707 = vadd.f32 0.0, %v706
    %v708 = vpop.f32.mrb[0].mxu0
    %v709 = vpop.f32.mrb[0].mxu0
    %v710 = vadd.f32 0.0, %v709
    %v711 = vpop.f32.mrb[0].mxu0
    %712 = vdwg.mxu0
    %v713 = vmul.f32 %v707, 0.35355338
    %v714 = vmul.f32 %v710, 0.35355338
    %v715 = vadd.f32 %v713, %v85
    %v716 = vadd.f32 %v714, %v86
    %v717 = vsel %vm356, %v715, -inf
    %718 = vmax.xlane.f32.xlu0 %v717
    %v719 = vpop.xlane.xlu0 %718
    %v720 = vsel %vm356, %v716, -inf
    %721 = vmax.xlane.f32.xlu0 %v720
    %v722 = vpop.xlane.xlu0 %721
    %v723 = vsub.f32 %v715, %v719
    %v724 = vsub.f32 %v716, %v722
    %v725 = vmul.f32 %v723, 1.442695
    %v726 = vpow.pop %v725
    %v727 = vmul.f32 %v724, 1.442695
    %v728 = vpow.pop %v727
    %v729 = vsel %vm356, %v726, 0.0
    %730 = vadd.xlane.f32.xlu0 %v729
    %v731 = vpop.xlane.xlu0 %730
    %v732 = vsel %vm356, %v728, 0.0
    %733 = vadd.xlane.f32.xlu0 %v732
    %v734 = vpop.xlane.xlu0 %733
    %v735 = vrcp.pop %v731
    %v736 = vrcp.pop %v734
    %v737 = vmul.f32 %v726, %v735
    %v738 = vmul.f32 %v728, %v736
    %v739 = vpack.c.bf16 %v738, %v737
    %740 = vrot.lane.b32.xlu0 %v380, 112
    %v741 = vpop.permute.xlu0 %740
    %v744 = vsel %vm356, %v739, 0
    %746 = vmatprep.subr.bf16.mxu0 0
    %747 = vmatpush1.bf16.msra.mxu0 %v741
    %748 = vmatprep.subr.bf16.mxu0 0
    %749 = vmatpush1.bf16.msra.mxu0 0
    %750 = vmatprep.subr.bf16.mxu0 0
    %751 = vmatpush1.bf16.msra.mxu0 0
    %752 = vmatprep.subr.bf16.mxu0 0
    %753 = vmatpush1.bf16.msra.mxu0 0
    %754 = vmatprep.subr.bf16.mxu0 0
    %755 = vmatpush1.bf16.msra.mxu0 0
    %756 = vmatprep.subr.bf16.mxu0 0
    %757 = vmatpush1.bf16.msra.mxu0 0
    %758 = vmatprep.subr.bf16.mxu0 0
    %759 = vmatpush1.bf16.msra.mxu0 0
    %760 = vmatprep.subr.bf16.mxu0 0
    %761 = vmatpush1.bf16.msra.mxu0 0
    %762 = vmatprep.subr.bf16.mxu0 0
    %763 = vmatpush1.bf16.msra.mxu0 0
    %764 = vmatprep.subr.bf16.mxu0 0
    %765 = vmatpush1.bf16.msra.mxu0 0
    %766 = vmatprep.subr.bf16.mxu0 0
    %767 = vmatpush1.bf16.msra.mxu0 0
    %768 = vmatprep.subr.bf16.mxu0 0
    %769 = vmatpush1.bf16.msra.mxu0 0
    %770 = vmatprep.subr.bf16.mxu0 0
    %771 = vmatpush1.bf16.msra.mxu0 0
    %772 = vmatprep.subr.bf16.mxu0 0
    %773 = vmatpush1.bf16.msra.mxu0 0
    %774 = vmatprep.subr.bf16.mxu0 0
    %775 = vmatpush1.bf16.msra.mxu0 0
    %776 = vmatprep.subr.bf16.mxu0 0
    %777 = vmatpush1.bf16.msra.mxu0 0
    %778 = vmatprep.mubr.bf16.mxu0 0
    %779 = vmatmul.mubr.bf16.gmra.mrb[0].mxu0 %v744
    %v780 = vpop.f32.mrb[0].mxu0
    %v781 = vadd.f32 0.0, %v780
    %v782 = vpop.f32.mrb[0].mxu0
    %v783 = vpop.f32.mrb[0].mxu0
    %v784 = vadd.f32 0.0, %v783
    %v785 = vpop.f32.mrb[0].mxu0
    %786 = vdwg.mxu0
    %v787 = vpack.c.bf16 %v784, %v781
    %v788 = vpack.c.bf16 %v140, %v140
    %v790 = vsel %vm304, %v787, 0
    %v793 = vsel %vm430, %v788, 0
    %795 = vmatprep.subr.bf16.mxu0 0
    %796 = vmatpush1.bf16.msra.mxu0 %v793
    %797 = vmatprep.subr.bf16.mxu0 0
    %798 = vmatpush1.bf16.msra.mxu0 0
    %799 = vmatprep.subr.bf16.mxu0 0
    %800 = vmatpush1.bf16.msra.mxu0 0
    %801 = vmatprep.subr.bf16.mxu0 0
    %802 = vmatpush1.bf16.msra.mxu0 0
    %803 = vmatprep.subr.bf16.mxu0 0
    %804 = vmatpush1.bf16.msra.mxu0 0
    %805 = vmatprep.subr.bf16.mxu0 0
    %806 = vmatpush1.bf16.msra.mxu0 0
    %807 = vmatprep.subr.bf16.mxu0 0
    %808 = vmatpush1.bf16.msra.mxu0 0
    %809 = vmatprep.subr.bf16.mxu0 0
    %810 = vmatpush1.bf16.msra.mxu0 0
    %811 = vmatprep.subr.bf16.mxu0 0
    %812 = vmatpush1.bf16.msra.mxu0 0
    %813 = vmatprep.subr.bf16.mxu0 0
    %814 = vmatpush1.bf16.msra.mxu0 0
    %815 = vmatprep.subr.bf16.mxu0 0
    %816 = vmatpush1.bf16.msra.mxu0 0
    %817 = vmatprep.subr.bf16.mxu0 0
    %818 = vmatpush1.bf16.msra.mxu0 0
    %819 = vmatprep.subr.bf16.mxu0 0
    %820 = vmatpush1.bf16.msra.mxu0 0
    %821 = vmatprep.subr.bf16.mxu0 0
    %822 = vmatpush1.bf16.msra.mxu0 0
    %823 = vmatprep.subr.bf16.mxu0 0
    %824 = vmatpush1.bf16.msra.mxu0 0
    %825 = vmatprep.subr.bf16.mxu0 0
    %826 = vmatpush1.bf16.msra.mxu0 0
    %827 = vmatprep.mubr.bf16.mxu0 0
    %828 = vmatmul.mubr.bf16.gmra.mrb[0].mxu0 %v790
    %v829 = vpop.f32.mrb[0].mxu0
    %v830 = vadd.f32 0.0, %v829
    %v831 = vpop.f32.mrb[0].mxu0
    %v832 = vpop.f32.mrb[0].mxu0
    %v833 = vadd.f32 0.0, %v832
    %v834 = vpop.f32.mrb[0].mxu0
    %835 = vdwg.mxu0
    %v836 = vadd.f32 %v660, %v830
    %v837 = vadd.f32 %v661, %v833
    %838 = vrot.lane.b32.xlu0 %v302, 104
    %v839 = vpop.permute.xlu0 %838
    %840 = vrot.lane.b32.xlu0 %v303, 104
    %v841 = vpop.permute.xlu0 %840
    %v843 = vsel %vm304, %v839, 0
    %v846 = vsel %vm304, %v841, 0
    %848 = vmatprep.subr.bf16.mxu0 0
    %849 = vmatpush1.bf16.xpose.msra.mxu0 %v846
    %850 = vmatprep.subr.bf16.mxu0 0
    %851 = vmatpush1.bf16.xpose.msra.mxu0 0
    %852 = vmatprep.subr.bf16.mxu0 0
    %853 = vmatpush1.bf16.xpose.msra.mxu0 0
    %854 = vmatprep.subr.bf16.mxu0 0
    %855 = vmatpush1.bf16.xpose.msra.mxu0 0
    %856 = vmatprep.subr.bf16.mxu0 0
    %857 = vmatpush1.bf16.xpose.msra.mxu0 0
    %858 = vmatprep.subr.bf16.mxu0 0
    %859 = vmatpush1.bf16.xpose.msra.mxu0 0
    %860 = vmatprep.subr.bf16.mxu0 0
    %861 = vmatpush1.bf16.xpose.msra.mxu0 0
    %862 = vmatprep.subr.bf16.mxu0 0
    %863 = vmatpush1.bf16.xpose.msra.mxu0 0
    %864 = vmatprep.subr.bf16.mxu0 0
    %865 = vmatpush1.bf16.xpose.msra.mxu0 0
    %866 = vmatprep.subr.bf16.mxu0 0
    %867 = vmatpush1.bf16.xpose.msra.mxu0 0
    %868 = vmatprep.subr.bf16.mxu0 0
    %869 = vmatpush1.bf16.xpose.msra.mxu0 0
    %870 = vmatprep.subr.bf16.mxu0 0
    %871 = vmatpush1.bf16.xpose.msra.mxu0 0
    %872 = vmatprep.subr.bf16.mxu0 0
    %873 = vmatpush1.bf16.xpose.msra.mxu0 0
    %874 = vmatprep.subr.bf16.mxu0 0
    %875 = vmatpush1.bf16.xpose.msra.mxu0 0
    %876 = vmatprep.subr.bf16.mxu0 0
    %877 = vmatpush1.bf16.xpose.msra.mxu0 0
    %878 = vmatprep.subr.bf16.mxu0 0
    %879 = vmatpush1.bf16.xpose.msra.mxu0 0
    %880 = vmatprep.mubr.bf16.mxu0 0
    %881 = vmatmul.mubr.bf16.gmra.mrb[0].mxu0 %v843
    %v882 = vpop.f32.mrb[0].mxu0
    %v883 = vadd.f32 0.0, %v882
    %v884 = vpop.f32.mrb[0].mxu0
    %v885 = vpop.f32.mrb[0].mxu0
    %v886 = vadd.f32 0.0, %v885
    %v887 = vpop.f32.mrb[0].mxu0
    %888 = vdwg.mxu0
    %v889 = vmul.f32 %v883, 0.35355338
    %v890 = vmul.f32 %v886, 0.35355338
    %v891 = vadd.f32 %v889, %v85
    %v892 = vadd.f32 %v890, %v86
    %v893 = vsel %vm356, %v891, -inf
    %894 = vmax.xlane.f32.xlu0 %v893
    %v895 = vpop.xlane.xlu0 %894
    %v896 = vsel %vm356, %v892, -inf
    %897 = vmax.xlane.f32.xlu0 %v896
    %v898 = vpop.xlane.xlu0 %897
    %v899 = vsub.f32 %v891, %v895
    %v900 = vsub.f32 %v892, %v898
    %v901 = vmul.f32 %v899, 1.442695
    %v902 = vpow.pop %v901
    %v903 = vmul.f32 %v900, 1.442695
    %v904 = vpow.pop %v903
    %v905 = vsel %vm356, %v902, 0.0
    %906 = vadd.xlane.f32.xlu0 %v905
    %v907 = vpop.xlane.xlu0 %906
    %v908 = vsel %vm356, %v904, 0.0
    %909 = vadd.xlane.f32.xlu0 %v908
    %v910 = vpop.xlane.xlu0 %909
    %v911 = vrcp.pop %v907
    %v912 = vrcp.pop %v910
    %v913 = vmul.f32 %v902, %v911
    %v914 = vmul.f32 %v904, %v912
    %v915 = vpack.c.bf16 %v914, %v913
    %916 = vrot.lane.b32.xlu0 %v380, 104
    %v917 = vpop.permute.xlu0 %916
    %v920 = vsel %vm356, %v915, 0
    %922 = vmatprep.subr.bf16.mxu0 0
    %923 = vmatpush1.bf16.msra.mxu0 %v917
    %924 = vmatprep.subr.bf16.mxu0 0
    %925 = vmatpush1.bf16.msra.mxu0 0
    %926 = vmatprep.subr.bf16.mxu0 0
    %927 = vmatpush1.bf16.msra.mxu0 0
    %928 = vmatprep.subr.bf16.mxu0 0
    %929 = vmatpush1.bf16.msra.mxu0 0
    %930 = vmatprep.subr.bf16.mxu0 0
    %931 = vmatpush1.bf16.msra.mxu0 0
    %932 = vmatprep.subr.bf16.mxu0 0
    %933 = vmatpush1.bf16.msra.mxu0 0
    %934 = vmatprep.subr.bf16.mxu0 0
    %935 = vmatpush1.bf16.msra.mxu0 0
    %936 = vmatprep.subr.bf16.mxu0 0
    %937 = vmatpush1.bf16.msra.mxu0 0
    %938 = vmatprep.subr.bf16.mxu0 0
    %939 = vmatpush1.bf16.msra.mxu0 0
    %940 = vmatprep.subr.bf16.mxu0 0
    %941 = vmatpush1.bf16.msra.mxu0 0
    %942 = vmatprep.subr.bf16.mxu0 0
    %943 = vmatpush1.bf16.msra.mxu0 0
    %944 = vmatprep.subr.bf16.mxu0 0
    %945 = vmatpush1.bf16.msra.mxu0 0
    %946 = vmatprep.subr.bf16.mxu0 0
    %947 = vmatpush1.bf16.msra.mxu0 0
    %948 = vmatprep.subr.bf16.mxu0 0
    %949 = vmatpush1.bf16.msra.mxu0 0
    %950 = vmatprep.subr.bf16.mxu0 0
    %951 = vmatpush1.bf16.msra.mxu0 0
    %952 = vmatprep.subr.bf16.mxu0 0
    %953 = vmatpush1.bf16.msra.mxu0 0
    %954 = vmatprep.mubr.bf16.mxu0 0
    %955 = vmatmul.mubr.bf16.gmra.mrb[0].mxu0 %v920
    %v956 = vpop.f32.mrb[0].mxu0
    %v957 = vadd.f32 0.0, %v956
    %v958 = vpop.f32.mrb[0].mxu0
    %v959 = vpop.f32.mrb[0].mxu0
    %v960 = vadd.f32 0.0, %v959
    %v961 = vpop.f32.mrb[0].mxu0
    %962 = vdwg.mxu0
    %v963 = vpack.c.bf16 %v960, %v957
    %v964 = vpack.c.bf16 %v141, %v141
    %v966 = vsel %vm304, %v963, 0
    %v969 = vsel %vm430, %v964, 0
    %971 = vmatprep.subr.bf16.mxu0 0
    %972 = vmatpush1.bf16.msra.mxu0 %v969
    %973 = vmatprep.subr.bf16.mxu0 0
    %974 = vmatpush1.bf16.msra.mxu0 0
    %975 = vmatprep.subr.bf16.mxu0 0
    %976 = vmatpush1.bf16.msra.mxu0 0
    %977 = vmatprep.subr.bf16.mxu0 0
    %978 = vmatpush1.bf16.msra.mxu0 0
    %979 = vmatprep.subr.bf16.mxu0 0
    %980 = vmatpush1.bf16.msra.mxu0 0
    %981 = vmatprep.subr.bf16.mxu0 0
    %982 = vmatpush1.bf16.msra.mxu0 0
    %983 = vmatprep.subr.bf16.mxu0 0
    %984 = vmatpush1.bf16.msra.mxu0 0
    %985 = vmatprep.subr.bf16.mxu0 0
    %986 = vmatpush1.bf16.msra.mxu0 0
    %987 = vmatprep.subr.bf16.mxu0 0
    %988 = vmatpush1.bf16.msra.mxu0 0
    %989 = vmatprep.subr.bf16.mxu0 0
    %990 = vmatpush1.bf16.msra.mxu0 0
    %991 = vmatprep.subr.bf16.mxu0 0
    %992 = vmatpush1.bf16.msra.mxu0 0
    %993 = vmatprep.subr.bf16.mxu0 0
    %994 = vmatpush1.bf16.msra.mxu0 0
    %995 = vmatprep.subr.bf16.mxu0 0
    %996 = vmatpush1.bf16.msra.mxu0 0
    %997 = vmatprep.subr.bf16.mxu0 0
    %998 = vmatpush1.bf16.msra.mxu0 0
    %999 = vmatprep.subr.bf16.mxu0 0
    %1000 = vmatpush1.bf16.msra.mxu0 0
    %1001 = vmatprep.subr.bf16.mxu0 0
    %1002 = vmatpush1.bf16.msra.mxu0 0
    %1003 = vmatprep.mubr.bf16.mxu0 0
    %1004 = vmatmul.mubr.bf16.gmra.mrb[0].mxu0 %v966
    %v1005 = vpop.f32.mrb[0].mxu0
    %v1006 = vadd.f32 0.0, %v1005
    %v1007 = vpop.f32.mrb[0].mxu0
    %v1008 = vpop.f32.mrb[0].mxu0
    %v1009 = vadd.f32 0.0, %v1008
    %v1010 = vpop.f32.mrb[0].mxu0
    %1011 = vdwg.mxu0
    %v1012 = vadd.f32 %v836, %v1006
    %v1013 = vadd.f32 %v837, %v1009
    %v1014 = vadd.f32 %v81, %v1012
    %v1015 = vadd.f32 %v82, %v1013
    %v1016 = vld [vmem:[%s9] sm:$0x1]
    %v1017 = vld [vmem:[%s10] sm:$0x1]
    %v1018 = vsel %vm89, %v1014, 0.0
    %1019 = vadd.xlane.f32.xlu0 %v1018
    %v1020 = vpop.xlane.xlu0 %1019
    %v1021 = vsel %vm89, %v1015, 0.0
    %1022 = vadd.xlane.f32.xlu0 %v1021
    %v1023 = vpop.xlane.xlu0 %1022
    %v1024 = vmul.f32 %v1020, %v96
    %v1025 = vmul.f32 %v1023, %v96
    %v1026 = vsub.f32 %v1014, %v1024
    %v1027 = vsub.f32 %v1015, %v1025
    %v1028 = vmul.f32 %v1026, %v1026
    %v1029 = vmul.f32 %v1027, %v1027
    %v1030 = vsel %vm89, %v1028, 0.0
    %1031 = vadd.xlane.f32.xlu0 %v1030
    %v1032 = vpop.xlane.xlu0 %1031
    %v1033 = vsel %vm89, %v1029, 0.0
    %1034 = vadd.xlane.f32.xlu0 %v1033
    %v1035 = vpop.xlane.xlu0 %1034
    %v1036 = vmul.f32 %v1032, %v96
    %v1037 = vmul.f32 %v1035, %v96
    %v1038 = vadd.f32 %v1036, 1e-05
    %v1039 = vadd.f32 %v1037, 1e-05
    %v1040 = vrsqrt.pop %v1038
    %v1041 = vrsqrt.pop %v1039
    %v1042 = vmul.f32 %v1026, %v1040
    %v1043 = vmul.f32 %v1027, %v1041
    %v1045 = vlaneseq
    %v1046 = vshrl.u32 %v1045, 7
    %v1047 = vsub.s32 0, %v1046
    %v1048 = vrot.slane %v1016, %v1047
    %v1050 = vmul.f32 %v1042, %v1048
    %v1051 = vmul.f32 %v1043, %v1048
    %v1053 = vlaneseq
    %v1054 = vshrl.u32 %v1053, 7
    %v1055 = vsub.s32 0, %v1054
    %v1056 = vrot.slane %v1017, %v1055
    %v1058 = vadd.f32 %v1050, %v1056
    %v1059 = vadd.f32 %v1051, %v1056
    %v1060 = vld [vmem:[%s11] sm:$0xff]
    %v1061 = vld [vmem:[%s11 + $0x8] sm:$0xff]
    %v1062 = vld [vmem:[%s11 + $0x10] sm:$0xff]
    %v1063 = vld [vmem:[%s11 + $0x18] sm:$0xff]
    %v1064 = vld [vmem:[%s12] sm:$0x1]
    %v1065 = vld [vmem:[%s13] sm:$0xff]
    %v1066 = vld [vmem:[%s13 + $0x8] sm:$0xff]
    %v1067 = vld [vmem:[%s13 + $0x10] sm:$0xff]
    %v1068 = vld [vmem:[%s13 + $0x18] sm:$0xff]
    %v1069 = vld [vmem:[%s14] sm:$0x1]
    %v1070 = vpack.c.bf16 %v1059, %v1058
    %v1071 = vpack.c.bf16 %v1061, %v1060
    %v1072 = vpack.c.bf16 %v1063, %v1062
    %v1074 = vsel %vm89, %v1070, 0
    %1076 = vmatprep.subr.bf16.mxu0 0
    %1077 = vmatpush1.bf16.msra.mxu0 %v1071
    %1078 = vmatprep.subr.bf16.mxu0 0
    %1079 = vmatpush1.bf16.msra.mxu0 %v1072
    %1080 = vmatprep.subr.bf16.mxu0 0
    %1081 = vmatpush1.bf16.msra.mxu0 0
    %1082 = vmatprep.subr.bf16.mxu0 0
    %1083 = vmatpush1.bf16.msra.mxu0 0
    %1084 = vmatprep.subr.bf16.mxu0 0
    %1085 = vmatpush1.bf16.msra.mxu0 0
    %1086 = vmatprep.subr.bf16.mxu0 0
    %1087 = vmatpush1.bf16.msra.mxu0 0
    %1088 = vmatprep.subr.bf16.mxu0 0
    %1089 = vmatpush1.bf16.msra.mxu0 0
    %1090 = vmatprep.subr.bf16.mxu0 0
    %1091 = vmatpush1.bf16.msra.mxu0 0
    %1092 = vmatprep.subr.bf16.mxu0 0
    %1093 = vmatpush1.bf16.msra.mxu0 0
    %1094 = vmatprep.subr.bf16.mxu0 0
    %1095 = vmatpush1.bf16.msra.mxu0 0
    %1096 = vmatprep.subr.bf16.mxu0 0
    %1097 = vmatpush1.bf16.msra.mxu0 0
    %1098 = vmatprep.subr.bf16.mxu0 0
    %1099 = vmatpush1.bf16.msra.mxu0 0
    %1100 = vmatprep.subr.bf16.mxu0 0
    %1101 = vmatpush1.bf16.msra.mxu0 0
    %1102 = vmatprep.subr.bf16.mxu0 0
    %1103 = vmatpush1.bf16.msra.mxu0 0
    %1104 = vmatprep.subr.bf16.mxu0 0
    %1105 = vmatpush1.bf16.msra.mxu0 0
    %1106 = vmatprep.subr.bf16.mxu0 0
    %1107 = vmatpush1.bf16.msra.mxu0 0
    %1108 = vmatprep.mubr.bf16.mxu0 0
    %1109 = vmatmul.mubr.bf16.gmra.mrb[0].mxu0 %v1074
    %v1110 = vpop.f32.mrb[0].mxu0
    %v1111 = vadd.f32 0.0, %v1110
    %v1112 = vpop.f32.mrb[0].mxu0
    %v1113 = vpop.f32.mrb[0].mxu0
    %v1114 = vadd.f32 0.0, %v1113
    %v1115 = vpop.f32.mrb[0].mxu0
    %1116 = vdwg.mxu0
    %v1117 = vmul.f32 %v1111, 0.17677669
    %v1118 = vmul.f32 %v1114, 0.17677669
    %v1120 = vlaneseq
    %v1121 = vshrl.u32 %v1120, 7
    %v1122 = vsub.s32 0, %v1121
    %v1123 = vrot.slane %v1064, %v1122
    %v1125 = vadd.f32 %v1117, %v1123
    %v1126 = vadd.f32 %v1118, %v1123
    %v1127 = vpack.c.bf16 %v84, %v83
    %1130 = vrot.lane.b32.xlu0 %v1071, 96
    %v1131 = vpop.permute.xlu0 %1130
    %1132 = vrot.lane.b32.xlu0 %v1072, 96
    %v1133 = vpop.permute.xlu0 %1132
    %1136 = vrot.lane.b32.xlu0 %v1123, 96
    %v1137 = vpop.permute.xlu0 %1136
    %v1140 = vsel %vm89, %v1127, 0
    %1142 = vmatprep.subr.bf16.mxu0 0
    %1143 = vmatpush1.bf16.msra.mxu0 %v1131
    %1144 = vmatprep.subr.bf16.mxu0 0
    %1145 = vmatpush1.bf16.msra.mxu0 %v1133
    %1146 = vmatprep.subr.bf16.mxu0 0
    %1147 = vmatpush1.bf16.msra.mxu0 0
    %1148 = vmatprep.subr.bf16.mxu0 0
    %1149 = vmatpush1.bf16.msra.mxu0 0
    %1150 = vmatprep.subr.bf16.mxu0 0
    %1151 = vmatpush1.bf16.msra.mxu0 0
    %1152 = vmatprep.subr.bf16.mxu0 0
    %1153 = vmatpush1.bf16.msra.mxu0 0
    %1154 = vmatprep.subr.bf16.mxu0 0
    %1155 = vmatpush1.bf16.msra.mxu0 0
    %1156 = vmatprep.subr.bf16.mxu0 0
    %1157 = vmatpush1.bf16.msra.mxu0 0
    %1158 = vmatprep.subr.bf16.mxu0 0
    %1159 = vmatpush1.bf16.msra.mxu0 0
    %1160 = vmatprep.subr.bf16.mxu0 0
    %1161 = vmatpush1.bf16.msra.mxu0 0
    %1162 = vmatprep.subr.bf16.mxu0 0
    %1163 = vmatpush1.bf16.msra.mxu0 0
    %1164 = vmatprep.subr.bf16.mxu0 0
    %1165 = vmatpush1.bf16.msra.mxu0 0
    %1166 = vmatprep.subr.bf16.mxu0 0
    %1167 = vmatpush1.bf16.msra.mxu0 0
    %1168 = vmatprep.subr.bf16.mxu0 0
    %1169 = vmatpush1.bf16.msra.mxu0 0
    %1170 = vmatprep.subr.bf16.mxu0 0
    %1171 = vmatpush1.bf16.msra.mxu0 0
    %1172 = vmatprep.subr.bf16.mxu0 0
    %1173 = vmatpush1.bf16.msra.mxu0 0
    %1174 = vmatprep.mubr.bf16.mxu0 0
    %1175 = vmatmul.mubr.bf16.gmra.mrb[0].mxu0 %v1140
    %v1176 = vpop.f32.mrb[0].mxu0
    %v1177 = vadd.f32 %v1137, %v1176
    %v1178 = vpop.f32.mrb[0].mxu0
    %v1179 = vpop.f32.mrb[0].mxu0
    %v1180 = vadd.f32 %v1137, %v1179
    %v1181 = vpop.f32.mrb[0].mxu0
    %1182 = vdwg.mxu0
    %1183 = vrot.lane.b32.xlu0 %v1071, 64
    %v1184 = vpop.permute.xlu0 %1183
    %1185 = vrot.lane.b32.xlu0 %v1072, 64
    %v1186 = vpop.permute.xlu0 %1185
    %1189 = vrot.lane.b32.xlu0 %v1123, 64
    %v1190 = vpop.permute.xlu0 %1189
    %1192 = vmatprep.subr.bf16.mxu0 0
    %1193 = vmatpush1.bf16.msra.mxu0 %v1184
    %1194 = vmatprep.subr.bf16.mxu0 0
    %1195 = vmatpush1.bf16.msra.mxu0 %v1186
    %1196 = vmatprep.subr.bf16.mxu0 0
    %1197 = vmatpush1.bf16.msra.mxu0 0
    %1198 = vmatprep.subr.bf16.mxu0 0
    %1199 = vmatpush1.bf16.msra.mxu0 0
    %1200 = vmatprep.subr.bf16.mxu0 0
    %1201 = vmatpush1.bf16.msra.mxu0 0
    %1202 = vmatprep.subr.bf16.mxu0 0
    %1203 = vmatpush1.bf16.msra.mxu0 0
    %1204 = vmatprep.subr.bf16.mxu0 0
    %1205 = vmatpush1.bf16.msra.mxu0 0
    %1206 = vmatprep.subr.bf16.mxu0 0
    %1207 = vmatpush1.bf16.msra.mxu0 0
    %1208 = vmatprep.subr.bf16.mxu0 0
    %1209 = vmatpush1.bf16.msra.mxu0 0
    %1210 = vmatprep.subr.bf16.mxu0 0
    %1211 = vmatpush1.bf16.msra.mxu0 0
    %1212 = vmatprep.subr.bf16.mxu0 0
    %1213 = vmatpush1.bf16.msra.mxu0 0
    %1214 = vmatprep.subr.bf16.mxu0 0
    %1215 = vmatpush1.bf16.msra.mxu0 0
    %1216 = vmatprep.subr.bf16.mxu0 0
    %1217 = vmatpush1.bf16.msra.mxu0 0
    %1218 = vmatprep.subr.bf16.mxu0 0
    %1219 = vmatpush1.bf16.msra.mxu0 0
    %1220 = vmatprep.subr.bf16.mxu0 0
    %1221 = vmatpush1.bf16.msra.mxu0 0
    %1222 = vmatprep.subr.bf16.mxu0 0
    %1223 = vmatpush1.bf16.msra.mxu0 0
    %1224 = vmatprep.mubr.bf16.mxu0 0
    %1225 = vmatmul.mubr.bf16.gmra.mrb[0].mxu0 %v1140
    %v1226 = vpop.f32.mrb[0].mxu0
    %v1227 = vadd.f32 %v1190, %v1226
    %v1228 = vpop.f32.mrb[0].mxu0
    %v1229 = vpop.f32.mrb[0].mxu0
    %v1230 = vadd.f32 %v1190, %v1229
    %v1231 = vpop.f32.mrb[0].mxu0
    %1232 = vdwg.mxu0
    %v1233 = vpack.c.bf16 %v1126, %v1125
    %v1234 = vpack.c.bf16 %v1180, %v1177
    %v1236 = vsel %vm304, %v1233, 0
    %v1239 = vsel %vm304, %v1234, 0
    %1241 = vmatprep.subr.bf16.mxu0 0
    %1242 = vmatpush1.bf16.xpose.msra.mxu0 %v1239
    %1243 = vmatprep.subr.bf16.mxu0 0
    %1244 = vmatpush1.bf16.xpose.msra.mxu0 0
    %1245 = vmatprep.subr.bf16.mxu0 0
    %1246 = vmatpush1.bf16.xpose.msra.mxu0 0
    %1247 = vmatprep.subr.bf16.mxu0 0
    %1248 = vmatpush1.bf16.xpose.msra.mxu0 0
    %1249 = vmatprep.subr.bf16.mxu0 0
    %1250 = vmatpush1.bf16.xpose.msra.mxu0 0
    %1251 = vmatprep.subr.bf16.mxu0 0
    %1252 = vmatpush1.bf16.xpose.msra.mxu0 0
    %1253 = vmatprep.subr.bf16.mxu0 0
    %1254 = vmatpush1.bf16.xpose.msra.mxu0 0
    %1255 = vmatprep.subr.bf16.mxu0 0
    %1256 = vmatpush1.bf16.xpose.msra.mxu0 0
    %1257 = vmatprep.subr.bf16.mxu0 0
    %1258 = vmatpush1.bf16.xpose.msra.mxu0 0
    %1259 = vmatprep.subr.bf16.mxu0 0
    %1260 = vmatpush1.bf16.xpose.msra.mxu0 0
    %1261 = vmatprep.subr.bf16.mxu0 0
    %1262 = vmatpush1.bf16.xpose.msra.mxu0 0
    %1263 = vmatprep.subr.bf16.mxu0 0
    %1264 = vmatpush1.bf16.xpose.msra.mxu0 0
    %1265 = vmatprep.subr.bf16.mxu0 0
    %1266 = vmatpush1.bf16.xpose.msra.mxu0 0
    %1267 = vmatprep.subr.bf16.mxu0 0
    %1268 = vmatpush1.bf16.xpose.msra.mxu0 0
    %1269 = vmatprep.subr.bf16.mxu0 0
    %1270 = vmatpush1.bf16.xpose.msra.mxu0 0
    %1271 = vmatprep.subr.bf16.mxu0 0
    %1272 = vmatpush1.bf16.xpose.msra.mxu0 0
    %1273 = vmatprep.mubr.bf16.mxu0 0
    %1274 = vmatmul.mubr.bf16.gmra.mrb[0].mxu0 %v1236
    %v1275 = vpop.f32.mrb[0].mxu0
    %v1276 = vadd.f32 0.0, %v1275
    %v1277 = vpop.f32.mrb[0].mxu0
    %v1278 = vpop.f32.mrb[0].mxu0
    %v1279 = vadd.f32 0.0, %v1278
    %v1280 = vpop.f32.mrb[0].mxu0
    %1281 = vdwg.mxu0
    %v1282 = vmul.f32 %v1276, 0.35355338
    %v1283 = vmul.f32 %v1279, 0.35355338
    %v1284 = vadd.f32 %v1282, %v85
    %v1285 = vadd.f32 %v1283, %v86
    %v1286 = vsel %vm356, %v1284, -inf
    %1287 = vmax.xlane.f32.xlu0 %v1286
    %v1288 = vpop.xlane.xlu0 %1287
    %v1289 = vsel %vm356, %v1285, -inf
    %1290 = vmax.xlane.f32.xlu0 %v1289
    %v1291 = vpop.xlane.xlu0 %1290
    %v1292 = vsub.f32 %v1284, %v1288
    %v1293 = vsub.f32 %v1285, %v1291
    %v1294 = vmul.f32 %v1292, 1.442695
    %v1295 = vpow.pop %v1294
    %v1296 = vmul.f32 %v1293, 1.442695
    %v1297 = vpow.pop %v1296
    %v1298 = vsel %vm356, %v1295, 0.0
    %1299 = vadd.xlane.f32.xlu0 %v1298
    %v1300 = vpop.xlane.xlu0 %1299
    %v1301 = vsel %vm356, %v1297, 0.0
    %1302 = vadd.xlane.f32.xlu0 %v1301
    %v1303 = vpop.xlane.xlu0 %1302
    %v1304 = vrcp.pop %v1300
    %v1305 = vrcp.pop %v1303
    %v1306 = vmul.f32 %v1295, %v1304
    %v1307 = vmul.f32 %v1297, %v1305
    %v1308 = vpack.c.bf16 %v1307, %v1306
    %v1309 = vpack.c.bf16 %v1230, %v1227
    %v1311 = vsel %vm356, %v1308, 0
    %1313 = vmatprep.subr.bf16.mxu0 0
    %1314 = vmatpush1.bf16.msra.mxu0 %v1309
    %1315 = vmatprep.subr.bf16.mxu0 0
    %1316 = vmatpush1.bf16.msra.mxu0 0
    %1317 = vmatprep.subr.bf16.mxu0 0
    %1318 = vmatpush1.bf16.msra.mxu0 0
    %1319 = vmatprep.subr.bf16.mxu0 0
    %1320 = vmatpush1.bf16.msra.mxu0 0
    %1321 = vmatprep.subr.bf16.mxu0 0
    %1322 = vmatpush1.bf16.msra.mxu0 0
    %1323 = vmatprep.subr.bf16.mxu0 0
    %1324 = vmatpush1.bf16.msra.mxu0 0
    %1325 = vmatprep.subr.bf16.mxu0 0
    %1326 = vmatpush1.bf16.msra.mxu0 0
    %1327 = vmatprep.subr.bf16.mxu0 0
    %1328 = vmatpush1.bf16.msra.mxu0 0
    %1329 = vmatprep.subr.bf16.mxu0 0
    %1330 = vmatpush1.bf16.msra.mxu0 0
    %1331 = vmatprep.subr.bf16.mxu0 0
    %1332 = vmatpush1.bf16.msra.mxu0 0
    %1333 = vmatprep.subr.bf16.mxu0 0
    %1334 = vmatpush1.bf16.msra.mxu0 0
    %1335 = vmatprep.subr.bf16.mxu0 0
    %1336 = vmatpush1.bf16.msra.mxu0 0
    %1337 = vmatprep.subr.bf16.mxu0 0
    %1338 = vmatpush1.bf16.msra.mxu0 0
    %1339 = vmatprep.subr.bf16.mxu0 0
    %1340 = vmatpush1.bf16.msra.mxu0 0
    %1341 = vmatprep.subr.bf16.mxu0 0
    %1342 = vmatpush1.bf16.msra.mxu0 0
    %1343 = vmatprep.subr.bf16.mxu0 0
    %1344 = vmatpush1.bf16.msra.mxu0 0
    %1345 = vmatprep.mubr.bf16.mxu0 0
    %1346 = vmatmul.mubr.bf16.gmra.mrb[0].mxu0 %v1311
    %v1347 = vpop.f32.mrb[0].mxu0
    %v1348 = vadd.f32 0.0, %v1347
    %v1349 = vpop.f32.mrb[0].mxu0
    %v1350 = vpop.f32.mrb[0].mxu0
    %v1351 = vadd.f32 0.0, %v1350
    %v1352 = vpop.f32.mrb[0].mxu0
    %1353 = vdwg.mxu0
    %v1354 = vpack.c.bf16 %v1351, %v1348
    %v1355 = vpack.c.bf16 %v1065, %v1065
    %v1357 = vsel %vm304, %v1354, 0
    %v1360 = vsel %vm430, %v1355, 0
    %1362 = vmatprep.subr.bf16.mxu0 0
    %1363 = vmatpush1.bf16.msra.mxu0 %v1360
    %1364 = vmatprep.subr.bf16.mxu0 0
    %1365 = vmatpush1.bf16.msra.mxu0 0
    %1366 = vmatprep.subr.bf16.mxu0 0
    %1367 = vmatpush1.bf16.msra.mxu0 0
    %1368 = vmatprep.subr.bf16.mxu0 0
    %1369 = vmatpush1.bf16.msra.mxu0 0
    %1370 = vmatprep.subr.bf16.mxu0 0
    %1371 = vmatpush1.bf16.msra.mxu0 0
    %1372 = vmatprep.subr.bf16.mxu0 0
    %1373 = vmatpush1.bf16.msra.mxu0 0
    %1374 = vmatprep.subr.bf16.mxu0 0
    %1375 = vmatpush1.bf16.msra.mxu0 0
    %1376 = vmatprep.subr.bf16.mxu0 0
    %1377 = vmatpush1.bf16.msra.mxu0 0
    %1378 = vmatprep.subr.bf16.mxu0 0
    %1379 = vmatpush1.bf16.msra.mxu0 0
    %1380 = vmatprep.subr.bf16.mxu0 0
    %1381 = vmatpush1.bf16.msra.mxu0 0
    %1382 = vmatprep.subr.bf16.mxu0 0
    %1383 = vmatpush1.bf16.msra.mxu0 0
    %1384 = vmatprep.subr.bf16.mxu0 0
    %1385 = vmatpush1.bf16.msra.mxu0 0
    %1386 = vmatprep.subr.bf16.mxu0 0
    %1387 = vmatpush1.bf16.msra.mxu0 0
    %1388 = vmatprep.subr.bf16.mxu0 0
    %1389 = vmatpush1.bf16.msra.mxu0 0
    %1390 = vmatprep.subr.bf16.mxu0 0
    %1391 = vmatpush1.bf16.msra.mxu0 0
    %1392 = vmatprep.subr.bf16.mxu0 0
    %1393 = vmatpush1.bf16.msra.mxu0 0
    %1394 = vmatprep.mubr.bf16.mxu0 0
    %1395 = vmatmul.mubr.bf16.gmra.mrb[0].mxu0 %v1357
    %v1396 = vpop.f32.mrb[0].mxu0
    %v1397 = vadd.f32 0.0, %v1396
    %v1398 = vpop.f32.mrb[0].mxu0
    %v1399 = vpop.f32.mrb[0].mxu0
    %v1400 = vadd.f32 0.0, %v1399
    %v1401 = vpop.f32.mrb[0].mxu0
    %1402 = vdwg.mxu0
    %v1404 = vlaneseq
    %v1405 = vshrl.u32 %v1404, 7
    %v1406 = vsub.s32 0, %v1405
    %v1407 = vrot.slane %v1069, %v1406
    %v1409 = vadd.f32 %v1407, %v1397
    %v1410 = vadd.f32 %v1407, %v1400
    %1412 = vrot.lane.b32.xlu0 %v1233, 120
    %v1413 = vpop.permute.xlu0 %1412
    %1415 = vrot.lane.b32.xlu0 %v1234, 120
    %v1416 = vpop.permute.xlu0 %1415
    %v1418 = vsel %vm304, %v1413, 0
    %v1421 = vsel %vm304, %v1416, 0
    %1423 = vmatprep.subr.bf16.mxu0 0
    %1424 = vmatpush1.bf16.xpose.msra.mxu0 %v1421
    %1425 = vmatprep.subr.bf16.mxu0 0
    %1426 = vmatpush1.bf16.xpose.msra.mxu0 0
    %1427 = vmatprep.subr.bf16.mxu0 0
    %1428 = vmatpush1.bf16.xpose.msra.mxu0 0
    %1429 = vmatprep.subr.bf16.mxu0 0
    %1430 = vmatpush1.bf16.xpose.msra.mxu0 0
    %1431 = vmatprep.subr.bf16.mxu0 0
    %1432 = vmatpush1.bf16.xpose.msra.mxu0 0
    %1433 = vmatprep.subr.bf16.mxu0 0
    %1434 = vmatpush1.bf16.xpose.msra.mxu0 0
    %1435 = vmatprep.subr.bf16.mxu0 0
    %1436 = vmatpush1.bf16.xpose.msra.mxu0 0
    %1437 = vmatprep.subr.bf16.mxu0 0
    %1438 = vmatpush1.bf16.xpose.msra.mxu0 0
    %1439 = vmatprep.subr.bf16.mxu0 0
    %1440 = vmatpush1.bf16.xpose.msra.mxu0 0
    %1441 = vmatprep.subr.bf16.mxu0 0
    %1442 = vmatpush1.bf16.xpose.msra.mxu0 0
    %1443 = vmatprep.subr.bf16.mxu0 0
    %1444 = vmatpush1.bf16.xpose.msra.mxu0 0
    %1445 = vmatprep.subr.bf16.mxu0 0
    %1446 = vmatpush1.bf16.xpose.msra.mxu0 0
    %1447 = vmatprep.subr.bf16.mxu0 0
    %1448 = vmatpush1.bf16.xpose.msra.mxu0 0
    %1449 = vmatprep.subr.bf16.mxu0 0
    %1450 = vmatpush1.bf16.xpose.msra.mxu0 0
    %1451 = vmatprep.subr.bf16.mxu0 0
    %1452 = vmatpush1.bf16.xpose.msra.mxu0 0
    %1453 = vmatprep.subr.bf16.mxu0 0
    %1454 = vmatpush1.bf16.xpose.msra.mxu0 0
    %1455 = vmatprep.mubr.bf16.mxu0 0
    %1456 = vmatmul.mubr.bf16.gmra.mrb[0].mxu0 %v1418
    %v1457 = vpop.f32.mrb[0].mxu0
    %v1458 = vadd.f32 0.0, %v1457
    %v1459 = vpop.f32.mrb[0].mxu0
    %v1460 = vpop.f32.mrb[0].mxu0
    %v1461 = vadd.f32 0.0, %v1460
    %v1462 = vpop.f32.mrb[0].mxu0
    %1463 = vdwg.mxu0
    %v1464 = vmul.f32 %v1458, 0.35355338
    %v1465 = vmul.f32 %v1461, 0.35355338
    %v1466 = vadd.f32 %v1464, %v85
    %v1467 = vadd.f32 %v1465, %v86
    %v1468 = vsel %vm356, %v1466, -inf
    %1469 = vmax.xlane.f32.xlu0 %v1468
    %v1470 = vpop.xlane.xlu0 %1469
    %v1471 = vsel %vm356, %v1467, -inf
    %1472 = vmax.xlane.f32.xlu0 %v1471
    %v1473 = vpop.xlane.xlu0 %1472
    %v1474 = vsub.f32 %v1466, %v1470
    %v1475 = vsub.f32 %v1467, %v1473
    %v1476 = vmul.f32 %v1474, 1.442695
    %v1477 = vpow.pop %v1476
    %v1478 = vmul.f32 %v1475, 1.442695
    %v1479 = vpow.pop %v1478
    %v1480 = vsel %vm356, %v1477, 0.0
    %1481 = vadd.xlane.f32.xlu0 %v1480
    %v1482 = vpop.xlane.xlu0 %1481
    %v1483 = vsel %vm356, %v1479, 0.0
    %1484 = vadd.xlane.f32.xlu0 %v1483
    %v1485 = vpop.xlane.xlu0 %1484
    %v1486 = vrcp.pop %v1482
    %v1487 = vrcp.pop %v1485
    %v1488 = vmul.f32 %v1477, %v1486
    %v1489 = vmul.f32 %v1479, %v1487
    %v1490 = vpack.c.bf16 %v1489, %v1488
    %1492 = vrot.lane.b32.xlu0 %v1309, 120
    %v1493 = vpop.permute.xlu0 %1492
    %v1496 = vsel %vm356, %v1490, 0
    %1498 = vmatprep.subr.bf16.mxu0 0
    %1499 = vmatpush1.bf16.msra.mxu0 %v1493
    %1500 = vmatprep.subr.bf16.mxu0 0
    %1501 = vmatpush1.bf16.msra.mxu0 0
    %1502 = vmatprep.subr.bf16.mxu0 0
    %1503 = vmatpush1.bf16.msra.mxu0 0
    %1504 = vmatprep.subr.bf16.mxu0 0
    %1505 = vmatpush1.bf16.msra.mxu0 0
    %1506 = vmatprep.subr.bf16.mxu0 0
    %1507 = vmatpush1.bf16.msra.mxu0 0
    %1508 = vmatprep.subr.bf16.mxu0 0
    %1509 = vmatpush1.bf16.msra.mxu0 0
    %1510 = vmatprep.subr.bf16.mxu0 0
    %1511 = vmatpush1.bf16.msra.mxu0 0
    %1512 = vmatprep.subr.bf16.mxu0 0
    %1513 = vmatpush1.bf16.msra.mxu0 0
    %1514 = vmatprep.subr.bf16.mxu0 0
    %1515 = vmatpush1.bf16.msra.mxu0 0
    %1516 = vmatprep.subr.bf16.mxu0 0
    %1517 = vmatpush1.bf16.msra.mxu0 0
    %1518 = vmatprep.subr.bf16.mxu0 0
    %1519 = vmatpush1.bf16.msra.mxu0 0
    %1520 = vmatprep.subr.bf16.mxu0 0
    %1521 = vmatpush1.bf16.msra.mxu0 0
    %1522 = vmatprep.subr.bf16.mxu0 0
    %1523 = vmatpush1.bf16.msra.mxu0 0
    %1524 = vmatprep.subr.bf16.mxu0 0
    %1525 = vmatpush1.bf16.msra.mxu0 0
    %1526 = vmatprep.subr.bf16.mxu0 0
    %1527 = vmatpush1.bf16.msra.mxu0 0
    %1528 = vmatprep.subr.bf16.mxu0 0
    %1529 = vmatpush1.bf16.msra.mxu0 0
    %1530 = vmatprep.mubr.bf16.mxu0 0
    %1531 = vmatmul.mubr.bf16.gmra.mrb[0].mxu0 %v1496
    %v1532 = vpop.f32.mrb[0].mxu0
    %v1533 = vadd.f32 0.0, %v1532
    %v1534 = vpop.f32.mrb[0].mxu0
    %v1535 = vpop.f32.mrb[0].mxu0
    %v1536 = vadd.f32 0.0, %v1535
    %v1537 = vpop.f32.mrb[0].mxu0
    %1538 = vdwg.mxu0
    %v1539 = vpack.c.bf16 %v1536, %v1533
    %v1540 = vpack.c.bf16 %v1066, %v1066
    %v1542 = vsel %vm304, %v1539, 0
    %v1545 = vsel %vm430, %v1540, 0
    %1547 = vmatprep.subr.bf16.mxu0 0
    %1548 = vmatpush1.bf16.msra.mxu0 %v1545
    %1549 = vmatprep.subr.bf16.mxu0 0
    %1550 = vmatpush1.bf16.msra.mxu0 0
    %1551 = vmatprep.subr.bf16.mxu0 0
    %1552 = vmatpush1.bf16.msra.mxu0 0
    %1553 = vmatprep.subr.bf16.mxu0 0
    %1554 = vmatpush1.bf16.msra.mxu0 0
    %1555 = vmatprep.subr.bf16.mxu0 0
    %1556 = vmatpush1.bf16.msra.mxu0 0
    %1557 = vmatprep.subr.bf16.mxu0 0
    %1558 = vmatpush1.bf16.msra.mxu0 0
    %1559 = vmatprep.subr.bf16.mxu0 0
    %1560 = vmatpush1.bf16.msra.mxu0 0
    %1561 = vmatprep.subr.bf16.mxu0 0
    %1562 = vmatpush1.bf16.msra.mxu0 0
    %1563 = vmatprep.subr.bf16.mxu0 0
    %1564 = vmatpush1.bf16.msra.mxu0 0
    %1565 = vmatprep.subr.bf16.mxu0 0
    %1566 = vmatpush1.bf16.msra.mxu0 0
    %1567 = vmatprep.subr.bf16.mxu0 0
    %1568 = vmatpush1.bf16.msra.mxu0 0
    %1569 = vmatprep.subr.bf16.mxu0 0
    %1570 = vmatpush1.bf16.msra.mxu0 0
    %1571 = vmatprep.subr.bf16.mxu0 0
    %1572 = vmatpush1.bf16.msra.mxu0 0
    %1573 = vmatprep.subr.bf16.mxu0 0
    %1574 = vmatpush1.bf16.msra.mxu0 0
    %1575 = vmatprep.subr.bf16.mxu0 0
    %1576 = vmatpush1.bf16.msra.mxu0 0
    %1577 = vmatprep.subr.bf16.mxu0 0
    %1578 = vmatpush1.bf16.msra.mxu0 0
    %1579 = vmatprep.mubr.bf16.mxu0 0
    %1580 = vmatmul.mubr.bf16.gmra.mrb[0].mxu0 %v1542
    %v1581 = vpop.f32.mrb[0].mxu0
    %v1582 = vadd.f32 0.0, %v1581
    %v1583 = vpop.f32.mrb[0].mxu0
    %v1584 = vpop.f32.mrb[0].mxu0
    %v1585 = vadd.f32 0.0, %v1584
    %v1586 = vpop.f32.mrb[0].mxu0
    %1587 = vdwg.mxu0
    %v1588 = vadd.f32 %v1409, %v1582
    %v1589 = vadd.f32 %v1410, %v1585
    %1590 = vrot.lane.b32.xlu0 %v1233, 112
    %v1591 = vpop.permute.xlu0 %1590
    %1592 = vrot.lane.b32.xlu0 %v1234, 112
    %v1593 = vpop.permute.xlu0 %1592
    %v1595 = vsel %vm304, %v1591, 0
    %v1598 = vsel %vm304, %v1593, 0
    %1600 = vmatprep.subr.bf16.mxu0 0
    %1601 = vmatpush1.bf16.xpose.msra.mxu0 %v1598
    %1602 = vmatprep.subr.bf16.mxu0 0
    %1603 = vmatpush1.bf16.xpose.msra.mxu0 0
    %1604 = vmatprep.subr.bf16.mxu0 0
    %1605 = vmatpush1.bf16.xpose.msra.mxu0 0
    %1606 = vmatprep.subr.bf16.mxu0 0
    %1607 = vmatpush1.bf16.xpose.msra.mxu0 0
    %1608 = vmatprep.subr.bf16.mxu0 0
    %1609 = vmatpush1.bf16.xpose.msra.mxu0 0
    %1610 = vmatprep.subr.bf16.mxu0 0
    %1611 = vmatpush1.bf16.xpose.msra.mxu0 0
    %1612 = vmatprep.subr.bf16.mxu0 0
    %1613 = vmatpush1.bf16.xpose.msra.mxu0 0
    %1614 = vmatprep.subr.bf16.mxu0 0
    %1615 = vmatpush1.bf16.xpose.msra.mxu0 0
    %1616 = vmatprep.subr.bf16.mxu0 0
    %1617 = vmatpush1.bf16.xpose.msra.mxu0 0
    %1618 = vmatprep.subr.bf16.mxu0 0
    %1619 = vmatpush1.bf16.xpose.msra.mxu0 0
    %1620 = vmatprep.subr.bf16.mxu0 0
    %1621 = vmatpush1.bf16.xpose.msra.mxu0 0
    %1622 = vmatprep.subr.bf16.mxu0 0
    %1623 = vmatpush1.bf16.xpose.msra.mxu0 0
    %1624 = vmatprep.subr.bf16.mxu0 0
    %1625 = vmatpush1.bf16.xpose.msra.mxu0 0
    %1626 = vmatprep.subr.bf16.mxu0 0
    %1627 = vmatpush1.bf16.xpose.msra.mxu0 0
    %1628 = vmatprep.subr.bf16.mxu0 0
    %1629 = vmatpush1.bf16.xpose.msra.mxu0 0
    %1630 = vmatprep.subr.bf16.mxu0 0
    %1631 = vmatpush1.bf16.xpose.msra.mxu0 0
    %1632 = vmatprep.mubr.bf16.mxu0 0
    %1633 = vmatmul.mubr.bf16.gmra.mrb[0].mxu0 %v1595
    %v1634 = vpop.f32.mrb[0].mxu0
    %v1635 = vadd.f32 0.0, %v1634
    %v1636 = vpop.f32.mrb[0].mxu0
    %v1637 = vpop.f32.mrb[0].mxu0
    %v1638 = vadd.f32 0.0, %v1637
    %v1639 = vpop.f32.mrb[0].mxu0
    %1640 = vdwg.mxu0
    %v1641 = vmul.f32 %v1635, 0.35355338
    %v1642 = vmul.f32 %v1638, 0.35355338
    %v1643 = vadd.f32 %v1641, %v85
    %v1644 = vadd.f32 %v1642, %v86
    %v1645 = vsel %vm356, %v1643, -inf
    %1646 = vmax.xlane.f32.xlu0 %v1645
    %v1647 = vpop.xlane.xlu0 %1646
    %v1648 = vsel %vm356, %v1644, -inf
    %1649 = vmax.xlane.f32.xlu0 %v1648
    %v1650 = vpop.xlane.xlu0 %1649
    %v1651 = vsub.f32 %v1643, %v1647
    %v1652 = vsub.f32 %v1644, %v1650
    %v1653 = vmul.f32 %v1651, 1.442695
    %v1654 = vpow.pop %v1653
    %v1655 = vmul.f32 %v1652, 1.442695
    %v1656 = vpow.pop %v1655
    %v1657 = vsel %vm356, %v1654, 0.0
    %1658 = vadd.xlane.f32.xlu0 %v1657
    %v1659 = vpop.xlane.xlu0 %1658
    %v1660 = vsel %vm356, %v1656, 0.0
    %1661 = vadd.xlane.f32.xlu0 %v1660
    %v1662 = vpop.xlane.xlu0 %1661
    %v1663 = vrcp.pop %v1659
    %v1664 = vrcp.pop %v1662
    %v1665 = vmul.f32 %v1654, %v1663
    %v1666 = vmul.f32 %v1656, %v1664
    %v1667 = vpack.c.bf16 %v1666, %v1665
    %1668 = vrot.lane.b32.xlu0 %v1309, 112
    %v1669 = vpop.permute.xlu0 %1668
    %v1672 = vsel %vm356, %v1667, 0
    %1674 = vmatprep.subr.bf16.mxu0 0
    %1675 = vmatpush1.bf16.msra.mxu0 %v1669
    %1676 = vmatprep.subr.bf16.mxu0 0
    %1677 = vmatpush1.bf16.msra.mxu0 0
    %1678 = vmatprep.subr.bf16.mxu0 0
    %1679 = vmatpush1.bf16.msra.mxu0 0
    %1680 = vmatprep.subr.bf16.mxu0 0
    %1681 = vmatpush1.bf16.msra.mxu0 0
    %1682 = vmatprep.subr.bf16.mxu0 0
    %1683 = vmatpush1.bf16.msra.mxu0 0
    %1684 = vmatprep.subr.bf16.mxu0 0
    %1685 = vmatpush1.bf16.msra.mxu0 0
    %1686 = vmatprep.subr.bf16.mxu0 0
    %1687 = vmatpush1.bf16.msra.mxu0 0
    %1688 = vmatprep.subr.bf16.mxu0 0
    %1689 = vmatpush1.bf16.msra.mxu0 0
    %1690 = vmatprep.subr.bf16.mxu0 0
    %1691 = vmatpush1.bf16.msra.mxu0 0
    %1692 = vmatprep.subr.bf16.mxu0 0
    %1693 = vmatpush1.bf16.msra.mxu0 0
    %1694 = vmatprep.subr.bf16.mxu0 0
    %1695 = vmatpush1.bf16.msra.mxu0 0
    %1696 = vmatprep.subr.bf16.mxu0 0
    %1697 = vmatpush1.bf16.msra.mxu0 0
    %1698 = vmatprep.subr.bf16.mxu0 0
    %1699 = vmatpush1.bf16.msra.mxu0 0
    %1700 = vmatprep.subr.bf16.mxu0 0
    %1701 = vmatpush1.bf16.msra.mxu0 0
    %1702 = vmatprep.subr.bf16.mxu0 0
    %1703 = vmatpush1.bf16.msra.mxu0 0
    %1704 = vmatprep.subr.bf16.mxu0 0
    %1705 = vmatpush1.bf16.msra.mxu0 0
    %1706 = vmatprep.mubr.bf16.mxu0 0
    %1707 = vmatmul.mubr.bf16.gmra.mrb[0].mxu0 %v1672
    %v1708 = vpop.f32.mrb[0].mxu0
    %v1709 = vadd.f32 0.0, %v1708
    %v1710 = vpop.f32.mrb[0].mxu0
    %v1711 = vpop.f32.mrb[0].mxu0
    %v1712 = vadd.f32 0.0, %v1711
    %v1713 = vpop.f32.mrb[0].mxu0
    %1714 = vdwg.mxu0
    %v1715 = vpack.c.bf16 %v1712, %v1709
    %v1716 = vpack.c.bf16 %v1067, %v1067
    %v1718 = vsel %vm304, %v1715, 0
    %v1721 = vsel %vm430, %v1716, 0
    %1723 = vmatprep.subr.bf16.mxu0 0
    %1724 = vmatpush1.bf16.msra.mxu0 %v1721
    %1725 = vmatprep.subr.bf16.mxu0 0
    %1726 = vmatpush1.bf16.msra.mxu0 0
    %1727 = vmatprep.subr.bf16.mxu0 0
    %1728 = vmatpush1.bf16.msra.mxu0 0
    %1729 = vmatprep.subr.bf16.mxu0 0
    %1730 = vmatpush1.bf16.msra.mxu0 0
    %1731 = vmatprep.subr.bf16.mxu0 0
    %1732 = vmatpush1.bf16.msra.mxu0 0
    %1733 = vmatprep.subr.bf16.mxu0 0
    %1734 = vmatpush1.bf16.msra.mxu0 0
    %1735 = vmatprep.subr.bf16.mxu0 0
    %1736 = vmatpush1.bf16.msra.mxu0 0
    %1737 = vmatprep.subr.bf16.mxu0 0
    %1738 = vmatpush1.bf16.msra.mxu0 0
    %1739 = vmatprep.subr.bf16.mxu0 0
    %1740 = vmatpush1.bf16.msra.mxu0 0
    %1741 = vmatprep.subr.bf16.mxu0 0
    %1742 = vmatpush1.bf16.msra.mxu0 0
    %1743 = vmatprep.subr.bf16.mxu0 0
    %1744 = vmatpush1.bf16.msra.mxu0 0
    %1745 = vmatprep.subr.bf16.mxu0 0
    %1746 = vmatpush1.bf16.msra.mxu0 0
    %1747 = vmatprep.subr.bf16.mxu0 0
    %1748 = vmatpush1.bf16.msra.mxu0 0
    %1749 = vmatprep.subr.bf16.mxu0 0
    %1750 = vmatpush1.bf16.msra.mxu0 0
    %1751 = vmatprep.subr.bf16.mxu0 0
    %1752 = vmatpush1.bf16.msra.mxu0 0
    %1753 = vmatprep.subr.bf16.mxu0 0
    %1754 = vmatpush1.bf16.msra.mxu0 0
    %1755 = vmatprep.mubr.bf16.mxu0 0
    %1756 = vmatmul.mubr.bf16.gmra.mrb[0].mxu0 %v1718
    %v1757 = vpop.f32.mrb[0].mxu0
    %v1758 = vadd.f32 0.0, %v1757
    %v1759 = vpop.f32.mrb[0].mxu0
    %v1760 = vpop.f32.mrb[0].mxu0
    %v1761 = vadd.f32 0.0, %v1760
    %v1762 = vpop.f32.mrb[0].mxu0
    %1763 = vdwg.mxu0
    %v1764 = vadd.f32 %v1588, %v1758
    %v1765 = vadd.f32 %v1589, %v1761
    %1766 = vrot.lane.b32.xlu0 %v1233, 104
    %v1767 = vpop.permute.xlu0 %1766
    %1768 = vrot.lane.b32.xlu0 %v1234, 104
    %v1769 = vpop.permute.xlu0 %1768
    %v1771 = vsel %vm304, %v1767, 0
    %v1774 = vsel %vm304, %v1769, 0
    %1776 = vmatprep.subr.bf16.mxu0 0
    %1777 = vmatpush1.bf16.xpose.msra.mxu0 %v1774
    %1778 = vmatprep.subr.bf16.mxu0 0
    %1779 = vmatpush1.bf16.xpose.msra.mxu0 0
    %1780 = vmatprep.subr.bf16.mxu0 0
    %1781 = vmatpush1.bf16.xpose.msra.mxu0 0
    %1782 = vmatprep.subr.bf16.mxu0 0
    %1783 = vmatpush1.bf16.xpose.msra.mxu0 0
    %1784 = vmatprep.subr.bf16.mxu0 0
    %1785 = vmatpush1.bf16.xpose.msra.mxu0 0
    %1786 = vmatprep.subr.bf16.mxu0 0
    %1787 = vmatpush1.bf16.xpose.msra.mxu0 0
    %1788 = vmatprep.subr.bf16.mxu0 0
    %1789 = vmatpush1.bf16.xpose.msra.mxu0 0
    %1790 = vmatprep.subr.bf16.mxu0 0
    %1791 = vmatpush1.bf16.xpose.msra.mxu0 0
    %1792 = vmatprep.subr.bf16.mxu0 0
    %1793 = vmatpush1.bf16.xpose.msra.mxu0 0
    %1794 = vmatprep.subr.bf16.mxu0 0
    %1795 = vmatpush1.bf16.xpose.msra.mxu0 0
    %1796 = vmatprep.subr.bf16.mxu0 0
    %1797 = vmatpush1.bf16.xpose.msra.mxu0 0
    %1798 = vmatprep.subr.bf16.mxu0 0
    %1799 = vmatpush1.bf16.xpose.msra.mxu0 0
    %1800 = vmatprep.subr.bf16.mxu0 0
    %1801 = vmatpush1.bf16.xpose.msra.mxu0 0
    %1802 = vmatprep.subr.bf16.mxu0 0
    %1803 = vmatpush1.bf16.xpose.msra.mxu0 0
    %1804 = vmatprep.subr.bf16.mxu0 0
    %1805 = vmatpush1.bf16.xpose.msra.mxu0 0
    %1806 = vmatprep.subr.bf16.mxu0 0
    %1807 = vmatpush1.bf16.xpose.msra.mxu0 0
    %1808 = vmatprep.mubr.bf16.mxu0 0
    %1809 = vmatmul.mubr.bf16.gmra.mrb[0].mxu0 %v1771
    %v1810 = vpop.f32.mrb[0].mxu0
    %v1811 = vadd.f32 0.0, %v1810
    %v1812 = vpop.f32.mrb[0].mxu0
    %v1813 = vpop.f32.mrb[0].mxu0
    %v1814 = vadd.f32 0.0, %v1813
    %v1815 = vpop.f32.mrb[0].mxu0
    %1816 = vdwg.mxu0
    %v1817 = vmul.f32 %v1811, 0.35355338
    %v1818 = vmul.f32 %v1814, 0.35355338
    %v1819 = vadd.f32 %v1817, %v85
    %v1820 = vadd.f32 %v1818, %v86
    %v1821 = vsel %vm356, %v1819, -inf
    %1822 = vmax.xlane.f32.xlu0 %v1821
    %v1823 = vpop.xlane.xlu0 %1822
    %v1824 = vsel %vm356, %v1820, -inf
    %1825 = vmax.xlane.f32.xlu0 %v1824
    %v1826 = vpop.xlane.xlu0 %1825
    %v1827 = vsub.f32 %v1819, %v1823
    %v1828 = vsub.f32 %v1820, %v1826
    %v1829 = vmul.f32 %v1827, 1.442695
    %v1830 = vpow.pop %v1829
    %v1831 = vmul.f32 %v1828, 1.442695
    %v1832 = vpow.pop %v1831
    %v1833 = vsel %vm356, %v1830, 0.0
    %1834 = vadd.xlane.f32.xlu0 %v1833
    %v1835 = vpop.xlane.xlu0 %1834
    %v1836 = vsel %vm356, %v1832, 0.0
    %1837 = vadd.xlane.f32.xlu0 %v1836
    %v1838 = vpop.xlane.xlu0 %1837
    %v1839 = vrcp.pop %v1835
    %v1840 = vrcp.pop %v1838
    %v1841 = vmul.f32 %v1830, %v1839
    %v1842 = vmul.f32 %v1832, %v1840
    %v1843 = vpack.c.bf16 %v1842, %v1841
    %1844 = vrot.lane.b32.xlu0 %v1309, 104
    %v1845 = vpop.permute.xlu0 %1844
    %v1848 = vsel %vm356, %v1843, 0
    %1850 = vmatprep.subr.bf16.mxu0 0
    %1851 = vmatpush1.bf16.msra.mxu0 %v1845
    %1852 = vmatprep.subr.bf16.mxu0 0
    %1853 = vmatpush1.bf16.msra.mxu0 0
    %1854 = vmatprep.subr.bf16.mxu0 0
    %1855 = vmatpush1.bf16.msra.mxu0 0
    %1856 = vmatprep.subr.bf16.mxu0 0
    %1857 = vmatpush1.bf16.msra.mxu0 0
    %1858 = vmatprep.subr.bf16.mxu0 0
    %1859 = vmatpush1.bf16.msra.mxu0 0
    %1860 = vmatprep.subr.bf16.mxu0 0
    %1861 = vmatpush1.bf16.msra.mxu0 0
    %1862 = vmatprep.subr.bf16.mxu0 0
    %1863 = vmatpush1.bf16.msra.mxu0 0
    %1864 = vmatprep.subr.bf16.mxu0 0
    %1865 = vmatpush1.bf16.msra.mxu0 0
    %1866 = vmatprep.subr.bf16.mxu0 0
    %1867 = vmatpush1.bf16.msra.mxu0 0
    %1868 = vmatprep.subr.bf16.mxu0 0
    %1869 = vmatpush1.bf16.msra.mxu0 0
    %1870 = vmatprep.subr.bf16.mxu0 0
    %1871 = vmatpush1.bf16.msra.mxu0 0
    %1872 = vmatprep.subr.bf16.mxu0 0
    %1873 = vmatpush1.bf16.msra.mxu0 0
    %1874 = vmatprep.subr.bf16.mxu0 0
    %1875 = vmatpush1.bf16.msra.mxu0 0
    %1876 = vmatprep.subr.bf16.mxu0 0
    %1877 = vmatpush1.bf16.msra.mxu0 0
    %1878 = vmatprep.subr.bf16.mxu0 0
    %1879 = vmatpush1.bf16.msra.mxu0 0
    %1880 = vmatprep.subr.bf16.mxu0 0
    %1881 = vmatpush1.bf16.msra.mxu0 0
    %1882 = vmatprep.mubr.bf16.mxu0 0
    %1883 = vmatmul.mubr.bf16.gmra.mrb[0].mxu0 %v1848
    %v1884 = vpop.f32.mrb[0].mxu0
    %v1885 = vadd.f32 0.0, %v1884
    %v1886 = vpop.f32.mrb[0].mxu0
    %v1887 = vpop.f32.mrb[0].mxu0
    %v1888 = vadd.f32 0.0, %v1887
    %v1889 = vpop.f32.mrb[0].mxu0
    %1890 = vdwg.mxu0
    %v1891 = vpack.c.bf16 %v1888, %v1885
    %v1892 = vpack.c.bf16 %v1068, %v1068
    %v1894 = vsel %vm304, %v1891, 0
    %v1897 = vsel %vm430, %v1892, 0
    %1899 = vmatprep.subr.bf16.mxu0 0
    %1900 = vmatpush1.bf16.msra.mxu0 %v1897
    %1901 = vmatprep.subr.bf16.mxu0 0
    %1902 = vmatpush1.bf16.msra.mxu0 0
    %1903 = vmatprep.subr.bf16.mxu0 0
    %1904 = vmatpush1.bf16.msra.mxu0 0
    %1905 = vmatprep.subr.bf16.mxu0 0
    %1906 = vmatpush1.bf16.msra.mxu0 0
    %1907 = vmatprep.subr.bf16.mxu0 0
    %1908 = vmatpush1.bf16.msra.mxu0 0
    %1909 = vmatprep.subr.bf16.mxu0 0
    %1910 = vmatpush1.bf16.msra.mxu0 0
    %1911 = vmatprep.subr.bf16.mxu0 0
    %1912 = vmatpush1.bf16.msra.mxu0 0
    %1913 = vmatprep.subr.bf16.mxu0 0
    %1914 = vmatpush1.bf16.msra.mxu0 0
    %1915 = vmatprep.subr.bf16.mxu0 0
    %1916 = vmatpush1.bf16.msra.mxu0 0
    %1917 = vmatprep.subr.bf16.mxu0 0
    %1918 = vmatpush1.bf16.msra.mxu0 0
    %1919 = vmatprep.subr.bf16.mxu0 0
    %1920 = vmatpush1.bf16.msra.mxu0 0
    %1921 = vmatprep.subr.bf16.mxu0 0
    %1922 = vmatpush1.bf16.msra.mxu0 0
    %1923 = vmatprep.subr.bf16.mxu0 0
    %1924 = vmatpush1.bf16.msra.mxu0 0
    %1925 = vmatprep.subr.bf16.mxu0 0
    %1926 = vmatpush1.bf16.msra.mxu0 0
    %1927 = vmatprep.subr.bf16.mxu0 0
    %1928 = vmatpush1.bf16.msra.mxu0 0
    %1929 = vmatprep.subr.bf16.mxu0 0
    %1930 = vmatpush1.bf16.msra.mxu0 0
    %1931 = vmatprep.mubr.bf16.mxu0 0
    %1932 = vmatmul.mubr.bf16.gmra.mrb[0].mxu0 %v1894
    %v1933 = vpop.f32.mrb[0].mxu0
    %v1934 = vadd.f32 0.0, %v1933
    %v1935 = vpop.f32.mrb[0].mxu0
    %v1936 = vpop.f32.mrb[0].mxu0
    %v1937 = vadd.f32 0.0, %v1936
    %v1938 = vpop.f32.mrb[0].mxu0
    %1939 = vdwg.mxu0
    %v1940 = vadd.f32 %v1764, %v1934
    %v1941 = vadd.f32 %v1765, %v1937
    %v1942 = vadd.f32 %v1014, %v1940
    %v1943 = vadd.f32 %v1015, %v1941
    %v1944 = vld [vmem:[%s15] sm:$0x1]
    %v1945 = vld [vmem:[%s16] sm:$0x1]
    %v1946 = vsel %vm89, %v1942, 0.0
    %1947 = vadd.xlane.f32.xlu0 %v1946
    %v1948 = vpop.xlane.xlu0 %1947
    %v1949 = vsel %vm89, %v1943, 0.0
    %1950 = vadd.xlane.f32.xlu0 %v1949
    %v1951 = vpop.xlane.xlu0 %1950
    %v1952 = vmul.f32 %v1948, %v96
    %v1953 = vmul.f32 %v1951, %v96
    %v1954 = vsub.f32 %v1942, %v1952
    %v1955 = vsub.f32 %v1943, %v1953
    %v1956 = vmul.f32 %v1954, %v1954
    %v1957 = vmul.f32 %v1955, %v1955
    %v1958 = vsel %vm89, %v1956, 0.0
    %1959 = vadd.xlane.f32.xlu0 %v1958
    %v1960 = vpop.xlane.xlu0 %1959
    %v1961 = vsel %vm89, %v1957, 0.0
    %1962 = vadd.xlane.f32.xlu0 %v1961
    %v1963 = vpop.xlane.xlu0 %1962
    %v1964 = vmul.f32 %v1960, %v96
    %v1965 = vmul.f32 %v1963, %v96
    %v1966 = vadd.f32 %v1964, 1e-05
    %v1967 = vadd.f32 %v1965, 1e-05
    %v1968 = vrsqrt.pop %v1966
    %v1969 = vrsqrt.pop %v1967
    %v1970 = vmul.f32 %v1954, %v1968
    %v1971 = vmul.f32 %v1955, %v1969
    %v1973 = vlaneseq
    %v1974 = vshrl.u32 %v1973, 7
    %v1975 = vsub.s32 0, %v1974
    %v1976 = vrot.slane %v1944, %v1975
    %v1978 = vmul.f32 %v1970, %v1976
    %v1979 = vmul.f32 %v1971, %v1976
    %v1981 = vlaneseq
    %v1982 = vshrl.u32 %v1981, 7
    %v1983 = vsub.s32 0, %v1982
    %v1984 = vrot.slane %v1945, %v1983
    %v1986 = vadd.f32 %v1978, %v1984
    %v1987 = vadd.f32 %v1979, %v1984
    %v1988 = vld [vmem:[%s17] sm:$0xff]
    %v1989 = vld [vmem:[%s17 + $0x8] sm:$0xff]
    %v1990 = vld [vmem:[%s17 + $0x10] sm:$0xff]
    %v1991 = vld [vmem:[%s17 + $0x18] sm:$0xff]
    %v1992 = vld [vmem:[%s18] sm:$0x1]
    %v1993 = vld [vmem:[%s19] sm:$0xff]
    %v1994 = vld [vmem:[%s19 + $0x8] sm:$0xff]
    %v1995 = vld [vmem:[%s19 + $0x10] sm:$0xff]
    %v1996 = vld [vmem:[%s19 + $0x18] sm:$0xff]
    %v1997 = vld [vmem:[%s19 + $0x20] sm:$0xff]
    %v1998 = vld [vmem:[%s19 + $0x28] sm:$0xff]
    %v1999 = vld [vmem:[%s19 + $0x30] sm:$0xff]
    %v2000 = vld [vmem:[%s19 + $0x38] sm:$0xff]
    %v2001 = vld [vmem:[%s19 + $0x40] sm:$0xff]
    %v2002 = vld [vmem:[%s19 + $0x48] sm:$0xff]
    %v2003 = vld [vmem:[%s19 + $0x50] sm:$0xff]
    %v2004 = vld [vmem:[%s19 + $0x58] sm:$0xff]
    %v2005 = vld [vmem:[%s19 + $0x60] sm:$0xff]
    %v2006 = vld [vmem:[%s19 + $0x68] sm:$0xff]
    %v2007 = vld [vmem:[%s19 + $0x70] sm:$0xff]
    %v2008 = vld [vmem:[%s19 + $0x78] sm:$0xff]
    %v2009 = vld [vmem:[%s20] sm:$0x1]
    %v2010 = vpack.c.bf16 %v1987, %v1986
    %v2011 = vpack.c.bf16 %v1989, %v1988
    %v2012 = vpack.c.bf16 %v1991, %v1990
    %v2014 = vlaneseq
    %v2015 = vshrl.u32 %v2014, 7
    %v2016 = vsub.s32 0, %v2015
    %v2017 = vrot.slane %v1992, %v2016
    %v2020 = vsel %vm89, %v2010, 0
    %2022 = vmatprep.subr.bf16.mxu0 0
    %2023 = vmatpush1.bf16.msra.mxu0 %v2011
    %2024 = vmatprep.subr.bf16.mxu0 0
    %2025 = vmatpush1.bf16.msra.mxu0 %v2012
    %2026 = vmatprep.subr.bf16.mxu0 0
    %2027 = vmatpush1.bf16.msra.mxu0 0
    %2028 = vmatprep.subr.bf16.mxu0 0
    %2029 = vmatpush1.bf16.msra.mxu0 0
    %2030 = vmatprep.subr.bf16.mxu0 0
    %2031 = vmatpush1.bf16.msra.mxu0 0
    %2032 = vmatprep.subr.bf16.mxu0 0
    %2033 = vmatpush1.bf16.msra.mxu0 0
    %2034 = vmatprep.subr.bf16.mxu0 0
    %2035 = vmatpush1.bf16.msra.mxu0 0
    %2036 = vmatprep.subr.bf16.mxu0 0
    %2037 = vmatpush1.bf16.msra.mxu0 0
    %2038 = vmatprep.subr.bf16.mxu0 0
    %2039 = vmatpush1.bf16.msra.mxu0 0
    %2040 = vmatprep.subr.bf16.mxu0 0
    %2041 = vmatpush1.bf16.msra.mxu0 0
    %2042 = vmatprep.subr.bf16.mxu0 0
    %2043 = vmatpush1.bf16.msra.mxu0 0
    %2044 = vmatprep.subr.bf16.mxu0 0
    %2045 = vmatpush1.bf16.msra.mxu0 0
    %2046 = vmatprep.subr.bf16.mxu0 0
    %2047 = vmatpush1.bf16.msra.mxu0 0
    %2048 = vmatprep.subr.bf16.mxu0 0
    %2049 = vmatpush1.bf16.msra.mxu0 0
    %2050 = vmatprep.subr.bf16.mxu0 0
    %2051 = vmatpush1.bf16.msra.mxu0 0
    %2052 = vmatprep.subr.bf16.mxu0 0
    %2053 = vmatpush1.bf16.msra.mxu0 0
    %2054 = vmatprep.mubr.bf16.mxu0 0
    %2055 = vmatmul.mubr.bf16.gmra.mrb[0].mxu0 %v2020
    %v2056 = vpop.f32.mrb[0].mxu0
    %v2057 = vadd.f32 %v2017, %v2056
    %v2058 = vpop.f32.mrb[0].mxu0
    %v2059 = vpop.f32.mrb[0].mxu0
    %v2060 = vadd.f32 %v2017, %v2059
    %v2061 = vpop.f32.mrb[0].mxu0
    %2062 = vdwg.mxu0
    %v2063 = vmax.f32 %v2057, 0.0
    %v2064 = vmax.f32 %v2060, 0.0
    %v2065 = vpack.c.bf16 %v2064, %v2063
    %v2066 = vpack.c.bf16 %v1994, %v1993
    %v2067 = vpack.c.bf16 %v1996, %v1995
    %v2068 = vpack.c.bf16 %v1998, %v1997
    %v2069 = vpack.c.bf16 %v2000, %v1999
    %v2070 = vpack.c.bf16 %v2002, %v2001
    %v2071 = vpack.c.bf16 %v2004, %v2003
    %v2072 = vpack.c.bf16 %v2006, %v2005
    %v2073 = vpack.c.bf16 %v2008, %v2007
    %v2075 = vlaneseq
    %v2076 = vshrl.u32 %v2075, 7
    %v2077 = vsub.s32 0, %v2076
    %v2078 = vrot.slane %v2009, %v2077
    %2080 = vmatprep.subr.bf16.mxu0 0
    %2081 = vmatpush1.bf16.msra.mxu0 %v2066
    %2082 = vmatprep.subr.bf16.mxu0 0
    %2083 = vmatpush1.bf16.msra.mxu0 %v2067
    %2084 = vmatprep.subr.bf16.mxu0 0
    %2085 = vmatpush1.bf16.msra.mxu0 %v2068
    %2086 = vmatprep.subr.bf16.mxu0 0
    %2087 = vmatpush1.bf16.msra.mxu0 %v2069
    %2088 = vmatprep.subr.bf16.mxu0 0
    %2089 = vmatpush1.bf16.msra.mxu0 %v2070
    %2090 = vmatprep.subr.bf16.mxu0 0
    %2091 = vmatpush1.bf16.msra.mxu0 %v2071
    %2092 = vmatprep.subr.bf16.mxu0 0
    %2093 = vmatpush1.bf16.msra.mxu0 %v2072
    %2094 = vmatprep.subr.bf16.mxu0 0
    %2095 = vmatpush1.bf16.msra.mxu0 %v2073
    %2096 = vmatprep.subr.bf16.mxu0 0
    %2097 = vmatpush1.bf16.msra.mxu0 0
    %2098 = vmatprep.subr.bf16.mxu0 0
    %2099 = vmatpush1.bf16.msra.mxu0 0
    %2100 = vmatprep.subr.bf16.mxu0 0
    %2101 = vmatpush1.bf16.msra.mxu0 0
    %2102 = vmatprep.subr.bf16.mxu0 0
    %2103 = vmatpush1.bf16.msra.mxu0 0
    %2104 = vmatprep.subr.bf16.mxu0 0
    %2105 = vmatpush1.bf16.msra.mxu0 0
    %2106 = vmatprep.subr.bf16.mxu0 0
    %2107 = vmatpush1.bf16.msra.mxu0 0
    %2108 = vmatprep.subr.bf16.mxu0 0
    %2109 = vmatpush1.bf16.msra.mxu0 0
    %2110 = vmatprep.subr.bf16.mxu0 0
    %2111 = vmatpush1.bf16.msra.mxu0 0
    %2112 = vmatprep.mubr.bf16.mxu0 0
    %2113 = vmatmul.mubr.bf16.gmra.mrb[0].mxu0 %v2065
    %v2114 = vpop.f32.mrb[0].mxu0
    %v2115 = vadd.f32 %v2078, %v2114
    %v2116 = vpop.f32.mrb[0].mxu0
    %v2117 = vpop.f32.mrb[0].mxu0
    %v2118 = vadd.f32 %v2078, %v2117
    %v2119 = vpop.f32.mrb[0].mxu0
    %2120 = vdwg.mxu0
    %v2121 = vadd.f32 %v1942, %v2115
    %v2122 = vadd.f32 %v1943, %v2118
    %2123 = vst.msk [vmem:[%s24] sm:$0xff] %vm89, %v2121
    %2124 = vst.msk [vmem:[%s24 + $0x8] sm:$0xff] %vm89, %v2122
    %v2125 = vld [vmem:[%s21] sm:$0x3]
    %v2127 = vsel %vm356, %v2125, 0
    %2129 = vmatprep.subr.mxu0 0.0
    %2130 = vmatpush1.msra.mxu0 %v2121
    %2131 = vmatprep.subr.mxu0 0.0
    %2132 = vmatpush1.msra.mxu0 %v2122
    %2133 = vmatprep.subr.mxu0 0.0
    %2134 = vmatpush1.msra.mxu0 0.0
    %2135 = vmatprep.subr.mxu0 0.0
    %2136 = vmatpush1.msra.mxu0 0.0
    %2137 = vmatprep.subr.mxu0 0.0
    %2138 = vmatpush1.msra.mxu0 0.0
    %2139 = vmatprep.subr.mxu0 0.0
    %2140 = vmatpush1.msra.mxu0 0.0
    %2141 = vmatprep.subr.mxu0 0.0
    %2142 = vmatpush1.msra.mxu0 0.0
    %2143 = vmatprep.subr.mxu0 0.0
    %2144 = vmatpush1.msra.mxu0 0.0
    %2145 = vmatprep.subr.mxu0 0.0
    %2146 = vmatpush1.msra.mxu0 0.0
    %2147 = vmatprep.subr.mxu0 0.0
    %2148 = vmatpush1.msra.mxu0 0.0
    %2149 = vmatprep.subr.mxu0 0.0
    %2150 = vmatpush1.msra.mxu0 0.0
    %2151 = vmatprep.subr.mxu0 0.0
    %2152 = vmatpush1.msra.mxu0 0.0
    %2153 = vmatprep.subr.mxu0 0.0
    %2154 = vmatpush1.msra.mxu0 0.0
    %2155 = vmatprep.subr.mxu0 0.0
    %2156 = vmatpush1.msra.mxu0 0.0
    %2157 = vmatprep.subr.mxu0 0.0
    %2158 = vmatpush1.msra.mxu0 0.0
    %2159 = vmatprep.subr.mxu0 0.0
    %2160 = vmatpush1.msra.mxu0 0.0
    %2161 = vmatprep.subr.mxu0 0.0
    %2162 = vmatpush1.msra.mxu0 0.0
    %2163 = vmatprep.subr.mxu0 0.0
    %2164 = vmatpush1.msra.mxu0 0.0
    %2165 = vmatprep.subr.mxu0 0.0
    %2166 = vmatpush1.msra.mxu0 0.0
    %2167 = vmatprep.subr.mxu0 0.0
    %2168 = vmatpush1.msra.mxu0 0.0
    %2169 = vmatprep.subr.mxu0 0.0
    %2170 = vmatpush1.msra.mxu0 0.0
    %2171 = vmatprep.subr.mxu0 0.0
    %2172 = vmatpush1.msra.mxu0 0.0
    %2173 = vmatprep.subr.mxu0 0.0
    %2174 = vmatpush1.msra.mxu0 0.0
    %2175 = vmatprep.subr.mxu0 0.0
    %2176 = vmatpush1.msra.mxu0 0.0
    %2177 = vmatprep.subr.mxu0 0.0
    %2178 = vmatpush1.msra.mxu0 0.0
    %2179 = vmatprep.subr.mxu0 0.0
    %2180 = vmatpush1.msra.mxu0 0.0
    %2181 = vmatprep.subr.mxu0 0.0
    %2182 = vmatpush1.msra.mxu0 0.0
    %2183 = vmatprep.subr.mxu0 0.0
    %2184 = vmatpush1.msra.mxu0 0.0
    %2185 = vmatprep.subr.mxu0 0.0
    %2186 = vmatpush1.msra.mxu0 0.0
    %2187 = vmatprep.subr.mxu0 0.0
    %2188 = vmatpush1.msra.mxu0 0.0
    %2189 = vmatprep.subr.mxu0 0.0
    %2190 = vmatpush1.msra.mxu0 0.0
    %2191 = vmatprep.subr.mxu0 0.0
    %2192 = vmatpush1.msra.mxu0 0.0
    %2193 = vmatprep.mubr.f32.mxu0 0.0
    %2194 = vmatmul.mubr.f32.gmra.mrb[0].mxu0 %v2127
    %v2195 = vpop.f32.mrb[0].mxu0
    %v2196 = vadd.f32 0.0, %v2195
    %v2197 = vpop.f32.mrb[0].mxu0
    %2198 = vdwg.mxu0
    %v2199 = vld [vmem:[%s22] sm:$0xff]
    %v2200 = vld [vmem:[%s22 + $0x8] sm:$0xff]
    %v2201 = vld [vmem:[%s22 + $0x10] sm:$0xff]
    %v2202 = vld [vmem:[%s22 + $0x18] sm:$0xff]
    %v2203 = vld [vmem:[%s23] sm:$0x1]
    %v2205 = vlaneseq
    %v2206 = vshrl.u32 %v2205, 7
    %v2207 = vsub.s32 0, %v2206
    %v2208 = vrot.slane %v2203, %v2207
    %v2211 = vsel %vm89, %v2196, 0
    %2213 = vmatprep.subr.mxu0 0.0
    %2214 = vmatpush1.msra.mxu0 %v2199
    %2215 = vmatprep.subr.mxu0 0.0
    %2216 = vmatpush1.msra.mxu0 %v2200
    %2217 = vmatprep.subr.mxu0 0.0
    %2218 = vmatpush1.msra.mxu0 %v2201
    %2219 = vmatprep.subr.mxu0 0.0
    %2220 = vmatpush1.msra.mxu0 %v2202
    %2221 = vmatprep.subr.mxu0 0.0
    %2222 = vmatpush1.msra.mxu0 0.0
    %2223 = vmatprep.subr.mxu0 0.0
    %2224 = vmatpush1.msra.mxu0 0.0
    %2225 = vmatprep.subr.mxu0 0.0
    %2226 = vmatpush1.msra.mxu0 0.0
    %2227 = vmatprep.subr.mxu0 0.0
    %2228 = vmatpush1.msra.mxu0 0.0
    %2229 = vmatprep.subr.mxu0 0.0
    %2230 = vmatpush1.msra.mxu0 0.0
    %2231 = vmatprep.subr.mxu0 0.0
    %2232 = vmatpush1.msra.mxu0 0.0
    %2233 = vmatprep.subr.mxu0 0.0
    %2234 = vmatpush1.msra.mxu0 0.0
    %2235 = vmatprep.subr.mxu0 0.0
    %2236 = vmatpush1.msra.mxu0 0.0
    %2237 = vmatprep.subr.mxu0 0.0
    %2238 = vmatpush1.msra.mxu0 0.0
    %2239 = vmatprep.subr.mxu0 0.0
    %2240 = vmatpush1.msra.mxu0 0.0
    %2241 = vmatprep.subr.mxu0 0.0
    %2242 = vmatpush1.msra.mxu0 0.0
    %2243 = vmatprep.subr.mxu0 0.0
    %2244 = vmatpush1.msra.mxu0 0.0
    %2245 = vmatprep.subr.mxu0 0.0
    %2246 = vmatpush1.msra.mxu0 0.0
    %2247 = vmatprep.subr.mxu0 0.0
    %2248 = vmatpush1.msra.mxu0 0.0
    %2249 = vmatprep.subr.mxu0 0.0
    %2250 = vmatpush1.msra.mxu0 0.0
    %2251 = vmatprep.subr.mxu0 0.0
    %2252 = vmatpush1.msra.mxu0 0.0
    %2253 = vmatprep.subr.mxu0 0.0
    %2254 = vmatpush1.msra.mxu0 0.0
    %2255 = vmatprep.subr.mxu0 0.0
    %2256 = vmatpush1.msra.mxu0 0.0
    %2257 = vmatprep.subr.mxu0 0.0
    %2258 = vmatpush1.msra.mxu0 0.0
    %2259 = vmatprep.subr.mxu0 0.0
    %2260 = vmatpush1.msra.mxu0 0.0
    %2261 = vmatprep.subr.mxu0 0.0
    %2262 = vmatpush1.msra.mxu0 0.0
    %2263 = vmatprep.subr.mxu0 0.0
    %2264 = vmatpush1.msra.mxu0 0.0
    %2265 = vmatprep.subr.mxu0 0.0
    %2266 = vmatpush1.msra.mxu0 0.0
    %2267 = vmatprep.subr.mxu0 0.0
    %2268 = vmatpush1.msra.mxu0 0.0
    %2269 = vmatprep.subr.mxu0 0.0
    %2270 = vmatpush1.msra.mxu0 0.0
    %2271 = vmatprep.subr.mxu0 0.0
    %2272 = vmatpush1.msra.mxu0 0.0
    %2273 = vmatprep.subr.mxu0 0.0
    %2274 = vmatpush1.msra.mxu0 0.0
    %2275 = vmatprep.subr.mxu0 0.0
    %2276 = vmatpush1.msra.mxu0 0.0
    %2277 = vmatprep.mubr.f32.mxu0 0.0
    %2278 = vmatmul.mubr.f32.gmra.mrb[0].mxu0 %v2211
    %v2279 = vpop.f32.mrb[0].mxu0
    %v2280 = vadd.f32 %v2208, %v2279
    %v2281 = vpop.f32.mrb[0].mxu0
    %2282 = vdwg.mxu0
    %vm2283 = vcmask 9216
    %v2284 = vsel %vm2283, %v2280, -inf
    %2285 = vmax.xlane.f32.xlu0 %v2284
    %v2286 = vpop.xlane.xlu0 %2285
    %v2287 = vsub.f32 %v2280, %v2286
    %v2288 = vmul.f32 %v2287, 1.442695
    %v2289 = vpow.pop %v2288
    %v2290 = vsel %vm2283, %v2289, 0.0
    %2291 = vadd.xlane.f32.xlu0 %v2290
    %v2292 = vpop.xlane.xlu0 %2291
    %v2293 = vrcp.pop %v2292
    %v2294 = vmul.f32 %v2289, %v2293
    %2295 = vst.msk [vmem:[#allocation2] sm:$0x3] %vm2283, %v2294
    // Predicated region
    $region98: #{transformer_forward.6} parent=1 // pred_check
      _
    $region99: #{transformer_forward.6} parent=1 // pred_check_branch
      %2297 = sbr.rel (0) target = $region101
    $region100: #{transformer_forward.6} parent=1 // pred_region
      _
    $region101: #{transformer_forward.6} parent=1 // pred_fallthru
      _
    // Predicated region
    $region102: #{transformer_forward.6} parent=1 // pred_check
      _
    $region103: #{transformer_forward.6} parent=1 // pred_check_branch
      %2299 = sbr.rel (0) target = $region105
    $region104: #{transformer_forward.6} parent=1 // pred_region
      %s2301 = ssub.s32 32, 32
      %2302 = vsyncadd [#allocation3], %s2301
      %s2304 = sshll.u32 [#allocation2], 4
      %s2305 = int_to_ptr.vmem [resolvable:$true] %s2304
      %2307 = dma.vmem_to_hbm [thread:$0]  %s2305, 32, %s25, [#allocation3]
    $region105: #{transformer_forward.6} parent=1 // pred_fallthru
      _
    // Predicated region
    $region106: #{transformer_forward.6} parent=1 // pred_check
      _
    $region107: #{transformer_forward.6} parent=1 // pred_check_branch
      %2309 = sbr.rel (0) target = $region109
    $region108: #{transformer_forward.6} parent=1 // pred_region
      _
    $region109: #{transformer_forward.6} parent=1 // pred_fallthru
      _
    // Predicated region
    $region110: #{transformer_forward.6} parent=1 // pred_check
      _
    $region111: #{transformer_forward.6} parent=1 // pred_check_branch
      %2311 = sbr.rel (0) target = $region113
    $region112: #{transformer_forward.6} parent=1 // pred_region
      %2312 = dma.done [#allocation3], 32
    $region113: #{transformer_forward.6} parent=1 // pred_fallthru
      _
    %2313 = vsyncpa [#allocation3], 1

</llo_original>
